<compile_context>
chip_gen: v6e
topology: v6e:2x2x1
jax: 0.10.0
libtpu: 0.0.40
codegen_flags: <defaults>
</compile_context>

<pallas_src>
import functools

import jax
import jax.numpy as jnp
from jax import lax
from jax.experimental import pallas as pl
from jax.experimental.pallas import tpu as pltpu

EPS = 1e-5
K = 3            # conv kernel size
LANES = 128
SUBLANES = 8

# MXU operand dtype.  bf16 operands + f32 accumulation ~doubles MXU throughput on
# v6e/v7x (more on v5e); set to jnp.float32 for bit-tighter (<1e-3) agreement.
MATMUL_DTYPE = jnp.bfloat16


def _round_up(x, m):
    return (x + m - 1) // m * m


def _conv_stats_kernel(src_ref, w_ref, s_ref, t_ref, a_ref,
                       z_ref, stats_ref, y_scr,
                       *, hp, wpp, h, w, g, cp, apply_act):
    """Per-image: (optional BN-apply + PReLU) -> 3x3 conv -> partial BN stats.

    src_ref : (rg, cp) f32  guard-banded flattened image slab (rg = hp*wpp + 2g)
    w_ref   : (9, cp, cp)   conv weights, tap-major, MATMUL_DTYPE
    s/t/a   : (1, cp) f32   BN scale / BN shift / PReLU slope (used iff apply_act)
    z_ref   : (rg, cp) f32  conv output, guard bands written as zeros
    stats   : (2, cp) f32   [masked sum; masked sum of squares] over interior rows
    y_scr   : (rg, cp) f32  scratch for the activated conv-2 input (apply_act only)
    """
    rp = hp * wpp

    # Interior mask over the slab rows: True exactly on real (h, w) positions,
    # False on halo / W-alignment padding rows.  Built in-kernel from iotas
    # (review: no mask input, no mask DMA).  The reshape only merges the two
    # leading dims (wpp % 8 == 0, lane dim untouched) so it is layout-preserving.
    row = lax.broadcasted_iota(jnp.int32, (rp, cp), 0)                     # flat row
    col = lax.broadcasted_iota(jnp.int32, (hp, wpp, cp), 1).reshape(rp, cp)  # w index
    interior = ((row >= wpp) & (row < (h + 1) * wpp)
                & (col >= 1) & (col <= w))

    if apply_act:
        # BN1 (precomputed scale/shift) + PReLU on the previous conv output, then
        # zero every non-interior row so conv2 sees SAME zero padding.  Result is
        # staged in a guard-banded scratch so the conv can do offset tap reads.
        y = src_ref[pl.ds(g, rp), :] * s_ref[...] + t_ref[...]
        y = jnp.where(y > 0, y, a_ref[...] * y)
        y = jnp.where(interior, y, 0.0)
        zeros_g = jnp.zeros((g, cp), jnp.float32)
        y_scr[pl.ds(0, g), :] = zeros_g
        y_scr[pl.ds(g + rp, g), :] = zeros_g
        y_scr[pl.ds(g, rp), :] = y
        lhs_ref = y_scr
    else:
        # conv1: the input slab is already zero on halo / pad / guard rows, so it
        # is used as the conv LHS directly (no copy, scratch unused).
        lhs_ref = src_ref

    # 3x3 conv = 9 shifted-LHS MXU matmuls with f32 accumulation.  The spatial
    # shift is applied on the INPUT side via offset reads from the guard-banded
    # ref (review: no 9x-wide output scratch).  Operands are cast to bf16 for the
    # MXU; accumulation and all VPU math stay f32.
    acc = None
    for dh in range(K):
        for dw in range(K):
            shift = (dh - 1) * wpp + (dw - 1)
            lhs = lhs_ref[pl.ds(g + shift, rp), :].astype(MATMUL_DTYPE)
            part = jnp.dot(lhs, w_ref[dh * K + dw],
                           preferred_element_type=jnp.float32)
            acc = part if acc is None else acc + part

    # Per-image partial BatchNorm statistics over interior rows (single-pass
    # sum / sum-of-squares in f32; reduced across images and finalized in the
    # wrapper).  NOTE: E[x^2]-E[x]^2 is clamped at zero in the wrapper; a
    # pivot-shifted two-pass variance would be safer for large-mean activations.
    am = jnp.where(interior, acc, 0.0)
    stats_ref[0:1, :] = jnp.sum(am, axis=0, keepdims=True)
    stats_ref[1:2, :] = jnp.sum(am * am, axis=0, keepdims=True)

    # Conv output with explicitly zeroed guard bands so the next pass can do
    # shifted tap reads directly from its input block (non-interior slab rows
    # hold finite garbage; they are masked downstream and sliced off at the end).
    zeros_g = jnp.zeros((g, cp), jnp.float32)
    z_ref[pl.ds(0, g), :] = zeros_g
    z_ref[pl.ds(g + rp, g), :] = zeros_g
    z_ref[pl.ds(g, rp), :] = acc


def _bn_residual_kernel(z_ref, x_ref, s_ref, t_ref, o_ref, *, rp, g):
    """Per-image: BN2 scale/shift + residual add (lane-dense elementwise)."""
    z = z_ref[pl.ds(g, rp), :]
    xi = x_ref[pl.ds(g, rp), :]
    o_ref[...] = z * s_ref[...] + t_ref[...] + xi


def _conv_pass(src, wt, scale, shift, alpha, *, n, rg, cp, hp, wpp, h, w, g,
               apply_act):
    """One gridded pallas_call: per-image conv(+act) + partial BN stats."""
    kern = functools.partial(_conv_stats_kernel, hp=hp, wpp=wpp, h=h, w=w,
                             g=g, cp=cp, apply_act=apply_act)
    img3 = lambda i: (i, 0, 0)
    full3 = lambda i: (0, 0, 0)
    full2 = lambda i: (0, 0)
    return pl.pallas_call(
        kern,
        grid=(n,),
        out_shape=(jax.ShapeDtypeStruct((n, rg, cp), jnp.float32),   # conv out
                   jax.ShapeDtypeStruct((n, 2, cp), jnp.float32)),   # partial stats
        in_specs=[pl.BlockSpec((None, rg, cp), img3),   # image slab (guard-banded)
                  pl.BlockSpec((K * K, cp, cp), full3),  # weights (resident)
                  pl.BlockSpec((1, cp), full2),          # BN scale
                  pl.BlockSpec((1, cp), full2),          # BN shift
                  pl.BlockSpec((1, cp), full2)],         # PReLU slope
        out_specs=(pl.BlockSpec((None, rg, cp), img3),
                   pl.BlockSpec((None, 2, cp), img3)),
        scratch_shapes=[pltpu.VMEM((rg, cp), jnp.float32)],
        compiler_params=pltpu.CompilerParams(
            dimension_semantics=("parallel",)),          # v7x: batch across 2 TCs
    )(src, wt, scale, shift, alpha)


def _bn_scale_shift(stats, gamma, beta, count):
    """Reduce per-image partial stats and fuse BN into one scale/shift. (1,Cp)."""
    ssum = jnp.sum(stats[:, 0:1, :], axis=0)             # (1, Cp)
    ssq = jnp.sum(stats[:, 1:2, :], axis=0)              # (1, Cp)
    mean = ssum / count
    var = jnp.maximum(ssq / count - mean * mean, 0.0)    # biased (training) var
    scale = gamma * lax.rsqrt(var + EPS)
    shift = beta - mean * scale
    return scale, shift


def residual_block(x, params):
    """x: (N, H, W, C) float32 NHWC.  Returns (N, H, W, C) float32."""
    N, H, W, C = x.shape
    Cp = _round_up(C, LANES)                 # lane-dense channels
    Hp = H + 2                               # 1-row halo
    Wpp = _round_up(W + 2, SUBLANES)         # 1-col halo + sublane alignment
    Rp = Hp * Wpp                            # rows per flattened image slab
    G = _round_up(Wpp + 1, SUBLANES)         # guard rows >= max tap shift
    Rg = Rp + 2 * G

    w1, b1, g1, bt1, w2, b2, g2, bt2, a = params
    del b1, b2   # conv biases cancel exactly under training-mode BatchNorm

    # One combined pad: spatial halo + W alignment + channel pad to 128 lanes,
    # flattened per image and guard-banded with G zero rows so every in-kernel
    # shifted tap read stays in bounds.
    xp = jnp.pad(x, ((0, 0), (1, 1), (1, 1 + Wpp - (W + 2)), (0, Cp - C)))
    xg = jnp.pad(xp.reshape(N, Rp, Cp), ((0, 0), (G, G), (0, 0)))   # (N, Rg, Cp)

    def prep_w(wt):   # (K,K,C,C) HWIO -> (K*K, Cp, Cp) tap-major, MXU dtype
        wp = jnp.zeros((K, K, Cp, Cp), jnp.float32).at[:, :, :C, :C].set(wt)
        return wp.reshape(K * K, Cp, Cp).astype(MATMUL_DTYPE)

    def prep_v(v, fill=0.0):   # (C,) -> (1, Cp)
        return jnp.full((1, Cp), fill, jnp.float32).at[0, :C].set(v)

    g1p, bt1p = prep_v(g1, 1.0), prep_v(bt1)
    g2p, bt2p = prep_v(g2, 1.0), prep_v(bt2)
    alpha_vec = jnp.full((1, Cp), a[0], jnp.float32)
    zeros_vec = jnp.zeros((1, Cp), jnp.float32)

    conv_pass = functools.partial(_conv_pass, n=N, rg=Rg, cp=Cp, hp=Hp,
                                  wpp=Wpp, h=H, w=W, g=G)
    count = N * H * W

    # Pass 1: conv1 + per-image BN1 partial stats (scale/shift/alpha unused).
    z1g, st1 = conv_pass(xg, prep_w(w1), zeros_vec, zeros_vec, zeros_vec,
                         apply_act=False)
    s1, t1 = _bn_scale_shift(st1, g1p, bt1p, count)

    # Pass 2: BN1-apply + PReLU + conv2 + per-image BN2 partial stats.
    z2g, st2 = conv_pass(z1g, prep_w(w2), s1, t1, alpha_vec, apply_act=True)
    s2, t2 = _bn_scale_shift(st2, g2p, bt2p, count)

    # Pass 3: BN2-apply + residual add (lane-dense elementwise, per-image grid).
    img3 = lambda i: (i, 0, 0)
    full2 = lambda i: (0, 0)
    out = pl.pallas_call(
        functools.partial(_bn_residual_kernel, rp=Rp, g=G),
        grid=(N,),
        out_shape=jax.ShapeDtypeStruct((N, Rp, Cp), jnp.float32),
        in_specs=[pl.BlockSpec((None, Rg, Cp), img3),
                  pl.BlockSpec((None, Rg, Cp), img3),
                  pl.BlockSpec((1, Cp), full2),
                  pl.BlockSpec((1, Cp), full2)],
        out_specs=pl.BlockSpec((None, Rp, Cp), img3),
        compiler_params=pltpu.CompilerParams(
            dimension_semantics=("parallel",)),
    )(z2g, xg, s2, t2)

    return out.reshape(N, Hp, Wpp, Cp)[:, 1:H + 1, 1:W + 1, :C]


def ref_residual_block(x, params):
    """Pure-JAX reference mirroring the PyTorch forward in training mode."""
    w1, b1, g1, bt1, w2, b2, g2, bt2, a = params
    dn = ('NHWC', 'HWIO', 'NHWC')

    def conv(inp, w, b):
        return lax.conv_general_dilated(inp, w, (1, 1), 'SAME',
                                        dimension_numbers=dn) + b

    def bn(y, g, bt):
        m = jnp.mean(y, axis=(0, 1, 2), keepdims=True)
        v = jnp.mean((y - m) ** 2, axis=(0, 1, 2), keepdims=True)
        return (y - m) * lax.rsqrt(v + EPS) * g + bt

    y = conv(x, w1, b1)
    y = bn(y, g1, bt1)
    y = jnp.where(y > 0, y, a[0] * y)
    y = conv(y, w2, b2)
    y = bn(y, g2, bt2)
    return y + x


if __name__ == "__main__":
    N, H, W, C = 2, 16, 16, 32   # small shapes (module default C=64 scaled down)

    key = jax.random.PRNGKey(0)
    ks = jax.random.split(key, 5)
    x = jax.random.normal(ks[0], (N, H, W, C), jnp.float32)
    w1 = jax.random.normal(ks[1], (K, K, C, C), jnp.float32) * 0.05
    b1 = jax.random.normal(ks[2], (C,), jnp.float32) * 0.05
    w2 = jax.random.normal(ks[3], (K, K, C, C), jnp.float32) * 0.05
    b2 = jax.random.normal(ks[4], (C,), jnp.float32) * 0.05
    g1 = jnp.ones((C,), jnp.float32)
    bt1 = jnp.zeros((C,), jnp.float32)
    g2 = jnp.ones((C,), jnp.float32)
    bt2 = jnp.zeros((C,), jnp.float32)
    a = jnp.full((1,), 0.25, jnp.float32)   # PReLU default init

    params = (w1, b1, g1, bt1, w2, b2, g2, bt2, a)

    run = jax.jit(residual_block)
    out = jax.block_until_ready(run(x, params))
    ref = ref_residual_block(x, params)

    # Tolerance: bf16 MXU operands (f32 accumulation) carry ~1e-3 relative
    # rounding per conv; 2e-2 gives ample margin.  With MATMUL_DTYPE=float32
    # the kernel matches the f32 reference within 1e-3.
    tol = 2e-2 if MATMUL_DTYPE == jnp.bfloat16 else 1e-3
    assert out.shape == (N, H, W, C)
    assert jnp.allclose(out, ref, atol=tol, rtol=tol), \
        f"max abs err = {float(jnp.max(jnp.abs(out - ref)))}"
    print("KERNEL_OK")
</pallas_src>

<mosaic_0001>
module attributes {stable_mosaic.version = 11 : i64} {
  func.func @_bn_residual_kernel(%arg0: i32, %arg1: memref<1x496x128xf32, #tpu.memory_space<vmem>>, %arg2: memref<1x496x128xf32, #tpu.memory_space<vmem>>, %arg3: memref<1x128xf32, #tpu.memory_space<vmem>>, %arg4: memref<1x128xf32, #tpu.memory_space<vmem>>, %arg5: memref<1x432x128xf32, #tpu.memory_space<vmem>>) attributes {dimension_semantics = [#tpu.dimension_semantics<parallel>], iteration_bounds = array<i64: 2>, scalar_prefetch = 0 : i64, scratch_operands = 0 : i64, tpu.core_type = #tpu.core_type<tc>, window_params = [{transform_indices = @transform_0, window_bounds = array<i64: 1, 496, 128>}, {transform_indices = @transform_1, window_bounds = array<i64: 1, 496, 128>}, {pipeline_mode = #tpu.pipeline_mode<synchronous>, transform_indices = @transform_2, window_bounds = array<i64: 1, 128>}, {pipeline_mode = #tpu.pipeline_mode<synchronous>, transform_indices = @transform_3, window_bounds = array<i64: 1, 128>}, {transform_indices = @transform_4, window_bounds = array<i64: 1, 432, 128>}]} {
    %c0 = arith.constant 0 : index
    %c32 = arith.constant 32 : index
    %c0_0 = arith.constant 0 : index
    %0 = vector.load %arg1[%c0, %c32, %c0_0] : memref<1x496x128xf32, #tpu.memory_space<vmem>>, vector<1x432x128xf32>
    %1 = vector.shape_cast %0 : vector<1x432x128xf32> to vector<432x128xf32>
    %c0_1 = arith.constant 0 : index
    %c32_2 = arith.constant 32 : index
    %c0_3 = arith.constant 0 : index
    %2 = vector.load %arg2[%c0_1, %c32_2, %c0_3] : memref<1x496x128xf32, #tpu.memory_space<vmem>>, vector<1x432x128xf32>
    %3 = vector.shape_cast %2 : vector<1x432x128xf32> to vector<432x128xf32>
    %c0_4 = arith.constant 0 : index
    %c0_5 = arith.constant 0 : index
    %4 = vector.load %arg3[%c0_4, %c0_5] : memref<1x128xf32, #tpu.memory_space<vmem>>, vector<1x128xf32>
    %5 = vector.broadcast %4 : vector<1x128xf32> to vector<432x128xf32>
    %6 = arith.mulf %1, %5 : vector<432x128xf32>
    %c0_6 = arith.constant 0 : index
    %c0_7 = arith.constant 0 : index
    %7 = vector.load %arg4[%c0_6, %c0_7] : memref<1x128xf32, #tpu.memory_space<vmem>>, vector<1x128xf32>
    %8 = vector.broadcast %7 : vector<1x128xf32> to vector<432x128xf32>
    %9 = arith.addf %6, %8 : vector<432x128xf32>
    %10 = arith.addf %9, %3 : vector<432x128xf32>
    %c0_8 = arith.constant 0 : index
    %c0_9 = arith.constant 0 : index
    %c0_10 = arith.constant 0 : index
    %11 = vector.load %arg5[%c0_8, %c0_9, %c0_10] : memref<1x432x128xf32, #tpu.memory_space<vmem>>, vector<1x432x128xf32>
    %12 = vector.shape_cast %11 : vector<1x432x128xf32> to vector<432x128xf32>
    %13 = vector.shape_cast %10 : vector<432x128xf32> to vector<1x432x128xf32>
    tpu.vector_store %arg5[%c0_8, %c0_9, %c0_10], %13 {strides = array<i32>} : memref<1x432x128xf32, #tpu.memory_space<vmem>>, vector<1x432x128xf32>,
    return
  }
  func.func @transform_0(%arg0: i32) -> (i32, i32, i32) {
    %c0_i32 = arith.constant 0 : i32
    %c0_i32_0 = arith.constant 0 : i32
    %c0_i32_1 = arith.constant 0 : i32
    return %arg0, %c0_i32, %c0_i32_0 : i32, i32, i32
  }
  func.func @transform_1(%arg0: i32) -> (i32, i32, i32) {
    %c0_i32 = arith.constant 0 : i32
    %c0_i32_0 = arith.constant 0 : i32
    %c0_i32_1 = arith.constant 0 : i32
    return %arg0, %c0_i32, %c0_i32_0 : i32, i32, i32
  }
  func.func @transform_2(%arg0: i32) -> (i32, i32) {
    %c0_i32 = arith.constant 0 : i32
    %c0_i32_0 = arith.constant 0 : i32
    %c0_i32_1 = arith.constant 0 : i32
    return %c0_i32, %c0_i32_0 : i32, i32
  }
  func.func @transform_3(%arg0: i32) -> (i32, i32) {
    %c0_i32 = arith.constant 0 : i32
    %c0_i32_0 = arith.constant 0 : i32
    %c0_i32_1 = arith.constant 0 : i32
    return %c0_i32, %c0_i32_0 : i32, i32
  }
  func.func @transform_4(%arg0: i32) -> (i32, i32, i32) {
    %c0_i32 = arith.constant 0 : i32
    %c0_i32_0 = arith.constant 0 : i32
    %c0_i32_1 = arith.constant 0 : i32
    return %arg0, %c0_i32, %c0_i32_0 : i32, i32, i32
  }
}

module attributes {stable_mosaic.version = 11 : i64} {
  func.func @_conv_stats_kernel(%arg0: i32, %arg1: memref<1x496x128xf32, #tpu.memory_space<vmem>>, %arg2: memref<9x128x128xbf16, #tpu.memory_space<vmem>>, %arg3: memref<1x128xf32, #tpu.memory_space<vmem>>, %arg4: memref<1x128xf32, #tpu.memory_space<vmem>>, %arg5: memref<1x128xf32, #tpu.memory_space<vmem>>, %arg6: memref<1x496x128xf32, #tpu.memory_space<vmem>>, %arg7: memref<1x2x128xf32, #tpu.memory_space<vmem>>, %arg8: memref<496x128xf32, #tpu.memory_space<vmem>>) attributes {dimension_semantics = [#tpu.dimension_semantics<parallel>], iteration_bounds = array<i64: 2>, scalar_prefetch = 0 : i64, scratch_operands = 1 : i64, tpu.core_type = #tpu.core_type<tc>, window_params = [{transform_indices = @transform_0, window_bounds = array<i64: 1, 496, 128>}, {pipeline_mode = #tpu.pipeline_mode<synchronous>, transform_indices = @transform_1, window_bounds = array<i64: 9, 128, 128>}, {pipeline_mode = #tpu.pipeline_mode<synchronous>, transform_indices = @transform_2, window_bounds = array<i64: 1, 128>}, {pipeline_mode = #tpu.pipeline_mode<synchronous>, transform_indices = @transform_3, window_bounds = array<i64: 1, 128>}, {pipeline_mode = #tpu.pipeline_mode<synchronous>, transform_indices = @transform_4, window_bounds = array<i64: 1, 128>}, {transform_indices = @transform_5, window_bounds = array<i64: 1, 496, 128>}, {transform_indices = @transform_6, window_bounds = array<i64: 1, 2, 128>}]} {
    %0 = tpu.iota {dimensions = array<i32: 0>} : vector<432x128xi32>
    %1 = tpu.iota {dimensions = array<i32: 1>} : vector<18x24x128xi32>
    %2 = vector.shape_cast %1 : vector<18x24x128xi32> to vector<432x128xi32>
    %c24_i32 = arith.constant 24 : i32
    %3 = vector.broadcast %c24_i32 : i32 to vector<432x128xi32>
    %4 = arith.cmpi sge, %0, %3 : vector<432x128xi32>
    %c408_i32 = arith.constant 408 : i32
    %5 = vector.broadcast %c408_i32 : i32 to vector<432x128xi32>
    %6 = arith.cmpi slt, %0, %5 : vector<432x128xi32>
    %7 = arith.andi %4, %6 : vector<432x128xi1>
    %c1_i32 = arith.constant 1 : i32
    %8 = vector.broadcast %c1_i32 : i32 to vector<432x128xi32>
    %9 = arith.cmpi sge, %2, %8 : vector<432x128xi32>
    %10 = arith.andi %7, %9 : vector<432x128xi1>
    %c16_i32 = arith.constant 16 : i32
    %11 = vector.broadcast %c16_i32 : i32 to vector<432x128xi32>
    %12 = arith.cmpi sle, %2, %11 : vector<432x128xi32>
    %13 = arith.andi %10, %12 : vector<432x128xi1>
    %c0 = arith.constant 0 : index
    %c32 = arith.constant 32 : index
    %c0_0 = arith.constant 0 : index
    %14 = vector.load %arg1[%c0, %c32, %c0_0] : memref<1x496x128xf32, #tpu.memory_space<vmem>>, vector<1x432x128xf32>
    %15 = vector.shape_cast %14 : vector<1x432x128xf32> to vector<432x128xf32>
    %c0_1 = arith.constant 0 : index
    %c0_2 = arith.constant 0 : index
    %16 = vector.load %arg3[%c0_1, %c0_2] : memref<1x128xf32, #tpu.memory_space<vmem>>, vector<1x128xf32>
    %17 = vector.broadcast %16 : vector<1x128xf32> to vector<432x128xf32>
    %18 = arith.mulf %15, %17 : vector<432x128xf32>
    %c0_3 = arith.constant 0 : index
    %c0_4 = arith.constant 0 : index
    %19 = vector.load %arg4[%c0_3, %c0_4] : memref<1x128xf32, #tpu.memory_space<vmem>>, vector<1x128xf32>
    %20 = vector.broadcast %19 : vector<1x128xf32> to vector<432x128xf32>
    %21 = arith.addf %18, %20 : vector<432x128xf32>
    %cst = arith.constant 0.000000e+00 : f32
    %22 = vector.broadcast %cst : f32 to vector<432x128xf32>
    %23 = arith.cmpf ogt, %21, %22 : vector<432x128xf32>
    %c0_5 = arith.constant 0 : index
    %c0_6 = arith.constant 0 : index
    %24 = vector.load %arg5[%c0_5, %c0_6] : memref<1x128xf32, #tpu.memory_space<vmem>>, vector<1x128xf32>
    %25 = vector.broadcast %24 : vector<1x128xf32> to vector<432x128xf32>
    %26 = arith.mulf %25, %21 : vector<432x128xf32>
    %27 = arith.select %23, %21, %26 : vector<432x128xi1>, vector<432x128xf32>
    %cst_7 = arith.constant 0.000000e+00 : f32
    %28 = vector.broadcast %cst_7 : f32 to vector<432x128xf32>
    %29 = arith.select %13, %27, %28 : vector<432x128xi1>, vector<432x128xf32>
    %cst_8 = arith.constant 0.000000e+00 : f32
    %30 = vector.broadcast %cst_8 : f32 to vector<32x128xf32>
    %c0_9 = arith.constant 0 : index
    %c0_10 = arith.constant 0 : index
    %31 = vector.load %arg8[%c0_9, %c0_10] : memref<496x128xf32, #tpu.memory_space<vmem>>, vector<32x128xf32>
    tpu.vector_store %arg8[%c0_9, %c0_10], %30 {strides = array<i32>} : memref<496x128xf32, #tpu.memory_space<vmem>>, vector<32x128xf32>,
    %c464 = arith.constant 464 : index
    %c0_11 = arith.constant 0 : index
    %32 = vector.load %arg8[%c464, %c0_11] : memref<496x128xf32, #tpu.memory_space<vmem>>, vector<32x128xf32>
    tpu.vector_store %arg8[%c464, %c0_11], %30 {strides = array<i32>} : memref<496x128xf32, #tpu.memory_space<vmem>>, vector<32x128xf32>,
    %c32_12 = arith.constant 32 : index
    %c0_13 = arith.constant 0 : index
    %33 = vector.load %arg8[%c32_12, %c0_13] : memref<496x128xf32, #tpu.memory_space<vmem>>, vector<432x128xf32>
    tpu.vector_store %arg8[%c32_12, %c0_13], %29 {strides = array<i32>} : memref<496x128xf32, #tpu.memory_space<vmem>>, vector<432x128xf32>,
    %c7 = arith.constant 7 : index
    %c0_14 = arith.constant 0 : index
    %34 = vector.load %arg8[%c7, %c0_14] : memref<496x128xf32, #tpu.memory_space<vmem>>, vector<432x128xf32>
    %35 = arith.truncf %34 : vector<432x128xf32> to vector<432x128xbf16>
    %c0_15 = arith.constant 0 : index
    %c0_16 = arith.constant 0 : index
    %c0_17 = arith.constant 0 : index
    %36 = vector.load %arg2[%c0_15, %c0_16, %c0_17] : memref<9x128x128xbf16, #tpu.memory_space<vmem>>, vector<1x128x128xbf16>
    %37 = vector.shape_cast %36 : vector<1x128x128xbf16> to vector<128x128xbf16>
    %cst_18 = arith.constant dense<0.000000e+00> : vector<432x128xf32>
    %38 = tpu.matmul %35, %37, %cst_18 {dimension_numbers = #tpu.dot_dimension_numbers<[1], [0], [0], [1], [0, 0, 1, 1], [], []>} : vector<432x128xbf16>, vector<128x128xbf16>, vector<432x128xf32> -> vector<432x128xf32>
    %c8 = arith.constant 8 : index
    %c0_19 = arith.constant 0 : index
    %39 = vector.load %arg8[%c8, %c0_19] : memref<496x128xf32, #tpu.memory_space<vmem>>, vector<432x128xf32>
    %40 = arith.truncf %39 : vector<432x128xf32> to vector<432x128xbf16>
    %c1 = arith.constant 1 : index
    %c0_20 = arith.constant 0 : index
    %c0_21 = arith.constant 0 : index
    %41 = vector.load %arg2[%c1, %c0_20, %c0_21] : memref<9x128x128xbf16, #tpu.memory_space<vmem>>, vector<1x128x128xbf16>
    %42 = vector.shape_cast %41 : vector<1x128x128xbf16> to vector<128x128xbf16>
    %cst_22 = arith.constant dense<0.000000e+00> : vector<432x128xf32>
    %43 = tpu.matmul %40, %42, %cst_22 {dimension_numbers = #tpu.dot_dimension_numbers<[1], [0], [0], [1], [0, 0, 1, 1], [], []>} : vector<432x128xbf16>, vector<128x128xbf16>, vector<432x128xf32> -> vector<432x128xf32>
    %44 = arith.addf %38, %43 : vector<432x128xf32>
    %c9 = arith.constant 9 : index
    %c0_23 = arith.constant 0 : index
    %45 = vector.load %arg8[%c9, %c0_23] : memref<496x128xf32, #tpu.memory_space<vmem>>, vector<432x128xf32>
    %46 = arith.truncf %45 : vector<432x128xf32> to vector<432x128xbf16>
    %c2 = arith.constant 2 : index
    %c0_24 = arith.constant 0 : index
    %c0_25 = arith.constant 0 : index
    %47 = vector.load %arg2[%c2, %c0_24, %c0_25] : memref<9x128x128xbf16, #tpu.memory_space<vmem>>, vector<1x128x128xbf16>
    %48 = vector.shape_cast %47 : vector<1x128x128xbf16> to vector<128x128xbf16>
    %cst_26 = arith.constant dense<0.000000e+00> : vector<432x128xf32>
    %49 = tpu.matmul %46, %48, %cst_26 {dimension_numbers = #tpu.dot_dimension_numbers<[1], [0], [0], [1], [0, 0, 1, 1], [], []>} : vector<432x128xbf16>, vector<128x128xbf16>, vector<432x128xf32> -> vector<432x128xf32>
    %50 = arith.addf %44, %49 : vector<432x128xf32>
    %c31 = arith.constant 31 : index
    %c0_27 = arith.constant 0 : index
    %51 = vector.load %arg8[%c31, %c0_27] : memref<496x128xf32, #tpu.memory_space<vmem>>, vector<432x128xf32>
    %52 = arith.truncf %51 : vector<432x128xf32> to vector<432x128xbf16>
    %c3 = arith.constant 3 : index
    %c0_28 = arith.constant 0 : index
    %c0_29 = arith.constant 0 : index
    %53 = vector.load %arg2[%c3, %c0_28, %c0_29] : memref<9x128x128xbf16, #tpu.memory_space<vmem>>, vector<1x128x128xbf16>
    %54 = vector.shape_cast %53 : vector<1x128x128xbf16> to vector<128x128xbf16>
    %cst_30 = arith.constant dense<0.000000e+00> : vector<432x128xf32>
    %55 = tpu.matmul %52, %54, %cst_30 {dimension_numbers = #tpu.dot_dimension_numbers<[1], [0], [0], [1], [0, 0, 1, 1], [], []>} : vector<432x128xbf16>, vector<128x128xbf16>, vector<432x128xf32> -> vector<432x128xf32>
    %56 = arith.addf %50, %55 : vector<432x128xf32>
    %c32_31 = arith.constant 32 : index
    %c0_32 = arith.constant 0 : index
    %57 = vector.load %arg8[%c32_31, %c0_32] : memref<496x128xf32, #tpu.memory_space<vmem>>, vector<432x128xf32>
    %58 = arith.truncf %57 : vector<432x128xf32> to vector<432x128xbf16>
    %c4 = arith.constant 4 : index
    %c0_33 = arith.constant 0 : index
    %c0_34 = arith.constant 0 : index
    %59 = vector.load %arg2[%c4, %c0_33, %c0_34] : memref<9x128x128xbf16, #tpu.memory_space<vmem>>, vector<1x128x128xbf16>
    %60 = vector.shape_cast %59 : vector<1x128x128xbf16> to vector<128x128xbf16>
    %cst_35 = arith.constant dense<0.000000e+00> : vector<432x128xf32>
    %61 = tpu.matmul %58, %60, %cst_35 {dimension_numbers = #tpu.dot_dimension_numbers<[1], [0], [0], [1], [0, 0, 1, 1], [], []>} : vector<432x128xbf16>, vector<128x128xbf16>, vector<432x128xf32> -> vector<432x128xf32>
    %62 = arith.addf %56, %61 : vector<432x128xf32>
    %c33 = arith.constant 33 : index
    %c0_36 = arith.constant 0 : index
    %63 = vector.load %arg8[%c33, %c0_36] : memref<496x128xf32, #tpu.memory_space<vmem>>, vector<432x128xf32>
    %64 = arith.truncf %63 : vector<432x128xf32> to vector<432x128xbf16>
    %c5 = arith.constant 5 : index
    %c0_37 = arith.constant 0 : index
    %c0_38 = arith.constant 0 : index
    %65 = vector.load %arg2[%c5, %c0_37, %c0_38] : memref<9x128x128xbf16, #tpu.memory_space<vmem>>, vector<1x128x128xbf16>
    %66 = vector.shape_cast %65 : vector<1x128x128xbf16> to vector<128x128xbf16>
    %cst_39 = arith.constant dense<0.000000e+00> : vector<432x128xf32>
    %67 = tpu.matmul %64, %66, %cst_39 {dimension_numbers = #tpu.dot_dimension_numbers<[1], [0], [0], [1], [0, 0, 1, 1], [], []>} : vector<432x128xbf16>, vector<128x128xbf16>, vector<432x128xf32> -> vector<432x128xf32>
    %68 = arith.addf %62, %67 : vector<432x128xf32>
    %c55 = arith.constant 55 : index
    %c0_40 = arith.constant 0 : index
    %69 = vector.load %arg8[%c55, %c0_40] : memref<496x128xf32, #tpu.memory_space<vmem>>, vector<432x128xf32>
    %70 = arith.truncf %69 : vector<432x128xf32> to vector<432x128xbf16>
    %c6 = arith.constant 6 : index
    %c0_41 = arith.constant 0 : index
    %c0_42 = arith.constant 0 : index
    %71 = vector.load %arg2[%c6, %c0_41, %c0_42] : memref<9x128x128xbf16, #tpu.memory_space<vmem>>, vector<1x128x128xbf16>
    %72 = vector.shape_cast %71 : vector<1x128x128xbf16> to vector<128x128xbf16>
    %cst_43 = arith.constant dense<0.000000e+00> : vector<432x128xf32>
    %73 = tpu.matmul %70, %72, %cst_43 {dimension_numbers = #tpu.dot_dimension_numbers<[1], [0], [0], [1], [0, 0, 1, 1], [], []>} : vector<432x128xbf16>, vector<128x128xbf16>, vector<432x128xf32> -> vector<432x128xf32>
    %74 = arith.addf %68, %73 : vector<432x128xf32>
    %c56 = arith.constant 56 : index
    %c0_44 = arith.constant 0 : index
    %75 = vector.load %arg8[%c56, %c0_44] : memref<496x128xf32, #tpu.memory_space<vmem>>, vector<432x128xf32>
    %76 = arith.truncf %75 : vector<432x128xf32> to vector<432x128xbf16>
    %c7_45 = arith.constant 7 : index
    %c0_46 = arith.constant 0 : index
    %c0_47 = arith.constant 0 : index
    %77 = vector.load %arg2[%c7_45, %c0_46, %c0_47] : memref<9x128x128xbf16, #tpu.memory_space<vmem>>, vector<1x128x128xbf16>
    %78 = vector.shape_cast %77 : vector<1x128x128xbf16> to vector<128x128xbf16>
    %cst_48 = arith.constant dense<0.000000e+00> : vector<432x128xf32>
    %79 = tpu.matmul %76, %78, %cst_48 {dimension_numbers = #tpu.dot_dimension_numbers<[1], [0], [0], [1], [0, 0, 1, 1], [], []>} : vector<432x128xbf16>, vector<128x128xbf16>, vector<432x128xf32> -> vector<432x128xf32>
    %80 = arith.addf %74, %79 : vector<432x128xf32>
    %c57 = arith.constant 57 : index
    %c0_49 = arith.constant 0 : index
    %81 = vector.load %arg8[%c57, %c0_49] : memref<496x128xf32, #tpu.memory_space<vmem>>, vector<432x128xf32>
    %82 = arith.truncf %81 : vector<432x128xf32> to vector<432x128xbf16>
    %c8_50 = arith.constant 8 : index
    %c0_51 = arith.constant 0 : index
    %c0_52 = arith.constant 0 : index
    %83 = vector.load %arg2[%c8_50, %c0_51, %c0_52] : memref<9x128x128xbf16, #tpu.memory_space<vmem>>, vector<1x128x128xbf16>
    %84 = vector.shape_cast %83 : vector<1x128x128xbf16> to vector<128x128xbf16>
    %cst_53 = arith.constant dense<0.000000e+00> : vector<432x128xf32>
    %85 = tpu.matmul %82, %84, %cst_53 {dimension_numbers = #tpu.dot_dimension_numbers<[1], [0], [0], [1], [0, 0, 1, 1], [], []>} : vector<432x128xbf16>, vector<128x128xbf16>, vector<432x128xf32> -> vector<432x128xf32>
    %86 = arith.addf %80, %85 : vector<432x128xf32>
    %cst_54 = arith.constant 0.000000e+00 : f32
    %87 = vector.broadcast %cst_54 : f32 to vector<432x128xf32>
    %88 = arith.select %13, %86, %87 : vector<432x128xi1>, vector<432x128xf32>
    %cst_55 = arith.constant dense<0.000000e+00> : vector<128xf32>
    %89 = vector.multi_reduction <add>, %88, %cst_55 [0] : vector<432x128xf32> to vector<128xf32>
    %90 = vector.shape_cast %89 : vector<128xf32> to vector<1x128xf32>
    %c0_56 = arith.constant 0 : index
    %c0_57 = arith.constant 0 : index
    %c0_58 = arith.constant 0 : index
    %91 = vector.load %arg7[%c0_56, %c0_57, %c0_58] : memref<1x2x128xf32, #tpu.memory_space<vmem>>, vector<1x1x128xf32>
    %92 = vector.shape_cast %91 : vector<1x1x128xf32> to vector<1x128xf32>
    %93 = vector.shape_cast %90 : vector<1x128xf32> to vector<1x1x128xf32>
    tpu.vector_store %arg7[%c0_56, %c0_57, %c0_58], %93 {strides = array<i32>} : memref<1x2x128xf32, #tpu.memory_space<vmem>>, vector<1x1x128xf32>,
    %94 = arith.mulf %88, %88 : vector<432x128xf32>
    %cst_59 = arith.constant dense<0.000000e+00> : vector<128xf32>
    %95 = vector.multi_reduction <add>, %94, %cst_59 [0] : vector<432x128xf32> to vector<128xf32>
    %96 = vector.shape_cast %95 : vector<128xf32> to vector<1x128xf32>
    %c0_60 = arith.constant 0 : index
    %c1_61 = arith.constant 1 : index
    %c0_62 = arith.constant 0 : index
    %97 = vector.load %arg7[%c0_60, %c1_61, %c0_62] : memref<1x2x128xf32, #tpu.memory_space<vmem>>, vector<1x1x128xf32>
    %98 = vector.shape_cast %97 : vector<1x1x128xf32> to vector<1x128xf32>
    %99 = vector.shape_cast %96 : vector<1x128xf32> to vector<1x1x128xf32>
    tpu.vector_store %arg7[%c0_60, %c1_61, %c0_62], %99 {strides = array<i32>} : memref<1x2x128xf32, #tpu.memory_space<vmem>>, vector<1x1x128xf32>,
    %cst_63 = arith.constant 0.000000e+00 : f32
    %100 = vector.broadcast %cst_63 : f32 to vector<32x128xf32>
    %c0_64 = arith.constant 0 : index
    %c0_65 = arith.constant 0 : index
    %c0_66 = arith.constant 0 : index
    %101 = vector.load %arg6[%c0_64, %c0_65, %c0_66] : memref<1x496x128xf32, #tpu.memory_space<vmem>>, vector<1x32x128xf32>
    %102 = vector.shape_cast %101 : vector<1x32x128xf32> to vector<32x128xf32>
    %103 = vector.shape_cast %100 : vector<32x128xf32> to vector<1x32x128xf32>
    tpu.vector_store %arg6[%c0_64, %c0_65, %c0_66], %103 {strides = array<i32>} : memref<1x496x128xf32, #tpu.memory_space<vmem>>, vector<1x32x128xf32>,
    %c0_67 = arith.constant 0 : index
    %c464_68 = arith.constant 464 : index
    %c0_69 = arith.constant 0 : index
    %104 = vector.load %arg6[%c0_67, %c464_68, %c0_69] : memref<1x496x128xf32, #tpu.memory_space<vmem>>, vector<1x32x128xf32>
    %105 = vector.shape_cast %104 : vector<1x32x128xf32> to vector<32x128xf32>
    %106 = vector.shape_cast %100 : vector<32x128xf32> to vector<1x32x128xf32>
    tpu.vector_store %arg6[%c0_67, %c464_68, %c0_69], %106 {strides = array<i32>} : memref<1x496x128xf32, #tpu.memory_space<vmem>>, vector<1x32x128xf32>,
    %c0_70 = arith.constant 0 : index
    %c32_71 = arith.constant 32 : index
    %c0_72 = arith.constant 0 : index
    %107 = vector.load %arg6[%c0_70, %c32_71, %c0_72] : memref<1x496x128xf32, #tpu.memory_space<vmem>>, vector<1x432x128xf32>
    %108 = vector.shape_cast %107 : vector<1x432x128xf32> to vector<432x128xf32>
    %109 = vector.shape_cast %86 : vector<432x128xf32> to vector<1x432x128xf32>
    tpu.vector_store %arg6[%c0_70, %c32_71, %c0_72], %109 {strides = array<i32>} : memref<1x496x128xf32, #tpu.memory_space<vmem>>, vector<1x432x128xf32>,
    return
  }
  func.func @transform_0(%arg0: i32) -> (i32, i32, i32) {
    %c0_i32 = arith.constant 0 : i32
    %c0_i32_0 = arith.constant 0 : i32
    %c0_i32_1 = arith.constant 0 : i32
    return %arg0, %c0_i32, %c0_i32_0 : i32, i32, i32
  }
  func.func @transform_1(%arg0: i32) -> (i32, i32, i32) {
    %c0_i32 = arith.constant 0 : i32
    %c0_i32_0 = arith.constant 0 : i32
    %c0_i32_1 = arith.constant 0 : i32
    %c0_i32_2 = arith.constant 0 : i32
    return %c0_i32, %c0_i32_0, %c0_i32_1 : i32, i32, i32
  }
  func.func @transform_2(%arg0: i32) -> (i32, i32) {
    %c0_i32 = arith.constant 0 : i32
    %c0_i32_0 = arith.constant 0 : i32
    %c0_i32_1 = arith.constant 0 : i32
    return %c0_i32, %c0_i32_0 : i32, i32
  }
  func.func @transform_3(%arg0: i32) -> (i32, i32) {
    %c0_i32 = arith.constant 0 : i32
    %c0_i32_0 = arith.constant 0 : i32
    %c0_i32_1 = arith.constant 0 : i32
    return %c0_i32, %c0_i32_0 : i32, i32
  }
  func.func @transform_4(%arg0: i32) -> (i32, i32) {
    %c0_i32 = arith.constant 0 : i32
    %c0_i32_0 = arith.constant 0 : i32
    %c0_i32_1 = arith.constant 0 : i32
    return %c0_i32, %c0_i32_0 : i32, i32
  }
  func.func @transform_5(%arg0: i32) -> (i32, i32, i32) {
    %c0_i32 = arith.constant 0 : i32
    %c0_i32_0 = arith.constant 0 : i32
    %c0_i32_1 = arith.constant 0 : i32
    return %arg0, %c0_i32, %c0_i32_0 : i32, i32, i32
  }
  func.func @transform_6(%arg0: i32) -> (i32, i32, i32) {
    %c0_i32 = arith.constant 0 : i32
    %c0_i32_0 = arith.constant 0 : i32
    %c0_i32_1 = arith.constant 0 : i32
    return %arg0, %c0_i32, %c0_i32_0 : i32, i32, i32
  }
}

module attributes {stable_mosaic.version = 11 : i64} {
  func.func @_conv_stats_kernel(%arg0: i32, %arg1: memref<1x496x128xf32, #tpu.memory_space<vmem>>, %arg2: memref<9x128x128xbf16, #tpu.memory_space<vmem>>, %arg3: memref<1x128xf32, #tpu.memory_space<vmem>>, %arg4: memref<1x128xf32, #tpu.memory_space<vmem>>, %arg5: memref<1x128xf32, #tpu.memory_space<vmem>>, %arg6: memref<1x496x128xf32, #tpu.memory_space<vmem>>, %arg7: memref<1x2x128xf32, #tpu.memory_space<vmem>>, %arg8: memref<496x128xf32, #tpu.memory_space<vmem>>) attributes {dimension_semantics = [#tpu.dimension_semantics<parallel>], iteration_bounds = array<i64: 2>, scalar_prefetch = 0 : i64, scratch_operands = 1 : i64, tpu.core_type = #tpu.core_type<tc>, window_params = [{transform_indices = @transform_0, window_bounds = array<i64: 1, 496, 128>}, {pipeline_mode = #tpu.pipeline_mode<synchronous>, transform_indices = @transform_1, window_bounds = array<i64: 9, 128, 128>}, {pipeline_mode = #tpu.pipeline_mode<synchronous>, transform_indices = @transform_2, window_bounds = array<i64: 1, 128>}, {pipeline_mode = #tpu.pipeline_mode<synchronous>, transform_indices = @transform_3, window_bounds = array<i64: 1, 128>}, {pipeline_mode = #tpu.pipeline_mode<synchronous>, transform_indices = @transform_4, window_bounds = array<i64: 1, 128>}, {transform_indices = @transform_5, window_bounds = array<i64: 1, 496, 128>}, {transform_indices = @transform_6, window_bounds = array<i64: 1, 2, 128>}]} {
    %0 = tpu.iota {dimensions = array<i32: 0>} : vector<432x128xi32>
    %1 = tpu.iota {dimensions = array<i32: 1>} : vector<18x24x128xi32>
    %2 = vector.shape_cast %1 : vector<18x24x128xi32> to vector<432x128xi32>
    %c24_i32 = arith.constant 24 : i32
    %3 = vector.broadcast %c24_i32 : i32 to vector<432x128xi32>
    %4 = arith.cmpi sge, %0, %3 : vector<432x128xi32>
    %c408_i32 = arith.constant 408 : i32
    %5 = vector.broadcast %c408_i32 : i32 to vector<432x128xi32>
    %6 = arith.cmpi slt, %0, %5 : vector<432x128xi32>
    %7 = arith.andi %4, %6 : vector<432x128xi1>
    %c1_i32 = arith.constant 1 : i32
    %8 = vector.broadcast %c1_i32 : i32 to vector<432x128xi32>
    %9 = arith.cmpi sge, %2, %8 : vector<432x128xi32>
    %10 = arith.andi %7, %9 : vector<432x128xi1>
    %c16_i32 = arith.constant 16 : i32
    %11 = vector.broadcast %c16_i32 : i32 to vector<432x128xi32>
    %12 = arith.cmpi sle, %2, %11 : vector<432x128xi32>
    %13 = arith.andi %10, %12 : vector<432x128xi1>
    %c0 = arith.constant 0 : index
    %c7 = arith.constant 7 : index
    %c0_0 = arith.constant 0 : index
    %14 = vector.load %arg1[%c0, %c7, %c0_0] : memref<1x496x128xf32, #tpu.memory_space<vmem>>, vector<1x432x128xf32>
    %15 = vector.shape_cast %14 : vector<1x432x128xf32> to vector<432x128xf32>
    %16 = arith.truncf %15 : vector<432x128xf32> to vector<432x128xbf16>
    %c0_1 = arith.constant 0 : index
    %c0_2 = arith.constant 0 : index
    %c0_3 = arith.constant 0 : index
    %17 = vector.load %arg2[%c0_1, %c0_2, %c0_3] : memref<9x128x128xbf16, #tpu.memory_space<vmem>>, vector<1x128x128xbf16>
    %18 = vector.shape_cast %17 : vector<1x128x128xbf16> to vector<128x128xbf16>
    %cst = arith.constant dense<0.000000e+00> : vector<432x128xf32>
    %19 = tpu.matmul %16, %18, %cst {dimension_numbers = #tpu.dot_dimension_numbers<[1], [0], [0], [1], [0, 0, 1, 1], [], []>} : vector<432x128xbf16>, vector<128x128xbf16>, vector<432x128xf32> -> vector<432x128xf32>
    %c0_4 = arith.constant 0 : index
    %c8 = arith.constant 8 : index
    %c0_5 = arith.constant 0 : index
    %20 = vector.load %arg1[%c0_4, %c8, %c0_5] : memref<1x496x128xf32, #tpu.memory_space<vmem>>, vector<1x432x128xf32>
    %21 = vector.shape_cast %20 : vector<1x432x128xf32> to vector<432x128xf32>
    %22 = arith.truncf %21 : vector<432x128xf32> to vector<432x128xbf16>
    %c1 = arith.constant 1 : index
    %c0_6 = arith.constant 0 : index
    %c0_7 = arith.constant 0 : index
    %23 = vector.load %arg2[%c1, %c0_6, %c0_7] : memref<9x128x128xbf16, #tpu.memory_space<vmem>>, vector<1x128x128xbf16>
    %24 = vector.shape_cast %23 : vector<1x128x128xbf16> to vector<128x128xbf16>
    %cst_8 = arith.constant dense<0.000000e+00> : vector<432x128xf32>
    %25 = tpu.matmul %22, %24, %cst_8 {dimension_numbers = #tpu.dot_dimension_numbers<[1], [0], [0], [1], [0, 0, 1, 1], [], []>} : vector<432x128xbf16>, vector<128x128xbf16>, vector<432x128xf32> -> vector<432x128xf32>
    %26 = arith.addf %19, %25 : vector<432x128xf32>
    %c0_9 = arith.constant 0 : index
    %c9 = arith.constant 9 : index
    %c0_10 = arith.constant 0 : index
    %27 = vector.load %arg1[%c0_9, %c9, %c0_10] : memref<1x496x128xf32, #tpu.memory_space<vmem>>, vector<1x432x128xf32>
    %28 = vector.shape_cast %27 : vector<1x432x128xf32> to vector<432x128xf32>
    %29 = arith.truncf %28 : vector<432x128xf32> to vector<432x128xbf16>
    %c2 = arith.constant 2 : index
    %c0_11 = arith.constant 0 : index
    %c0_12 = arith.constant 0 : index
    %30 = vector.load %arg2[%c2, %c0_11, %c0_12] : memref<9x128x128xbf16, #tpu.memory_space<vmem>>, vector<1x128x128xbf16>
    %31 = vector.shape_cast %30 : vector<1x128x128xbf16> to vector<128x128xbf16>
    %cst_13 = arith.constant dense<0.000000e+00> : vector<432x128xf32>
    %32 = tpu.matmul %29, %31, %cst_13 {dimension_numbers = #tpu.dot_dimension_numbers<[1], [0], [0], [1], [0, 0, 1, 1], [], []>} : vector<432x128xbf16>, vector<128x128xbf16>, vector<432x128xf32> -> vector<432x128xf32>
    %33 = arith.addf %26, %32 : vector<432x128xf32>
    %c0_14 = arith.constant 0 : index
    %c31 = arith.constant 31 : index
    %c0_15 = arith.constant 0 : index
    %34 = vector.load %arg1[%c0_14, %c31, %c0_15] : memref<1x496x128xf32, #tpu.memory_space<vmem>>, vector<1x432x128xf32>
    %35 = vector.shape_cast %34 : vector<1x432x128xf32> to vector<432x128xf32>
    %36 = arith.truncf %35 : vector<432x128xf32> to vector<432x128xbf16>
    %c3 = arith.constant 3 : index
    %c0_16 = arith.constant 0 : index
    %c0_17 = arith.constant 0 : index
    %37 = vector.load %arg2[%c3, %c0_16, %c0_17] : memref<9x128x128xbf16, #tpu.memory_space<vmem>>, vector<1x128x128xbf16>
    %38 = vector.shape_cast %37 : vector<1x128x128xbf16> to vector<128x128xbf16>
    %cst_18 = arith.constant dense<0.000000e+00> : vector<432x128xf32>
    %39 = tpu.matmul %36, %38, %cst_18 {dimension_numbers = #tpu.dot_dimension_numbers<[1], [0], [0], [1], [0, 0, 1, 1], [], []>} : vector<432x128xbf16>, vector<128x128xbf16>, vector<432x128xf32> -> vector<432x128xf32>
    %40 = arith.addf %33, %39 : vector<432x128xf32>
    %c0_19 = arith.constant 0 : index
    %c32 = arith.constant 32 : index
    %c0_20 = arith.constant 0 : index
    %41 = vector.load %arg1[%c0_19, %c32, %c0_20] : memref<1x496x128xf32, #tpu.memory_space<vmem>>, vector<1x432x128xf32>
    %42 = vector.shape_cast %41 : vector<1x432x128xf32> to vector<432x128xf32>
    %43 = arith.truncf %42 : vector<432x128xf32> to vector<432x128xbf16>
    %c4 = arith.constant 4 : index
    %c0_21 = arith.constant 0 : index
    %c0_22 = arith.constant 0 : index
    %44 = vector.load %arg2[%c4, %c0_21, %c0_22] : memref<9x128x128xbf16, #tpu.memory_space<vmem>>, vector<1x128x128xbf16>
    %45 = vector.shape_cast %44 : vector<1x128x128xbf16> to vector<128x128xbf16>
    %cst_23 = arith.constant dense<0.000000e+00> : vector<432x128xf32>
    %46 = tpu.matmul %43, %45, %cst_23 {dimension_numbers = #tpu.dot_dimension_numbers<[1], [0], [0], [1], [0, 0, 1, 1], [], []>} : vector<432x128xbf16>, vector<128x128xbf16>, vector<432x128xf32> -> vector<432x128xf32>
    %47 = arith.addf %40, %46 : vector<432x128xf32>
    %c0_24 = arith.constant 0 : index
    %c33 = arith.constant 33 : index
    %c0_25 = arith.constant 0 : index
    %48 = vector.load %arg1[%c0_24, %c33, %c0_25] : memref<1x496x128xf32, #tpu.memory_space<vmem>>, vector<1x432x128xf32>
    %49 = vector.shape_cast %48 : vector<1x432x128xf32> to vector<432x128xf32>
    %50 = arith.truncf %49 : vector<432x128xf32> to vector<432x128xbf16>
    %c5 = arith.constant 5 : index
    %c0_26 = arith.constant 0 : index
    %c0_27 = arith.constant 0 : index
    %51 = vector.load %arg2[%c5, %c0_26, %c0_27] : memref<9x128x128xbf16, #tpu.memory_space<vmem>>, vector<1x128x128xbf16>
    %52 = vector.shape_cast %51 : vector<1x128x128xbf16> to vector<128x128xbf16>
    %cst_28 = arith.constant dense<0.000000e+00> : vector<432x128xf32>
    %53 = tpu.matmul %50, %52, %cst_28 {dimension_numbers = #tpu.dot_dimension_numbers<[1], [0], [0], [1], [0, 0, 1, 1], [], []>} : vector<432x128xbf16>, vector<128x128xbf16>, vector<432x128xf32> -> vector<432x128xf32>
    %54 = arith.addf %47, %53 : vector<432x128xf32>
    %c0_29 = arith.constant 0 : index
    %c55 = arith.constant 55 : index
    %c0_30 = arith.constant 0 : index
    %55 = vector.load %arg1[%c0_29, %c55, %c0_30] : memref<1x496x128xf32, #tpu.memory_space<vmem>>, vector<1x432x128xf32>
    %56 = vector.shape_cast %55 : vector<1x432x128xf32> to vector<432x128xf32>
    %57 = arith.truncf %56 : vector<432x128xf32> to vector<432x128xbf16>
    %c6 = arith.constant 6 : index
    %c0_31 = arith.constant 0 : index
    %c0_32 = arith.constant 0 : index
    %58 = vector.load %arg2[%c6, %c0_31, %c0_32] : memref<9x128x128xbf16, #tpu.memory_space<vmem>>, vector<1x128x128xbf16>
    %59 = vector.shape_cast %58 : vector<1x128x128xbf16> to vector<128x128xbf16>
    %cst_33 = arith.constant dense<0.000000e+00> : vector<432x128xf32>
    %60 = tpu.matmul %57, %59, %cst_33 {dimension_numbers = #tpu.dot_dimension_numbers<[1], [0], [0], [1], [0, 0, 1, 1], [], []>} : vector<432x128xbf16>, vector<128x128xbf16>, vector<432x128xf32> -> vector<432x128xf32>
    %61 = arith.addf %54, %60 : vector<432x128xf32>
    %c0_34 = arith.constant 0 : index
    %c56 = arith.constant 56 : index
    %c0_35 = arith.constant 0 : index
    %62 = vector.load %arg1[%c0_34, %c56, %c0_35] : memref<1x496x128xf32, #tpu.memory_space<vmem>>, vector<1x432x128xf32>
    %63 = vector.shape_cast %62 : vector<1x432x128xf32> to vector<432x128xf32>
    %64 = arith.truncf %63 : vector<432x128xf32> to vector<432x128xbf16>
    %c7_36 = arith.constant 7 : index
    %c0_37 = arith.constant 0 : index
    %c0_38 = arith.constant 0 : index
    %65 = vector.load %arg2[%c7_36, %c0_37, %c0_38] : memref<9x128x128xbf16, #tpu.memory_space<vmem>>, vector<1x128x128xbf16>
    %66 = vector.shape_cast %65 : vector<1x128x128xbf16> to vector<128x128xbf16>
    %cst_39 = arith.constant dense<0.000000e+00> : vector<432x128xf32>
    %67 = tpu.matmul %64, %66, %cst_39 {dimension_numbers = #tpu.dot_dimension_numbers<[1], [0], [0], [1], [0, 0, 1, 1], [], []>} : vector<432x128xbf16>, vector<128x128xbf16>, vector<432x128xf32> -> vector<432x128xf32>
    %68 = arith.addf %61, %67 : vector<432x128xf32>
    %c0_40 = arith.constant 0 : index
    %c57 = arith.constant 57 : index
    %c0_41 = arith.constant 0 : index
    %69 = vector.load %arg1[%c0_40, %c57, %c0_41] : memref<1x496x128xf32, #tpu.memory_space<vmem>>, vector<1x432x128xf32>
    %70 = vector.shape_cast %69 : vector<1x432x128xf32> to vector<432x128xf32>
    %71 = arith.truncf %70 : vector<432x128xf32> to vector<432x128xbf16>
    %c8_42 = arith.constant 8 : index
    %c0_43 = arith.constant 0 : index
    %c0_44 = arith.constant 0 : index
    %72 = vector.load %arg2[%c8_42, %c0_43, %c0_44] : memref<9x128x128xbf16, #tpu.memory_space<vmem>>, vector<1x128x128xbf16>
    %73 = vector.shape_cast %72 : vector<1x128x128xbf16> to vector<128x128xbf16>
    %cst_45 = arith.constant dense<0.000000e+00> : vector<432x128xf32>
    %74 = tpu.matmul %71, %73, %cst_45 {dimension_numbers = #tpu.dot_dimension_numbers<[1], [0], [0], [1], [0, 0, 1, 1], [], []>} : vector<432x128xbf16>, vector<128x128xbf16>, vector<432x128xf32> -> vector<432x128xf32>
    %75 = arith.addf %68, %74 : vector<432x128xf32>
    %cst_46 = arith.constant 0.000000e+00 : f32
    %76 = vector.broadcast %cst_46 : f32 to vector<432x128xf32>
    %77 = arith.select %13, %75, %76 : vector<432x128xi1>, vector<432x128xf32>
    %cst_47 = arith.constant dense<0.000000e+00> : vector<128xf32>
    %78 = vector.multi_reduction <add>, %77, %cst_47 [0] : vector<432x128xf32> to vector<128xf32>
    %79 = vector.shape_cast %78 : vector<128xf32> to vector<1x128xf32>
    %c0_48 = arith.constant 0 : index
    %c0_49 = arith.constant 0 : index
    %c0_50 = arith.constant 0 : index
    %80 = vector.load %arg7[%c0_48, %c0_49, %c0_50] : memref<1x2x128xf32, #tpu.memory_space<vmem>>, vector<1x1x128xf32>
    %81 = vector.shape_cast %80 : vector<1x1x128xf32> to vector<1x128xf32>
    %82 = vector.shape_cast %79 : vector<1x128xf32> to vector<1x1x128xf32>
    tpu.vector_store %arg7[%c0_48, %c0_49, %c0_50], %82 {strides = array<i32>} : memref<1x2x128xf32, #tpu.memory_space<vmem>>, vector<1x1x128xf32>,
    %83 = arith.mulf %77, %77 : vector<432x128xf32>
    %cst_51 = arith.constant dense<0.000000e+00> : vector<128xf32>
    %84 = vector.multi_reduction <add>, %83, %cst_51 [0] : vector<432x128xf32> to vector<128xf32>
    %85 = vector.shape_cast %84 : vector<128xf32> to vector<1x128xf32>
    %c0_52 = arith.constant 0 : index
    %c1_53 = arith.constant 1 : index
    %c0_54 = arith.constant 0 : index
    %86 = vector.load %arg7[%c0_52, %c1_53, %c0_54] : memref<1x2x128xf32, #tpu.memory_space<vmem>>, vector<1x1x128xf32>
    %87 = vector.shape_cast %86 : vector<1x1x128xf32> to vector<1x128xf32>
    %88 = vector.shape_cast %85 : vector<1x128xf32> to vector<1x1x128xf32>
    tpu.vector_store %arg7[%c0_52, %c1_53, %c0_54], %88 {strides = array<i32>} : memref<1x2x128xf32, #tpu.memory_space<vmem>>, vector<1x1x128xf32>,
    %cst_55 = arith.constant 0.000000e+00 : f32
    %89 = vector.broadcast %cst_55 : f32 to vector<32x128xf32>
    %c0_56 = arith.constant 0 : index
    %c0_57 = arith.constant 0 : index
    %c0_58 = arith.constant 0 : index
    %90 = vector.load %arg6[%c0_56, %c0_57, %c0_58] : memref<1x496x128xf32, #tpu.memory_space<vmem>>, vector<1x32x128xf32>
    %91 = vector.shape_cast %90 : vector<1x32x128xf32> to vector<32x128xf32>
    %92 = vector.shape_cast %89 : vector<32x128xf32> to vector<1x32x128xf32>
    tpu.vector_store %arg6[%c0_56, %c0_57, %c0_58], %92 {strides = array<i32>} : memref<1x496x128xf32, #tpu.memory_space<vmem>>, vector<1x32x128xf32>,
    %c0_59 = arith.constant 0 : index
    %c464 = arith.constant 464 : index
    %c0_60 = arith.constant 0 : index
    %93 = vector.load %arg6[%c0_59, %c464, %c0_60] : memref<1x496x128xf32, #tpu.memory_space<vmem>>, vector<1x32x128xf32>
    %94 = vector.shape_cast %93 : vector<1x32x128xf32> to vector<32x128xf32>
    %95 = vector.shape_cast %89 : vector<32x128xf32> to vector<1x32x128xf32>
    tpu.vector_store %arg6[%c0_59, %c464, %c0_60], %95 {strides = array<i32>} : memref<1x496x128xf32, #tpu.memory_space<vmem>>, vector<1x32x128xf32>,
    %c0_61 = arith.constant 0 : index
    %c32_62 = arith.constant 32 : index
    %c0_63 = arith.constant 0 : index
    %96 = vector.load %arg6[%c0_61, %c32_62, %c0_63] : memref<1x496x128xf32, #tpu.memory_space<vmem>>, vector<1x432x128xf32>
    %97 = vector.shape_cast %96 : vector<1x432x128xf32> to vector<432x128xf32>
    %98 = vector.shape_cast %75 : vector<432x128xf32> to vector<1x432x128xf32>
    tpu.vector_store %arg6[%c0_61, %c32_62, %c0_63], %98 {strides = array<i32>} : memref<1x496x128xf32, #tpu.memory_space<vmem>>, vector<1x432x128xf32>,
    return
  }
  func.func @transform_0(%arg0: i32) -> (i32, i32, i32) {
    %c0_i32 = arith.constant 0 : i32
    %c0_i32_0 = arith.constant 0 : i32
    %c0_i32_1 = arith.constant 0 : i32
    return %arg0, %c0_i32, %c0_i32_0 : i32, i32, i32
  }
  func.func @transform_1(%arg0: i32) -> (i32, i32, i32) {
    %c0_i32 = arith.constant 0 : i32
    %c0_i32_0 = arith.constant 0 : i32
    %c0_i32_1 = arith.constant 0 : i32
    %c0_i32_2 = arith.constant 0 : i32
    return %c0_i32, %c0_i32_0, %c0_i32_1 : i32, i32, i32
  }
  func.func @transform_2(%arg0: i32) -> (i32, i32) {
    %c0_i32 = arith.constant 0 : i32
    %c0_i32_0 = arith.constant 0 : i32
    %c0_i32_1 = arith.constant 0 : i32
    return %c0_i32, %c0_i32_0 : i32, i32
  }
  func.func @transform_3(%arg0: i32) -> (i32, i32) {
    %c0_i32 = arith.constant 0 : i32
    %c0_i32_0 = arith.constant 0 : i32
    %c0_i32_1 = arith.constant 0 : i32
    return %c0_i32, %c0_i32_0 : i32, i32
  }
  func.func @transform_4(%arg0: i32) -> (i32, i32) {
    %c0_i32 = arith.constant 0 : i32
    %c0_i32_0 = arith.constant 0 : i32
    %c0_i32_1 = arith.constant 0 : i32
    return %c0_i32, %c0_i32_0 : i32, i32
  }
  func.func @transform_5(%arg0: i32) -> (i32, i32, i32) {
    %c0_i32 = arith.constant 0 : i32
    %c0_i32_0 = arith.constant 0 : i32
    %c0_i32_1 = arith.constant 0 : i32
    return %arg0, %c0_i32, %c0_i32_0 : i32, i32, i32
  }
  func.func @transform_6(%arg0: i32) -> (i32, i32, i32) {
    %c0_i32 = arith.constant 0 : i32
    %c0_i32_0 = arith.constant 0 : i32
    %c0_i32_1 = arith.constant 0 : i32
    return %arg0, %c0_i32, %c0_i32_0 : i32, i32, i32
  }
}

</mosaic_0001>

<llo_original>
// kernel: residual_block.5
$region0: #{residual_block.5}
  #allocation0 [shape = 'u32[]', space=smem, size = 0x4, offset = 0x4, fixed_abs, tag = 'smem constant byte address 0x4 - core index']
  #allocation1 [shape = 'u32[144,128]{1,0:T(1,128)}', space=vmem, size = 0x12000, scoped, tag = 'internal scratch']
  %s0 = inlined_call_operand.vmem [shape: f32[2,496,128], index: 0, kind: input, shape index: {}]
  %s1 = inlined_call_operand.vmem [shape: f32[2,496,128], index: 1, kind: input, shape index: {}]
  %s2 = inlined_call_operand.vmem [shape: f32[1,128], index: 2, kind: input, shape index: {}]
  %s3 = inlined_call_operand.vmem [shape: f32[1,128], index: 3, kind: input, shape index: {}]
  %s4 = inlined_call_operand.vmem [shape: f32[2,432,128], index: 4, kind: output, shape index: {}]
  %s5 = sld [smem:[#allocation0]]
  $region49: #{residual_block.5} parent=0
    _
  %s7 = ssub.s32 1, %s5
  %s8 = scalar_select 0, %s7, %s5
  loop: start=0, step=1, limit=4
  $region2: #{residual_block.5} parent=0 // loop_pre_header
    _
  $region3: #{residual_block.5} parent=0 // loop_header
    %s10 = sphi 0, %s14
    %p11 = scmp.ge.s32.totalorder %s10, 4
    %s20 = sphi 0, %s22
    %s23 = sphi 0, %s20
    %s24 = sphi 0, %s23
    %s40 = sphi 0, %s24
    %s46 = sphi 0, %s48
    %s49 = sphi 0, %s46
    %s50 = sphi 0, %s49
    %s66 = sphi 0, %s50
    %s70 = sphi 0, %s70
    %s72 = sphi 0, %s70
    %s73 = sphi 0, %s72
    %s87 = sphi 0, %s73
    %s91 = sphi 0, %s91
    %s93 = sphi 0, %s91
    %s94 = sphi 0, %s93
    %s108 = sphi 0, %s94
    %s114 = sphi 0, %s116
    %s117 = sphi 0, %s114
    %s118 = sphi 0, %s117
    %s134 = sphi 0, %s118
  $region4: #{residual_block.5} parent=0 // loop_header_branch
    %13 = sbr.rel (%p11) target = $region8
  $region5: #{residual_block.5} parent=0 // loop_body
    %s15 = ssub.s32 %s10, 1
    %s16 = ssub.s32 %s10, 2
    %s17 = sadd.s32 %s10, 1
    %s18 = ssub.s32 %s10, %s17
    %p19 = scmp.eq.s32.totalorder %s18, 0
    %s21 = sadd.s32 %s20, 1
    %s22 = scalar_select %p19, %s20, %s21
    %p25 = pneg %p19
    %p26 = scmp.eq.s32.totalorder %s10, 1
    %p27 = por %p25, %p26
    %p28 = scmp.ne.s32.totalorder %s20, %s23
    %p29 = scmp.eq.s32.totalorder %s10, 0
    %p30 = por %p28, %p29
    %p31 = scmp.ne.s32.totalorder %s20, %s23
    %p32 = scmp.eq.s32.totalorder %s15, 1
    %p33 = por %p31, %p32
    %p34 = scmp.ne.s32.totalorder %s23, %s24
    %p35 = scmp.eq.s32.totalorder %s15, 0
    %p36 = por %p34, %p35
    %p37 = scmp.ne.s32.totalorder %s23, %s24
    %p38 = scmp.eq.s32.totalorder %s16, 1
    %p39 = por %p37, %p38
    %p41 = scmp.ne.s32.totalorder %s24, %s40
    %p42 = scmp.eq.s32.totalorder %s16, 0
    %p43 = por %p41, %p42
    %s44 = ssub.s32 %s10, %s17
    %p45 = scmp.eq.s32.totalorder %s44, 0
    %s47 = sadd.s32 %s46, 1
    %s48 = scalar_select %p45, %s46, %s47
    %p51 = pneg %p45
    %p52 = scmp.eq.s32.totalorder %s10, 1
    %p53 = por %p51, %p52
    %p54 = scmp.ne.s32.totalorder %s46, %s49
    %p55 = scmp.eq.s32.totalorder %s10, 0
    %p56 = por %p54, %p55
    %p57 = scmp.ne.s32.totalorder %s46, %s49
    %p58 = scmp.eq.s32.totalorder %s15, 1
    %p59 = por %p57, %p58
    %p60 = scmp.ne.s32.totalorder %s49, %s50
    %p61 = scmp.eq.s32.totalorder %s15, 0
    %p62 = por %p60, %p61
    %p63 = scmp.ne.s32.totalorder %s49, %s50
    %p64 = scmp.eq.s32.totalorder %s16, 1
    %p65 = por %p63, %p64
    %p67 = scmp.ne.s32.totalorder %s50, %s66
    %p68 = scmp.eq.s32.totalorder %s16, 0
    %p69 = por %p67, %p68
    %s71 = sadd.s32 %s70, 1
    %p74 = scmp.eq.s32.totalorder %s10, 1
    %p75 = scmp.ne.s32.totalorder %s70, %s72
    %p76 = scmp.eq.s32.totalorder %s10, 0
    %p77 = por %p75, %p76
    %p78 = scmp.ne.s32.totalorder %s70, %s72
    %p79 = scmp.eq.s32.totalorder %s15, 1
    %p80 = por %p78, %p79
    %p81 = scmp.ne.s32.totalorder %s72, %s73
    %p82 = scmp.eq.s32.totalorder %s15, 0
    %p83 = por %p81, %p82
    %p84 = scmp.ne.s32.totalorder %s72, %s73
    %p85 = scmp.eq.s32.totalorder %s16, 1
    %p86 = por %p84, %p85
    %p88 = scmp.ne.s32.totalorder %s73, %s87
    %p89 = scmp.eq.s32.totalorder %s16, 0
    %p90 = por %p88, %p89
    %s92 = sadd.s32 %s91, 1
    %p95 = scmp.eq.s32.totalorder %s10, 1
    %p96 = scmp.ne.s32.totalorder %s91, %s93
    %p97 = scmp.eq.s32.totalorder %s10, 0
    %p98 = por %p96, %p97
    %p99 = scmp.ne.s32.totalorder %s91, %s93
    %p100 = scmp.eq.s32.totalorder %s15, 1
    %p101 = por %p99, %p100
    %p102 = scmp.ne.s32.totalorder %s93, %s94
    %p103 = scmp.eq.s32.totalorder %s15, 0
    %p104 = por %p102, %p103
    %p105 = scmp.ne.s32.totalorder %s93, %s94
    %p106 = scmp.eq.s32.totalorder %s16, 1
    %p107 = por %p105, %p106
    %p109 = scmp.ne.s32.totalorder %s94, %s108
    %p110 = scmp.eq.s32.totalorder %s16, 0
    %p111 = por %p109, %p110
    %s112 = ssub.s32 %s10, %s17
    %p113 = scmp.eq.s32.totalorder %s112, 0
    %s115 = sadd.s32 %s114, 1
    %s116 = scalar_select %p113, %s114, %s115
    %p119 = pneg %p113
    %p120 = scmp.eq.s32.totalorder %s10, 1
    %p121 = por %p119, %p120
    %p122 = scmp.ne.s32.totalorder %s114, %s117
    %p123 = scmp.eq.s32.totalorder %s10, 0
    %p124 = por %p122, %p123
    %p125 = scmp.ne.s32.totalorder %s114, %s117
    %p126 = scmp.eq.s32.totalorder %s15, 1
    %p127 = por %p125, %p126
    %p128 = scmp.ne.s32.totalorder %s117, %s118
    %p129 = scmp.eq.s32.totalorder %s15, 0
    %p130 = por %p128, %p129
    %p131 = scmp.ne.s32.totalorder %s117, %s118
    %p132 = scmp.eq.s32.totalorder %s16, 1
    %p133 = por %p131, %p132
    %p135 = scmp.ne.s32.totalorder %s118, %s134
    %p136 = scmp.eq.s32.totalorder %s16, 0
    %p137 = por %p135, %p136
    %p138 = scmp.le.s32.totalorder 1, %s10
    %p139 = scmp.lt.s32.totalorder %s10, 3
    %p140 = pnand %p138, %p139
    %p141 = pneg %p140
    // Predicated region
    $region9: #{residual_block.5} parent=5 // pred_check
      _
    $region10: #{residual_block.5} parent=5 // pred_check_branch
      %143 = sbr.rel (%p140) target = $region12
    $region11: #{residual_block.5} parent=5 // pred_region
      %s144 = ssub.s32 %s10, 1
      // Predicated region
      $region13: #{residual_block.5} parent=11 // pred_check
        %p145 = pneg %p83
      $region14: #{residual_block.5} parent=11 // pred_check_branch
        %147 = sbr.rel (%p145) target = $region16
      $region15: #{residual_block.5} parent=11 // pred_region
        _
      $region16: #{residual_block.5} parent=11 // pred_fallthru
        _
      // Predicated region
      $region17: #{residual_block.5} parent=11 // pred_check
        %p148 = pneg %p104
      $region18: #{residual_block.5} parent=11 // pred_check_branch
        %150 = sbr.rel (%p148) target = $region20
      $region19: #{residual_block.5} parent=11 // pred_region
        _
      $region20: #{residual_block.5} parent=11 // pred_fallthru
        _
    $region12: #{residual_block.5} parent=5 // pred_fallthru
      _
    %p151 = scmp.lt.s32.totalorder %s10, 2
    // Predicated region
    $region21: #{residual_block.5} parent=5 // pred_check
      %p152 = pneg %p151
    $region22: #{residual_block.5} parent=5 // pred_check_branch
      %154 = sbr.rel (%p152) target = $region24
    $region23: #{residual_block.5} parent=5 // pred_region
      // Predicated region
      $region25: #{residual_block.5} parent=23 // pred_check
        %p155 = pneg %p30
      $region26: #{residual_block.5} parent=23 // pred_check_branch
        %157 = sbr.rel (%p155) target = $region28
      $region27: #{residual_block.5} parent=23 // pred_region
        %p158 = scmp.lt.s32.totalorder %s10, 1
        %s159 = scalar_select %p158, %s10, 1
        %s160 = smul.addr %s159, 62
        %s161 = smul.addr %s160, 8
        %s162 = scalar_lea.vmem %s0, %s161
      $region28: #{residual_block.5} parent=23 // pred_fallthru
        _
      // Predicated region
      $region29: #{residual_block.5} parent=23 // pred_check
        %p163 = pneg %p56
      $region30: #{residual_block.5} parent=23 // pred_check_branch
        %165 = sbr.rel (%p163) target = $region32
      $region31: #{residual_block.5} parent=23 // pred_region
        %p166 = scmp.lt.s32.totalorder %s10, 1
        %s167 = scalar_select %p166, %s10, 1
        %s168 = smul.addr %s167, 62
        %s169 = smul.addr %s168, 8
        %s170 = scalar_lea.vmem %s1, %s169
      $region32: #{residual_block.5} parent=23 // pred_fallthru
        _
    $region24: #{residual_block.5} parent=5 // pred_fallthru
      _
    %p171 = scmp.le.s32.totalorder 1, %s10
    %p172 = scmp.lt.s32.totalorder %s10, 3
    %p173 = pnand %p171, %p172
    %p174 = pneg %p173
    // Predicated region
    $region33: #{residual_block.5} parent=5 // pred_check
      _
    $region34: #{residual_block.5} parent=5 // pred_check_branch
      %176 = sbr.rel (%p173) target = $region36
    $region35: #{residual_block.5} parent=5 // pred_region
      %s177 = ssub.s32 %s10, 1
      %p178 = scmp.lt.s32.totalorder %s15, 1
      %s179 = scalar_select %p178, %s15, 1
      %s180 = smul.addr %s179, 62
      %s181 = smul.addr %s180, 8
      %s182 = scalar_lea.vmem %s0, %s181
      %p183 = pneg %p36
      %p184 = pneg %p33
      %p185 = scmp.lt.s32.totalorder %s15, 1
      %s186 = scalar_select %p185, %s15, 1
      %s187 = smul.addr %s186, 62
      %s188 = smul.addr %s187, 8
      %s189 = scalar_lea.vmem %s1, %s188
      %p190 = pneg %p62
      %p191 = pneg %p59
      %p192 = pneg %p83
      %p193 = pneg %p80
      %p194 = pneg %p104
      %p195 = pneg %p101
      %p196 = pneg %p130
      %p197 = pneg %p127
      %p198 = scmp.lt.s32.totalorder %s15, 1
      %s199 = scalar_select %p198, %s15, 1
      %s200 = smul.addr %s199, 54
      %s201 = smul.addr %s200, 8
      %s202 = scalar_lea.vmem %s4, %s201
      %p203 = scmp.lt.s32.totalorder %s15, 1
      %s204 = scalar_select %p203, %s15, 1
      %s205 = smul.addr %s204, 62
      %s206 = smul.addr %s205, 8
      %s207 = scalar_lea.vmem %s0, %s206
      %p208 = scmp.lt.s32.totalorder %s15, 1
      %s209 = scalar_select %p208, %s15, 1
      %s210 = smul.addr %s209, 62
      %s211 = smul.addr %s210, 8
      %s212 = scalar_lea.vmem %s1, %s211
      %p213 = scmp.lt.s32.totalorder %s15, 1
      %s214 = scalar_select %p213, %s15, 1
      %s215 = smul.addr %s214, 54
      %s216 = smul.addr %s215, 8
      %s217 = scalar_lea.vmem %s4, %s216
      %v218 = vld [vmem:[%s207 + $0x20] sm:$0xff]
      %v219 = vld [vmem:[%s207 + $0x28] sm:$0xff]
      %v220 = vld [vmem:[%s207 + $0x30] sm:$0xff]
      %v221 = vld [vmem:[%s207 + $0x38] sm:$0xff]
      %v222 = vld [vmem:[%s207 + $0x40] sm:$0xff]
      %v223 = vld [vmem:[%s207 + $0x48] sm:$0xff]
      %v224 = vld [vmem:[%s207 + $0x50] sm:$0xff]
      %v225 = vld [vmem:[%s207 + $0x58] sm:$0xff]
      %v226 = vld [vmem:[%s207 + $0x60] sm:$0xff]
      %v227 = vld [vmem:[%s207 + $0x68] sm:$0xff]
      %v228 = vld [vmem:[%s207 + $0x70] sm:$0xff]
      %v229 = vld [vmem:[%s207 + $0x78] sm:$0xff]
      %v230 = vld [vmem:[%s207 + $0x80] sm:$0xff]
      %v231 = vld [vmem:[%s207 + $0x88] sm:$0xff]
      %v232 = vld [vmem:[%s207 + $0x90] sm:$0xff]
      %v233 = vld [vmem:[%s207 + $0x98] sm:$0xff]
      %v234 = vld [vmem:[%s207 + $0xa0] sm:$0xff]
      %v235 = vld [vmem:[%s207 + $0xa8] sm:$0xff]
      %v236 = vld [vmem:[%s207 + $0xb0] sm:$0xff]
      %v237 = vld [vmem:[%s207 + $0xb8] sm:$0xff]
      %v238 = vld [vmem:[%s207 + $0xc0] sm:$0xff]
      %v239 = vld [vmem:[%s207 + $0xc8] sm:$0xff]
      %v240 = vld [vmem:[%s207 + $0xd0] sm:$0xff]
      %v241 = vld [vmem:[%s207 + $0xd8] sm:$0xff]
      %v242 = vld [vmem:[%s207 + $0xe0] sm:$0xff]
      %v243 = vld [vmem:[%s207 + $0xe8] sm:$0xff]
      %v244 = vld [vmem:[%s207 + $0xf0] sm:$0xff]
      %v245 = vld [vmem:[%s207 + $0xf8] sm:$0xff]
      %v246 = vld [vmem:[%s207 + $0x100] sm:$0xff]
      %v247 = vld [vmem:[%s207 + $0x108] sm:$0xff]
      %v248 = vld [vmem:[%s207 + $0x110] sm:$0xff]
      %v249 = vld [vmem:[%s207 + $0x118] sm:$0xff]
      %v250 = vld [vmem:[%s207 + $0x120] sm:$0xff]
      %v251 = vld [vmem:[%s207 + $0x128] sm:$0xff]
      %v252 = vld [vmem:[%s207 + $0x130] sm:$0xff]
      %v253 = vld [vmem:[%s207 + $0x138] sm:$0xff]
      %v254 = vld [vmem:[%s207 + $0x140] sm:$0xff]
      %v255 = vld [vmem:[%s207 + $0x148] sm:$0xff]
      %v256 = vld [vmem:[%s207 + $0x150] sm:$0xff]
      %v257 = vld [vmem:[%s207 + $0x158] sm:$0xff]
      %v258 = vld [vmem:[%s207 + $0x160] sm:$0xff]
      %v259 = vld [vmem:[%s207 + $0x168] sm:$0xff]
      %v260 = vld [vmem:[%s207 + $0x170] sm:$0xff]
      %v261 = vld [vmem:[%s207 + $0x178] sm:$0xff]
      %v262 = vld [vmem:[%s207 + $0x180] sm:$0xff]
      %v263 = vld [vmem:[%s207 + $0x188] sm:$0xff]
      %v264 = vld [vmem:[%s207 + $0x190] sm:$0xff]
      %v265 = vld [vmem:[%s207 + $0x198] sm:$0xff]
      %v266 = vld [vmem:[%s207 + $0x1a0] sm:$0xff]
      %v267 = vld [vmem:[%s207 + $0x1a8] sm:$0xff]
      %v268 = vld [vmem:[%s207 + $0x1b0] sm:$0xff]
      %v269 = vld [vmem:[%s207 + $0x1b8] sm:$0xff]
      %v270 = vld [vmem:[%s207 + $0x1c0] sm:$0xff]
      %v271 = vld [vmem:[%s207 + $0x1c8] sm:$0xff]
      %v272 = vld [vmem:[%s212 + $0x20] sm:$0xff]
      %v273 = vld [vmem:[%s212 + $0x28] sm:$0xff]
      %v274 = vld [vmem:[%s212 + $0x30] sm:$0xff]
      %v275 = vld [vmem:[%s212 + $0x38] sm:$0xff]
      %v276 = vld [vmem:[%s212 + $0x40] sm:$0xff]
      %v277 = vld [vmem:[%s212 + $0x48] sm:$0xff]
      %v278 = vld [vmem:[%s212 + $0x50] sm:$0xff]
      %v279 = vld [vmem:[%s212 + $0x58] sm:$0xff]
      %v280 = vld [vmem:[%s212 + $0x60] sm:$0xff]
      %v281 = vld [vmem:[%s212 + $0x68] sm:$0xff]
      %v282 = vld [vmem:[%s212 + $0x70] sm:$0xff]
      %v283 = vld [vmem:[%s212 + $0x78] sm:$0xff]
      %v284 = vld [vmem:[%s212 + $0x80] sm:$0xff]
      %v285 = vld [vmem:[%s212 + $0x88] sm:$0xff]
      %v286 = vld [vmem:[%s212 + $0x90] sm:$0xff]
      %v287 = vld [vmem:[%s212 + $0x98] sm:$0xff]
      %v288 = vld [vmem:[%s212 + $0xa0] sm:$0xff]
      %v289 = vld [vmem:[%s212 + $0xa8] sm:$0xff]
      %v290 = vld [vmem:[%s212 + $0xb0] sm:$0xff]
      %v291 = vld [vmem:[%s212 + $0xb8] sm:$0xff]
      %v292 = vld [vmem:[%s212 + $0xc0] sm:$0xff]
      %v293 = vld [vmem:[%s212 + $0xc8] sm:$0xff]
      %v294 = vld [vmem:[%s212 + $0xd0] sm:$0xff]
      %v295 = vld [vmem:[%s212 + $0xd8] sm:$0xff]
      %v296 = vld [vmem:[%s212 + $0xe0] sm:$0xff]
      %v297 = vld [vmem:[%s212 + $0xe8] sm:$0xff]
      %v298 = vld [vmem:[%s212 + $0xf0] sm:$0xff]
      %v299 = vld [vmem:[%s212 + $0xf8] sm:$0xff]
      %v300 = vld [vmem:[%s212 + $0x100] sm:$0xff]
      %v301 = vld [vmem:[%s212 + $0x108] sm:$0xff]
      %v302 = vld [vmem:[%s212 + $0x110] sm:$0xff]
      %v303 = vld [vmem:[%s212 + $0x118] sm:$0xff]
      %v304 = vld [vmem:[%s212 + $0x120] sm:$0xff]
      %v305 = vld [vmem:[%s212 + $0x128] sm:$0xff]
      %v306 = vld [vmem:[%s212 + $0x130] sm:$0xff]
      %v307 = vld [vmem:[%s212 + $0x138] sm:$0xff]
      %v308 = vld [vmem:[%s212 + $0x140] sm:$0xff]
      %v309 = vld [vmem:[%s212 + $0x148] sm:$0xff]
      %v310 = vld [vmem:[%s212 + $0x150] sm:$0xff]
      %v311 = vld [vmem:[%s212 + $0x158] sm:$0xff]
      %v312 = vld [vmem:[%s212 + $0x160] sm:$0xff]
      %v313 = vld [vmem:[%s212 + $0x168] sm:$0xff]
      %v314 = vld [vmem:[%s212 + $0x170] sm:$0xff]
      %v315 = vld [vmem:[%s212 + $0x178] sm:$0xff]
      %v316 = vld [vmem:[%s212 + $0x180] sm:$0xff]
      %v317 = vld [vmem:[%s212 + $0x188] sm:$0xff]
      %v318 = vld [vmem:[%s212 + $0x190] sm:$0xff]
      %v319 = vld [vmem:[%s212 + $0x198] sm:$0xff]
      %v320 = vld [vmem:[%s212 + $0x1a0] sm:$0xff]
      %v321 = vld [vmem:[%s212 + $0x1a8] sm:$0xff]
      %v322 = vld [vmem:[%s212 + $0x1b0] sm:$0xff]
      %v323 = vld [vmem:[%s212 + $0x1b8] sm:$0xff]
      %v324 = vld [vmem:[%s212 + $0x1c0] sm:$0xff]
      %v325 = vld [vmem:[%s212 + $0x1c8] sm:$0xff]
      %v326 = vld [vmem:[%s2] sm:$0x1]
      %v328 = vlaneseq
      %v329 = vshrl.u32 %v328, 7
      %v330 = vsub.s32 0, %v329
      %v331 = vrot.slane %v326, %v330
      %v333 = vmul.f32 %v218, %v331
      %v334 = vmul.f32 %v219, %v331
      %v335 = vmul.f32 %v220, %v331
      %v336 = vmul.f32 %v221, %v331
      %v337 = vmul.f32 %v222, %v331
      %v338 = vmul.f32 %v223, %v331
      %v339 = vmul.f32 %v224, %v331
      %v340 = vmul.f32 %v225, %v331
      %v341 = vmul.f32 %v226, %v331
      %v342 = vmul.f32 %v227, %v331
      %v343 = vmul.f32 %v228, %v331
      %v344 = vmul.f32 %v229, %v331
      %v345 = vmul.f32 %v230, %v331
      %v346 = vmul.f32 %v231, %v331
      %v347 = vmul.f32 %v232, %v331
      %v348 = vmul.f32 %v233, %v331
      %v349 = vmul.f32 %v234, %v331
      %v350 = vmul.f32 %v235, %v331
      %v351 = vmul.f32 %v236, %v331
      %v352 = vmul.f32 %v237, %v331
      %v353 = vmul.f32 %v238, %v331
      %v354 = vmul.f32 %v239, %v331
      %v355 = vmul.f32 %v240, %v331
      %v356 = vmul.f32 %v241, %v331
      %v357 = vmul.f32 %v242, %v331
      %v358 = vmul.f32 %v243, %v331
      %v359 = vmul.f32 %v244, %v331
      %v360 = vmul.f32 %v245, %v331
      %v361 = vmul.f32 %v246, %v331
      %v362 = vmul.f32 %v247, %v331
      %v363 = vmul.f32 %v248, %v331
      %v364 = vmul.f32 %v249, %v331
      %v365 = vmul.f32 %v250, %v331
      %v366 = vmul.f32 %v251, %v331
      %v367 = vmul.f32 %v252, %v331
      %v368 = vmul.f32 %v253, %v331
      %v369 = vmul.f32 %v254, %v331
      %v370 = vmul.f32 %v255, %v331
      %v371 = vmul.f32 %v256, %v331
      %v372 = vmul.f32 %v257, %v331
      %v373 = vmul.f32 %v258, %v331
      %v374 = vmul.f32 %v259, %v331
      %v375 = vmul.f32 %v260, %v331
      %v376 = vmul.f32 %v261, %v331
      %v377 = vmul.f32 %v262, %v331
      %v378 = vmul.f32 %v263, %v331
      %v379 = vmul.f32 %v264, %v331
      %v380 = vmul.f32 %v265, %v331
      %v381 = vmul.f32 %v266, %v331
      %v382 = vmul.f32 %v267, %v331
      %v383 = vmul.f32 %v268, %v331
      %v384 = vmul.f32 %v269, %v331
      %v385 = vmul.f32 %v270, %v331
      %v386 = vmul.f32 %v271, %v331
      %v387 = vld [vmem:[%s3] sm:$0x1]
      %v389 = vlaneseq
      %v390 = vshrl.u32 %v389, 7
      %v391 = vsub.s32 0, %v390
      %v392 = vrot.slane %v387, %v391
      %v394 = vadd.f32 %v333, %v392
      %v395 = vadd.f32 %v334, %v392
      %v396 = vadd.f32 %v335, %v392
      %v397 = vadd.f32 %v336, %v392
      %v398 = vadd.f32 %v337, %v392
      %v399 = vadd.f32 %v338, %v392
      %v400 = vadd.f32 %v339, %v392
      %v401 = vadd.f32 %v340, %v392
      %v402 = vadd.f32 %v341, %v392
      %v403 = vadd.f32 %v342, %v392
      %v404 = vadd.f32 %v343, %v392
      %v405 = vadd.f32 %v344, %v392
      %v406 = vadd.f32 %v345, %v392
      %v407 = vadd.f32 %v346, %v392
      %v408 = vadd.f32 %v347, %v392
      %v409 = vadd.f32 %v348, %v392
      %v410 = vadd.f32 %v349, %v392
      %v411 = vadd.f32 %v350, %v392
      %v412 = vadd.f32 %v351, %v392
      %v413 = vadd.f32 %v352, %v392
      %v414 = vadd.f32 %v353, %v392
      %v415 = vadd.f32 %v354, %v392
      %v416 = vadd.f32 %v355, %v392
      %v417 = vadd.f32 %v356, %v392
      %v418 = vadd.f32 %v357, %v392
      %v419 = vadd.f32 %v358, %v392
      %v420 = vadd.f32 %v359, %v392
      %v421 = vadd.f32 %v360, %v392
      %v422 = vadd.f32 %v361, %v392
      %v423 = vadd.f32 %v362, %v392
      %v424 = vadd.f32 %v363, %v392
      %v425 = vadd.f32 %v364, %v392
      %v426 = vadd.f32 %v365, %v392
      %v427 = vadd.f32 %v366, %v392
      %v428 = vadd.f32 %v367, %v392
      %v429 = vadd.f32 %v368, %v392
      %v430 = vadd.f32 %v369, %v392
      %v431 = vadd.f32 %v370, %v392
      %v432 = vadd.f32 %v371, %v392
      %v433 = vadd.f32 %v372, %v392
      %v434 = vadd.f32 %v373, %v392
      %v435 = vadd.f32 %v374, %v392
      %v436 = vadd.f32 %v375, %v392
      %v437 = vadd.f32 %v376, %v392
      %v438 = vadd.f32 %v377, %v392
      %v439 = vadd.f32 %v378, %v392
      %v440 = vadd.f32 %v379, %v392
      %v441 = vadd.f32 %v380, %v392
      %v442 = vadd.f32 %v381, %v392
      %v443 = vadd.f32 %v382, %v392
      %v444 = vadd.f32 %v383, %v392
      %v445 = vadd.f32 %v384, %v392
      %v446 = vadd.f32 %v385, %v392
      %v447 = vadd.f32 %v386, %v392
      %v448 = vadd.f32 %v394, %v272
      %v449 = vadd.f32 %v395, %v273
      %v450 = vadd.f32 %v396, %v274
      %v451 = vadd.f32 %v397, %v275
      %v452 = vadd.f32 %v398, %v276
      %v453 = vadd.f32 %v399, %v277
      %v454 = vadd.f32 %v400, %v278
      %v455 = vadd.f32 %v401, %v279
      %v456 = vadd.f32 %v402, %v280
      %v457 = vadd.f32 %v403, %v281
      %v458 = vadd.f32 %v404, %v282
      %v459 = vadd.f32 %v405, %v283
      %v460 = vadd.f32 %v406, %v284
      %v461 = vadd.f32 %v407, %v285
      %v462 = vadd.f32 %v408, %v286
      %v463 = vadd.f32 %v409, %v287
      %v464 = vadd.f32 %v410, %v288
      %v465 = vadd.f32 %v411, %v289
      %v466 = vadd.f32 %v412, %v290
      %v467 = vadd.f32 %v413, %v291
      %v468 = vadd.f32 %v414, %v292
      %v469 = vadd.f32 %v415, %v293
      %v470 = vadd.f32 %v416, %v294
      %v471 = vadd.f32 %v417, %v295
      %v472 = vadd.f32 %v418, %v296
      %v473 = vadd.f32 %v419, %v297
      %v474 = vadd.f32 %v420, %v298
      %v475 = vadd.f32 %v421, %v299
      %v476 = vadd.f32 %v422, %v300
      %v477 = vadd.f32 %v423, %v301
      %v478 = vadd.f32 %v424, %v302
      %v479 = vadd.f32 %v425, %v303
      %v480 = vadd.f32 %v426, %v304
      %v481 = vadd.f32 %v427, %v305
      %v482 = vadd.f32 %v428, %v306
      %v483 = vadd.f32 %v429, %v307
      %v484 = vadd.f32 %v430, %v308
      %v485 = vadd.f32 %v431, %v309
      %v486 = vadd.f32 %v432, %v310
      %v487 = vadd.f32 %v433, %v311
      %v488 = vadd.f32 %v434, %v312
      %v489 = vadd.f32 %v435, %v313
      %v490 = vadd.f32 %v436, %v314
      %v491 = vadd.f32 %v437, %v315
      %v492 = vadd.f32 %v438, %v316
      %v493 = vadd.f32 %v439, %v317
      %v494 = vadd.f32 %v440, %v318
      %v495 = vadd.f32 %v441, %v319
      %v496 = vadd.f32 %v442, %v320
      %v497 = vadd.f32 %v443, %v321
      %v498 = vadd.f32 %v444, %v322
      %v499 = vadd.f32 %v445, %v323
      %v500 = vadd.f32 %v446, %v324
      %v501 = vadd.f32 %v447, %v325
      %502 = vst [vmem:[%s217] sm:$0xff] %v448
      %503 = vst [vmem:[%s217 + $0x8] sm:$0xff] %v449
      %504 = vst [vmem:[%s217 + $0x10] sm:$0xff] %v450
      %505 = vst [vmem:[%s217 + $0x18] sm:$0xff] %v451
      %506 = vst [vmem:[%s217 + $0x20] sm:$0xff] %v452
      %507 = vst [vmem:[%s217 + $0x28] sm:$0xff] %v453
      %508 = vst [vmem:[%s217 + $0x30] sm:$0xff] %v454
      %509 = vst [vmem:[%s217 + $0x38] sm:$0xff] %v455
      %510 = vst [vmem:[%s217 + $0x40] sm:$0xff] %v456
      %511 = vst [vmem:[%s217 + $0x48] sm:$0xff] %v457
      %512 = vst [vmem:[%s217 + $0x50] sm:$0xff] %v458
      %513 = vst [vmem:[%s217 + $0x58] sm:$0xff] %v459
      %514 = vst [vmem:[%s217 + $0x60] sm:$0xff] %v460
      %515 = vst [vmem:[%s217 + $0x68] sm:$0xff] %v461
      %516 = vst [vmem:[%s217 + $0x70] sm:$0xff] %v462
      %517 = vst [vmem:[%s217 + $0x78] sm:$0xff] %v463
      %518 = vst [vmem:[%s217 + $0x80] sm:$0xff] %v464
      %519 = vst [vmem:[%s217 + $0x88] sm:$0xff] %v465
      %520 = vst [vmem:[%s217 + $0x90] sm:$0xff] %v466
      %521 = vst [vmem:[%s217 + $0x98] sm:$0xff] %v467
      %522 = vst [vmem:[%s217 + $0xa0] sm:$0xff] %v468
      %523 = vst [vmem:[%s217 + $0xa8] sm:$0xff] %v469
      %524 = vst [vmem:[%s217 + $0xb0] sm:$0xff] %v470
      %525 = vst [vmem:[%s217 + $0xb8] sm:$0xff] %v471
      %526 = vst [vmem:[%s217 + $0xc0] sm:$0xff] %v472
      %527 = vst [vmem:[%s217 + $0xc8] sm:$0xff] %v473
      %528 = vst [vmem:[%s217 + $0xd0] sm:$0xff] %v474
      %529 = vst [vmem:[%s217 + $0xd8] sm:$0xff] %v475
      %530 = vst [vmem:[%s217 + $0xe0] sm:$0xff] %v476
      %531 = vst [vmem:[%s217 + $0xe8] sm:$0xff] %v477
      %532 = vst [vmem:[%s217 + $0xf0] sm:$0xff] %v478
      %533 = vst [vmem:[%s217 + $0xf8] sm:$0xff] %v479
      %534 = vst [vmem:[%s217 + $0x100] sm:$0xff] %v480
      %535 = vst [vmem:[%s217 + $0x108] sm:$0xff] %v481
      %536 = vst [vmem:[%s217 + $0x110] sm:$0xff] %v482
      %537 = vst [vmem:[%s217 + $0x118] sm:$0xff] %v483
      %538 = vst [vmem:[%s217 + $0x120] sm:$0xff] %v484
      %539 = vst [vmem:[%s217 + $0x128] sm:$0xff] %v485
      %540 = vst [vmem:[%s217 + $0x130] sm:$0xff] %v486
      %541 = vst [vmem:[%s217 + $0x138] sm:$0xff] %v487
      %542 = vst [vmem:[%s217 + $0x140] sm:$0xff] %v488
      %543 = vst [vmem:[%s217 + $0x148] sm:$0xff] %v489
      %544 = vst [vmem:[%s217 + $0x150] sm:$0xff] %v490
      %545 = vst [vmem:[%s217 + $0x158] sm:$0xff] %v491
      %546 = vst [vmem:[%s217 + $0x160] sm:$0xff] %v492
      %547 = vst [vmem:[%s217 + $0x168] sm:$0xff] %v493
      %548 = vst [vmem:[%s217 + $0x170] sm:$0xff] %v494
      %549 = vst [vmem:[%s217 + $0x178] sm:$0xff] %v495
      %550 = vst [vmem:[%s217 + $0x180] sm:$0xff] %v496
      %551 = vst [vmem:[%s217 + $0x188] sm:$0xff] %v497
      %552 = vst [vmem:[%s217 + $0x190] sm:$0xff] %v498
      %553 = vst [vmem:[%s217 + $0x198] sm:$0xff] %v499
      %554 = vst [vmem:[%s217 + $0x1a0] sm:$0xff] %v500
      %555 = vst [vmem:[%s217 + $0x1a8] sm:$0xff] %v501
      %p556 = scmp.lt.s32.totalorder %s15, 1
      %s557 = scalar_select %p556, %s15, 1
      %s558 = smul.addr %s557, 54
      %s559 = smul.addr %s558, 8
      %s560 = scalar_lea.vmem %s4, %s559
      // Predicated region
      $region37: #{residual_block.5} parent=35 // pred_check
        %p561 = pneg %p127
      $region38: #{residual_block.5} parent=35 // pred_check_branch
        %563 = sbr.rel (%p561) target = $region40
      $region39: #{residual_block.5} parent=35 // pred_region
        _
      $region40: #{residual_block.5} parent=35 // pred_fallthru
        _
    $region36: #{residual_block.5} parent=5 // pred_fallthru
      _
    %p564 = scmp.le.s32.totalorder 2, %s10
    // Predicated region
    $region41: #{residual_block.5} parent=5 // pred_check
      %p565 = pneg %p564
    $region42: #{residual_block.5} parent=5 // pred_check_branch
      %567 = sbr.rel (%p565) target = $region44
    $region43: #{residual_block.5} parent=5 // pred_region
      %s568 = ssub.s32 %s10, 2
      // Predicated region
      $region45: #{residual_block.5} parent=43 // pred_check
        %p569 = pneg %p133
      $region46: #{residual_block.5} parent=43 // pred_check_branch
        %571 = sbr.rel (%p569) target = $region48
      $region47: #{residual_block.5} parent=43 // pred_region
        %p572 = scmp.lt.s32.totalorder %s16, 1
        %s573 = scalar_select %p572, %s16, 1
        %s574 = smul.addr %s573, 54
        %s575 = smul.addr %s574, 8
        %s576 = scalar_lea.vmem %s4, %s575
      $region48: #{residual_block.5} parent=43 // pred_fallthru
        _
    $region44: #{residual_block.5} parent=5 // pred_fallthru
      _
  $region6: #{residual_block.5} parent=0 // loop_footer
    %s14 = sadd.s32 1, %s10
  $region7: #{residual_block.5} parent=0 // loop_footer_branch
    %9 = sbr.rel target = $region3
  $region8: #{residual_block.5} parent=0 // loop_exit
    _

// kernel: residual_block.4
$region0: #{residual_block.4}
  #allocation0 [shape = 'u32[]', space=smem, size = 0x4, offset = 0x4, fixed_abs, tag = 'smem constant byte address 0x4 - core index']
  #allocation1 [shape = 'u32[144,128]{1,0:T(1,128)}', space=vmem, size = 0x12000, scoped, tag = 'internal scratch']
  #allocation2 [shape = 'f32[496,128]{1,0:T(8,128)}', space=vmem, size = 0x3e000, scoped, tag = 'scratch operand']
  %s0 = inlined_call_operand.vmem [shape: f32[2,496,128], index: 0, kind: input, shape index: {}]
  %s1 = inlined_call_operand.vmem [shape: bf16[9,128,128], index: 1, kind: input, shape index: {}]
  %s2 = inlined_call_operand.vmem [shape: f32[1,128], index: 2, kind: input, shape index: {}]
  %s3 = inlined_call_operand.vmem [shape: f32[1,128], index: 3, kind: input, shape index: {}]
  %s4 = inlined_call_operand.vmem [shape: f32[1,128], index: 4, kind: input, shape index: {}]
  %s5 = inlined_call_operand.vmem [shape: f32[2,496,128], index: 5, kind: output, shape index: {0}]
  %s6 = inlined_call_operand.vmem [shape: f32[2,2,128], index: 6, kind: output, shape index: {1}]
  %7 = xla_tuple %s5, %s6
  %s8 = sld [smem:[#allocation0]]
  $region61: #{residual_block.4} parent=0
    _
  %s10 = ssub.s32 1, %s8
  %s11 = scalar_select 0, %s10, %s8
  loop: start=0, step=1, limit=4
  $region2: #{residual_block.4} parent=0 // loop_pre_header
    _
  $region3: #{residual_block.4} parent=0 // loop_header
    %s13 = sphi 0, %s17
    %p14 = scmp.ge.s32.totalorder %s13, 4
    %s23 = sphi 0, %s25
    %s26 = sphi 0, %s23
    %s27 = sphi 0, %s26
    %s43 = sphi 0, %s27
    %s47 = sphi 0, %s47
    %s49 = sphi 0, %s47
    %s50 = sphi 0, %s49
    %s64 = sphi 0, %s50
    %s68 = sphi 0, %s68
    %s70 = sphi 0, %s68
    %s71 = sphi 0, %s70
    %s85 = sphi 0, %s71
    %s89 = sphi 0, %s89
    %s91 = sphi 0, %s89
    %s92 = sphi 0, %s91
    %s106 = sphi 0, %s92
    %s110 = sphi 0, %s110
    %s112 = sphi 0, %s110
    %s113 = sphi 0, %s112
    %s127 = sphi 0, %s113
    %s133 = sphi 0, %s135
    %s136 = sphi 0, %s133
    %s137 = sphi 0, %s136
    %s153 = sphi 0, %s137
    %s159 = sphi 0, %s161
    %s162 = sphi 0, %s159
    %s163 = sphi 0, %s162
    %s179 = sphi 0, %s163
  $region4: #{residual_block.4} parent=0 // loop_header_branch
    %16 = sbr.rel (%p14) target = $region8
  $region5: #{residual_block.4} parent=0 // loop_body
    %s18 = ssub.s32 %s13, 1
    %s19 = ssub.s32 %s13, 2
    %s20 = sadd.s32 %s13, 1
    %s21 = ssub.s32 %s13, %s20
    %p22 = scmp.eq.s32.totalorder %s21, 0
    %s24 = sadd.s32 %s23, 1
    %s25 = scalar_select %p22, %s23, %s24
    %p28 = pneg %p22
    %p29 = scmp.eq.s32.totalorder %s13, 1
    %p30 = por %p28, %p29
    %p31 = scmp.ne.s32.totalorder %s23, %s26
    %p32 = scmp.eq.s32.totalorder %s13, 0
    %p33 = por %p31, %p32
    %p34 = scmp.ne.s32.totalorder %s23, %s26
    %p35 = scmp.eq.s32.totalorder %s18, 1
    %p36 = por %p34, %p35
    %p37 = scmp.ne.s32.totalorder %s26, %s27
    %p38 = scmp.eq.s32.totalorder %s18, 0
    %p39 = por %p37, %p38
    %p40 = scmp.ne.s32.totalorder %s26, %s27
    %p41 = scmp.eq.s32.totalorder %s19, 1
    %p42 = por %p40, %p41
    %p44 = scmp.ne.s32.totalorder %s27, %s43
    %p45 = scmp.eq.s32.totalorder %s19, 0
    %p46 = por %p44, %p45
    %s48 = sadd.s32 %s47, 1
    %p51 = scmp.eq.s32.totalorder %s13, 1
    %p52 = scmp.ne.s32.totalorder %s47, %s49
    %p53 = scmp.eq.s32.totalorder %s13, 0
    %p54 = por %p52, %p53
    %p55 = scmp.ne.s32.totalorder %s47, %s49
    %p56 = scmp.eq.s32.totalorder %s18, 1
    %p57 = por %p55, %p56
    %p58 = scmp.ne.s32.totalorder %s49, %s50
    %p59 = scmp.eq.s32.totalorder %s18, 0
    %p60 = por %p58, %p59
    %p61 = scmp.ne.s32.totalorder %s49, %s50
    %p62 = scmp.eq.s32.totalorder %s19, 1
    %p63 = por %p61, %p62
    %p65 = scmp.ne.s32.totalorder %s50, %s64
    %p66 = scmp.eq.s32.totalorder %s19, 0
    %p67 = por %p65, %p66
    %s69 = sadd.s32 %s68, 1
    %p72 = scmp.eq.s32.totalorder %s13, 1
    %p73 = scmp.ne.s32.totalorder %s68, %s70
    %p74 = scmp.eq.s32.totalorder %s13, 0
    %p75 = por %p73, %p74
    %p76 = scmp.ne.s32.totalorder %s68, %s70
    %p77 = scmp.eq.s32.totalorder %s18, 1
    %p78 = por %p76, %p77
    %p79 = scmp.ne.s32.totalorder %s70, %s71
    %p80 = scmp.eq.s32.totalorder %s18, 0
    %p81 = por %p79, %p80
    %p82 = scmp.ne.s32.totalorder %s70, %s71
    %p83 = scmp.eq.s32.totalorder %s19, 1
    %p84 = por %p82, %p83
    %p86 = scmp.ne.s32.totalorder %s71, %s85
    %p87 = scmp.eq.s32.totalorder %s19, 0
    %p88 = por %p86, %p87
    %s90 = sadd.s32 %s89, 1
    %p93 = scmp.eq.s32.totalorder %s13, 1
    %p94 = scmp.ne.s32.totalorder %s89, %s91
    %p95 = scmp.eq.s32.totalorder %s13, 0
    %p96 = por %p94, %p95
    %p97 = scmp.ne.s32.totalorder %s89, %s91
    %p98 = scmp.eq.s32.totalorder %s18, 1
    %p99 = por %p97, %p98
    %p100 = scmp.ne.s32.totalorder %s91, %s92
    %p101 = scmp.eq.s32.totalorder %s18, 0
    %p102 = por %p100, %p101
    %p103 = scmp.ne.s32.totalorder %s91, %s92
    %p104 = scmp.eq.s32.totalorder %s19, 1
    %p105 = por %p103, %p104
    %p107 = scmp.ne.s32.totalorder %s92, %s106
    %p108 = scmp.eq.s32.totalorder %s19, 0
    %p109 = por %p107, %p108
    %s111 = sadd.s32 %s110, 1
    %p114 = scmp.eq.s32.totalorder %s13, 1
    %p115 = scmp.ne.s32.totalorder %s110, %s112
    %p116 = scmp.eq.s32.totalorder %s13, 0
    %p117 = por %p115, %p116
    %p118 = scmp.ne.s32.totalorder %s110, %s112
    %p119 = scmp.eq.s32.totalorder %s18, 1
    %p120 = por %p118, %p119
    %p121 = scmp.ne.s32.totalorder %s112, %s113
    %p122 = scmp.eq.s32.totalorder %s18, 0
    %p123 = por %p121, %p122
    %p124 = scmp.ne.s32.totalorder %s112, %s113
    %p125 = scmp.eq.s32.totalorder %s19, 1
    %p126 = por %p124, %p125
    %p128 = scmp.ne.s32.totalorder %s113, %s127
    %p129 = scmp.eq.s32.totalorder %s19, 0
    %p130 = por %p128, %p129
    %s131 = ssub.s32 %s13, %s20
    %p132 = scmp.eq.s32.totalorder %s131, 0
    %s134 = sadd.s32 %s133, 1
    %s135 = scalar_select %p132, %s133, %s134
    %p138 = pneg %p132
    %p139 = scmp.eq.s32.totalorder %s13, 1
    %p140 = por %p138, %p139
    %p141 = scmp.ne.s32.totalorder %s133, %s136
    %p142 = scmp.eq.s32.totalorder %s13, 0
    %p143 = por %p141, %p142
    %p144 = scmp.ne.s32.totalorder %s133, %s136
    %p145 = scmp.eq.s32.totalorder %s18, 1
    %p146 = por %p144, %p145
    %p147 = scmp.ne.s32.totalorder %s136, %s137
    %p148 = scmp.eq.s32.totalorder %s18, 0
    %p149 = por %p147, %p148
    %p150 = scmp.ne.s32.totalorder %s136, %s137
    %p151 = scmp.eq.s32.totalorder %s19, 1
    %p152 = por %p150, %p151
    %p154 = scmp.ne.s32.totalorder %s137, %s153
    %p155 = scmp.eq.s32.totalorder %s19, 0
    %p156 = por %p154, %p155
    %s157 = ssub.s32 %s13, %s20
    %p158 = scmp.eq.s32.totalorder %s157, 0
    %s160 = sadd.s32 %s159, 1
    %s161 = scalar_select %p158, %s159, %s160
    %p164 = pneg %p158
    %p165 = scmp.eq.s32.totalorder %s13, 1
    %p166 = por %p164, %p165
    %p167 = scmp.ne.s32.totalorder %s159, %s162
    %p168 = scmp.eq.s32.totalorder %s13, 0
    %p169 = por %p167, %p168
    %p170 = scmp.ne.s32.totalorder %s159, %s162
    %p171 = scmp.eq.s32.totalorder %s18, 1
    %p172 = por %p170, %p171
    %p173 = scmp.ne.s32.totalorder %s162, %s163
    %p174 = scmp.eq.s32.totalorder %s18, 0
    %p175 = por %p173, %p174
    %p176 = scmp.ne.s32.totalorder %s162, %s163
    %p177 = scmp.eq.s32.totalorder %s19, 1
    %p178 = por %p176, %p177
    %p180 = scmp.ne.s32.totalorder %s163, %s179
    %p181 = scmp.eq.s32.totalorder %s19, 0
    %p182 = por %p180, %p181
    %p183 = scmp.le.s32.totalorder 1, %s13
    %p184 = scmp.lt.s32.totalorder %s13, 3
    %p185 = pnand %p183, %p184
    %p186 = pneg %p185
    // Predicated region
    $region9: #{residual_block.4} parent=5 // pred_check
      _
    $region10: #{residual_block.4} parent=5 // pred_check_branch
      %188 = sbr.rel (%p185) target = $region12
    $region11: #{residual_block.4} parent=5 // pred_region
      %s189 = ssub.s32 %s13, 1
      // Predicated region
      $region13: #{residual_block.4} parent=11 // pred_check
        %p190 = pneg %p60
      $region14: #{residual_block.4} parent=11 // pred_check_branch
        %192 = sbr.rel (%p190) target = $region16
      $region15: #{residual_block.4} parent=11 // pred_region
        _
      $region16: #{residual_block.4} parent=11 // pred_fallthru
        _
      // Predicated region
      $region17: #{residual_block.4} parent=11 // pred_check
        %p193 = pneg %p81
      $region18: #{residual_block.4} parent=11 // pred_check_branch
        %195 = sbr.rel (%p193) target = $region20
      $region19: #{residual_block.4} parent=11 // pred_region
        _
      $region20: #{residual_block.4} parent=11 // pred_fallthru
        _
      // Predicated region
      $region21: #{residual_block.4} parent=11 // pred_check
        %p196 = pneg %p102
      $region22: #{residual_block.4} parent=11 // pred_check_branch
        %198 = sbr.rel (%p196) target = $region24
      $region23: #{residual_block.4} parent=11 // pred_region
        _
      $region24: #{residual_block.4} parent=11 // pred_fallthru
        _
      // Predicated region
      $region25: #{residual_block.4} parent=11 // pred_check
        %p199 = pneg %p123
      $region26: #{residual_block.4} parent=11 // pred_check_branch
        %201 = sbr.rel (%p199) target = $region28
      $region27: #{residual_block.4} parent=11 // pred_region
        _
      $region28: #{residual_block.4} parent=11 // pred_fallthru
        _
    $region12: #{residual_block.4} parent=5 // pred_fallthru
      _
    %p202 = scmp.lt.s32.totalorder %s13, 2
    // Predicated region
    $region29: #{residual_block.4} parent=5 // pred_check
      %p203 = pneg %p202
    $region30: #{residual_block.4} parent=5 // pred_check_branch
      %205 = sbr.rel (%p203) target = $region32
    $region31: #{residual_block.4} parent=5 // pred_region
      // Predicated region
      $region33: #{residual_block.4} parent=31 // pred_check
        %p206 = pneg %p33
      $region34: #{residual_block.4} parent=31 // pred_check_branch
        %208 = sbr.rel (%p206) target = $region36
      $region35: #{residual_block.4} parent=31 // pred_region
        %p209 = scmp.lt.s32.totalorder %s13, 1
        %s210 = scalar_select %p209, %s13, 1
        %s211 = smul.addr %s210, 62
        %s212 = smul.addr %s211, 8
        %s213 = scalar_lea.vmem %s0, %s212
      $region36: #{residual_block.4} parent=31 // pred_fallthru
        _
    $region32: #{residual_block.4} parent=5 // pred_fallthru
      _
    %p214 = scmp.le.s32.totalorder 1, %s13
    %p215 = scmp.lt.s32.totalorder %s13, 3
    %p216 = pnand %p214, %p215
    %p217 = pneg %p216
    // Predicated region
    $region37: #{residual_block.4} parent=5 // pred_check
      _
    $region38: #{residual_block.4} parent=5 // pred_check_branch
      %219 = sbr.rel (%p216) target = $region40
    $region39: #{residual_block.4} parent=5 // pred_region
      %s220 = ssub.s32 %s13, 1
      %p221 = scmp.lt.s32.totalorder %s18, 1
      %s222 = scalar_select %p221, %s18, 1
      %s223 = smul.addr %s222, 62
      %s224 = smul.addr %s223, 8
      %s225 = scalar_lea.vmem %s0, %s224
      %p226 = pneg %p39
      %p227 = pneg %p36
      %p228 = pneg %p60
      %p229 = pneg %p57
      %p230 = pneg %p81
      %p231 = pneg %p78
      %p232 = pneg %p102
      %p233 = pneg %p99
      %p234 = pneg %p123
      %p235 = pneg %p120
      %p236 = pneg %p149
      %p237 = pneg %p146
      %p238 = scmp.lt.s32.totalorder %s18, 1
      %s239 = scalar_select %p238, %s18, 1
      %s240 = smul.addr %s239, 62
      %s241 = smul.addr %s240, 8
      %s242 = scalar_lea.vmem %s5, %s241
      %p243 = pneg %p175
      %p244 = pneg %p172
      %p245 = scmp.lt.s32.totalorder %s18, 1
      %s246 = scalar_select %p245, %s18, 1
      %s247 = smul.addr %s246, 2
      %s248 = scalar_lea.vmem %s6, %s247
      %p249 = scmp.lt.s32.totalorder %s18, 1
      %s250 = scalar_select %p249, %s18, 1
      %s251 = smul.addr %s250, 62
      %s252 = smul.addr %s251, 8
      %s253 = scalar_lea.vmem %s0, %s252
      %p254 = scmp.lt.s32.totalorder %s18, 1
      %s255 = scalar_select %p254, %s18, 1
      %s256 = smul.addr %s255, 62
      %s257 = smul.addr %s256, 8
      %s258 = scalar_lea.vmem %s5, %s257
      %p259 = scmp.lt.s32.totalorder %s18, 1
      %s260 = scalar_select %p259, %s18, 1
      %s261 = smul.addr %s260, 2
      %s262 = scalar_lea.vmem %s6, %s261
      %v264 = vlaneseq
      %v265 = vshrl.u32 %v264, 7
      %v266 = vadd.s32 %v265, 8
      %v267 = vadd.s32 %v265, 16
      %v268 = vadd.s32 %v265, 24
      %v269 = vadd.s32 %v265, 32
      %v270 = vadd.s32 %v265, 40
      %v271 = vadd.s32 %v265, 48
      %v272 = vadd.s32 %v265, 56
      %v273 = vadd.s32 %v265, 64
      %v274 = vadd.s32 %v265, 72
      %v275 = vadd.s32 %v265, 80
      %v276 = vadd.s32 %v265, 88
      %v277 = vadd.s32 %v265, 96
      %v278 = vadd.s32 %v265, 104
      %v279 = vadd.s32 %v265, 112
      %v280 = vadd.s32 %v265, 120
      %v281 = vadd.s32 %v265, 128
      %v282 = vadd.s32 %v265, 136
      %v283 = vadd.s32 %v265, 144
      %v284 = vadd.s32 %v265, 152
      %v285 = vadd.s32 %v265, 160
      %v286 = vadd.s32 %v265, 168
      %v287 = vadd.s32 %v265, 176
      %v288 = vadd.s32 %v265, 184
      %v289 = vadd.s32 %v265, 192
      %v290 = vadd.s32 %v265, 200
      %v291 = vadd.s32 %v265, 208
      %v292 = vadd.s32 %v265, 216
      %v293 = vadd.s32 %v265, 224
      %v294 = vadd.s32 %v265, 232
      %v295 = vadd.s32 %v265, 240
      %v296 = vadd.s32 %v265, 248
      %v297 = vadd.s32 %v265, 256
      %v298 = vadd.s32 %v265, 264
      %v299 = vadd.s32 %v265, 272
      %v300 = vadd.s32 %v265, 280
      %v301 = vadd.s32 %v265, 288
      %v302 = vadd.s32 %v265, 296
      %v303 = vadd.s32 %v265, 304
      %v304 = vadd.s32 %v265, 312
      %v305 = vadd.s32 %v265, 320
      %v306 = vadd.s32 %v265, 328
      %v307 = vadd.s32 %v265, 336
      %v308 = vadd.s32 %v265, 344
      %v309 = vadd.s32 %v265, 352
      %v310 = vadd.s32 %v265, 360
      %v311 = vadd.s32 %v265, 368
      %v312 = vadd.s32 %v265, 376
      %v313 = vadd.s32 %v265, 384
      %v314 = vadd.s32 %v265, 392
      %v315 = vadd.s32 %v265, 400
      %v316 = vadd.s32 %v265, 408
      %v317 = vadd.s32 %v265, 416
      %v318 = vadd.s32 %v265, 424
      %vm319 = vcmp.ge.s32.totalorder %v265, 24
      %vm320 = vcmp.ge.s32.totalorder %v266, 24
      %vm321 = vcmp.ge.s32.totalorder %v267, 24
      %vm322 = vcmp.ge.s32.totalorder %v268, 24
      %vm323 = vcmp.ge.s32.totalorder %v269, 24
      %vm324 = vcmp.ge.s32.totalorder %v270, 24
      %vm325 = vcmp.ge.s32.totalorder %v271, 24
      %vm326 = vcmp.ge.s32.totalorder %v272, 24
      %vm327 = vcmp.ge.s32.totalorder %v273, 24
      %vm328 = vcmp.ge.s32.totalorder %v274, 24
      %vm329 = vcmp.ge.s32.totalorder %v275, 24
      %vm330 = vcmp.ge.s32.totalorder %v276, 24
      %vm331 = vcmp.ge.s32.totalorder %v277, 24
      %vm332 = vcmp.ge.s32.totalorder %v278, 24
      %vm333 = vcmp.ge.s32.totalorder %v279, 24
      %vm334 = vcmp.ge.s32.totalorder %v280, 24
      %vm335 = vcmp.ge.s32.totalorder %v281, 24
      %vm336 = vcmp.ge.s32.totalorder %v282, 24
      %vm337 = vcmp.ge.s32.totalorder %v283, 24
      %vm338 = vcmp.ge.s32.totalorder %v284, 24
      %vm339 = vcmp.ge.s32.totalorder %v285, 24
      %vm340 = vcmp.ge.s32.totalorder %v286, 24
      %vm341 = vcmp.ge.s32.totalorder %v287, 24
      %vm342 = vcmp.ge.s32.totalorder %v288, 24
      %vm343 = vcmp.ge.s32.totalorder %v289, 24
      %vm344 = vcmp.ge.s32.totalorder %v290, 24
      %vm345 = vcmp.ge.s32.totalorder %v291, 24
      %vm346 = vcmp.ge.s32.totalorder %v292, 24
      %vm347 = vcmp.ge.s32.totalorder %v293, 24
      %vm348 = vcmp.ge.s32.totalorder %v294, 24
      %vm349 = vcmp.ge.s32.totalorder %v295, 24
      %vm350 = vcmp.ge.s32.totalorder %v296, 24
      %vm351 = vcmp.ge.s32.totalorder %v297, 24
      %vm352 = vcmp.ge.s32.totalorder %v298, 24
      %vm353 = vcmp.ge.s32.totalorder %v299, 24
      %vm354 = vcmp.ge.s32.totalorder %v300, 24
      %vm355 = vcmp.ge.s32.totalorder %v301, 24
      %vm356 = vcmp.ge.s32.totalorder %v302, 24
      %vm357 = vcmp.ge.s32.totalorder %v303, 24
      %vm358 = vcmp.ge.s32.totalorder %v304, 24
      %vm359 = vcmp.ge.s32.totalorder %v305, 24
      %vm360 = vcmp.ge.s32.totalorder %v306, 24
      %vm361 = vcmp.ge.s32.totalorder %v307, 24
      %vm362 = vcmp.ge.s32.totalorder %v308, 24
      %vm363 = vcmp.ge.s32.totalorder %v309, 24
      %vm364 = vcmp.ge.s32.totalorder %v310, 24
      %vm365 = vcmp.ge.s32.totalorder %v311, 24
      %vm366 = vcmp.ge.s32.totalorder %v312, 24
      %vm367 = vcmp.ge.s32.totalorder %v313, 24
      %vm368 = vcmp.ge.s32.totalorder %v314, 24
      %vm369 = vcmp.ge.s32.totalorder %v315, 24
      %vm370 = vcmp.ge.s32.totalorder %v316, 24
      %vm371 = vcmp.ge.s32.totalorder %v317, 24
      %vm372 = vcmp.ge.s32.totalorder %v318, 24
      %vm373 = vcmp.lt.s32.totalorder %v265, 408
      %vm374 = vcmp.lt.s32.totalorder %v266, 408
      %vm375 = vcmp.lt.s32.totalorder %v267, 408
      %vm376 = vcmp.lt.s32.totalorder %v268, 408
      %vm377 = vcmp.lt.s32.totalorder %v269, 408
      %vm378 = vcmp.lt.s32.totalorder %v270, 408
      %vm379 = vcmp.lt.s32.totalorder %v271, 408
      %vm380 = vcmp.lt.s32.totalorder %v272, 408
      %vm381 = vcmp.lt.s32.totalorder %v273, 408
      %vm382 = vcmp.lt.s32.totalorder %v274, 408
      %vm383 = vcmp.lt.s32.totalorder %v275, 408
      %vm384 = vcmp.lt.s32.totalorder %v276, 408
      %vm385 = vcmp.lt.s32.totalorder %v277, 408
      %vm386 = vcmp.lt.s32.totalorder %v278, 408
      %vm387 = vcmp.lt.s32.totalorder %v279, 408
      %vm388 = vcmp.lt.s32.totalorder %v280, 408
      %vm389 = vcmp.lt.s32.totalorder %v281, 408
      %vm390 = vcmp.lt.s32.totalorder %v282, 408
      %vm391 = vcmp.lt.s32.totalorder %v283, 408
      %vm392 = vcmp.lt.s32.totalorder %v284, 408
      %vm393 = vcmp.lt.s32.totalorder %v285, 408
      %vm394 = vcmp.lt.s32.totalorder %v286, 408
      %vm395 = vcmp.lt.s32.totalorder %v287, 408
      %vm396 = vcmp.lt.s32.totalorder %v288, 408
      %vm397 = vcmp.lt.s32.totalorder %v289, 408
      %vm398 = vcmp.lt.s32.totalorder %v290, 408
      %vm399 = vcmp.lt.s32.totalorder %v291, 408
      %vm400 = vcmp.lt.s32.totalorder %v292, 408
      %vm401 = vcmp.lt.s32.totalorder %v293, 408
      %vm402 = vcmp.lt.s32.totalorder %v294, 408
      %vm403 = vcmp.lt.s32.totalorder %v295, 408
      %vm404 = vcmp.lt.s32.totalorder %v296, 408
      %vm405 = vcmp.lt.s32.totalorder %v297, 408
      %vm406 = vcmp.lt.s32.totalorder %v298, 408
      %vm407 = vcmp.lt.s32.totalorder %v299, 408
      %vm408 = vcmp.lt.s32.totalorder %v300, 408
      %vm409 = vcmp.lt.s32.totalorder %v301, 408
      %vm410 = vcmp.lt.s32.totalorder %v302, 408
      %vm411 = vcmp.lt.s32.totalorder %v303, 408
      %vm412 = vcmp.lt.s32.totalorder %v304, 408
      %vm413 = vcmp.lt.s32.totalorder %v305, 408
      %vm414 = vcmp.lt.s32.totalorder %v306, 408
      %vm415 = vcmp.lt.s32.totalorder %v307, 408
      %vm416 = vcmp.lt.s32.totalorder %v308, 408
      %vm417 = vcmp.lt.s32.totalorder %v309, 408
      %vm418 = vcmp.lt.s32.totalorder %v310, 408
      %vm419 = vcmp.lt.s32.totalorder %v311, 408
      %vm420 = vcmp.lt.s32.totalorder %v312, 408
      %vm421 = vcmp.lt.s32.totalorder %v313, 408
      %vm422 = vcmp.lt.s32.totalorder %v314, 408
      %vm423 = vcmp.lt.s32.totalorder %v315, 408
      %vm424 = vcmp.lt.s32.totalorder %v316, 408
      %vm425 = vcmp.lt.s32.totalorder %v317, 408
      %vm426 = vcmp.lt.s32.totalorder %v318, 408
      %vm427 = vmand %vm319, %vm373
      %vm428 = vmand %vm320, %vm374
      %vm429 = vmand %vm321, %vm375
      %vm430 = vmand %vm322, %vm376
      %vm431 = vmand %vm323, %vm377
      %vm432 = vmand %vm324, %vm378
      %vm433 = vmand %vm325, %vm379
      %vm434 = vmand %vm326, %vm380
      %vm435 = vmand %vm327, %vm381
      %vm436 = vmand %vm328, %vm382
      %vm437 = vmand %vm329, %vm383
      %vm438 = vmand %vm330, %vm384
      %vm439 = vmand %vm331, %vm385
      %vm440 = vmand %vm332, %vm386
      %vm441 = vmand %vm333, %vm387
      %vm442 = vmand %vm334, %vm388
      %vm443 = vmand %vm335, %vm389
      %vm444 = vmand %vm336, %vm390
      %vm445 = vmand %vm337, %vm391
      %vm446 = vmand %vm338, %vm392
      %vm447 = vmand %vm339, %vm393
      %vm448 = vmand %vm340, %vm394
      %vm449 = vmand %vm341, %vm395
      %vm450 = vmand %vm342, %vm396
      %vm451 = vmand %vm343, %vm397
      %vm452 = vmand %vm344, %vm398
      %vm453 = vmand %vm345, %vm399
      %vm454 = vmand %vm346, %vm400
      %vm455 = vmand %vm347, %vm401
      %vm456 = vmand %vm348, %vm402
      %vm457 = vmand %vm349, %vm403
      %vm458 = vmand %vm350, %vm404
      %vm459 = vmand %vm351, %vm405
      %vm460 = vmand %vm352, %vm406
      %vm461 = vmand %vm353, %vm407
      %vm462 = vmand %vm354, %vm408
      %vm463 = vmand %vm355, %vm409
      %vm464 = vmand %vm356, %vm410
      %vm465 = vmand %vm357, %vm411
      %vm466 = vmand %vm358, %vm412
      %vm467 = vmand %vm359, %vm413
      %vm468 = vmand %vm360, %vm414
      %vm469 = vmand %vm361, %vm415
      %vm470 = vmand %vm362, %vm416
      %vm471 = vmand %vm363, %vm417
      %vm472 = vmand %vm364, %vm418
      %vm473 = vmand %vm365, %vm419
      %vm474 = vmand %vm366, %vm420
      %vm475 = vmand %vm367, %vm421
      %vm476 = vmand %vm368, %vm422
      %vm477 = vmand %vm369, %vm423
      %vm478 = vmand %vm370, %vm424
      %vm479 = vmand %vm371, %vm425
      %vm480 = vmand %vm372, %vm426
      %vm481 = vcmp.ge.s32.totalorder %v265, 1
      %vm482 = vcmp.ge.s32.totalorder %v266, 1
      %vm483 = vcmp.ge.s32.totalorder %v267, 1
      %vm484 = vmand %vm427, %vm481
      %vm485 = vmand %vm428, %vm482
      %vm486 = vmand %vm429, %vm483
      %vm487 = vmand %vm430, %vm481
      %vm488 = vmand %vm431, %vm482
      %vm489 = vmand %vm432, %vm483
      %vm490 = vmand %vm433, %vm481
      %vm491 = vmand %vm434, %vm482
      %vm492 = vmand %vm435, %vm483
      %vm493 = vmand %vm436, %vm481
      %vm494 = vmand %vm437, %vm482
      %vm495 = vmand %vm438, %vm483
      %vm496 = vmand %vm439, %vm481
      %vm497 = vmand %vm440, %vm482
      %vm498 = vmand %vm441, %vm483
      %vm499 = vmand %vm442, %vm481
      %vm500 = vmand %vm443, %vm482
      %vm501 = vmand %vm444, %vm483
      %vm502 = vmand %vm445, %vm481
      %vm503 = vmand %vm446, %vm482
      %vm504 = vmand %vm447, %vm483
      %vm505 = vmand %vm448, %vm481
      %vm506 = vmand %vm449, %vm482
      %vm507 = vmand %vm450, %vm483
      %vm508 = vmand %vm451, %vm481
      %vm509 = vmand %vm452, %vm482
      %vm510 = vmand %vm453, %vm483
      %vm511 = vmand %vm454, %vm481
      %vm512 = vmand %vm455, %vm482
      %vm513 = vmand %vm456, %vm483
      %vm514 = vmand %vm457, %vm481
      %vm515 = vmand %vm458, %vm482
      %vm516 = vmand %vm459, %vm483
      %vm517 = vmand %vm460, %vm481
      %vm518 = vmand %vm461, %vm482
      %vm519 = vmand %vm462, %vm483
      %vm520 = vmand %vm463, %vm481
      %vm521 = vmand %vm464, %vm482
      %vm522 = vmand %vm465, %vm483
      %vm523 = vmand %vm466, %vm481
      %vm524 = vmand %vm467, %vm482
      %vm525 = vmand %vm468, %vm483
      %vm526 = vmand %vm469, %vm481
      %vm527 = vmand %vm470, %vm482
      %vm528 = vmand %vm471, %vm483
      %vm529 = vmand %vm472, %vm481
      %vm530 = vmand %vm473, %vm482
      %vm531 = vmand %vm474, %vm483
      %vm532 = vmand %vm475, %vm481
      %vm533 = vmand %vm476, %vm482
      %vm534 = vmand %vm477, %vm483
      %vm535 = vmand %vm478, %vm481
      %vm536 = vmand %vm479, %vm482
      %vm537 = vmand %vm480, %vm483
      %vm538 = vcmp.le.s32.totalorder %v265, 16
      %vm539 = vcmp.le.s32.totalorder %v266, 16
      %vm540 = vcmp.le.s32.totalorder %v267, 16
      %vm541 = vmand %vm484, %vm538
      %vm542 = vmand %vm485, %vm539
      %vm543 = vmand %vm486, %vm540
      %vm544 = vmand %vm487, %vm538
      %vm545 = vmand %vm488, %vm539
      %vm546 = vmand %vm489, %vm540
      %vm547 = vmand %vm490, %vm538
      %vm548 = vmand %vm491, %vm539
      %vm549 = vmand %vm492, %vm540
      %vm550 = vmand %vm493, %vm538
      %vm551 = vmand %vm494, %vm539
      %vm552 = vmand %vm495, %vm540
      %vm553 = vmand %vm496, %vm538
      %vm554 = vmand %vm497, %vm539
      %vm555 = vmand %vm498, %vm540
      %vm556 = vmand %vm499, %vm538
      %vm557 = vmand %vm500, %vm539
      %vm558 = vmand %vm501, %vm540
      %vm559 = vmand %vm502, %vm538
      %vm560 = vmand %vm503, %vm539
      %vm561 = vmand %vm504, %vm540
      %vm562 = vmand %vm505, %vm538
      %vm563 = vmand %vm506, %vm539
      %vm564 = vmand %vm507, %vm540
      %vm565 = vmand %vm508, %vm538
      %vm566 = vmand %vm509, %vm539
      %vm567 = vmand %vm510, %vm540
      %vm568 = vmand %vm511, %vm538
      %vm569 = vmand %vm512, %vm539
      %vm570 = vmand %vm513, %vm540
      %vm571 = vmand %vm514, %vm538
      %vm572 = vmand %vm515, %vm539
      %vm573 = vmand %vm516, %vm540
      %vm574 = vmand %vm517, %vm538
      %vm575 = vmand %vm518, %vm539
      %vm576 = vmand %vm519, %vm540
      %vm577 = vmand %vm520, %vm538
      %vm578 = vmand %vm521, %vm539
      %vm579 = vmand %vm522, %vm540
      %vm580 = vmand %vm523, %vm538
      %vm581 = vmand %vm524, %vm539
      %vm582 = vmand %vm525, %vm540
      %vm583 = vmand %vm526, %vm538
      %vm584 = vmand %vm527, %vm539
      %vm585 = vmand %vm528, %vm540
      %vm586 = vmand %vm529, %vm538
      %vm587 = vmand %vm530, %vm539
      %vm588 = vmand %vm531, %vm540
      %vm589 = vmand %vm532, %vm538
      %vm590 = vmand %vm533, %vm539
      %vm591 = vmand %vm534, %vm540
      %vm592 = vmand %vm535, %vm538
      %vm593 = vmand %vm536, %vm539
      %vm594 = vmand %vm537, %vm540
      %v595 = vld [vmem:[%s253 + $0x20] sm:$0xff]
      %v596 = vld [vmem:[%s253 + $0x28] sm:$0xff]
      %v597 = vld [vmem:[%s253 + $0x30] sm:$0xff]
      %v598 = vld [vmem:[%s253 + $0x38] sm:$0xff]
      %v599 = vld [vmem:[%s253 + $0x40] sm:$0xff]
      %v600 = vld [vmem:[%s253 + $0x48] sm:$0xff]
      %v601 = vld [vmem:[%s253 + $0x50] sm:$0xff]
      %v602 = vld [vmem:[%s253 + $0x58] sm:$0xff]
      %v603 = vld [vmem:[%s253 + $0x60] sm:$0xff]
      %v604 = vld [vmem:[%s253 + $0x68] sm:$0xff]
      %v605 = vld [vmem:[%s253 + $0x70] sm:$0xff]
      %v606 = vld [vmem:[%s253 + $0x78] sm:$0xff]
      %v607 = vld [vmem:[%s253 + $0x80] sm:$0xff]
      %v608 = vld [vmem:[%s253 + $0x88] sm:$0xff]
      %v609 = vld [vmem:[%s253 + $0x90] sm:$0xff]
      %v610 = vld [vmem:[%s253 + $0x98] sm:$0xff]
      %v611 = vld [vmem:[%s253 + $0xa0] sm:$0xff]
      %v612 = vld [vmem:[%s253 + $0xa8] sm:$0xff]
      %v613 = vld [vmem:[%s253 + $0xb0] sm:$0xff]
      %v614 = vld [vmem:[%s253 + $0xb8] sm:$0xff]
      %v615 = vld [vmem:[%s253 + $0xc0] sm:$0xff]
      %v616 = vld [vmem:[%s253 + $0xc8] sm:$0xff]
      %v617 = vld [vmem:[%s253 + $0xd0] sm:$0xff]
      %v618 = vld [vmem:[%s253 + $0xd8] sm:$0xff]
      %v619 = vld [vmem:[%s253 + $0xe0] sm:$0xff]
      %v620 = vld [vmem:[%s253 + $0xe8] sm:$0xff]
      %v621 = vld [vmem:[%s253 + $0xf0] sm:$0xff]
      %v622 = vld [vmem:[%s253 + $0xf8] sm:$0xff]
      %v623 = vld [vmem:[%s253 + $0x100] sm:$0xff]
      %v624 = vld [vmem:[%s253 + $0x108] sm:$0xff]
      %v625 = vld [vmem:[%s253 + $0x110] sm:$0xff]
      %v626 = vld [vmem:[%s253 + $0x118] sm:$0xff]
      %v627 = vld [vmem:[%s253 + $0x120] sm:$0xff]
      %v628 = vld [vmem:[%s253 + $0x128] sm:$0xff]
      %v629 = vld [vmem:[%s253 + $0x130] sm:$0xff]
      %v630 = vld [vmem:[%s253 + $0x138] sm:$0xff]
      %v631 = vld [vmem:[%s253 + $0x140] sm:$0xff]
      %v632 = vld [vmem:[%s253 + $0x148] sm:$0xff]
      %v633 = vld [vmem:[%s253 + $0x150] sm:$0xff]
      %v634 = vld [vmem:[%s253 + $0x158] sm:$0xff]
      %v635 = vld [vmem:[%s253 + $0x160] sm:$0xff]
      %v636 = vld [vmem:[%s253 + $0x168] sm:$0xff]
      %v637 = vld [vmem:[%s253 + $0x170] sm:$0xff]
      %v638 = vld [vmem:[%s253 + $0x178] sm:$0xff]
      %v639 = vld [vmem:[%s253 + $0x180] sm:$0xff]
      %v640 = vld [vmem:[%s253 + $0x188] sm:$0xff]
      %v641 = vld [vmem:[%s253 + $0x190] sm:$0xff]
      %v642 = vld [vmem:[%s253 + $0x198] sm:$0xff]
      %v643 = vld [vmem:[%s253 + $0x1a0] sm:$0xff]
      %v644 = vld [vmem:[%s253 + $0x1a8] sm:$0xff]
      %v645 = vld [vmem:[%s253 + $0x1b0] sm:$0xff]
      %v646 = vld [vmem:[%s253 + $0x1b8] sm:$0xff]
      %v647 = vld [vmem:[%s253 + $0x1c0] sm:$0xff]
      %v648 = vld [vmem:[%s253 + $0x1c8] sm:$0xff]
      %v649 = vld [vmem:[%s2] sm:$0x1]
      %v651 = vlaneseq
      %v652 = vshrl.u32 %v651, 7
      %v653 = vsub.s32 0, %v652
      %v654 = vrot.slane %v649, %v653
      %v656 = vmul.f32 %v595, %v654
      %v657 = vmul.f32 %v596, %v654
      %v658 = vmul.f32 %v597, %v654
      %v659 = vmul.f32 %v598, %v654
      %v660 = vmul.f32 %v599, %v654
      %v661 = vmul.f32 %v600, %v654
      %v662 = vmul.f32 %v601, %v654
      %v663 = vmul.f32 %v602, %v654
      %v664 = vmul.f32 %v603, %v654
      %v665 = vmul.f32 %v604, %v654
      %v666 = vmul.f32 %v605, %v654
      %v667 = vmul.f32 %v606, %v654
      %v668 = vmul.f32 %v607, %v654
      %v669 = vmul.f32 %v608, %v654
      %v670 = vmul.f32 %v609, %v654
      %v671 = vmul.f32 %v610, %v654
      %v672 = vmul.f32 %v611, %v654
      %v673 = vmul.f32 %v612, %v654
      %v674 = vmul.f32 %v613, %v654
      %v675 = vmul.f32 %v614, %v654
      %v676 = vmul.f32 %v615, %v654
      %v677 = vmul.f32 %v616, %v654
      %v678 = vmul.f32 %v617, %v654
      %v679 = vmul.f32 %v618, %v654
      %v680 = vmul.f32 %v619, %v654
      %v681 = vmul.f32 %v620, %v654
      %v682 = vmul.f32 %v621, %v654
      %v683 = vmul.f32 %v622, %v654
      %v684 = vmul.f32 %v623, %v654
      %v685 = vmul.f32 %v624, %v654
      %v686 = vmul.f32 %v625, %v654
      %v687 = vmul.f32 %v626, %v654
      %v688 = vmul.f32 %v627, %v654
      %v689 = vmul.f32 %v628, %v654
      %v690 = vmul.f32 %v629, %v654
      %v691 = vmul.f32 %v630, %v654
      %v692 = vmul.f32 %v631, %v654
      %v693 = vmul.f32 %v632, %v654
      %v694 = vmul.f32 %v633, %v654
      %v695 = vmul.f32 %v634, %v654
      %v696 = vmul.f32 %v635, %v654
      %v697 = vmul.f32 %v636, %v654
      %v698 = vmul.f32 %v637, %v654
      %v699 = vmul.f32 %v638, %v654
      %v700 = vmul.f32 %v639, %v654
      %v701 = vmul.f32 %v640, %v654
      %v702 = vmul.f32 %v641, %v654
      %v703 = vmul.f32 %v642, %v654
      %v704 = vmul.f32 %v643, %v654
      %v705 = vmul.f32 %v644, %v654
      %v706 = vmul.f32 %v645, %v654
      %v707 = vmul.f32 %v646, %v654
      %v708 = vmul.f32 %v647, %v654
      %v709 = vmul.f32 %v648, %v654
      %v710 = vld [vmem:[%s3] sm:$0x1]
      %v712 = vlaneseq
      %v713 = vshrl.u32 %v712, 7
      %v714 = vsub.s32 0, %v713
      %v715 = vrot.slane %v710, %v714
      %v717 = vadd.f32 %v656, %v715
      %v718 = vadd.f32 %v657, %v715
      %v719 = vadd.f32 %v658, %v715
      %v720 = vadd.f32 %v659, %v715
      %v721 = vadd.f32 %v660, %v715
      %v722 = vadd.f32 %v661, %v715
      %v723 = vadd.f32 %v662, %v715
      %v724 = vadd.f32 %v663, %v715
      %v725 = vadd.f32 %v664, %v715
      %v726 = vadd.f32 %v665, %v715
      %v727 = vadd.f32 %v666, %v715
      %v728 = vadd.f32 %v667, %v715
      %v729 = vadd.f32 %v668, %v715
      %v730 = vadd.f32 %v669, %v715
      %v731 = vadd.f32 %v670, %v715
      %v732 = vadd.f32 %v671, %v715
      %v733 = vadd.f32 %v672, %v715
      %v734 = vadd.f32 %v673, %v715
      %v735 = vadd.f32 %v674, %v715
      %v736 = vadd.f32 %v675, %v715
      %v737 = vadd.f32 %v676, %v715
      %v738 = vadd.f32 %v677, %v715
      %v739 = vadd.f32 %v678, %v715
      %v740 = vadd.f32 %v679, %v715
      %v741 = vadd.f32 %v680, %v715
      %v742 = vadd.f32 %v681, %v715
      %v743 = vadd.f32 %v682, %v715
      %v744 = vadd.f32 %v683, %v715
      %v745 = vadd.f32 %v684, %v715
      %v746 = vadd.f32 %v685, %v715
      %v747 = vadd.f32 %v686, %v715
      %v748 = vadd.f32 %v687, %v715
      %v749 = vadd.f32 %v688, %v715
      %v750 = vadd.f32 %v689, %v715
      %v751 = vadd.f32 %v690, %v715
      %v752 = vadd.f32 %v691, %v715
      %v753 = vadd.f32 %v692, %v715
      %v754 = vadd.f32 %v693, %v715
      %v755 = vadd.f32 %v694, %v715
      %v756 = vadd.f32 %v695, %v715
      %v757 = vadd.f32 %v696, %v715
      %v758 = vadd.f32 %v697, %v715
      %v759 = vadd.f32 %v698, %v715
      %v760 = vadd.f32 %v699, %v715
      %v761 = vadd.f32 %v700, %v715
      %v762 = vadd.f32 %v701, %v715
      %v763 = vadd.f32 %v702, %v715
      %v764 = vadd.f32 %v703, %v715
      %v765 = vadd.f32 %v704, %v715
      %v766 = vadd.f32 %v705, %v715
      %v767 = vadd.f32 %v706, %v715
      %v768 = vadd.f32 %v707, %v715
      %v769 = vadd.f32 %v708, %v715
      %v770 = vadd.f32 %v709, %v715
      %vm771 = vcmp.gt.f32.partialorder %v717, 0.0
      %vm772 = vcmp.gt.f32.partialorder %v718, 0.0
      %vm773 = vcmp.gt.f32.partialorder %v719, 0.0
      %vm774 = vcmp.gt.f32.partialorder %v720, 0.0
      %vm775 = vcmp.gt.f32.partialorder %v721, 0.0
      %vm776 = vcmp.gt.f32.partialorder %v722, 0.0
      %vm777 = vcmp.gt.f32.partialorder %v723, 0.0
      %vm778 = vcmp.gt.f32.partialorder %v724, 0.0
      %vm779 = vcmp.gt.f32.partialorder %v725, 0.0
      %vm780 = vcmp.gt.f32.partialorder %v726, 0.0
      %vm781 = vcmp.gt.f32.partialorder %v727, 0.0
      %vm782 = vcmp.gt.f32.partialorder %v728, 0.0
      %vm783 = vcmp.gt.f32.partialorder %v729, 0.0
      %vm784 = vcmp.gt.f32.partialorder %v730, 0.0
      %vm785 = vcmp.gt.f32.partialorder %v731, 0.0
      %vm786 = vcmp.gt.f32.partialorder %v732, 0.0
      %vm787 = vcmp.gt.f32.partialorder %v733, 0.0
      %vm788 = vcmp.gt.f32.partialorder %v734, 0.0
      %vm789 = vcmp.gt.f32.partialorder %v735, 0.0
      %vm790 = vcmp.gt.f32.partialorder %v736, 0.0
      %vm791 = vcmp.gt.f32.partialorder %v737, 0.0
      %vm792 = vcmp.gt.f32.partialorder %v738, 0.0
      %vm793 = vcmp.gt.f32.partialorder %v739, 0.0
      %vm794 = vcmp.gt.f32.partialorder %v740, 0.0
      %vm795 = vcmp.gt.f32.partialorder %v741, 0.0
      %vm796 = vcmp.gt.f32.partialorder %v742, 0.0
      %vm797 = vcmp.gt.f32.partialorder %v743, 0.0
      %vm798 = vcmp.gt.f32.partialorder %v744, 0.0
      %vm799 = vcmp.gt.f32.partialorder %v745, 0.0
      %vm800 = vcmp.gt.f32.partialorder %v746, 0.0
      %vm801 = vcmp.gt.f32.partialorder %v747, 0.0
      %vm802 = vcmp.gt.f32.partialorder %v748, 0.0
      %vm803 = vcmp.gt.f32.partialorder %v749, 0.0
      %vm804 = vcmp.gt.f32.partialorder %v750, 0.0
      %vm805 = vcmp.gt.f32.partialorder %v751, 0.0
      %vm806 = vcmp.gt.f32.partialorder %v752, 0.0
      %vm807 = vcmp.gt.f32.partialorder %v753, 0.0
      %vm808 = vcmp.gt.f32.partialorder %v754, 0.0
      %vm809 = vcmp.gt.f32.partialorder %v755, 0.0
      %vm810 = vcmp.gt.f32.partialorder %v756, 0.0
      %vm811 = vcmp.gt.f32.partialorder %v757, 0.0
      %vm812 = vcmp.gt.f32.partialorder %v758, 0.0
      %vm813 = vcmp.gt.f32.partialorder %v759, 0.0
      %vm814 = vcmp.gt.f32.partialorder %v760, 0.0
      %vm815 = vcmp.gt.f32.partialorder %v761, 0.0
      %vm816 = vcmp.gt.f32.partialorder %v762, 0.0
      %vm817 = vcmp.gt.f32.partialorder %v763, 0.0
      %vm818 = vcmp.gt.f32.partialorder %v764, 0.0
      %vm819 = vcmp.gt.f32.partialorder %v765, 0.0
      %vm820 = vcmp.gt.f32.partialorder %v766, 0.0
      %vm821 = vcmp.gt.f32.partialorder %v767, 0.0
      %vm822 = vcmp.gt.f32.partialorder %v768, 0.0
      %vm823 = vcmp.gt.f32.partialorder %v769, 0.0
      %vm824 = vcmp.gt.f32.partialorder %v770, 0.0
      %v825 = vld [vmem:[%s4] sm:$0x1]
      %v827 = vlaneseq
      %v828 = vshrl.u32 %v827, 7
      %v829 = vsub.s32 0, %v828
      %v830 = vrot.slane %v825, %v829
      %v832 = vmul.f32 %v830, %v717
      %v833 = vmul.f32 %v830, %v718
      %v834 = vmul.f32 %v830, %v719
      %v835 = vmul.f32 %v830, %v720
      %v836 = vmul.f32 %v830, %v721
      %v837 = vmul.f32 %v830, %v722
      %v838 = vmul.f32 %v830, %v723
      %v839 = vmul.f32 %v830, %v724
      %v840 = vmul.f32 %v830, %v725
      %v841 = vmul.f32 %v830, %v726
      %v842 = vmul.f32 %v830, %v727
      %v843 = vmul.f32 %v830, %v728
      %v844 = vmul.f32 %v830, %v729
      %v845 = vmul.f32 %v830, %v730
      %v846 = vmul.f32 %v830, %v731
      %v847 = vmul.f32 %v830, %v732
      %v848 = vmul.f32 %v830, %v733
      %v849 = vmul.f32 %v830, %v734
      %v850 = vmul.f32 %v830, %v735
      %v851 = vmul.f32 %v830, %v736
      %v852 = vmul.f32 %v830, %v737
      %v853 = vmul.f32 %v830, %v738
      %v854 = vmul.f32 %v830, %v739
      %v855 = vmul.f32 %v830, %v740
      %v856 = vmul.f32 %v830, %v741
      %v857 = vmul.f32 %v830, %v742
      %v858 = vmul.f32 %v830, %v743
      %v859 = vmul.f32 %v830, %v744
      %v860 = vmul.f32 %v830, %v745
      %v861 = vmul.f32 %v830, %v746
      %v862 = vmul.f32 %v830, %v747
      %v863 = vmul.f32 %v830, %v748
      %v864 = vmul.f32 %v830, %v749
      %v865 = vmul.f32 %v830, %v750
      %v866 = vmul.f32 %v830, %v751
      %v867 = vmul.f32 %v830, %v752
      %v868 = vmul.f32 %v830, %v753
      %v869 = vmul.f32 %v830, %v754
      %v870 = vmul.f32 %v830, %v755
      %v871 = vmul.f32 %v830, %v756
      %v872 = vmul.f32 %v830, %v757
      %v873 = vmul.f32 %v830, %v758
      %v874 = vmul.f32 %v830, %v759
      %v875 = vmul.f32 %v830, %v760
      %v876 = vmul.f32 %v830, %v761
      %v877 = vmul.f32 %v830, %v762
      %v878 = vmul.f32 %v830, %v763
      %v879 = vmul.f32 %v830, %v764
      %v880 = vmul.f32 %v830, %v765
      %v881 = vmul.f32 %v830, %v766
      %v882 = vmul.f32 %v830, %v767
      %v883 = vmul.f32 %v830, %v768
      %v884 = vmul.f32 %v830, %v769
      %v885 = vmul.f32 %v830, %v770
      %v886 = vsel %vm771, %v717, %v832
      %v887 = vsel %vm772, %v718, %v833
      %v888 = vsel %vm773, %v719, %v834
      %v889 = vsel %vm774, %v720, %v835
      %v890 = vsel %vm775, %v721, %v836
      %v891 = vsel %vm776, %v722, %v837
      %v892 = vsel %vm777, %v723, %v838
      %v893 = vsel %vm778, %v724, %v839
      %v894 = vsel %vm779, %v725, %v840
      %v895 = vsel %vm780, %v726, %v841
      %v896 = vsel %vm781, %v727, %v842
      %v897 = vsel %vm782, %v728, %v843
      %v898 = vsel %vm783, %v729, %v844
      %v899 = vsel %vm784, %v730, %v845
      %v900 = vsel %vm785, %v731, %v846
      %v901 = vsel %vm786, %v732, %v847
      %v902 = vsel %vm787, %v733, %v848
      %v903 = vsel %vm788, %v734, %v849
      %v904 = vsel %vm789, %v735, %v850
      %v905 = vsel %vm790, %v736, %v851
      %v906 = vsel %vm791, %v737, %v852
      %v907 = vsel %vm792, %v738, %v853
      %v908 = vsel %vm793, %v739, %v854
      %v909 = vsel %vm794, %v740, %v855
      %v910 = vsel %vm795, %v741, %v856
      %v911 = vsel %vm796, %v742, %v857
      %v912 = vsel %vm797, %v743, %v858
      %v913 = vsel %vm798, %v744, %v859
      %v914 = vsel %vm799, %v745, %v860
      %v915 = vsel %vm800, %v746, %v861
      %v916 = vsel %vm801, %v747, %v862
      %v917 = vsel %vm802, %v748, %v863
      %v918 = vsel %vm803, %v749, %v864
      %v919 = vsel %vm804, %v750, %v865
      %v920 = vsel %vm805, %v751, %v866
      %v921 = vsel %vm806, %v752, %v867
      %v922 = vsel %vm807, %v753, %v868
      %v923 = vsel %vm808, %v754, %v869
      %v924 = vsel %vm809, %v755, %v870
      %v925 = vsel %vm810, %v756, %v871
      %v926 = vsel %vm811, %v757, %v872
      %v927 = vsel %vm812, %v758, %v873
      %v928 = vsel %vm813, %v759, %v874
      %v929 = vsel %vm814, %v760, %v875
      %v930 = vsel %vm815, %v761, %v876
      %v931 = vsel %vm816, %v762, %v877
      %v932 = vsel %vm817, %v763, %v878
      %v933 = vsel %vm818, %v764, %v879
      %v934 = vsel %vm819, %v765, %v880
      %v935 = vsel %vm820, %v766, %v881
      %v936 = vsel %vm821, %v767, %v882
      %v937 = vsel %vm822, %v768, %v883
      %v938 = vsel %vm823, %v769, %v884
      %v939 = vsel %vm824, %v770, %v885
      %v940 = vsel %vm541, %v886, 0.0
      %v941 = vsel %vm542, %v887, 0.0
      %v942 = vsel %vm543, %v888, 0.0
      %v943 = vsel %vm544, %v889, 0.0
      %v944 = vsel %vm545, %v890, 0.0
      %v945 = vsel %vm546, %v891, 0.0
      %v946 = vsel %vm547, %v892, 0.0
      %v947 = vsel %vm548, %v893, 0.0
      %v948 = vsel %vm549, %v894, 0.0
      %v949 = vsel %vm550, %v895, 0.0
      %v950 = vsel %vm551, %v896, 0.0
      %v951 = vsel %vm552, %v897, 0.0
      %v952 = vsel %vm553, %v898, 0.0
      %v953 = vsel %vm554, %v899, 0.0
      %v954 = vsel %vm555, %v900, 0.0
      %v955 = vsel %vm556, %v901, 0.0
      %v956 = vsel %vm557, %v902, 0.0
      %v957 = vsel %vm558, %v903, 0.0
      %v958 = vsel %vm559, %v904, 0.0
      %v959 = vsel %vm560, %v905, 0.0
      %v960 = vsel %vm561, %v906, 0.0
      %v961 = vsel %vm562, %v907, 0.0
      %v962 = vsel %vm563, %v908, 0.0
      %v963 = vsel %vm564, %v909, 0.0
      %v964 = vsel %vm565, %v910, 0.0
      %v965 = vsel %vm566, %v911, 0.0
      %v966 = vsel %vm567, %v912, 0.0
      %v967 = vsel %vm568, %v913, 0.0
      %v968 = vsel %vm569, %v914, 0.0
      %v969 = vsel %vm570, %v915, 0.0
      %v970 = vsel %vm571, %v916, 0.0
      %v971 = vsel %vm572, %v917, 0.0
      %v972 = vsel %vm573, %v918, 0.0
      %v973 = vsel %vm574, %v919, 0.0
      %v974 = vsel %vm575, %v920, 0.0
      %v975 = vsel %vm576, %v921, 0.0
      %v976 = vsel %vm577, %v922, 0.0
      %v977 = vsel %vm578, %v923, 0.0
      %v978 = vsel %vm579, %v924, 0.0
      %v979 = vsel %vm580, %v925, 0.0
      %v980 = vsel %vm581, %v926, 0.0
      %v981 = vsel %vm582, %v927, 0.0
      %v982 = vsel %vm583, %v928, 0.0
      %v983 = vsel %vm584, %v929, 0.0
      %v984 = vsel %vm585, %v930, 0.0
      %v985 = vsel %vm586, %v931, 0.0
      %v986 = vsel %vm587, %v932, 0.0
      %v987 = vsel %vm588, %v933, 0.0
      %v988 = vsel %vm589, %v934, 0.0
      %v989 = vsel %vm590, %v935, 0.0
      %v990 = vsel %vm591, %v936, 0.0
      %v991 = vsel %vm592, %v937, 0.0
      %v992 = vsel %vm593, %v938, 0.0
      %v993 = vsel %vm594, %v939, 0.0
      %994 = vst [vmem:[#allocation2] sm:$0xff] 0.0
      %995 = vst [vmem:[#allocation2 + $0x8] sm:$0xff] 0.0
      %996 = vst [vmem:[#allocation2 + $0x10] sm:$0xff] 0.0
      %997 = vst [vmem:[#allocation2 + $0x18] sm:$0xff] 0.0
      %998 = vst [vmem:[#allocation2 + $0x1d0] sm:$0xff] 0.0
      %999 = vst [vmem:[#allocation2 + $0x1d8] sm:$0xff] 0.0
      %1000 = vst [vmem:[#allocation2 + $0x1e0] sm:$0xff] 0.0
      %1001 = vst [vmem:[#allocation2 + $0x1e8] sm:$0xff] 0.0
      %1002 = vst [vmem:[#allocation2 + $0x20] sm:$0xff] %v940
      %1003 = vst [vmem:[#allocation2 + $0x28] sm:$0xff] %v941
      %1004 = vst [vmem:[#allocation2 + $0x30] sm:$0xff] %v942
      %1005 = vst [vmem:[#allocation2 + $0x38] sm:$0xff] %v943
      %1006 = vst [vmem:[#allocation2 + $0x40] sm:$0xff] %v944
      %1007 = vst [vmem:[#allocation2 + $0x48] sm:$0xff] %v945
      %1008 = vst [vmem:[#allocation2 + $0x50] sm:$0xff] %v946
      %1009 = vst [vmem:[#allocation2 + $0x58] sm:$0xff] %v947
      %1010 = vst [vmem:[#allocation2 + $0x60] sm:$0xff] %v948
      %1011 = vst [vmem:[#allocation2 + $0x68] sm:$0xff] %v949
      %1012 = vst [vmem:[#allocation2 + $0x70] sm:$0xff] %v950
      %1013 = vst [vmem:[#allocation2 + $0x78] sm:$0xff] %v951
      %1014 = vst [vmem:[#allocation2 + $0x80] sm:$0xff] %v952
      %1015 = vst [vmem:[#allocation2 + $0x88] sm:$0xff] %v953
      %1016 = vst [vmem:[#allocation2 + $0x90] sm:$0xff] %v954
      %1017 = vst [vmem:[#allocation2 + $0x98] sm:$0xff] %v955
      %1018 = vst [vmem:[#allocation2 + $0xa0] sm:$0xff] %v956
      %1019 = vst [vmem:[#allocation2 + $0xa8] sm:$0xff] %v957
      %1020 = vst [vmem:[#allocation2 + $0xb0] sm:$0xff] %v958
      %1021 = vst [vmem:[#allocation2 + $0xb8] sm:$0xff] %v959
      %1022 = vst [vmem:[#allocation2 + $0xc0] sm:$0xff] %v960
      %1023 = vst [vmem:[#allocation2 + $0xc8] sm:$0xff] %v961
      %1024 = vst [vmem:[#allocation2 + $0xd0] sm:$0xff] %v962
      %1025 = vst [vmem:[#allocation2 + $0xd8] sm:$0xff] %v963
      %1026 = vst [vmem:[#allocation2 + $0xe0] sm:$0xff] %v964
      %1027 = vst [vmem:[#allocation2 + $0xe8] sm:$0xff] %v965
      %1028 = vst [vmem:[#allocation2 + $0xf0] sm:$0xff] %v966
      %1029 = vst [vmem:[#allocation2 + $0xf8] sm:$0xff] %v967
      %1030 = vst [vmem:[#allocation2 + $0x100] sm:$0xff] %v968
      %1031 = vst [vmem:[#allocation2 + $0x108] sm:$0xff] %v969
      %1032 = vst [vmem:[#allocation2 + $0x110] sm:$0xff] %v970
      %1033 = vst [vmem:[#allocation2 + $0x118] sm:$0xff] %v971
      %1034 = vst [vmem:[#allocation2 + $0x120] sm:$0xff] %v972
      %1035 = vst [vmem:[#allocation2 + $0x128] sm:$0xff] %v973
      %1036 = vst [vmem:[#allocation2 + $0x130] sm:$0xff] %v974
      %1037 = vst [vmem:[#allocation2 + $0x138] sm:$0xff] %v975
      %1038 = vst [vmem:[#allocation2 + $0x140] sm:$0xff] %v976
      %1039 = vst [vmem:[#allocation2 + $0x148] sm:$0xff] %v977
      %1040 = vst [vmem:[#allocation2 + $0x150] sm:$0xff] %v978
      %1041 = vst [vmem:[#allocation2 + $0x158] sm:$0xff] %v979
      %1042 = vst [vmem:[#allocation2 + $0x160] sm:$0xff] %v980
      %1043 = vst [vmem:[#allocation2 + $0x168] sm:$0xff] %v981
      %1044 = vst [vmem:[#allocation2 + $0x170] sm:$0xff] %v982
      %1045 = vst [vmem:[#allocation2 + $0x178] sm:$0xff] %v983
      %1046 = vst [vmem:[#allocation2 + $0x180] sm:$0xff] %v984
      %1047 = vst [vmem:[#allocation2 + $0x188] sm:$0xff] %v985
      %1048 = vst [vmem:[#allocation2 + $0x190] sm:$0xff] %v986
      %1049 = vst [vmem:[#allocation2 + $0x198] sm:$0xff] %v987
      %1050 = vst [vmem:[#allocation2 + $0x1a0] sm:$0xff] %v988
      %1051 = vst [vmem:[#allocation2 + $0x1a8] sm:$0xff] %v989
      %1052 = vst [vmem:[#allocation2 + $0x1b0] sm:$0xff] %v990
      %1053 = vst [vmem:[#allocation2 + $0x1b8] sm:$0xff] %v991
      %1054 = vst [vmem:[#allocation2 + $0x1c0] sm:$0xff] %v992
      %1055 = vst [vmem:[#allocation2 + $0x1c8] sm:$0xff] %v993
      %v1056 = vld [vmem:[#allocation2 + $0x7] sm:$0xff]
      %v1057 = vld [vmem:[#allocation2 + $0xf] sm:$0xff]
      %v1058 = vld [vmem:[#allocation2 + $0x17] sm:$0xff]
      %v1059 = vld [vmem:[#allocation2 + $0x1f] sm:$0xff]
      %v1060 = vld [vmem:[#allocation2 + $0x27] sm:$0xff]
      %v1061 = vld [vmem:[#allocation2 + $0x2f] sm:$0xff]
      %v1062 = vld [vmem:[#allocation2 + $0x37] sm:$0xff]
      %v1063 = vld [vmem:[#allocation2 + $0x3f] sm:$0xff]
      %v1064 = vld [vmem:[#allocation2 + $0x47] sm:$0xff]
      %v1065 = vld [vmem:[#allocation2 + $0x4f] sm:$0xff]
      %v1066 = vld [vmem:[#allocation2 + $0x57] sm:$0xff]
      %v1067 = vld [vmem:[#allocation2 + $0x5f] sm:$0xff]
      %v1068 = vld [vmem:[#allocation2 + $0x67] sm:$0xff]
      %v1069 = vld [vmem:[#allocation2 + $0x6f] sm:$0xff]
      %v1070 = vld [vmem:[#allocation2 + $0x77] sm:$0xff]
      %v1071 = vld [vmem:[#allocation2 + $0x7f] sm:$0xff]
      %v1072 = vld [vmem:[#allocation2 + $0x87] sm:$0xff]
      %v1073 = vld [vmem:[#allocation2 + $0x8f] sm:$0xff]
      %v1074 = vld [vmem:[#allocation2 + $0x97] sm:$0xff]
      %v1075 = vld [vmem:[#allocation2 + $0x9f] sm:$0xff]
      %v1076 = vld [vmem:[#allocation2 + $0xa7] sm:$0xff]
      %v1077 = vld [vmem:[#allocation2 + $0xaf] sm:$0xff]
      %v1078 = vld [vmem:[#allocation2 + $0xb7] sm:$0xff]
      %v1079 = vld [vmem:[#allocation2 + $0xbf] sm:$0xff]
      %v1080 = vld [vmem:[#allocation2 + $0xc7] sm:$0xff]
      %v1081 = vld [vmem:[#allocation2 + $0xcf] sm:$0xff]
      %v1082 = vld [vmem:[#allocation2 + $0xd7] sm:$0xff]
      %v1083 = vld [vmem:[#allocation2 + $0xdf] sm:$0xff]
      %v1084 = vld [vmem:[#allocation2 + $0xe7] sm:$0xff]
      %v1085 = vld [vmem:[#allocation2 + $0xef] sm:$0xff]
      %v1086 = vld [vmem:[#allocation2 + $0xf7] sm:$0xff]
      %v1087 = vld [vmem:[#allocation2 + $0xff] sm:$0xff]
      %v1088 = vld [vmem:[#allocation2 + $0x107] sm:$0xff]
      %v1089 = vld [vmem:[#allocation2 + $0x10f] sm:$0xff]
      %v1090 = vld [vmem:[#allocation2 + $0x117] sm:$0xff]
      %v1091 = vld [vmem:[#allocation2 + $0x11f] sm:$0xff]
      %v1092 = vld [vmem:[#allocation2 + $0x127] sm:$0xff]
      %v1093 = vld [vmem:[#allocation2 + $0x12f] sm:$0xff]
      %v1094 = vld [vmem:[#allocation2 + $0x137] sm:$0xff]
      %v1095 = vld [vmem:[#allocation2 + $0x13f] sm:$0xff]
      %v1096 = vld [vmem:[#allocation2 + $0x147] sm:$0xff]
      %v1097 = vld [vmem:[#allocation2 + $0x14f] sm:$0xff]
      %v1098 = vld [vmem:[#allocation2 + $0x157] sm:$0xff]
      %v1099 = vld [vmem:[#allocation2 + $0x15f] sm:$0xff]
      %v1100 = vld [vmem:[#allocation2 + $0x167] sm:$0xff]
      %v1101 = vld [vmem:[#allocation2 + $0x16f] sm:$0xff]
      %v1102 = vld [vmem:[#allocation2 + $0x177] sm:$0xff]
      %v1103 = vld [vmem:[#allocation2 + $0x17f] sm:$0xff]
      %v1104 = vld [vmem:[#allocation2 + $0x187] sm:$0xff]
      %v1105 = vld [vmem:[#allocation2 + $0x18f] sm:$0xff]
      %v1106 = vld [vmem:[#allocation2 + $0x197] sm:$0xff]
      %v1107 = vld [vmem:[#allocation2 + $0x19f] sm:$0xff]
      %v1108 = vld [vmem:[#allocation2 + $0x1a7] sm:$0xff]
      %v1109 = vld [vmem:[#allocation2 + $0x1af] sm:$0xff]
      %v1110 = vpack.c.bf16 %v1057, %v1056
      %v1111 = vpack.c.bf16 %v1059, %v1058
      %v1112 = vpack.c.bf16 %v1061, %v1060
      %v1113 = vpack.c.bf16 %v1063, %v1062
      %v1114 = vpack.c.bf16 %v1065, %v1064
      %v1115 = vpack.c.bf16 %v1067, %v1066
      %v1116 = vpack.c.bf16 %v1069, %v1068
      %v1117 = vpack.c.bf16 %v1071, %v1070
      %v1118 = vpack.c.bf16 %v1073, %v1072
      %v1119 = vpack.c.bf16 %v1075, %v1074
      %v1120 = vpack.c.bf16 %v1077, %v1076
      %v1121 = vpack.c.bf16 %v1079, %v1078
      %v1122 = vpack.c.bf16 %v1081, %v1080
      %v1123 = vpack.c.bf16 %v1083, %v1082
      %v1124 = vpack.c.bf16 %v1085, %v1084
      %v1125 = vpack.c.bf16 %v1087, %v1086
      %v1126 = vpack.c.bf16 %v1089, %v1088
      %v1127 = vpack.c.bf16 %v1091, %v1090
      %v1128 = vpack.c.bf16 %v1093, %v1092
      %v1129 = vpack.c.bf16 %v1095, %v1094
      %v1130 = vpack.c.bf16 %v1097, %v1096
      %v1131 = vpack.c.bf16 %v1099, %v1098
      %v1132 = vpack.c.bf16 %v1101, %v1100
      %v1133 = vpack.c.bf16 %v1103, %v1102
      %v1134 = vpack.c.bf16 %v1105, %v1104
      %v1135 = vpack.c.bf16 %v1107, %v1106
      %v1136 = vpack.c.bf16 %v1109, %v1108
      %v1137 = vld [vmem:[%s1] sm:$0xf]
      %v1138 = vld [vmem:[%s1 + $0x4] sm:$0xf]
      %v1139 = vld [vmem:[%s1 + $0x8] sm:$0xf]
      %v1140 = vld [vmem:[%s1 + $0xc] sm:$0xf]
      %v1141 = vld [vmem:[%s1 + $0x10] sm:$0xf]
      %v1142 = vld [vmem:[%s1 + $0x14] sm:$0xf]
      %v1143 = vld [vmem:[%s1 + $0x18] sm:$0xf]
      %v1144 = vld [vmem:[%s1 + $0x1c] sm:$0xf]
      %v1145 = vld [vmem:[%s1 + $0x20] sm:$0xf]
      %v1146 = vld [vmem:[%s1 + $0x24] sm:$0xf]
      %v1147 = vld [vmem:[%s1 + $0x28] sm:$0xf]
      %v1148 = vld [vmem:[%s1 + $0x2c] sm:$0xf]
      %v1149 = vld [vmem:[%s1 + $0x30] sm:$0xf]
      %v1150 = vld [vmem:[%s1 + $0x34] sm:$0xf]
      %v1151 = vld [vmem:[%s1 + $0x38] sm:$0xf]
      %v1152 = vld [vmem:[%s1 + $0x3c] sm:$0xf]
      %v1153 = vld [vmem:[#allocation2 + $0x8] sm:$0xff]
      %v1154 = vld [vmem:[#allocation2 + $0x10] sm:$0xff]
      %v1155 = vld [vmem:[#allocation2 + $0x18] sm:$0xff]
      %v1156 = vld [vmem:[#allocation2 + $0x20] sm:$0xff]
      %v1157 = vld [vmem:[#allocation2 + $0x28] sm:$0xff]
      %v1158 = vld [vmem:[#allocation2 + $0x30] sm:$0xff]
      %v1159 = vld [vmem:[#allocation2 + $0x38] sm:$0xff]
      %v1160 = vld [vmem:[#allocation2 + $0x40] sm:$0xff]
      %v1161 = vld [vmem:[#allocation2 + $0x48] sm:$0xff]
      %v1162 = vld [vmem:[#allocation2 + $0x50] sm:$0xff]
      %v1163 = vld [vmem:[#allocation2 + $0x58] sm:$0xff]
      %v1164 = vld [vmem:[#allocation2 + $0x60] sm:$0xff]
      %v1165 = vld [vmem:[#allocation2 + $0x68] sm:$0xff]
      %v1166 = vld [vmem:[#allocation2 + $0x70] sm:$0xff]
      %v1167 = vld [vmem:[#allocation2 + $0x78] sm:$0xff]
      %v1168 = vld [vmem:[#allocation2 + $0x80] sm:$0xff]
      %v1169 = vld [vmem:[#allocation2 + $0x88] sm:$0xff]
      %v1170 = vld [vmem:[#allocation2 + $0x90] sm:$0xff]
      %v1171 = vld [vmem:[#allocation2 + $0x98] sm:$0xff]
      %v1172 = vld [vmem:[#allocation2 + $0xa0] sm:$0xff]
      %v1173 = vld [vmem:[#allocation2 + $0xa8] sm:$0xff]
      %v1174 = vld [vmem:[#allocation2 + $0xb0] sm:$0xff]
      %v1175 = vld [vmem:[#allocation2 + $0xb8] sm:$0xff]
      %v1176 = vld [vmem:[#allocation2 + $0xc0] sm:$0xff]
      %v1177 = vld [vmem:[#allocation2 + $0xc8] sm:$0xff]
      %v1178 = vld [vmem:[#allocation2 + $0xd0] sm:$0xff]
      %v1179 = vld [vmem:[#allocation2 + $0xd8] sm:$0xff]
      %v1180 = vld [vmem:[#allocation2 + $0xe0] sm:$0xff]
      %v1181 = vld [vmem:[#allocation2 + $0xe8] sm:$0xff]
      %v1182 = vld [vmem:[#allocation2 + $0xf0] sm:$0xff]
      %v1183 = vld [vmem:[#allocation2 + $0xf8] sm:$0xff]
      %v1184 = vld [vmem:[#allocation2 + $0x100] sm:$0xff]
      %v1185 = vld [vmem:[#allocation2 + $0x108] sm:$0xff]
      %v1186 = vld [vmem:[#allocation2 + $0x110] sm:$0xff]
      %v1187 = vld [vmem:[#allocation2 + $0x118] sm:$0xff]
      %v1188 = vld [vmem:[#allocation2 + $0x120] sm:$0xff]
      %v1189 = vld [vmem:[#allocation2 + $0x128] sm:$0xff]
      %v1190 = vld [vmem:[#allocation2 + $0x130] sm:$0xff]
      %v1191 = vld [vmem:[#allocation2 + $0x138] sm:$0xff]
      %v1192 = vld [vmem:[#allocation2 + $0x140] sm:$0xff]
      %v1193 = vld [vmem:[#allocation2 + $0x148] sm:$0xff]
      %v1194 = vld [vmem:[#allocation2 + $0x150] sm:$0xff]
      %v1195 = vld [vmem:[#allocation2 + $0x158] sm:$0xff]
      %v1196 = vld [vmem:[#allocation2 + $0x160] sm:$0xff]
      %v1197 = vld [vmem:[#allocation2 + $0x168] sm:$0xff]
      %v1198 = vld [vmem:[#allocation2 + $0x170] sm:$0xff]
      %v1199 = vld [vmem:[#allocation2 + $0x178] sm:$0xff]
      %v1200 = vld [vmem:[#allocation2 + $0x180] sm:$0xff]
      %v1201 = vld [vmem:[#allocation2 + $0x188] sm:$0xff]
      %v1202 = vld [vmem:[#allocation2 + $0x190] sm:$0xff]
      %v1203 = vld [vmem:[#allocation2 + $0x198] sm:$0xff]
      %v1204 = vld [vmem:[#allocation2 + $0x1a0] sm:$0xff]
      %v1205 = vld [vmem:[#allocation2 + $0x1a8] sm:$0xff]
      %v1206 = vld [vmem:[#allocation2 + $0x1b0] sm:$0xff]
      %v1207 = vpack.c.bf16 %v1154, %v1153
      %v1208 = vpack.c.bf16 %v1156, %v1155
      %v1209 = vpack.c.bf16 %v1158, %v1157
      %v1210 = vpack.c.bf16 %v1160, %v1159
      %v1211 = vpack.c.bf16 %v1162, %v1161
      %v1212 = vpack.c.bf16 %v1164, %v1163
      %v1213 = vpack.c.bf16 %v1166, %v1165
      %v1214 = vpack.c.bf16 %v1168, %v1167
      %v1215 = vpack.c.bf16 %v1170, %v1169
      %v1216 = vpack.c.bf16 %v1172, %v1171
      %v1217 = vpack.c.bf16 %v1174, %v1173
      %v1218 = vpack.c.bf16 %v1176, %v1175
      %v1219 = vpack.c.bf16 %v1178, %v1177
      %v1220 = vpack.c.bf16 %v1180, %v1179
      %v1221 = vpack.c.bf16 %v1182, %v1181
      %v1222 = vpack.c.bf16 %v1184, %v1183
      %v1223 = vpack.c.bf16 %v1186, %v1185
      %v1224 = vpack.c.bf16 %v1188, %v1187
      %v1225 = vpack.c.bf16 %v1190, %v1189
      %v1226 = vpack.c.bf16 %v1192, %v1191
      %v1227 = vpack.c.bf16 %v1194, %v1193
      %v1228 = vpack.c.bf16 %v1196, %v1195
      %v1229 = vpack.c.bf16 %v1198, %v1197
      %v1230 = vpack.c.bf16 %v1200, %v1199
      %v1231 = vpack.c.bf16 %v1202, %v1201
      %v1232 = vpack.c.bf16 %v1204, %v1203
      %v1233 = vpack.c.bf16 %v1206, %v1205
      %s1234 = scalar_lea.vmem %s1, 64
      %v1235 = vld [vmem:[%s1234] sm:$0xf]
      %v1236 = vld [vmem:[%s1234 + $0x4] sm:$0xf]
      %v1237 = vld [vmem:[%s1234 + $0x8] sm:$0xf]
      %v1238 = vld [vmem:[%s1234 + $0xc] sm:$0xf]
      %v1239 = vld [vmem:[%s1234 + $0x10] sm:$0xf]
      %v1240 = vld [vmem:[%s1234 + $0x14] sm:$0xf]
      %v1241 = vld [vmem:[%s1234 + $0x18] sm:$0xf]
      %v1242 = vld [vmem:[%s1234 + $0x1c] sm:$0xf]
      %v1243 = vld [vmem:[%s1234 + $0x20] sm:$0xf]
      %v1244 = vld [vmem:[%s1234 + $0x24] sm:$0xf]
      %v1245 = vld [vmem:[%s1234 + $0x28] sm:$0xf]
      %v1246 = vld [vmem:[%s1234 + $0x2c] sm:$0xf]
      %v1247 = vld [vmem:[%s1234 + $0x30] sm:$0xf]
      %v1248 = vld [vmem:[%s1234 + $0x34] sm:$0xf]
      %v1249 = vld [vmem:[%s1234 + $0x38] sm:$0xf]
      %v1250 = vld [vmem:[%s1234 + $0x3c] sm:$0xf]
      %v1267 = vunpack.c.l.b16 %v1235
      %v1268 = vunpack.c.l.b16 %v1236
      %v1269 = vunpack.c.l.b16 %v1237
      %v1270 = vunpack.c.l.b16 %v1238
      %v1271 = vunpack.c.l.b16 %v1239
      %v1272 = vunpack.c.l.b16 %v1240
      %v1273 = vunpack.c.l.b16 %v1241
      %v1274 = vunpack.c.l.b16 %v1242
      %v1275 = vunpack.c.l.b16 %v1243
      %v1276 = vunpack.c.l.b16 %v1244
      %v1277 = vunpack.c.l.b16 %v1245
      %v1278 = vunpack.c.l.b16 %v1246
      %v1279 = vunpack.c.l.b16 %v1247
      %v1280 = vunpack.c.l.b16 %v1248
      %v1281 = vunpack.c.l.b16 %v1249
      %v1282 = vunpack.c.l.b16 %v1250
      %v1283 = vpack.c.b16 %v1268, %v1267
      %v1284 = vpack.c.b16 %v1270, %v1269
      %v1285 = vpack.c.b16 %v1272, %v1271
      %v1286 = vpack.c.b16 %v1274, %v1273
      %v1287 = vpack.c.b16 %v1276, %v1275
      %v1288 = vpack.c.b16 %v1278, %v1277
      %v1289 = vpack.c.b16 %v1280, %v1279
      %v1290 = vpack.c.b16 %v1282, %v1281
      %1299 = vmatprep.subr.bf16.mxu0 0
      %1300 = vmatpush1.bf16.msra.mxu0 %v1290
      %1301 = vmatprep.subr.bf16.mxu0 0
      %1302 = vmatpush1.bf16.msra.mxu0 %v1289
      %1303 = vmatprep.subr.bf16.mxu0 0
      %1304 = vmatpush1.bf16.msra.mxu0 %v1288
      %1305 = vmatprep.subr.bf16.mxu0 0
      %1306 = vmatpush1.bf16.msra.mxu0 %v1287
      %1307 = vmatprep.subr.bf16.mxu0 0
      %1308 = vmatpush1.bf16.msra.mxu0 %v1286
      %1309 = vmatprep.subr.bf16.mxu0 0
      %1310 = vmatpush1.bf16.msra.mxu0 %v1285
      %1311 = vmatprep.subr.bf16.mxu0 0
      %1312 = vmatpush1.bf16.msra.mxu0 %v1284
      %1313 = vmatprep.subr.bf16.mxu0 0
      %1314 = vmatpush1.bf16.msra.mxu0 %v1283
      %1315 = vmatprep.subr.bf16.mxu0 0
      %1316 = vmatpush2.bf16.msra.mxu0 0
      %1317 = vmatprep.subr.bf16.mxu0 0
      %1318 = vmatpush2.bf16.msra.mxu0 0
      %1319 = vmatprep.subr.bf16.mxu0 0
      %1320 = vmatpush2.bf16.msra.mxu0 0
      %1321 = vmatprep.subr.bf16.mxu0 0
      %1322 = vmatpush2.bf16.msra.mxu0 0
      %1323 = vmatprep.subr.bf16.mxu0 0
      %1324 = vmatpush2.bf16.msra.mxu0 0
      %1325 = vmatprep.subr.bf16.mxu0 0
      %1326 = vmatpush2.bf16.msra.mxu0 0
      %1327 = vmatprep.subr.bf16.mxu0 0
      %1328 = vmatpush2.bf16.msra.mxu0 0
      %1329 = vmatprep.subr.bf16.mxu0 0
      %1330 = vmatpush2.bf16.msra.mxu0 0
      %1331 = vmatprep.mubr.bf16.mxu0 0
      %1332 = vmatmul.mubr.bf16.gmra.mxu0 %v1207
      %v1333 = vpop.f32.mrf.mxu0
      %v1334 = vadd.f32 0.0, %v1333
      %v1335 = vpop.f32.mrf.mxu0
      %v1336 = vpop.f32.mrf.mxu0
      %v1337 = vadd.f32 0.0, %v1336
      %v1338 = vpop.f32.mrf.mxu0
      %1339 = vmatprep.mubr.bf16.mxu0 0
      %1340 = vmatmul.mubr.bf16.gmra.mxu0 %v1208
      %v1341 = vpop.f32.mrf.mxu0
      %v1342 = vadd.f32 0.0, %v1341
      %v1343 = vpop.f32.mrf.mxu0
      %v1344 = vpop.f32.mrf.mxu0
      %v1345 = vadd.f32 0.0, %v1344
      %v1346 = vpop.f32.mrf.mxu0
      %1347 = vmatprep.mubr.bf16.mxu0 0
      %1348 = vmatmul.mubr.bf16.gmra.mxu0 %v1209
      %v1349 = vpop.f32.mrf.mxu0
      %v1350 = vadd.f32 0.0, %v1349
      %v1351 = vpop.f32.mrf.mxu0
      %v1352 = vpop.f32.mrf.mxu0
      %v1353 = vadd.f32 0.0, %v1352
      %v1354 = vpop.f32.mrf.mxu0
      %1355 = vmatprep.mubr.bf16.mxu0 0
      %1356 = vmatmul.mubr.bf16.gmra.mxu0 %v1210
      %v1357 = vpop.f32.mrf.mxu0
      %v1358 = vadd.f32 0.0, %v1357
      %v1359 = vpop.f32.mrf.mxu0
      %v1360 = vpop.f32.mrf.mxu0
      %v1361 = vadd.f32 0.0, %v1360
      %v1362 = vpop.f32.mrf.mxu0
      %1363 = vmatprep.mubr.bf16.mxu0 0
      %1364 = vmatmul.mubr.bf16.gmra.mxu0 %v1211
      %v1365 = vpop.f32.mrf.mxu0
      %v1366 = vadd.f32 0.0, %v1365
      %v1367 = vpop.f32.mrf.mxu0
      %v1368 = vpop.f32.mrf.mxu0
      %v1369 = vadd.f32 0.0, %v1368
      %v1370 = vpop.f32.mrf.mxu0
      %1371 = vmatprep.mubr.bf16.mxu0 0
      %1372 = vmatmul.mubr.bf16.gmra.mxu0 %v1212
      %v1373 = vpop.f32.mrf.mxu0
      %v1374 = vadd.f32 0.0, %v1373
      %v1375 = vpop.f32.mrf.mxu0
      %v1376 = vpop.f32.mrf.mxu0
      %v1377 = vadd.f32 0.0, %v1376
      %v1378 = vpop.f32.mrf.mxu0
      %1379 = vmatprep.mubr.bf16.mxu0 0
      %1380 = vmatmul.mubr.bf16.gmra.mxu0 %v1213
      %v1381 = vpop.f32.mrf.mxu0
      %v1382 = vadd.f32 0.0, %v1381
      %v1383 = vpop.f32.mrf.mxu0
      %v1384 = vpop.f32.mrf.mxu0
      %v1385 = vadd.f32 0.0, %v1384
      %v1386 = vpop.f32.mrf.mxu0
      %1387 = vmatprep.mubr.bf16.mxu0 0
      %1388 = vmatmul.mubr.bf16.gmra.mxu0 %v1214
      %v1389 = vpop.f32.mrf.mxu0
      %v1390 = vadd.f32 0.0, %v1389
      %v1391 = vpop.f32.mrf.mxu0
      %v1392 = vpop.f32.mrf.mxu0
      %v1393 = vadd.f32 0.0, %v1392
      %v1394 = vpop.f32.mrf.mxu0
      %1395 = vmatprep.mubr.bf16.mxu0 0
      %1396 = vmatmul.mubr.bf16.gmra.mxu0 %v1215
      %v1397 = vpop.f32.mrf.mxu0
      %v1398 = vadd.f32 0.0, %v1397
      %v1399 = vpop.f32.mrf.mxu0
      %v1400 = vpop.f32.mrf.mxu0
      %v1401 = vadd.f32 0.0, %v1400
      %v1402 = vpop.f32.mrf.mxu0
      %1403 = vmatprep.mubr.bf16.mxu0 0
      %1404 = vmatmul.mubr.bf16.gmra.mxu0 %v1216
      %v1405 = vpop.f32.mrf.mxu0
      %v1406 = vadd.f32 0.0, %v1405
      %v1407 = vpop.f32.mrf.mxu0
      %v1408 = vpop.f32.mrf.mxu0
      %v1409 = vadd.f32 0.0, %v1408
      %v1410 = vpop.f32.mrf.mxu0
      %1411 = vmatprep.mubr.bf16.mxu0 0
      %1412 = vmatmul.mubr.bf16.gmra.mxu0 %v1217
      %v1413 = vpop.f32.mrf.mxu0
      %v1414 = vadd.f32 0.0, %v1413
      %v1415 = vpop.f32.mrf.mxu0
      %v1416 = vpop.f32.mrf.mxu0
      %v1417 = vadd.f32 0.0, %v1416
      %v1418 = vpop.f32.mrf.mxu0
      %1419 = vmatprep.mubr.bf16.mxu0 0
      %1420 = vmatmul.mubr.bf16.gmra.mxu0 %v1218
      %v1421 = vpop.f32.mrf.mxu0
      %v1422 = vadd.f32 0.0, %v1421
      %v1423 = vpop.f32.mrf.mxu0
      %v1424 = vpop.f32.mrf.mxu0
      %v1425 = vadd.f32 0.0, %v1424
      %v1426 = vpop.f32.mrf.mxu0
      %1427 = vmatprep.mubr.bf16.mxu0 0
      %1428 = vmatmul.mubr.bf16.gmra.mxu0 %v1219
      %v1429 = vpop.f32.mrf.mxu0
      %v1430 = vadd.f32 0.0, %v1429
      %v1431 = vpop.f32.mrf.mxu0
      %v1432 = vpop.f32.mrf.mxu0
      %v1433 = vadd.f32 0.0, %v1432
      %v1434 = vpop.f32.mrf.mxu0
      %1435 = vmatprep.mubr.bf16.mxu0 0
      %1436 = vmatmul.mubr.bf16.gmra.mxu0 %v1220
      %v1437 = vpop.f32.mrf.mxu0
      %v1438 = vadd.f32 0.0, %v1437
      %v1439 = vpop.f32.mrf.mxu0
      %v1440 = vpop.f32.mrf.mxu0
      %v1441 = vadd.f32 0.0, %v1440
      %v1442 = vpop.f32.mrf.mxu0
      %1443 = vmatprep.mubr.bf16.mxu0 0
      %1444 = vmatmul.mubr.bf16.gmra.mxu0 %v1221
      %v1445 = vpop.f32.mrf.mxu0
      %v1446 = vadd.f32 0.0, %v1445
      %v1447 = vpop.f32.mrf.mxu0
      %v1448 = vpop.f32.mrf.mxu0
      %v1449 = vadd.f32 0.0, %v1448
      %v1450 = vpop.f32.mrf.mxu0
      %1451 = vmatprep.mubr.bf16.mxu0 0
      %1452 = vmatmul.mubr.bf16.gmra.mxu0 %v1222
      %v1453 = vpop.f32.mrf.mxu0
      %v1454 = vadd.f32 0.0, %v1453
      %v1455 = vpop.f32.mrf.mxu0
      %v1456 = vpop.f32.mrf.mxu0
      %v1457 = vadd.f32 0.0, %v1456
      %v1458 = vpop.f32.mrf.mxu0
      %1459 = vmatprep.mubr.bf16.mxu0 0
      %1460 = vmatmul.mubr.bf16.gmra.mxu0 %v1223
      %v1461 = vpop.f32.mrf.mxu0
      %v1462 = vadd.f32 0.0, %v1461
      %v1463 = vpop.f32.mrf.mxu0
      %v1464 = vpop.f32.mrf.mxu0
      %v1465 = vadd.f32 0.0, %v1464
      %v1466 = vpop.f32.mrf.mxu0
      %1467 = vmatprep.mubr.bf16.mxu0 0
      %1468 = vmatmul.mubr.bf16.gmra.mxu0 %v1224
      %v1469 = vpop.f32.mrf.mxu0
      %v1470 = vadd.f32 0.0, %v1469
      %v1471 = vpop.f32.mrf.mxu0
      %v1472 = vpop.f32.mrf.mxu0
      %v1473 = vadd.f32 0.0, %v1472
      %v1474 = vpop.f32.mrf.mxu0
      %1475 = vmatprep.mubr.bf16.mxu0 0
      %1476 = vmatmul.mubr.bf16.gmra.mxu0 %v1225
      %v1477 = vpop.f32.mrf.mxu0
      %v1478 = vadd.f32 0.0, %v1477
      %v1479 = vpop.f32.mrf.mxu0
      %v1480 = vpop.f32.mrf.mxu0
      %v1481 = vadd.f32 0.0, %v1480
      %v1482 = vpop.f32.mrf.mxu0
      %1483 = vmatprep.mubr.bf16.mxu0 0
      %1484 = vmatmul.mubr.bf16.gmra.mxu0 %v1226
      %v1485 = vpop.f32.mrf.mxu0
      %v1486 = vadd.f32 0.0, %v1485
      %v1487 = vpop.f32.mrf.mxu0
      %v1488 = vpop.f32.mrf.mxu0
      %v1489 = vadd.f32 0.0, %v1488
      %v1490 = vpop.f32.mrf.mxu0
      %1491 = vmatprep.mubr.bf16.mxu0 0
      %1492 = vmatmul.mubr.bf16.gmra.mxu0 %v1227
      %v1493 = vpop.f32.mrf.mxu0
      %v1494 = vadd.f32 0.0, %v1493
      %v1495 = vpop.f32.mrf.mxu0
      %v1496 = vpop.f32.mrf.mxu0
      %v1497 = vadd.f32 0.0, %v1496
      %v1498 = vpop.f32.mrf.mxu0
      %1499 = vmatprep.mubr.bf16.mxu0 0
      %1500 = vmatmul.mubr.bf16.gmra.mxu0 %v1228
      %v1501 = vpop.f32.mrf.mxu0
      %v1502 = vadd.f32 0.0, %v1501
      %v1503 = vpop.f32.mrf.mxu0
      %v1504 = vpop.f32.mrf.mxu0
      %v1505 = vadd.f32 0.0, %v1504
      %v1506 = vpop.f32.mrf.mxu0
      %1507 = vmatprep.mubr.bf16.mxu0 0
      %1508 = vmatmul.mubr.bf16.gmra.mxu0 %v1229
      %v1509 = vpop.f32.mrf.mxu0
      %v1510 = vadd.f32 0.0, %v1509
      %v1511 = vpop.f32.mrf.mxu0
      %v1512 = vpop.f32.mrf.mxu0
      %v1513 = vadd.f32 0.0, %v1512
      %v1514 = vpop.f32.mrf.mxu0
      %1515 = vmatprep.mubr.bf16.mxu0 0
      %1516 = vmatmul.mubr.bf16.gmra.mxu0 %v1230
      %v1517 = vpop.f32.mrf.mxu0
      %v1518 = vadd.f32 0.0, %v1517
      %v1519 = vpop.f32.mrf.mxu0
      %v1520 = vpop.f32.mrf.mxu0
      %v1521 = vadd.f32 0.0, %v1520
      %v1522 = vpop.f32.mrf.mxu0
      %1523 = vmatprep.mubr.bf16.mxu0 0
      %1524 = vmatmul.mubr.bf16.gmra.mxu0 %v1231
      %v1525 = vpop.f32.mrf.mxu0
      %v1526 = vadd.f32 0.0, %v1525
      %v1527 = vpop.f32.mrf.mxu0
      %v1528 = vpop.f32.mrf.mxu0
      %v1529 = vadd.f32 0.0, %v1528
      %v1530 = vpop.f32.mrf.mxu0
      %1531 = vmatprep.mubr.bf16.mxu0 0
      %1532 = vmatmul.mubr.bf16.gmra.mxu0 %v1232
      %v1533 = vpop.f32.mrf.mxu0
      %v1534 = vadd.f32 0.0, %v1533
      %v1535 = vpop.f32.mrf.mxu0
      %v1536 = vpop.f32.mrf.mxu0
      %v1537 = vadd.f32 0.0, %v1536
      %v1538 = vpop.f32.mrf.mxu0
      %1539 = vmatprep.mubr.bf16.mxu0 0
      %1540 = vmatmul.mubr.bf16.gmra.mxu0 %v1233
      %v1541 = vpop.f32.mrf.mxu0
      %v1542 = vadd.f32 0.0, %v1541
      %v1543 = vpop.f32.mrf.mxu0
      %v1544 = vpop.f32.mrf.mxu0
      %v1545 = vadd.f32 0.0, %v1544
      %v1546 = vpop.f32.mrf.mxu0
      %1547 = vdwg.mxu0
      %v1564 = vunpack.c.l.b16 %v1137
      %v1565 = vunpack.c.l.b16 %v1138
      %v1566 = vunpack.c.l.b16 %v1139
      %v1567 = vunpack.c.l.b16 %v1140
      %v1568 = vunpack.c.l.b16 %v1141
      %v1569 = vunpack.c.l.b16 %v1142
      %v1570 = vunpack.c.l.b16 %v1143
      %v1571 = vunpack.c.l.b16 %v1144
      %v1572 = vunpack.c.l.b16 %v1145
      %v1573 = vunpack.c.l.b16 %v1146
      %v1574 = vunpack.c.l.b16 %v1147
      %v1575 = vunpack.c.l.b16 %v1148
      %v1576 = vunpack.c.l.b16 %v1149
      %v1577 = vunpack.c.l.b16 %v1150
      %v1578 = vunpack.c.l.b16 %v1151
      %v1579 = vunpack.c.l.b16 %v1152
      %v1580 = vpack.c.b16 %v1565, %v1564
      %v1581 = vpack.c.b16 %v1567, %v1566
      %v1582 = vpack.c.b16 %v1569, %v1568
      %v1583 = vpack.c.b16 %v1571, %v1570
      %v1584 = vpack.c.b16 %v1573, %v1572
      %v1585 = vpack.c.b16 %v1575, %v1574
      %v1586 = vpack.c.b16 %v1577, %v1576
      %v1587 = vpack.c.b16 %v1579, %v1578
      %1596 = vmatprep.subr.bf16.mxu0 0
      %1597 = vmatpush1.bf16.msra.mxu0 %v1587
      %1598 = vmatprep.subr.bf16.mxu0 0
      %1599 = vmatpush1.bf16.msra.mxu0 %v1586
      %1600 = vmatprep.subr.bf16.mxu0 0
      %1601 = vmatpush1.bf16.msra.mxu0 %v1585
      %1602 = vmatprep.subr.bf16.mxu0 0
      %1603 = vmatpush1.bf16.msra.mxu0 %v1584
      %1604 = vmatprep.subr.bf16.mxu0 0
      %1605 = vmatpush1.bf16.msra.mxu0 %v1583
      %1606 = vmatprep.subr.bf16.mxu0 0
      %1607 = vmatpush1.bf16.msra.mxu0 %v1582
      %1608 = vmatprep.subr.bf16.mxu0 0
      %1609 = vmatpush1.bf16.msra.mxu0 %v1581
      %1610 = vmatprep.subr.bf16.mxu0 0
      %1611 = vmatpush1.bf16.msra.mxu0 %v1580
      %1612 = vmatprep.subr.bf16.mxu0 0
      %1613 = vmatpush2.bf16.msra.mxu0 0
      %1614 = vmatprep.subr.bf16.mxu0 0
      %1615 = vmatpush2.bf16.msra.mxu0 0
      %1616 = vmatprep.subr.bf16.mxu0 0
      %1617 = vmatpush2.bf16.msra.mxu0 0
      %1618 = vmatprep.subr.bf16.mxu0 0
      %1619 = vmatpush2.bf16.msra.mxu0 0
      %1620 = vmatprep.subr.bf16.mxu0 0
      %1621 = vmatpush2.bf16.msra.mxu0 0
      %1622 = vmatprep.subr.bf16.mxu0 0
      %1623 = vmatpush2.bf16.msra.mxu0 0
      %1624 = vmatprep.subr.bf16.mxu0 0
      %1625 = vmatpush2.bf16.msra.mxu0 0
      %1626 = vmatprep.subr.bf16.mxu0 0
      %1627 = vmatpush2.bf16.msra.mxu0 0
      %1628 = vmatprep.mubr.bf16.mxu0 0
      %1629 = vmatmul.mubr.bf16.gmra.mxu0 %v1110
      %v1630 = vpop.f32.mrf.mxu0
      %v1631 = vadd.f32 %v1334, %v1630
      %v1632 = vpop.f32.mrf.mxu0
      %v1633 = vpop.f32.mrf.mxu0
      %v1634 = vadd.f32 %v1337, %v1633
      %v1635 = vpop.f32.mrf.mxu0
      %1636 = vmatprep.mubr.bf16.mxu0 0
      %1637 = vmatmul.mubr.bf16.gmra.mxu0 %v1111
      %v1638 = vpop.f32.mrf.mxu0
      %v1639 = vadd.f32 %v1342, %v1638
      %v1640 = vpop.f32.mrf.mxu0
      %v1641 = vpop.f32.mrf.mxu0
      %v1642 = vadd.f32 %v1345, %v1641
      %v1643 = vpop.f32.mrf.mxu0
      %1644 = vmatprep.mubr.bf16.mxu0 0
      %1645 = vmatmul.mubr.bf16.gmra.mxu0 %v1112
      %v1646 = vpop.f32.mrf.mxu0
      %v1647 = vadd.f32 %v1350, %v1646
      %v1648 = vpop.f32.mrf.mxu0
      %v1649 = vpop.f32.mrf.mxu0
      %v1650 = vadd.f32 %v1353, %v1649
      %v1651 = vpop.f32.mrf.mxu0
      %1652 = vmatprep.mubr.bf16.mxu0 0
      %1653 = vmatmul.mubr.bf16.gmra.mxu0 %v1113
      %v1654 = vpop.f32.mrf.mxu0
      %v1655 = vadd.f32 %v1358, %v1654
      %v1656 = vpop.f32.mrf.mxu0
      %v1657 = vpop.f32.mrf.mxu0
      %v1658 = vadd.f32 %v1361, %v1657
      %v1659 = vpop.f32.mrf.mxu0
      %1660 = vmatprep.mubr.bf16.mxu0 0
      %1661 = vmatmul.mubr.bf16.gmra.mxu0 %v1114
      %v1662 = vpop.f32.mrf.mxu0
      %v1663 = vadd.f32 %v1366, %v1662
      %v1664 = vpop.f32.mrf.mxu0
      %v1665 = vpop.f32.mrf.mxu0
      %v1666 = vadd.f32 %v1369, %v1665
      %v1667 = vpop.f32.mrf.mxu0
      %1668 = vmatprep.mubr.bf16.mxu0 0
      %1669 = vmatmul.mubr.bf16.gmra.mxu0 %v1115
      %v1670 = vpop.f32.mrf.mxu0
      %v1671 = vadd.f32 %v1374, %v1670
      %v1672 = vpop.f32.mrf.mxu0
      %v1673 = vpop.f32.mrf.mxu0
      %v1674 = vadd.f32 %v1377, %v1673
      %v1675 = vpop.f32.mrf.mxu0
      %1676 = vmatprep.mubr.bf16.mxu0 0
      %1677 = vmatmul.mubr.bf16.gmra.mxu0 %v1116
      %v1678 = vpop.f32.mrf.mxu0
      %v1679 = vadd.f32 %v1382, %v1678
      %v1680 = vpop.f32.mrf.mxu0
      %v1681 = vpop.f32.mrf.mxu0
      %v1682 = vadd.f32 %v1385, %v1681
      %v1683 = vpop.f32.mrf.mxu0
      %1684 = vmatprep.mubr.bf16.mxu0 0
      %1685 = vmatmul.mubr.bf16.gmra.mxu0 %v1117
      %v1686 = vpop.f32.mrf.mxu0
      %v1687 = vadd.f32 %v1390, %v1686
      %v1688 = vpop.f32.mrf.mxu0
      %v1689 = vpop.f32.mrf.mxu0
      %v1690 = vadd.f32 %v1393, %v1689
      %v1691 = vpop.f32.mrf.mxu0
      %1692 = vmatprep.mubr.bf16.mxu0 0
      %1693 = vmatmul.mubr.bf16.gmra.mxu0 %v1118
      %v1694 = vpop.f32.mrf.mxu0
      %v1695 = vadd.f32 %v1398, %v1694
      %v1696 = vpop.f32.mrf.mxu0
      %v1697 = vpop.f32.mrf.mxu0
      %v1698 = vadd.f32 %v1401, %v1697
      %v1699 = vpop.f32.mrf.mxu0
      %1700 = vmatprep.mubr.bf16.mxu0 0
      %1701 = vmatmul.mubr.bf16.gmra.mxu0 %v1119
      %v1702 = vpop.f32.mrf.mxu0
      %v1703 = vadd.f32 %v1406, %v1702
      %v1704 = vpop.f32.mrf.mxu0
      %v1705 = vpop.f32.mrf.mxu0
      %v1706 = vadd.f32 %v1409, %v1705
      %v1707 = vpop.f32.mrf.mxu0
      %1708 = vmatprep.mubr.bf16.mxu0 0
      %1709 = vmatmul.mubr.bf16.gmra.mxu0 %v1120
      %v1710 = vpop.f32.mrf.mxu0
      %v1711 = vadd.f32 %v1414, %v1710
      %v1712 = vpop.f32.mrf.mxu0
      %v1713 = vpop.f32.mrf.mxu0
      %v1714 = vadd.f32 %v1417, %v1713
      %v1715 = vpop.f32.mrf.mxu0
      %1716 = vmatprep.mubr.bf16.mxu0 0
      %1717 = vmatmul.mubr.bf16.gmra.mxu0 %v1121
      %v1718 = vpop.f32.mrf.mxu0
      %v1719 = vadd.f32 %v1422, %v1718
      %v1720 = vpop.f32.mrf.mxu0
      %v1721 = vpop.f32.mrf.mxu0
      %v1722 = vadd.f32 %v1425, %v1721
      %v1723 = vpop.f32.mrf.mxu0
      %1724 = vmatprep.mubr.bf16.mxu0 0
      %1725 = vmatmul.mubr.bf16.gmra.mxu0 %v1122
      %v1726 = vpop.f32.mrf.mxu0
      %v1727 = vadd.f32 %v1430, %v1726
      %v1728 = vpop.f32.mrf.mxu0
      %v1729 = vpop.f32.mrf.mxu0
      %v1730 = vadd.f32 %v1433, %v1729
      %v1731 = vpop.f32.mrf.mxu0
      %1732 = vmatprep.mubr.bf16.mxu0 0
      %1733 = vmatmul.mubr.bf16.gmra.mxu0 %v1123
      %v1734 = vpop.f32.mrf.mxu0
      %v1735 = vadd.f32 %v1438, %v1734
      %v1736 = vpop.f32.mrf.mxu0
      %v1737 = vpop.f32.mrf.mxu0
      %v1738 = vadd.f32 %v1441, %v1737
      %v1739 = vpop.f32.mrf.mxu0
      %1740 = vmatprep.mubr.bf16.mxu0 0
      %1741 = vmatmul.mubr.bf16.gmra.mxu0 %v1124
      %v1742 = vpop.f32.mrf.mxu0
      %v1743 = vadd.f32 %v1446, %v1742
      %v1744 = vpop.f32.mrf.mxu0
      %v1745 = vpop.f32.mrf.mxu0
      %v1746 = vadd.f32 %v1449, %v1745
      %v1747 = vpop.f32.mrf.mxu0
      %1748 = vmatprep.mubr.bf16.mxu0 0
      %1749 = vmatmul.mubr.bf16.gmra.mxu0 %v1125
      %v1750 = vpop.f32.mrf.mxu0
      %v1751 = vadd.f32 %v1454, %v1750
      %v1752 = vpop.f32.mrf.mxu0
      %v1753 = vpop.f32.mrf.mxu0
      %v1754 = vadd.f32 %v1457, %v1753
      %v1755 = vpop.f32.mrf.mxu0
      %1756 = vmatprep.mubr.bf16.mxu0 0
      %1757 = vmatmul.mubr.bf16.gmra.mxu0 %v1126
      %v1758 = vpop.f32.mrf.mxu0
      %v1759 = vadd.f32 %v1462, %v1758
      %v1760 = vpop.f32.mrf.mxu0
      %v1761 = vpop.f32.mrf.mxu0
      %v1762 = vadd.f32 %v1465, %v1761
      %v1763 = vpop.f32.mrf.mxu0
      %1764 = vmatprep.mubr.bf16.mxu0 0
      %1765 = vmatmul.mubr.bf16.gmra.mxu0 %v1127
      %v1766 = vpop.f32.mrf.mxu0
      %v1767 = vadd.f32 %v1470, %v1766
      %v1768 = vpop.f32.mrf.mxu0
      %v1769 = vpop.f32.mrf.mxu0
      %v1770 = vadd.f32 %v1473, %v1769
      %v1771 = vpop.f32.mrf.mxu0
      %1772 = vmatprep.mubr.bf16.mxu0 0
      %1773 = vmatmul.mubr.bf16.gmra.mxu0 %v1128
      %v1774 = vpop.f32.mrf.mxu0
      %v1775 = vadd.f32 %v1478, %v1774
      %v1776 = vpop.f32.mrf.mxu0
      %v1777 = vpop.f32.mrf.mxu0
      %v1778 = vadd.f32 %v1481, %v1777
      %v1779 = vpop.f32.mrf.mxu0
      %1780 = vmatprep.mubr.bf16.mxu0 0
      %1781 = vmatmul.mubr.bf16.gmra.mxu0 %v1129
      %v1782 = vpop.f32.mrf.mxu0
      %v1783 = vadd.f32 %v1486, %v1782
      %v1784 = vpop.f32.mrf.mxu0
      %v1785 = vpop.f32.mrf.mxu0
      %v1786 = vadd.f32 %v1489, %v1785
      %v1787 = vpop.f32.mrf.mxu0
      %1788 = vmatprep.mubr.bf16.mxu0 0
      %1789 = vmatmul.mubr.bf16.gmra.mxu0 %v1130
      %v1790 = vpop.f32.mrf.mxu0
      %v1791 = vadd.f32 %v1494, %v1790
      %v1792 = vpop.f32.mrf.mxu0
      %v1793 = vpop.f32.mrf.mxu0
      %v1794 = vadd.f32 %v1497, %v1793
      %v1795 = vpop.f32.mrf.mxu0
      %1796 = vmatprep.mubr.bf16.mxu0 0
      %1797 = vmatmul.mubr.bf16.gmra.mxu0 %v1131
      %v1798 = vpop.f32.mrf.mxu0
      %v1799 = vadd.f32 %v1502, %v1798
      %v1800 = vpop.f32.mrf.mxu0
      %v1801 = vpop.f32.mrf.mxu0
      %v1802 = vadd.f32 %v1505, %v1801
      %v1803 = vpop.f32.mrf.mxu0
      %1804 = vmatprep.mubr.bf16.mxu0 0
      %1805 = vmatmul.mubr.bf16.gmra.mxu0 %v1132
      %v1806 = vpop.f32.mrf.mxu0
      %v1807 = vadd.f32 %v1510, %v1806
      %v1808 = vpop.f32.mrf.mxu0
      %v1809 = vpop.f32.mrf.mxu0
      %v1810 = vadd.f32 %v1513, %v1809
      %v1811 = vpop.f32.mrf.mxu0
      %1812 = vmatprep.mubr.bf16.mxu0 0
      %1813 = vmatmul.mubr.bf16.gmra.mxu0 %v1133
      %v1814 = vpop.f32.mrf.mxu0
      %v1815 = vadd.f32 %v1518, %v1814
      %v1816 = vpop.f32.mrf.mxu0
      %v1817 = vpop.f32.mrf.mxu0
      %v1818 = vadd.f32 %v1521, %v1817
      %v1819 = vpop.f32.mrf.mxu0
      %1820 = vmatprep.mubr.bf16.mxu0 0
      %1821 = vmatmul.mubr.bf16.gmra.mxu0 %v1134
      %v1822 = vpop.f32.mrf.mxu0
      %v1823 = vadd.f32 %v1526, %v1822
      %v1824 = vpop.f32.mrf.mxu0
      %v1825 = vpop.f32.mrf.mxu0
      %v1826 = vadd.f32 %v1529, %v1825
      %v1827 = vpop.f32.mrf.mxu0
      %1828 = vmatprep.mubr.bf16.mxu0 0
      %1829 = vmatmul.mubr.bf16.gmra.mxu0 %v1135
      %v1830 = vpop.f32.mrf.mxu0
      %v1831 = vadd.f32 %v1534, %v1830
      %v1832 = vpop.f32.mrf.mxu0
      %v1833 = vpop.f32.mrf.mxu0
      %v1834 = vadd.f32 %v1537, %v1833
      %v1835 = vpop.f32.mrf.mxu0
      %1836 = vmatprep.mubr.bf16.mxu0 0
      %1837 = vmatmul.mubr.bf16.gmra.mxu0 %v1136
      %v1838 = vpop.f32.mrf.mxu0
      %v1839 = vadd.f32 %v1542, %v1838
      %v1840 = vpop.f32.mrf.mxu0
      %v1841 = vpop.f32.mrf.mxu0
      %v1842 = vadd.f32 %v1545, %v1841
      %v1843 = vpop.f32.mrf.mxu0
      %1844 = vdwg.mxu0
      %v1845 = vld [vmem:[#allocation2 + $0x9] sm:$0xff]
      %v1846 = vld [vmem:[#allocation2 + $0x11] sm:$0xff]
      %v1847 = vld [vmem:[#allocation2 + $0x19] sm:$0xff]
      %v1848 = vld [vmem:[#allocation2 + $0x21] sm:$0xff]
      %v1849 = vld [vmem:[#allocation2 + $0x29] sm:$0xff]
      %v1850 = vld [vmem:[#allocation2 + $0x31] sm:$0xff]
      %v1851 = vld [vmem:[#allocation2 + $0x39] sm:$0xff]
      %v1852 = vld [vmem:[#allocation2 + $0x41] sm:$0xff]
      %v1853 = vld [vmem:[#allocation2 + $0x49] sm:$0xff]
      %v1854 = vld [vmem:[#allocation2 + $0x51] sm:$0xff]
      %v1855 = vld [vmem:[#allocation2 + $0x59] sm:$0xff]
      %v1856 = vld [vmem:[#allocation2 + $0x61] sm:$0xff]
      %v1857 = vld [vmem:[#allocation2 + $0x69] sm:$0xff]
      %v1858 = vld [vmem:[#allocation2 + $0x71] sm:$0xff]
      %v1859 = vld [vmem:[#allocation2 + $0x79] sm:$0xff]
      %v1860 = vld [vmem:[#allocation2 + $0x81] sm:$0xff]
      %v1861 = vld [vmem:[#allocation2 + $0x89] sm:$0xff]
      %v1862 = vld [vmem:[#allocation2 + $0x91] sm:$0xff]
      %v1863 = vld [vmem:[#allocation2 + $0x99] sm:$0xff]
      %v1864 = vld [vmem:[#allocation2 + $0xa1] sm:$0xff]
      %v1865 = vld [vmem:[#allocation2 + $0xa9] sm:$0xff]
      %v1866 = vld [vmem:[#allocation2 + $0xb1] sm:$0xff]
      %v1867 = vld [vmem:[#allocation2 + $0xb9] sm:$0xff]
      %v1868 = vld [vmem:[#allocation2 + $0xc1] sm:$0xff]
      %v1869 = vld [vmem:[#allocation2 + $0xc9] sm:$0xff]
      %v1870 = vld [vmem:[#allocation2 + $0xd1] sm:$0xff]
      %v1871 = vld [vmem:[#allocation2 + $0xd9] sm:$0xff]
      %v1872 = vld [vmem:[#allocation2 + $0xe1] sm:$0xff]
      %v1873 = vld [vmem:[#allocation2 + $0xe9] sm:$0xff]
      %v1874 = vld [vmem:[#allocation2 + $0xf1] sm:$0xff]
      %v1875 = vld [vmem:[#allocation2 + $0xf9] sm:$0xff]
      %v1876 = vld [vmem:[#allocation2 + $0x101] sm:$0xff]
      %v1877 = vld [vmem:[#allocation2 + $0x109] sm:$0xff]
      %v1878 = vld [vmem:[#allocation2 + $0x111] sm:$0xff]
      %v1879 = vld [vmem:[#allocation2 + $0x119] sm:$0xff]
      %v1880 = vld [vmem:[#allocation2 + $0x121] sm:$0xff]
      %v1881 = vld [vmem:[#allocation2 + $0x129] sm:$0xff]
      %v1882 = vld [vmem:[#allocation2 + $0x131] sm:$0xff]
      %v1883 = vld [vmem:[#allocation2 + $0x139] sm:$0xff]
      %v1884 = vld [vmem:[#allocation2 + $0x141] sm:$0xff]
      %v1885 = vld [vmem:[#allocation2 + $0x149] sm:$0xff]
      %v1886 = vld [vmem:[#allocation2 + $0x151] sm:$0xff]
      %v1887 = vld [vmem:[#allocation2 + $0x159] sm:$0xff]
      %v1888 = vld [vmem:[#allocation2 + $0x161] sm:$0xff]
      %v1889 = vld [vmem:[#allocation2 + $0x169] sm:$0xff]
      %v1890 = vld [vmem:[#allocation2 + $0x171] sm:$0xff]
      %v1891 = vld [vmem:[#allocation2 + $0x179] sm:$0xff]
      %v1892 = vld [vmem:[#allocation2 + $0x181] sm:$0xff]
      %v1893 = vld [vmem:[#allocation2 + $0x189] sm:$0xff]
      %v1894 = vld [vmem:[#allocation2 + $0x191] sm:$0xff]
      %v1895 = vld [vmem:[#allocation2 + $0x199] sm:$0xff]
      %v1896 = vld [vmem:[#allocation2 + $0x1a1] sm:$0xff]
      %v1897 = vld [vmem:[#allocation2 + $0x1a9] sm:$0xff]
      %v1898 = vld [vmem:[#allocation2 + $0x1b1] sm:$0xff]
      %v1899 = vpack.c.bf16 %v1846, %v1845
      %v1900 = vpack.c.bf16 %v1848, %v1847
      %v1901 = vpack.c.bf16 %v1850, %v1849
      %v1902 = vpack.c.bf16 %v1852, %v1851
      %v1903 = vpack.c.bf16 %v1854, %v1853
      %v1904 = vpack.c.bf16 %v1856, %v1855
      %v1905 = vpack.c.bf16 %v1858, %v1857
      %v1906 = vpack.c.bf16 %v1860, %v1859
      %v1907 = vpack.c.bf16 %v1862, %v1861
      %v1908 = vpack.c.bf16 %v1864, %v1863
      %v1909 = vpack.c.bf16 %v1866, %v1865
      %v1910 = vpack.c.bf16 %v1868, %v1867
      %v1911 = vpack.c.bf16 %v1870, %v1869
      %v1912 = vpack.c.bf16 %v1872, %v1871
      %v1913 = vpack.c.bf16 %v1874, %v1873
      %v1914 = vpack.c.bf16 %v1876, %v1875
      %v1915 = vpack.c.bf16 %v1878, %v1877
      %v1916 = vpack.c.bf16 %v1880, %v1879
      %v1917 = vpack.c.bf16 %v1882, %v1881
      %v1918 = vpack.c.bf16 %v1884, %v1883
      %v1919 = vpack.c.bf16 %v1886, %v1885
      %v1920 = vpack.c.bf16 %v1888, %v1887
      %v1921 = vpack.c.bf16 %v1890, %v1889
      %v1922 = vpack.c.bf16 %v1892, %v1891
      %v1923 = vpack.c.bf16 %v1894, %v1893
      %v1924 = vpack.c.bf16 %v1896, %v1895
      %v1925 = vpack.c.bf16 %v1898, %v1897
      %s1926 = scalar_lea.vmem %s1, 128
      %v1927 = vld [vmem:[%s1926] sm:$0xf]
      %v1928 = vld [vmem:[%s1926 + $0x4] sm:$0xf]
      %v1929 = vld [vmem:[%s1926 + $0x8] sm:$0xf]
      %v1930 = vld [vmem:[%s1926 + $0xc] sm:$0xf]
      %v1931 = vld [vmem:[%s1926 + $0x10] sm:$0xf]
      %v1932 = vld [vmem:[%s1926 + $0x14] sm:$0xf]
      %v1933 = vld [vmem:[%s1926 + $0x18] sm:$0xf]
      %v1934 = vld [vmem:[%s1926 + $0x1c] sm:$0xf]
      %v1935 = vld [vmem:[%s1926 + $0x20] sm:$0xf]
      %v1936 = vld [vmem:[%s1926 + $0x24] sm:$0xf]
      %v1937 = vld [vmem:[%s1926 + $0x28] sm:$0xf]
      %v1938 = vld [vmem:[%s1926 + $0x2c] sm:$0xf]
      %v1939 = vld [vmem:[%s1926 + $0x30] sm:$0xf]
      %v1940 = vld [vmem:[%s1926 + $0x34] sm:$0xf]
      %v1941 = vld [vmem:[%s1926 + $0x38] sm:$0xf]
      %v1942 = vld [vmem:[%s1926 + $0x3c] sm:$0xf]
      %v1959 = vunpack.c.l.b16 %v1927
      %v1960 = vunpack.c.l.b16 %v1928
      %v1961 = vunpack.c.l.b16 %v1929
      %v1962 = vunpack.c.l.b16 %v1930
      %v1963 = vunpack.c.l.b16 %v1931
      %v1964 = vunpack.c.l.b16 %v1932
      %v1965 = vunpack.c.l.b16 %v1933
      %v1966 = vunpack.c.l.b16 %v1934
      %v1967 = vunpack.c.l.b16 %v1935
      %v1968 = vunpack.c.l.b16 %v1936
      %v1969 = vunpack.c.l.b16 %v1937
      %v1970 = vunpack.c.l.b16 %v1938
      %v1971 = vunpack.c.l.b16 %v1939
      %v1972 = vunpack.c.l.b16 %v1940
      %v1973 = vunpack.c.l.b16 %v1941
      %v1974 = vunpack.c.l.b16 %v1942
      %v1975 = vpack.c.b16 %v1960, %v1959
      %v1976 = vpack.c.b16 %v1962, %v1961
      %v1977 = vpack.c.b16 %v1964, %v1963
      %v1978 = vpack.c.b16 %v1966, %v1965
      %v1979 = vpack.c.b16 %v1968, %v1967
      %v1980 = vpack.c.b16 %v1970, %v1969
      %v1981 = vpack.c.b16 %v1972, %v1971
      %v1982 = vpack.c.b16 %v1974, %v1973
      %1991 = vmatprep.subr.bf16.mxu0 0
      %1992 = vmatpush1.bf16.msra.mxu0 %v1982
      %1993 = vmatprep.subr.bf16.mxu0 0
      %1994 = vmatpush1.bf16.msra.mxu0 %v1981
      %1995 = vmatprep.subr.bf16.mxu0 0
      %1996 = vmatpush1.bf16.msra.mxu0 %v1980
      %1997 = vmatprep.subr.bf16.mxu0 0
      %1998 = vmatpush1.bf16.msra.mxu0 %v1979
      %1999 = vmatprep.subr.bf16.mxu0 0
      %2000 = vmatpush1.bf16.msra.mxu0 %v1978
      %2001 = vmatprep.subr.bf16.mxu0 0
      %2002 = vmatpush1.bf16.msra.mxu0 %v1977
      %2003 = vmatprep.subr.bf16.mxu0 0
      %2004 = vmatpush1.bf16.msra.mxu0 %v1976
      %2005 = vmatprep.subr.bf16.mxu0 0
      %2006 = vmatpush1.bf16.msra.mxu0 %v1975
      %2007 = vmatprep.subr.bf16.mxu0 0
      %2008 = vmatpush2.bf16.msra.mxu0 0
      %2009 = vmatprep.subr.bf16.mxu0 0
      %2010 = vmatpush2.bf16.msra.mxu0 0
      %2011 = vmatprep.subr.bf16.mxu0 0
      %2012 = vmatpush2.bf16.msra.mxu0 0
      %2013 = vmatprep.subr.bf16.mxu0 0
      %2014 = vmatpush2.bf16.msra.mxu0 0
      %2015 = vmatprep.subr.bf16.mxu0 0
      %2016 = vmatpush2.bf16.msra.mxu0 0
      %2017 = vmatprep.subr.bf16.mxu0 0
      %2018 = vmatpush2.bf16.msra.mxu0 0
      %2019 = vmatprep.subr.bf16.mxu0 0
      %2020 = vmatpush2.bf16.msra.mxu0 0
      %2021 = vmatprep.subr.bf16.mxu0 0
      %2022 = vmatpush2.bf16.msra.mxu0 0
      %2023 = vmatprep.mubr.bf16.mxu0 0
      %2024 = vmatmul.mubr.bf16.gmra.mxu0 %v1899
      %v2025 = vpop.f32.mrf.mxu0
      %v2026 = vadd.f32 0.0, %v2025
      %v2027 = vpop.f32.mrf.mxu0
      %v2028 = vpop.f32.mrf.mxu0
      %v2029 = vadd.f32 0.0, %v2028
      %v2030 = vpop.f32.mrf.mxu0
      %2031 = vmatprep.mubr.bf16.mxu0 0
      %2032 = vmatmul.mubr.bf16.gmra.mxu0 %v1900
      %v2033 = vpop.f32.mrf.mxu0
      %v2034 = vadd.f32 0.0, %v2033
      %v2035 = vpop.f32.mrf.mxu0
      %v2036 = vpop.f32.mrf.mxu0
      %v2037 = vadd.f32 0.0, %v2036
      %v2038 = vpop.f32.mrf.mxu0
      %2039 = vmatprep.mubr.bf16.mxu0 0
      %2040 = vmatmul.mubr.bf16.gmra.mxu0 %v1901
      %v2041 = vpop.f32.mrf.mxu0
      %v2042 = vadd.f32 0.0, %v2041
      %v2043 = vpop.f32.mrf.mxu0
      %v2044 = vpop.f32.mrf.mxu0
      %v2045 = vadd.f32 0.0, %v2044
      %v2046 = vpop.f32.mrf.mxu0
      %2047 = vmatprep.mubr.bf16.mxu0 0
      %2048 = vmatmul.mubr.bf16.gmra.mxu0 %v1902
      %v2049 = vpop.f32.mrf.mxu0
      %v2050 = vadd.f32 0.0, %v2049
      %v2051 = vpop.f32.mrf.mxu0
      %v2052 = vpop.f32.mrf.mxu0
      %v2053 = vadd.f32 0.0, %v2052
      %v2054 = vpop.f32.mrf.mxu0
      %2055 = vmatprep.mubr.bf16.mxu0 0
      %2056 = vmatmul.mubr.bf16.gmra.mxu0 %v1903
      %v2057 = vpop.f32.mrf.mxu0
      %v2058 = vadd.f32 0.0, %v2057
      %v2059 = vpop.f32.mrf.mxu0
      %v2060 = vpop.f32.mrf.mxu0
      %v2061 = vadd.f32 0.0, %v2060
      %v2062 = vpop.f32.mrf.mxu0
      %2063 = vmatprep.mubr.bf16.mxu0 0
      %2064 = vmatmul.mubr.bf16.gmra.mxu0 %v1904
      %v2065 = vpop.f32.mrf.mxu0
      %v2066 = vadd.f32 0.0, %v2065
      %v2067 = vpop.f32.mrf.mxu0
      %v2068 = vpop.f32.mrf.mxu0
      %v2069 = vadd.f32 0.0, %v2068
      %v2070 = vpop.f32.mrf.mxu0
      %2071 = vmatprep.mubr.bf16.mxu0 0
      %2072 = vmatmul.mubr.bf16.gmra.mxu0 %v1905
      %v2073 = vpop.f32.mrf.mxu0
      %v2074 = vadd.f32 0.0, %v2073
      %v2075 = vpop.f32.mrf.mxu0
      %v2076 = vpop.f32.mrf.mxu0
      %v2077 = vadd.f32 0.0, %v2076
      %v2078 = vpop.f32.mrf.mxu0
      %2079 = vmatprep.mubr.bf16.mxu0 0
      %2080 = vmatmul.mubr.bf16.gmra.mxu0 %v1906
      %v2081 = vpop.f32.mrf.mxu0
      %v2082 = vadd.f32 0.0, %v2081
      %v2083 = vpop.f32.mrf.mxu0
      %v2084 = vpop.f32.mrf.mxu0
      %v2085 = vadd.f32 0.0, %v2084
      %v2086 = vpop.f32.mrf.mxu0
      %2087 = vmatprep.mubr.bf16.mxu0 0
      %2088 = vmatmul.mubr.bf16.gmra.mxu0 %v1907
      %v2089 = vpop.f32.mrf.mxu0
      %v2090 = vadd.f32 0.0, %v2089
      %v2091 = vpop.f32.mrf.mxu0
      %v2092 = vpop.f32.mrf.mxu0
      %v2093 = vadd.f32 0.0, %v2092
      %v2094 = vpop.f32.mrf.mxu0
      %2095 = vmatprep.mubr.bf16.mxu0 0
      %2096 = vmatmul.mubr.bf16.gmra.mxu0 %v1908
      %v2097 = vpop.f32.mrf.mxu0
      %v2098 = vadd.f32 0.0, %v2097
      %v2099 = vpop.f32.mrf.mxu0
      %v2100 = vpop.f32.mrf.mxu0
      %v2101 = vadd.f32 0.0, %v2100
      %v2102 = vpop.f32.mrf.mxu0
      %2103 = vmatprep.mubr.bf16.mxu0 0
      %2104 = vmatmul.mubr.bf16.gmra.mxu0 %v1909
      %v2105 = vpop.f32.mrf.mxu0
      %v2106 = vadd.f32 0.0, %v2105
      %v2107 = vpop.f32.mrf.mxu0
      %v2108 = vpop.f32.mrf.mxu0
      %v2109 = vadd.f32 0.0, %v2108
      %v2110 = vpop.f32.mrf.mxu0
      %2111 = vmatprep.mubr.bf16.mxu0 0
      %2112 = vmatmul.mubr.bf16.gmra.mxu0 %v1910
      %v2113 = vpop.f32.mrf.mxu0
      %v2114 = vadd.f32 0.0, %v2113
      %v2115 = vpop.f32.mrf.mxu0
      %v2116 = vpop.f32.mrf.mxu0
      %v2117 = vadd.f32 0.0, %v2116
      %v2118 = vpop.f32.mrf.mxu0
      %2119 = vmatprep.mubr.bf16.mxu0 0
      %2120 = vmatmul.mubr.bf16.gmra.mxu0 %v1911
      %v2121 = vpop.f32.mrf.mxu0
      %v2122 = vadd.f32 0.0, %v2121
      %v2123 = vpop.f32.mrf.mxu0
      %v2124 = vpop.f32.mrf.mxu0
      %v2125 = vadd.f32 0.0, %v2124
      %v2126 = vpop.f32.mrf.mxu0
      %2127 = vmatprep.mubr.bf16.mxu0 0
      %2128 = vmatmul.mubr.bf16.gmra.mxu0 %v1912
      %v2129 = vpop.f32.mrf.mxu0
      %v2130 = vadd.f32 0.0, %v2129
      %v2131 = vpop.f32.mrf.mxu0
      %v2132 = vpop.f32.mrf.mxu0
      %v2133 = vadd.f32 0.0, %v2132
      %v2134 = vpop.f32.mrf.mxu0
      %2135 = vmatprep.mubr.bf16.mxu0 0
      %2136 = vmatmul.mubr.bf16.gmra.mxu0 %v1913
      %v2137 = vpop.f32.mrf.mxu0
      %v2138 = vadd.f32 0.0, %v2137
      %v2139 = vpop.f32.mrf.mxu0
      %v2140 = vpop.f32.mrf.mxu0
      %v2141 = vadd.f32 0.0, %v2140
      %v2142 = vpop.f32.mrf.mxu0
      %2143 = vmatprep.mubr.bf16.mxu0 0
      %2144 = vmatmul.mubr.bf16.gmra.mxu0 %v1914
      %v2145 = vpop.f32.mrf.mxu0
      %v2146 = vadd.f32 0.0, %v2145
      %v2147 = vpop.f32.mrf.mxu0
      %v2148 = vpop.f32.mrf.mxu0
      %v2149 = vadd.f32 0.0, %v2148
      %v2150 = vpop.f32.mrf.mxu0
      %2151 = vmatprep.mubr.bf16.mxu0 0
      %2152 = vmatmul.mubr.bf16.gmra.mxu0 %v1915
      %v2153 = vpop.f32.mrf.mxu0
      %v2154 = vadd.f32 0.0, %v2153
      %v2155 = vpop.f32.mrf.mxu0
      %v2156 = vpop.f32.mrf.mxu0
      %v2157 = vadd.f32 0.0, %v2156
      %v2158 = vpop.f32.mrf.mxu0
      %2159 = vmatprep.mubr.bf16.mxu0 0
      %2160 = vmatmul.mubr.bf16.gmra.mxu0 %v1916
      %v2161 = vpop.f32.mrf.mxu0
      %v2162 = vadd.f32 0.0, %v2161
      %v2163 = vpop.f32.mrf.mxu0
      %v2164 = vpop.f32.mrf.mxu0
      %v2165 = vadd.f32 0.0, %v2164
      %v2166 = vpop.f32.mrf.mxu0
      %2167 = vmatprep.mubr.bf16.mxu0 0
      %2168 = vmatmul.mubr.bf16.gmra.mxu0 %v1917
      %v2169 = vpop.f32.mrf.mxu0
      %v2170 = vadd.f32 0.0, %v2169
      %v2171 = vpop.f32.mrf.mxu0
      %v2172 = vpop.f32.mrf.mxu0
      %v2173 = vadd.f32 0.0, %v2172
      %v2174 = vpop.f32.mrf.mxu0
      %2175 = vmatprep.mubr.bf16.mxu0 0
      %2176 = vmatmul.mubr.bf16.gmra.mxu0 %v1918
      %v2177 = vpop.f32.mrf.mxu0
      %v2178 = vadd.f32 0.0, %v2177
      %v2179 = vpop.f32.mrf.mxu0
      %v2180 = vpop.f32.mrf.mxu0
      %v2181 = vadd.f32 0.0, %v2180
      %v2182 = vpop.f32.mrf.mxu0
      %2183 = vmatprep.mubr.bf16.mxu0 0
      %2184 = vmatmul.mubr.bf16.gmra.mxu0 %v1919
      %v2185 = vpop.f32.mrf.mxu0
      %v2186 = vadd.f32 0.0, %v2185
      %v2187 = vpop.f32.mrf.mxu0
      %v2188 = vpop.f32.mrf.mxu0
      %v2189 = vadd.f32 0.0, %v2188
      %v2190 = vpop.f32.mrf.mxu0
      %2191 = vmatprep.mubr.bf16.mxu0 0
      %2192 = vmatmul.mubr.bf16.gmra.mxu0 %v1920
      %v2193 = vpop.f32.mrf.mxu0
      %v2194 = vadd.f32 0.0, %v2193
      %v2195 = vpop.f32.mrf.mxu0
      %v2196 = vpop.f32.mrf.mxu0
      %v2197 = vadd.f32 0.0, %v2196
      %v2198 = vpop.f32.mrf.mxu0
      %2199 = vmatprep.mubr.bf16.mxu0 0
      %2200 = vmatmul.mubr.bf16.gmra.mxu0 %v1921
      %v2201 = vpop.f32.mrf.mxu0
      %v2202 = vadd.f32 0.0, %v2201
      %v2203 = vpop.f32.mrf.mxu0
      %v2204 = vpop.f32.mrf.mxu0
      %v2205 = vadd.f32 0.0, %v2204
      %v2206 = vpop.f32.mrf.mxu0
      %2207 = vmatprep.mubr.bf16.mxu0 0
      %2208 = vmatmul.mubr.bf16.gmra.mxu0 %v1922
      %v2209 = vpop.f32.mrf.mxu0
      %v2210 = vadd.f32 0.0, %v2209
      %v2211 = vpop.f32.mrf.mxu0
      %v2212 = vpop.f32.mrf.mxu0
      %v2213 = vadd.f32 0.0, %v2212
      %v2214 = vpop.f32.mrf.mxu0
      %2215 = vmatprep.mubr.bf16.mxu0 0
      %2216 = vmatmul.mubr.bf16.gmra.mxu0 %v1923
      %v2217 = vpop.f32.mrf.mxu0
      %v2218 = vadd.f32 0.0, %v2217
      %v2219 = vpop.f32.mrf.mxu0
      %v2220 = vpop.f32.mrf.mxu0
      %v2221 = vadd.f32 0.0, %v2220
      %v2222 = vpop.f32.mrf.mxu0
      %2223 = vmatprep.mubr.bf16.mxu0 0
      %2224 = vmatmul.mubr.bf16.gmra.mxu0 %v1924
      %v2225 = vpop.f32.mrf.mxu0
      %v2226 = vadd.f32 0.0, %v2225
      %v2227 = vpop.f32.mrf.mxu0
      %v2228 = vpop.f32.mrf.mxu0
      %v2229 = vadd.f32 0.0, %v2228
      %v2230 = vpop.f32.mrf.mxu0
      %2231 = vmatprep.mubr.bf16.mxu0 0
      %2232 = vmatmul.mubr.bf16.gmra.mxu0 %v1925
      %v2233 = vpop.f32.mrf.mxu0
      %v2234 = vadd.f32 0.0, %v2233
      %v2235 = vpop.f32.mrf.mxu0
      %v2236 = vpop.f32.mrf.mxu0
      %v2237 = vadd.f32 0.0, %v2236
      %v2238 = vpop.f32.mrf.mxu0
      %2239 = vdwg.mxu0
      %v2240 = vadd.f32 %v1631, %v2026
      %v2241 = vadd.f32 %v1634, %v2029
      %v2242 = vadd.f32 %v1639, %v2034
      %v2243 = vadd.f32 %v1642, %v2037
      %v2244 = vadd.f32 %v1647, %v2042
      %v2245 = vadd.f32 %v1650, %v2045
      %v2246 = vadd.f32 %v1655, %v2050
      %v2247 = vadd.f32 %v1658, %v2053
      %v2248 = vadd.f32 %v1663, %v2058
      %v2249 = vadd.f32 %v1666, %v2061
      %v2250 = vadd.f32 %v1671, %v2066
      %v2251 = vadd.f32 %v1674, %v2069
      %v2252 = vadd.f32 %v1679, %v2074
      %v2253 = vadd.f32 %v1682, %v2077
      %v2254 = vadd.f32 %v1687, %v2082
      %v2255 = vadd.f32 %v1690, %v2085
      %v2256 = vadd.f32 %v1695, %v2090
      %v2257 = vadd.f32 %v1698, %v2093
      %v2258 = vadd.f32 %v1703, %v2098
      %v2259 = vadd.f32 %v1706, %v2101
      %v2260 = vadd.f32 %v1711, %v2106
      %v2261 = vadd.f32 %v1714, %v2109
      %v2262 = vadd.f32 %v1719, %v2114
      %v2263 = vadd.f32 %v1722, %v2117
      %v2264 = vadd.f32 %v1727, %v2122
      %v2265 = vadd.f32 %v1730, %v2125
      %v2266 = vadd.f32 %v1735, %v2130
      %v2267 = vadd.f32 %v1738, %v2133
      %v2268 = vadd.f32 %v1743, %v2138
      %v2269 = vadd.f32 %v1746, %v2141
      %v2270 = vadd.f32 %v1751, %v2146
      %v2271 = vadd.f32 %v1754, %v2149
      %v2272 = vadd.f32 %v1759, %v2154
      %v2273 = vadd.f32 %v1762, %v2157
      %v2274 = vadd.f32 %v1767, %v2162
      %v2275 = vadd.f32 %v1770, %v2165
      %v2276 = vadd.f32 %v1775, %v2170
      %v2277 = vadd.f32 %v1778, %v2173
      %v2278 = vadd.f32 %v1783, %v2178
      %v2279 = vadd.f32 %v1786, %v2181
      %v2280 = vadd.f32 %v1791, %v2186
      %v2281 = vadd.f32 %v1794, %v2189
      %v2282 = vadd.f32 %v1799, %v2194
      %v2283 = vadd.f32 %v1802, %v2197
      %v2284 = vadd.f32 %v1807, %v2202
      %v2285 = vadd.f32 %v1810, %v2205
      %v2286 = vadd.f32 %v1815, %v2210
      %v2287 = vadd.f32 %v1818, %v2213
      %v2288 = vadd.f32 %v1823, %v2218
      %v2289 = vadd.f32 %v1826, %v2221
      %v2290 = vadd.f32 %v1831, %v2226
      %v2291 = vadd.f32 %v1834, %v2229
      %v2292 = vadd.f32 %v1839, %v2234
      %v2293 = vadd.f32 %v1842, %v2237
      %v2294 = vld [vmem:[#allocation2 + $0x1f] sm:$0xff]
      %v2295 = vld [vmem:[#allocation2 + $0x27] sm:$0xff]
      %v2296 = vld [vmem:[#allocation2 + $0x2f] sm:$0xff]
      %v2297 = vld [vmem:[#allocation2 + $0x37] sm:$0xff]
      %v2298 = vld [vmem:[#allocation2 + $0x3f] sm:$0xff]
      %v2299 = vld [vmem:[#allocation2 + $0x47] sm:$0xff]
      %v2300 = vld [vmem:[#allocation2 + $0x4f] sm:$0xff]
      %v2301 = vld [vmem:[#allocation2 + $0x57] sm:$0xff]
      %v2302 = vld [vmem:[#allocation2 + $0x5f] sm:$0xff]
      %v2303 = vld [vmem:[#allocation2 + $0x67] sm:$0xff]
      %v2304 = vld [vmem:[#allocation2 + $0x6f] sm:$0xff]
      %v2305 = vld [vmem:[#allocation2 + $0x77] sm:$0xff]
      %v2306 = vld [vmem:[#allocation2 + $0x7f] sm:$0xff]
      %v2307 = vld [vmem:[#allocation2 + $0x87] sm:$0xff]
      %v2308 = vld [vmem:[#allocation2 + $0x8f] sm:$0xff]
      %v2309 = vld [vmem:[#allocation2 + $0x97] sm:$0xff]
      %v2310 = vld [vmem:[#allocation2 + $0x9f] sm:$0xff]
      %v2311 = vld [vmem:[#allocation2 + $0xa7] sm:$0xff]
      %v2312 = vld [vmem:[#allocation2 + $0xaf] sm:$0xff]
      %v2313 = vld [vmem:[#allocation2 + $0xb7] sm:$0xff]
      %v2314 = vld [vmem:[#allocation2 + $0xbf] sm:$0xff]
      %v2315 = vld [vmem:[#allocation2 + $0xc7] sm:$0xff]
      %v2316 = vld [vmem:[#allocation2 + $0xcf] sm:$0xff]
      %v2317 = vld [vmem:[#allocation2 + $0xd7] sm:$0xff]
      %v2318 = vld [vmem:[#allocation2 + $0xdf] sm:$0xff]
      %v2319 = vld [vmem:[#allocation2 + $0xe7] sm:$0xff]
      %v2320 = vld [vmem:[#allocation2 + $0xef] sm:$0xff]
      %v2321 = vld [vmem:[#allocation2 + $0xf7] sm:$0xff]
      %v2322 = vld [vmem:[#allocation2 + $0xff] sm:$0xff]
      %v2323 = vld [vmem:[#allocation2 + $0x107] sm:$0xff]
      %v2324 = vld [vmem:[#allocation2 + $0x10f] sm:$0xff]
      %v2325 = vld [vmem:[#allocation2 + $0x117] sm:$0xff]
      %v2326 = vld [vmem:[#allocation2 + $0x11f] sm:$0xff]
      %v2327 = vld [vmem:[#allocation2 + $0x127] sm:$0xff]
      %v2328 = vld [vmem:[#allocation2 + $0x12f] sm:$0xff]
      %v2329 = vld [vmem:[#allocation2 + $0x137] sm:$0xff]
      %v2330 = vld [vmem:[#allocation2 + $0x13f] sm:$0xff]
      %v2331 = vld [vmem:[#allocation2 + $0x147] sm:$0xff]
      %v2332 = vld [vmem:[#allocation2 + $0x14f] sm:$0xff]
      %v2333 = vld [vmem:[#allocation2 + $0x157] sm:$0xff]
      %v2334 = vld [vmem:[#allocation2 + $0x15f] sm:$0xff]
      %v2335 = vld [vmem:[#allocation2 + $0x167] sm:$0xff]
      %v2336 = vld [vmem:[#allocation2 + $0x16f] sm:$0xff]
      %v2337 = vld [vmem:[#allocation2 + $0x177] sm:$0xff]
      %v2338 = vld [vmem:[#allocation2 + $0x17f] sm:$0xff]
      %v2339 = vld [vmem:[#allocation2 + $0x187] sm:$0xff]
      %v2340 = vld [vmem:[#allocation2 + $0x18f] sm:$0xff]
      %v2341 = vld [vmem:[#allocation2 + $0x197] sm:$0xff]
      %v2342 = vld [vmem:[#allocation2 + $0x19f] sm:$0xff]
      %v2343 = vld [vmem:[#allocation2 + $0x1a7] sm:$0xff]
      %v2344 = vld [vmem:[#allocation2 + $0x1af] sm:$0xff]
      %v2345 = vld [vmem:[#allocation2 + $0x1b7] sm:$0xff]
      %v2346 = vld [vmem:[#allocation2 + $0x1bf] sm:$0xff]
      %v2347 = vld [vmem:[#allocation2 + $0x1c7] sm:$0xff]
      %v2348 = vpack.c.bf16 %v2295, %v2294
      %v2349 = vpack.c.bf16 %v2297, %v2296
      %v2350 = vpack.c.bf16 %v2299, %v2298
      %v2351 = vpack.c.bf16 %v2301, %v2300
      %v2352 = vpack.c.bf16 %v2303, %v2302
      %v2353 = vpack.c.bf16 %v2305, %v2304
      %v2354 = vpack.c.bf16 %v2307, %v2306
      %v2355 = vpack.c.bf16 %v2309, %v2308
      %v2356 = vpack.c.bf16 %v2311, %v2310
      %v2357 = vpack.c.bf16 %v2313, %v2312
      %v2358 = vpack.c.bf16 %v2315, %v2314
      %v2359 = vpack.c.bf16 %v2317, %v2316
      %v2360 = vpack.c.bf16 %v2319, %v2318
      %v2361 = vpack.c.bf16 %v2321, %v2320
      %v2362 = vpack.c.bf16 %v2323, %v2322
      %v2363 = vpack.c.bf16 %v2325, %v2324
      %v2364 = vpack.c.bf16 %v2327, %v2326
      %v2365 = vpack.c.bf16 %v2329, %v2328
      %v2366 = vpack.c.bf16 %v2331, %v2330
      %v2367 = vpack.c.bf16 %v2333, %v2332
      %v2368 = vpack.c.bf16 %v2335, %v2334
      %v2369 = vpack.c.bf16 %v2337, %v2336
      %v2370 = vpack.c.bf16 %v2339, %v2338
      %v2371 = vpack.c.bf16 %v2341, %v2340
      %v2372 = vpack.c.bf16 %v2343, %v2342
      %v2373 = vpack.c.bf16 %v2345, %v2344
      %v2374 = vpack.c.bf16 %v2347, %v2346
      %s2375 = scalar_lea.vmem %s1, 192
      %v2376 = vld [vmem:[%s2375] sm:$0xf]
      %v2377 = vld [vmem:[%s2375 + $0x4] sm:$0xf]
      %v2378 = vld [vmem:[%s2375 + $0x8] sm:$0xf]
      %v2379 = vld [vmem:[%s2375 + $0xc] sm:$0xf]
      %v2380 = vld [vmem:[%s2375 + $0x10] sm:$0xf]
      %v2381 = vld [vmem:[%s2375 + $0x14] sm:$0xf]
      %v2382 = vld [vmem:[%s2375 + $0x18] sm:$0xf]
      %v2383 = vld [vmem:[%s2375 + $0x1c] sm:$0xf]
      %v2384 = vld [vmem:[%s2375 + $0x20] sm:$0xf]
      %v2385 = vld [vmem:[%s2375 + $0x24] sm:$0xf]
      %v2386 = vld [vmem:[%s2375 + $0x28] sm:$0xf]
      %v2387 = vld [vmem:[%s2375 + $0x2c] sm:$0xf]
      %v2388 = vld [vmem:[%s2375 + $0x30] sm:$0xf]
      %v2389 = vld [vmem:[%s2375 + $0x34] sm:$0xf]
      %v2390 = vld [vmem:[%s2375 + $0x38] sm:$0xf]
      %v2391 = vld [vmem:[%s2375 + $0x3c] sm:$0xf]
      %v2408 = vunpack.c.l.b16 %v2376
      %v2409 = vunpack.c.l.b16 %v2377
      %v2410 = vunpack.c.l.b16 %v2378
      %v2411 = vunpack.c.l.b16 %v2379
      %v2412 = vunpack.c.l.b16 %v2380
      %v2413 = vunpack.c.l.b16 %v2381
      %v2414 = vunpack.c.l.b16 %v2382
      %v2415 = vunpack.c.l.b16 %v2383
      %v2416 = vunpack.c.l.b16 %v2384
      %v2417 = vunpack.c.l.b16 %v2385
      %v2418 = vunpack.c.l.b16 %v2386
      %v2419 = vunpack.c.l.b16 %v2387
      %v2420 = vunpack.c.l.b16 %v2388
      %v2421 = vunpack.c.l.b16 %v2389
      %v2422 = vunpack.c.l.b16 %v2390
      %v2423 = vunpack.c.l.b16 %v2391
      %v2424 = vpack.c.b16 %v2409, %v2408
      %v2425 = vpack.c.b16 %v2411, %v2410
      %v2426 = vpack.c.b16 %v2413, %v2412
      %v2427 = vpack.c.b16 %v2415, %v2414
      %v2428 = vpack.c.b16 %v2417, %v2416
      %v2429 = vpack.c.b16 %v2419, %v2418
      %v2430 = vpack.c.b16 %v2421, %v2420
      %v2431 = vpack.c.b16 %v2423, %v2422
      %2440 = vmatprep.subr.bf16.mxu0 0
      %2441 = vmatpush1.bf16.msra.mxu0 %v2431
      %2442 = vmatprep.subr.bf16.mxu0 0
      %2443 = vmatpush1.bf16.msra.mxu0 %v2430
      %2444 = vmatprep.subr.bf16.mxu0 0
      %2445 = vmatpush1.bf16.msra.mxu0 %v2429
      %2446 = vmatprep.subr.bf16.mxu0 0
      %2447 = vmatpush1.bf16.msra.mxu0 %v2428
      %2448 = vmatprep.subr.bf16.mxu0 0
      %2449 = vmatpush1.bf16.msra.mxu0 %v2427
      %2450 = vmatprep.subr.bf16.mxu0 0
      %2451 = vmatpush1.bf16.msra.mxu0 %v2426
      %2452 = vmatprep.subr.bf16.mxu0 0
      %2453 = vmatpush1.bf16.msra.mxu0 %v2425
      %2454 = vmatprep.subr.bf16.mxu0 0
      %2455 = vmatpush1.bf16.msra.mxu0 %v2424
      %2456 = vmatprep.subr.bf16.mxu0 0
      %2457 = vmatpush2.bf16.msra.mxu0 0
      %2458 = vmatprep.subr.bf16.mxu0 0
      %2459 = vmatpush2.bf16.msra.mxu0 0
      %2460 = vmatprep.subr.bf16.mxu0 0
      %2461 = vmatpush2.bf16.msra.mxu0 0
      %2462 = vmatprep.subr.bf16.mxu0 0
      %2463 = vmatpush2.bf16.msra.mxu0 0
      %2464 = vmatprep.subr.bf16.mxu0 0
      %2465 = vmatpush2.bf16.msra.mxu0 0
      %2466 = vmatprep.subr.bf16.mxu0 0
      %2467 = vmatpush2.bf16.msra.mxu0 0
      %2468 = vmatprep.subr.bf16.mxu0 0
      %2469 = vmatpush2.bf16.msra.mxu0 0
      %2470 = vmatprep.subr.bf16.mxu0 0
      %2471 = vmatpush2.bf16.msra.mxu0 0
      %2472 = vmatprep.mubr.bf16.mxu0 0
      %2473 = vmatmul.mubr.bf16.gmra.mxu0 %v2348
      %v2474 = vpop.f32.mrf.mxu0
      %v2475 = vadd.f32 0.0, %v2474
      %v2476 = vpop.f32.mrf.mxu0
      %v2477 = vpop.f32.mrf.mxu0
      %v2478 = vadd.f32 0.0, %v2477
      %v2479 = vpop.f32.mrf.mxu0
      %2480 = vmatprep.mubr.bf16.mxu0 0
      %2481 = vmatmul.mubr.bf16.gmra.mxu0 %v2349
      %v2482 = vpop.f32.mrf.mxu0
      %v2483 = vadd.f32 0.0, %v2482
      %v2484 = vpop.f32.mrf.mxu0
      %v2485 = vpop.f32.mrf.mxu0
      %v2486 = vadd.f32 0.0, %v2485
      %v2487 = vpop.f32.mrf.mxu0
      %2488 = vmatprep.mubr.bf16.mxu0 0
      %2489 = vmatmul.mubr.bf16.gmra.mxu0 %v2350
      %v2490 = vpop.f32.mrf.mxu0
      %v2491 = vadd.f32 0.0, %v2490
      %v2492 = vpop.f32.mrf.mxu0
      %v2493 = vpop.f32.mrf.mxu0
      %v2494 = vadd.f32 0.0, %v2493
      %v2495 = vpop.f32.mrf.mxu0
      %2496 = vmatprep.mubr.bf16.mxu0 0
      %2497 = vmatmul.mubr.bf16.gmra.mxu0 %v2351
      %v2498 = vpop.f32.mrf.mxu0
      %v2499 = vadd.f32 0.0, %v2498
      %v2500 = vpop.f32.mrf.mxu0
      %v2501 = vpop.f32.mrf.mxu0
      %v2502 = vadd.f32 0.0, %v2501
      %v2503 = vpop.f32.mrf.mxu0
      %2504 = vmatprep.mubr.bf16.mxu0 0
      %2505 = vmatmul.mubr.bf16.gmra.mxu0 %v2352
      %v2506 = vpop.f32.mrf.mxu0
      %v2507 = vadd.f32 0.0, %v2506
      %v2508 = vpop.f32.mrf.mxu0
      %v2509 = vpop.f32.mrf.mxu0
      %v2510 = vadd.f32 0.0, %v2509
      %v2511 = vpop.f32.mrf.mxu0
      %2512 = vmatprep.mubr.bf16.mxu0 0
      %2513 = vmatmul.mubr.bf16.gmra.mxu0 %v2353
      %v2514 = vpop.f32.mrf.mxu0
      %v2515 = vadd.f32 0.0, %v2514
      %v2516 = vpop.f32.mrf.mxu0
      %v2517 = vpop.f32.mrf.mxu0
      %v2518 = vadd.f32 0.0, %v2517
      %v2519 = vpop.f32.mrf.mxu0
      %2520 = vmatprep.mubr.bf16.mxu0 0
      %2521 = vmatmul.mubr.bf16.gmra.mxu0 %v2354
      %v2522 = vpop.f32.mrf.mxu0
      %v2523 = vadd.f32 0.0, %v2522
      %v2524 = vpop.f32.mrf.mxu0
      %v2525 = vpop.f32.mrf.mxu0
      %v2526 = vadd.f32 0.0, %v2525
      %v2527 = vpop.f32.mrf.mxu0
      %2528 = vmatprep.mubr.bf16.mxu0 0
      %2529 = vmatmul.mubr.bf16.gmra.mxu0 %v2355
      %v2530 = vpop.f32.mrf.mxu0
      %v2531 = vadd.f32 0.0, %v2530
      %v2532 = vpop.f32.mrf.mxu0
      %v2533 = vpop.f32.mrf.mxu0
      %v2534 = vadd.f32 0.0, %v2533
      %v2535 = vpop.f32.mrf.mxu0
      %2536 = vmatprep.mubr.bf16.mxu0 0
      %2537 = vmatmul.mubr.bf16.gmra.mxu0 %v2356
      %v2538 = vpop.f32.mrf.mxu0
      %v2539 = vadd.f32 0.0, %v2538
      %v2540 = vpop.f32.mrf.mxu0
      %v2541 = vpop.f32.mrf.mxu0
      %v2542 = vadd.f32 0.0, %v2541
      %v2543 = vpop.f32.mrf.mxu0
      %2544 = vmatprep.mubr.bf16.mxu0 0
      %2545 = vmatmul.mubr.bf16.gmra.mxu0 %v2357
      %v2546 = vpop.f32.mrf.mxu0
      %v2547 = vadd.f32 0.0, %v2546
      %v2548 = vpop.f32.mrf.mxu0
      %v2549 = vpop.f32.mrf.mxu0
      %v2550 = vadd.f32 0.0, %v2549
      %v2551 = vpop.f32.mrf.mxu0
      %2552 = vmatprep.mubr.bf16.mxu0 0
      %2553 = vmatmul.mubr.bf16.gmra.mxu0 %v2358
      %v2554 = vpop.f32.mrf.mxu0
      %v2555 = vadd.f32 0.0, %v2554
      %v2556 = vpop.f32.mrf.mxu0
      %v2557 = vpop.f32.mrf.mxu0
      %v2558 = vadd.f32 0.0, %v2557
      %v2559 = vpop.f32.mrf.mxu0
      %2560 = vmatprep.mubr.bf16.mxu0 0
      %2561 = vmatmul.mubr.bf16.gmra.mxu0 %v2359
      %v2562 = vpop.f32.mrf.mxu0
      %v2563 = vadd.f32 0.0, %v2562
      %v2564 = vpop.f32.mrf.mxu0
      %v2565 = vpop.f32.mrf.mxu0
      %v2566 = vadd.f32 0.0, %v2565
      %v2567 = vpop.f32.mrf.mxu0
      %2568 = vmatprep.mubr.bf16.mxu0 0
      %2569 = vmatmul.mubr.bf16.gmra.mxu0 %v2360
      %v2570 = vpop.f32.mrf.mxu0
      %v2571 = vadd.f32 0.0, %v2570
      %v2572 = vpop.f32.mrf.mxu0
      %v2573 = vpop.f32.mrf.mxu0
      %v2574 = vadd.f32 0.0, %v2573
      %v2575 = vpop.f32.mrf.mxu0
      %2576 = vmatprep.mubr.bf16.mxu0 0
      %2577 = vmatmul.mubr.bf16.gmra.mxu0 %v2361
      %v2578 = vpop.f32.mrf.mxu0
      %v2579 = vadd.f32 0.0, %v2578
      %v2580 = vpop.f32.mrf.mxu0
      %v2581 = vpop.f32.mrf.mxu0
      %v2582 = vadd.f32 0.0, %v2581
      %v2583 = vpop.f32.mrf.mxu0
      %2584 = vmatprep.mubr.bf16.mxu0 0
      %2585 = vmatmul.mubr.bf16.gmra.mxu0 %v2362
      %v2586 = vpop.f32.mrf.mxu0
      %v2587 = vadd.f32 0.0, %v2586
      %v2588 = vpop.f32.mrf.mxu0
      %v2589 = vpop.f32.mrf.mxu0
      %v2590 = vadd.f32 0.0, %v2589
      %v2591 = vpop.f32.mrf.mxu0
      %2592 = vmatprep.mubr.bf16.mxu0 0
      %2593 = vmatmul.mubr.bf16.gmra.mxu0 %v2363
      %v2594 = vpop.f32.mrf.mxu0
      %v2595 = vadd.f32 0.0, %v2594
      %v2596 = vpop.f32.mrf.mxu0
      %v2597 = vpop.f32.mrf.mxu0
      %v2598 = vadd.f32 0.0, %v2597
      %v2599 = vpop.f32.mrf.mxu0
      %2600 = vmatprep.mubr.bf16.mxu0 0
      %2601 = vmatmul.mubr.bf16.gmra.mxu0 %v2364
      %v2602 = vpop.f32.mrf.mxu0
      %v2603 = vadd.f32 0.0, %v2602
      %v2604 = vpop.f32.mrf.mxu0
      %v2605 = vpop.f32.mrf.mxu0
      %v2606 = vadd.f32 0.0, %v2605
      %v2607 = vpop.f32.mrf.mxu0
      %2608 = vmatprep.mubr.bf16.mxu0 0
      %2609 = vmatmul.mubr.bf16.gmra.mxu0 %v2365
      %v2610 = vpop.f32.mrf.mxu0
      %v2611 = vadd.f32 0.0, %v2610
      %v2612 = vpop.f32.mrf.mxu0
      %v2613 = vpop.f32.mrf.mxu0
      %v2614 = vadd.f32 0.0, %v2613
      %v2615 = vpop.f32.mrf.mxu0
      %2616 = vmatprep.mubr.bf16.mxu0 0
      %2617 = vmatmul.mubr.bf16.gmra.mxu0 %v2366
      %v2618 = vpop.f32.mrf.mxu0
      %v2619 = vadd.f32 0.0, %v2618
      %v2620 = vpop.f32.mrf.mxu0
      %v2621 = vpop.f32.mrf.mxu0
      %v2622 = vadd.f32 0.0, %v2621
      %v2623 = vpop.f32.mrf.mxu0
      %2624 = vmatprep.mubr.bf16.mxu0 0
      %2625 = vmatmul.mubr.bf16.gmra.mxu0 %v2367
      %v2626 = vpop.f32.mrf.mxu0
      %v2627 = vadd.f32 0.0, %v2626
      %v2628 = vpop.f32.mrf.mxu0
      %v2629 = vpop.f32.mrf.mxu0
      %v2630 = vadd.f32 0.0, %v2629
      %v2631 = vpop.f32.mrf.mxu0
      %2632 = vmatprep.mubr.bf16.mxu0 0
      %2633 = vmatmul.mubr.bf16.gmra.mxu0 %v2368
      %v2634 = vpop.f32.mrf.mxu0
      %v2635 = vadd.f32 0.0, %v2634
      %v2636 = vpop.f32.mrf.mxu0
      %v2637 = vpop.f32.mrf.mxu0
      %v2638 = vadd.f32 0.0, %v2637
      %v2639 = vpop.f32.mrf.mxu0
      %2640 = vmatprep.mubr.bf16.mxu0 0
      %2641 = vmatmul.mubr.bf16.gmra.mxu0 %v2369
      %v2642 = vpop.f32.mrf.mxu0
      %v2643 = vadd.f32 0.0, %v2642
      %v2644 = vpop.f32.mrf.mxu0
      %v2645 = vpop.f32.mrf.mxu0
      %v2646 = vadd.f32 0.0, %v2645
      %v2647 = vpop.f32.mrf.mxu0
      %2648 = vmatprep.mubr.bf16.mxu0 0
      %2649 = vmatmul.mubr.bf16.gmra.mxu0 %v2370
      %v2650 = vpop.f32.mrf.mxu0
      %v2651 = vadd.f32 0.0, %v2650
      %v2652 = vpop.f32.mrf.mxu0
      %v2653 = vpop.f32.mrf.mxu0
      %v2654 = vadd.f32 0.0, %v2653
      %v2655 = vpop.f32.mrf.mxu0
      %2656 = vmatprep.mubr.bf16.mxu0 0
      %2657 = vmatmul.mubr.bf16.gmra.mxu0 %v2371
      %v2658 = vpop.f32.mrf.mxu0
      %v2659 = vadd.f32 0.0, %v2658
      %v2660 = vpop.f32.mrf.mxu0
      %v2661 = vpop.f32.mrf.mxu0
      %v2662 = vadd.f32 0.0, %v2661
      %v2663 = vpop.f32.mrf.mxu0
      %2664 = vmatprep.mubr.bf16.mxu0 0
      %2665 = vmatmul.mubr.bf16.gmra.mxu0 %v2372
      %v2666 = vpop.f32.mrf.mxu0
      %v2667 = vadd.f32 0.0, %v2666
      %v2668 = vpop.f32.mrf.mxu0
      %v2669 = vpop.f32.mrf.mxu0
      %v2670 = vadd.f32 0.0, %v2669
      %v2671 = vpop.f32.mrf.mxu0
      %2672 = vmatprep.mubr.bf16.mxu0 0
      %2673 = vmatmul.mubr.bf16.gmra.mxu0 %v2373
      %v2674 = vpop.f32.mrf.mxu0
      %v2675 = vadd.f32 0.0, %v2674
      %v2676 = vpop.f32.mrf.mxu0
      %v2677 = vpop.f32.mrf.mxu0
      %v2678 = vadd.f32 0.0, %v2677
      %v2679 = vpop.f32.mrf.mxu0
      %2680 = vmatprep.mubr.bf16.mxu0 0
      %2681 = vmatmul.mubr.bf16.gmra.mxu0 %v2374
      %v2682 = vpop.f32.mrf.mxu0
      %v2683 = vadd.f32 0.0, %v2682
      %v2684 = vpop.f32.mrf.mxu0
      %v2685 = vpop.f32.mrf.mxu0
      %v2686 = vadd.f32 0.0, %v2685
      %v2687 = vpop.f32.mrf.mxu0
      %2688 = vdwg.mxu0
      %v2689 = vadd.f32 %v2240, %v2475
      %v2690 = vadd.f32 %v2241, %v2478
      %v2691 = vadd.f32 %v2242, %v2483
      %v2692 = vadd.f32 %v2243, %v2486
      %v2693 = vadd.f32 %v2244, %v2491
      %v2694 = vadd.f32 %v2245, %v2494
      %v2695 = vadd.f32 %v2246, %v2499
      %v2696 = vadd.f32 %v2247, %v2502
      %v2697 = vadd.f32 %v2248, %v2507
      %v2698 = vadd.f32 %v2249, %v2510
      %v2699 = vadd.f32 %v2250, %v2515
      %v2700 = vadd.f32 %v2251, %v2518
      %v2701 = vadd.f32 %v2252, %v2523
      %v2702 = vadd.f32 %v2253, %v2526
      %v2703 = vadd.f32 %v2254, %v2531
      %v2704 = vadd.f32 %v2255, %v2534
      %v2705 = vadd.f32 %v2256, %v2539
      %v2706 = vadd.f32 %v2257, %v2542
      %v2707 = vadd.f32 %v2258, %v2547
      %v2708 = vadd.f32 %v2259, %v2550
      %v2709 = vadd.f32 %v2260, %v2555
      %v2710 = vadd.f32 %v2261, %v2558
      %v2711 = vadd.f32 %v2262, %v2563
      %v2712 = vadd.f32 %v2263, %v2566
      %v2713 = vadd.f32 %v2264, %v2571
      %v2714 = vadd.f32 %v2265, %v2574
      %v2715 = vadd.f32 %v2266, %v2579
      %v2716 = vadd.f32 %v2267, %v2582
      %v2717 = vadd.f32 %v2268, %v2587
      %v2718 = vadd.f32 %v2269, %v2590
      %v2719 = vadd.f32 %v2270, %v2595
      %v2720 = vadd.f32 %v2271, %v2598
      %v2721 = vadd.f32 %v2272, %v2603
      %v2722 = vadd.f32 %v2273, %v2606
      %v2723 = vadd.f32 %v2274, %v2611
      %v2724 = vadd.f32 %v2275, %v2614
      %v2725 = vadd.f32 %v2276, %v2619
      %v2726 = vadd.f32 %v2277, %v2622
      %v2727 = vadd.f32 %v2278, %v2627
      %v2728 = vadd.f32 %v2279, %v2630
      %v2729 = vadd.f32 %v2280, %v2635
      %v2730 = vadd.f32 %v2281, %v2638
      %v2731 = vadd.f32 %v2282, %v2643
      %v2732 = vadd.f32 %v2283, %v2646
      %v2733 = vadd.f32 %v2284, %v2651
      %v2734 = vadd.f32 %v2285, %v2654
      %v2735 = vadd.f32 %v2286, %v2659
      %v2736 = vadd.f32 %v2287, %v2662
      %v2737 = vadd.f32 %v2288, %v2667
      %v2738 = vadd.f32 %v2289, %v2670
      %v2739 = vadd.f32 %v2290, %v2675
      %v2740 = vadd.f32 %v2291, %v2678
      %v2741 = vadd.f32 %v2292, %v2683
      %v2742 = vadd.f32 %v2293, %v2686
      %v2743 = vld [vmem:[#allocation2 + $0x20] sm:$0xff]
      %v2744 = vld [vmem:[#allocation2 + $0x28] sm:$0xff]
      %v2745 = vld [vmem:[#allocation2 + $0x30] sm:$0xff]
      %v2746 = vld [vmem:[#allocation2 + $0x38] sm:$0xff]
      %v2747 = vld [vmem:[#allocation2 + $0x40] sm:$0xff]
      %v2748 = vld [vmem:[#allocation2 + $0x48] sm:$0xff]
      %v2749 = vld [vmem:[#allocation2 + $0x50] sm:$0xff]
      %v2750 = vld [vmem:[#allocation2 + $0x58] sm:$0xff]
      %v2751 = vld [vmem:[#allocation2 + $0x60] sm:$0xff]
      %v2752 = vld [vmem:[#allocation2 + $0x68] sm:$0xff]
      %v2753 = vld [vmem:[#allocation2 + $0x70] sm:$0xff]
      %v2754 = vld [vmem:[#allocation2 + $0x78] sm:$0xff]
      %v2755 = vld [vmem:[#allocation2 + $0x80] sm:$0xff]
      %v2756 = vld [vmem:[#allocation2 + $0x88] sm:$0xff]
      %v2757 = vld [vmem:[#allocation2 + $0x90] sm:$0xff]
      %v2758 = vld [vmem:[#allocation2 + $0x98] sm:$0xff]
      %v2759 = vld [vmem:[#allocation2 + $0xa0] sm:$0xff]
      %v2760 = vld [vmem:[#allocation2 + $0xa8] sm:$0xff]
      %v2761 = vld [vmem:[#allocation2 + $0xb0] sm:$0xff]
      %v2762 = vld [vmem:[#allocation2 + $0xb8] sm:$0xff]
      %v2763 = vld [vmem:[#allocation2 + $0xc0] sm:$0xff]
      %v2764 = vld [vmem:[#allocation2 + $0xc8] sm:$0xff]
      %v2765 = vld [vmem:[#allocation2 + $0xd0] sm:$0xff]
      %v2766 = vld [vmem:[#allocation2 + $0xd8] sm:$0xff]
      %v2767 = vld [vmem:[#allocation2 + $0xe0] sm:$0xff]
      %v2768 = vld [vmem:[#allocation2 + $0xe8] sm:$0xff]
      %v2769 = vld [vmem:[#allocation2 + $0xf0] sm:$0xff]
      %v2770 = vld [vmem:[#allocation2 + $0xf8] sm:$0xff]
      %v2771 = vld [vmem:[#allocation2 + $0x100] sm:$0xff]
      %v2772 = vld [vmem:[#allocation2 + $0x108] sm:$0xff]
      %v2773 = vld [vmem:[#allocation2 + $0x110] sm:$0xff]
      %v2774 = vld [vmem:[#allocation2 + $0x118] sm:$0xff]
      %v2775 = vld [vmem:[#allocation2 + $0x120] sm:$0xff]
      %v2776 = vld [vmem:[#allocation2 + $0x128] sm:$0xff]
      %v2777 = vld [vmem:[#allocation2 + $0x130] sm:$0xff]
      %v2778 = vld [vmem:[#allocation2 + $0x138] sm:$0xff]
      %v2779 = vld [vmem:[#allocation2 + $0x140] sm:$0xff]
      %v2780 = vld [vmem:[#allocation2 + $0x148] sm:$0xff]
      %v2781 = vld [vmem:[#allocation2 + $0x150] sm:$0xff]
      %v2782 = vld [vmem:[#allocation2 + $0x158] sm:$0xff]
      %v2783 = vld [vmem:[#allocation2 + $0x160] sm:$0xff]
      %v2784 = vld [vmem:[#allocation2 + $0x168] sm:$0xff]
      %v2785 = vld [vmem:[#allocation2 + $0x170] sm:$0xff]
      %v2786 = vld [vmem:[#allocation2 + $0x178] sm:$0xff]
      %v2787 = vld [vmem:[#allocation2 + $0x180] sm:$0xff]
      %v2788 = vld [vmem:[#allocation2 + $0x188] sm:$0xff]
      %v2789 = vld [vmem:[#allocation2 + $0x190] sm:$0xff]
      %v2790 = vld [vmem:[#allocation2 + $0x198] sm:$0xff]
      %v2791 = vld [vmem:[#allocation2 + $0x1a0] sm:$0xff]
      %v2792 = vld [vmem:[#allocation2 + $0x1a8] sm:$0xff]
      %v2793 = vld [vmem:[#allocation2 + $0x1b0] sm:$0xff]
      %v2794 = vld [vmem:[#allocation2 + $0x1b8] sm:$0xff]
      %v2795 = vld [vmem:[#allocation2 + $0x1c0] sm:$0xff]
      %v2796 = vld [vmem:[#allocation2 + $0x1c8] sm:$0xff]
      %v2797 = vpack.c.bf16 %v2744, %v2743
      %v2798 = vpack.c.bf16 %v2746, %v2745
      %v2799 = vpack.c.bf16 %v2748, %v2747
      %v2800 = vpack.c.bf16 %v2750, %v2749
      %v2801 = vpack.c.bf16 %v2752, %v2751
      %v2802 = vpack.c.bf16 %v2754, %v2753
      %v2803 = vpack.c.bf16 %v2756, %v2755
      %v2804 = vpack.c.bf16 %v2758, %v2757
      %v2805 = vpack.c.bf16 %v2760, %v2759
      %v2806 = vpack.c.bf16 %v2762, %v2761
      %v2807 = vpack.c.bf16 %v2764, %v2763
      %v2808 = vpack.c.bf16 %v2766, %v2765
      %v2809 = vpack.c.bf16 %v2768, %v2767
      %v2810 = vpack.c.bf16 %v2770, %v2769
      %v2811 = vpack.c.bf16 %v2772, %v2771
      %v2812 = vpack.c.bf16 %v2774, %v2773
      %v2813 = vpack.c.bf16 %v2776, %v2775
      %v2814 = vpack.c.bf16 %v2778, %v2777
      %v2815 = vpack.c.bf16 %v2780, %v2779
      %v2816 = vpack.c.bf16 %v2782, %v2781
      %v2817 = vpack.c.bf16 %v2784, %v2783
      %v2818 = vpack.c.bf16 %v2786, %v2785
      %v2819 = vpack.c.bf16 %v2788, %v2787
      %v2820 = vpack.c.bf16 %v2790, %v2789
      %v2821 = vpack.c.bf16 %v2792, %v2791
      %v2822 = vpack.c.bf16 %v2794, %v2793
      %v2823 = vpack.c.bf16 %v2796, %v2795
      %s2824 = scalar_lea.vmem %s1, 256
      %v2825 = vld [vmem:[%s2824] sm:$0xf]
      %v2826 = vld [vmem:[%s2824 + $0x4] sm:$0xf]
      %v2827 = vld [vmem:[%s2824 + $0x8] sm:$0xf]
      %v2828 = vld [vmem:[%s2824 + $0xc] sm:$0xf]
      %v2829 = vld [vmem:[%s2824 + $0x10] sm:$0xf]
      %v2830 = vld [vmem:[%s2824 + $0x14] sm:$0xf]
      %v2831 = vld [vmem:[%s2824 + $0x18] sm:$0xf]
      %v2832 = vld [vmem:[%s2824 + $0x1c] sm:$0xf]
      %v2833 = vld [vmem:[%s2824 + $0x20] sm:$0xf]
      %v2834 = vld [vmem:[%s2824 + $0x24] sm:$0xf]
      %v2835 = vld [vmem:[%s2824 + $0x28] sm:$0xf]
      %v2836 = vld [vmem:[%s2824 + $0x2c] sm:$0xf]
      %v2837 = vld [vmem:[%s2824 + $0x30] sm:$0xf]
      %v2838 = vld [vmem:[%s2824 + $0x34] sm:$0xf]
      %v2839 = vld [vmem:[%s2824 + $0x38] sm:$0xf]
      %v2840 = vld [vmem:[%s2824 + $0x3c] sm:$0xf]
      %v2857 = vunpack.c.l.b16 %v2825
      %v2858 = vunpack.c.l.b16 %v2826
      %v2859 = vunpack.c.l.b16 %v2827
      %v2860 = vunpack.c.l.b16 %v2828
      %v2861 = vunpack.c.l.b16 %v2829
      %v2862 = vunpack.c.l.b16 %v2830
      %v2863 = vunpack.c.l.b16 %v2831
      %v2864 = vunpack.c.l.b16 %v2832
      %v2865 = vunpack.c.l.b16 %v2833
      %v2866 = vunpack.c.l.b16 %v2834
      %v2867 = vunpack.c.l.b16 %v2835
      %v2868 = vunpack.c.l.b16 %v2836
      %v2869 = vunpack.c.l.b16 %v2837
      %v2870 = vunpack.c.l.b16 %v2838
      %v2871 = vunpack.c.l.b16 %v2839
      %v2872 = vunpack.c.l.b16 %v2840
      %v2873 = vpack.c.b16 %v2858, %v2857
      %v2874 = vpack.c.b16 %v2860, %v2859
      %v2875 = vpack.c.b16 %v2862, %v2861
      %v2876 = vpack.c.b16 %v2864, %v2863
      %v2877 = vpack.c.b16 %v2866, %v2865
      %v2878 = vpack.c.b16 %v2868, %v2867
      %v2879 = vpack.c.b16 %v2870, %v2869
      %v2880 = vpack.c.b16 %v2872, %v2871
      %2889 = vmatprep.subr.bf16.mxu0 0
      %2890 = vmatpush1.bf16.msra.mxu0 %v2880
      %2891 = vmatprep.subr.bf16.mxu0 0
      %2892 = vmatpush1.bf16.msra.mxu0 %v2879
      %2893 = vmatprep.subr.bf16.mxu0 0
      %2894 = vmatpush1.bf16.msra.mxu0 %v2878
      %2895 = vmatprep.subr.bf16.mxu0 0
      %2896 = vmatpush1.bf16.msra.mxu0 %v2877
      %2897 = vmatprep.subr.bf16.mxu0 0
      %2898 = vmatpush1.bf16.msra.mxu0 %v2876
      %2899 = vmatprep.subr.bf16.mxu0 0
      %2900 = vmatpush1.bf16.msra.mxu0 %v2875
      %2901 = vmatprep.subr.bf16.mxu0 0
      %2902 = vmatpush1.bf16.msra.mxu0 %v2874
      %2903 = vmatprep.subr.bf16.mxu0 0
      %2904 = vmatpush1.bf16.msra.mxu0 %v2873
      %2905 = vmatprep.subr.bf16.mxu0 0
      %2906 = vmatpush2.bf16.msra.mxu0 0
      %2907 = vmatprep.subr.bf16.mxu0 0
      %2908 = vmatpush2.bf16.msra.mxu0 0
      %2909 = vmatprep.subr.bf16.mxu0 0
      %2910 = vmatpush2.bf16.msra.mxu0 0
      %2911 = vmatprep.subr.bf16.mxu0 0
      %2912 = vmatpush2.bf16.msra.mxu0 0
      %2913 = vmatprep.subr.bf16.mxu0 0
      %2914 = vmatpush2.bf16.msra.mxu0 0
      %2915 = vmatprep.subr.bf16.mxu0 0
      %2916 = vmatpush2.bf16.msra.mxu0 0
      %2917 = vmatprep.subr.bf16.mxu0 0
      %2918 = vmatpush2.bf16.msra.mxu0 0
      %2919 = vmatprep.subr.bf16.mxu0 0
      %2920 = vmatpush2.bf16.msra.mxu0 0
      %2921 = vmatprep.mubr.bf16.mxu0 0
      %2922 = vmatmul.mubr.bf16.gmra.mxu0 %v2797
      %v2923 = vpop.f32.mrf.mxu0
      %v2924 = vadd.f32 0.0, %v2923
      %v2925 = vpop.f32.mrf.mxu0
      %v2926 = vpop.f32.mrf.mxu0
      %v2927 = vadd.f32 0.0, %v2926
      %v2928 = vpop.f32.mrf.mxu0
      %2929 = vmatprep.mubr.bf16.mxu0 0
      %2930 = vmatmul.mubr.bf16.gmra.mxu0 %v2798
      %v2931 = vpop.f32.mrf.mxu0
      %v2932 = vadd.f32 0.0, %v2931
      %v2933 = vpop.f32.mrf.mxu0
      %v2934 = vpop.f32.mrf.mxu0
      %v2935 = vadd.f32 0.0, %v2934
      %v2936 = vpop.f32.mrf.mxu0
      %2937 = vmatprep.mubr.bf16.mxu0 0
      %2938 = vmatmul.mubr.bf16.gmra.mxu0 %v2799
      %v2939 = vpop.f32.mrf.mxu0
      %v2940 = vadd.f32 0.0, %v2939
      %v2941 = vpop.f32.mrf.mxu0
      %v2942 = vpop.f32.mrf.mxu0
      %v2943 = vadd.f32 0.0, %v2942
      %v2944 = vpop.f32.mrf.mxu0
      %2945 = vmatprep.mubr.bf16.mxu0 0
      %2946 = vmatmul.mubr.bf16.gmra.mxu0 %v2800
      %v2947 = vpop.f32.mrf.mxu0
      %v2948 = vadd.f32 0.0, %v2947
      %v2949 = vpop.f32.mrf.mxu0
      %v2950 = vpop.f32.mrf.mxu0
      %v2951 = vadd.f32 0.0, %v2950
      %v2952 = vpop.f32.mrf.mxu0
      %2953 = vmatprep.mubr.bf16.mxu0 0
      %2954 = vmatmul.mubr.bf16.gmra.mxu0 %v2801
      %v2955 = vpop.f32.mrf.mxu0
      %v2956 = vadd.f32 0.0, %v2955
      %v2957 = vpop.f32.mrf.mxu0
      %v2958 = vpop.f32.mrf.mxu0
      %v2959 = vadd.f32 0.0, %v2958
      %v2960 = vpop.f32.mrf.mxu0
      %2961 = vmatprep.mubr.bf16.mxu0 0
      %2962 = vmatmul.mubr.bf16.gmra.mxu0 %v2802
      %v2963 = vpop.f32.mrf.mxu0
      %v2964 = vadd.f32 0.0, %v2963
      %v2965 = vpop.f32.mrf.mxu0
      %v2966 = vpop.f32.mrf.mxu0
      %v2967 = vadd.f32 0.0, %v2966
      %v2968 = vpop.f32.mrf.mxu0
      %2969 = vmatprep.mubr.bf16.mxu0 0
      %2970 = vmatmul.mubr.bf16.gmra.mxu0 %v2803
      %v2971 = vpop.f32.mrf.mxu0
      %v2972 = vadd.f32 0.0, %v2971
      %v2973 = vpop.f32.mrf.mxu0
      %v2974 = vpop.f32.mrf.mxu0
      %v2975 = vadd.f32 0.0, %v2974
      %v2976 = vpop.f32.mrf.mxu0
      %2977 = vmatprep.mubr.bf16.mxu0 0
      %2978 = vmatmul.mubr.bf16.gmra.mxu0 %v2804
      %v2979 = vpop.f32.mrf.mxu0
      %v2980 = vadd.f32 0.0, %v2979
      %v2981 = vpop.f32.mrf.mxu0
      %v2982 = vpop.f32.mrf.mxu0
      %v2983 = vadd.f32 0.0, %v2982
      %v2984 = vpop.f32.mrf.mxu0
      %2985 = vmatprep.mubr.bf16.mxu0 0
      %2986 = vmatmul.mubr.bf16.gmra.mxu0 %v2805
      %v2987 = vpop.f32.mrf.mxu0
      %v2988 = vadd.f32 0.0, %v2987
      %v2989 = vpop.f32.mrf.mxu0
      %v2990 = vpop.f32.mrf.mxu0
      %v2991 = vadd.f32 0.0, %v2990
      %v2992 = vpop.f32.mrf.mxu0
      %2993 = vmatprep.mubr.bf16.mxu0 0
      %2994 = vmatmul.mubr.bf16.gmra.mxu0 %v2806
      %v2995 = vpop.f32.mrf.mxu0
      %v2996 = vadd.f32 0.0, %v2995
      %v2997 = vpop.f32.mrf.mxu0
      %v2998 = vpop.f32.mrf.mxu0
      %v2999 = vadd.f32 0.0, %v2998
      %v3000 = vpop.f32.mrf.mxu0
      %3001 = vmatprep.mubr.bf16.mxu0 0
      %3002 = vmatmul.mubr.bf16.gmra.mxu0 %v2807
      %v3003 = vpop.f32.mrf.mxu0
      %v3004 = vadd.f32 0.0, %v3003
      %v3005 = vpop.f32.mrf.mxu0
      %v3006 = vpop.f32.mrf.mxu0
      %v3007 = vadd.f32 0.0, %v3006
      %v3008 = vpop.f32.mrf.mxu0
      %3009 = vmatprep.mubr.bf16.mxu0 0
      %3010 = vmatmul.mubr.bf16.gmra.mxu0 %v2808
      %v3011 = vpop.f32.mrf.mxu0
      %v3012 = vadd.f32 0.0, %v3011
      %v3013 = vpop.f32.mrf.mxu0
      %v3014 = vpop.f32.mrf.mxu0
      %v3015 = vadd.f32 0.0, %v3014
      %v3016 = vpop.f32.mrf.mxu0
      %3017 = vmatprep.mubr.bf16.mxu0 0
      %3018 = vmatmul.mubr.bf16.gmra.mxu0 %v2809
      %v3019 = vpop.f32.mrf.mxu0
      %v3020 = vadd.f32 0.0, %v3019
      %v3021 = vpop.f32.mrf.mxu0
      %v3022 = vpop.f32.mrf.mxu0
      %v3023 = vadd.f32 0.0, %v3022
      %v3024 = vpop.f32.mrf.mxu0
      %3025 = vmatprep.mubr.bf16.mxu0 0
      %3026 = vmatmul.mubr.bf16.gmra.mxu0 %v2810
      %v3027 = vpop.f32.mrf.mxu0
      %v3028 = vadd.f32 0.0, %v3027
      %v3029 = vpop.f32.mrf.mxu0
      %v3030 = vpop.f32.mrf.mxu0
      %v3031 = vadd.f32 0.0, %v3030
      %v3032 = vpop.f32.mrf.mxu0
      %3033 = vmatprep.mubr.bf16.mxu0 0
      %3034 = vmatmul.mubr.bf16.gmra.mxu0 %v2811
      %v3035 = vpop.f32.mrf.mxu0
      %v3036 = vadd.f32 0.0, %v3035
      %v3037 = vpop.f32.mrf.mxu0
      %v3038 = vpop.f32.mrf.mxu0
      %v3039 = vadd.f32 0.0, %v3038
      %v3040 = vpop.f32.mrf.mxu0
      %3041 = vmatprep.mubr.bf16.mxu0 0
      %3042 = vmatmul.mubr.bf16.gmra.mxu0 %v2812
      %v3043 = vpop.f32.mrf.mxu0
      %v3044 = vadd.f32 0.0, %v3043
      %v3045 = vpop.f32.mrf.mxu0
      %v3046 = vpop.f32.mrf.mxu0
      %v3047 = vadd.f32 0.0, %v3046
      %v3048 = vpop.f32.mrf.mxu0
      %3049 = vmatprep.mubr.bf16.mxu0 0
      %3050 = vmatmul.mubr.bf16.gmra.mxu0 %v2813
      %v3051 = vpop.f32.mrf.mxu0
      %v3052 = vadd.f32 0.0, %v3051
      %v3053 = vpop.f32.mrf.mxu0
      %v3054 = vpop.f32.mrf.mxu0
      %v3055 = vadd.f32 0.0, %v3054
      %v3056 = vpop.f32.mrf.mxu0
      %3057 = vmatprep.mubr.bf16.mxu0 0
      %3058 = vmatmul.mubr.bf16.gmra.mxu0 %v2814
      %v3059 = vpop.f32.mrf.mxu0
      %v3060 = vadd.f32 0.0, %v3059
      %v3061 = vpop.f32.mrf.mxu0
      %v3062 = vpop.f32.mrf.mxu0
      %v3063 = vadd.f32 0.0, %v3062
      %v3064 = vpop.f32.mrf.mxu0
      %3065 = vmatprep.mubr.bf16.mxu0 0
      %3066 = vmatmul.mubr.bf16.gmra.mxu0 %v2815
      %v3067 = vpop.f32.mrf.mxu0
      %v3068 = vadd.f32 0.0, %v3067
      %v3069 = vpop.f32.mrf.mxu0
      %v3070 = vpop.f32.mrf.mxu0
      %v3071 = vadd.f32 0.0, %v3070
      %v3072 = vpop.f32.mrf.mxu0
      %3073 = vmatprep.mubr.bf16.mxu0 0
      %3074 = vmatmul.mubr.bf16.gmra.mxu0 %v2816
      %v3075 = vpop.f32.mrf.mxu0
      %v3076 = vadd.f32 0.0, %v3075
      %v3077 = vpop.f32.mrf.mxu0
      %v3078 = vpop.f32.mrf.mxu0
      %v3079 = vadd.f32 0.0, %v3078
      %v3080 = vpop.f32.mrf.mxu0
      %3081 = vmatprep.mubr.bf16.mxu0 0
      %3082 = vmatmul.mubr.bf16.gmra.mxu0 %v2817
      %v3083 = vpop.f32.mrf.mxu0
      %v3084 = vadd.f32 0.0, %v3083
      %v3085 = vpop.f32.mrf.mxu0
      %v3086 = vpop.f32.mrf.mxu0
      %v3087 = vadd.f32 0.0, %v3086
      %v3088 = vpop.f32.mrf.mxu0
      %3089 = vmatprep.mubr.bf16.mxu0 0
      %3090 = vmatmul.mubr.bf16.gmra.mxu0 %v2818
      %v3091 = vpop.f32.mrf.mxu0
      %v3092 = vadd.f32 0.0, %v3091
      %v3093 = vpop.f32.mrf.mxu0
      %v3094 = vpop.f32.mrf.mxu0
      %v3095 = vadd.f32 0.0, %v3094
      %v3096 = vpop.f32.mrf.mxu0
      %3097 = vmatprep.mubr.bf16.mxu0 0
      %3098 = vmatmul.mubr.bf16.gmra.mxu0 %v2819
      %v3099 = vpop.f32.mrf.mxu0
      %v3100 = vadd.f32 0.0, %v3099
      %v3101 = vpop.f32.mrf.mxu0
      %v3102 = vpop.f32.mrf.mxu0
      %v3103 = vadd.f32 0.0, %v3102
      %v3104 = vpop.f32.mrf.mxu0
      %3105 = vmatprep.mubr.bf16.mxu0 0
      %3106 = vmatmul.mubr.bf16.gmra.mxu0 %v2820
      %v3107 = vpop.f32.mrf.mxu0
      %v3108 = vadd.f32 0.0, %v3107
      %v3109 = vpop.f32.mrf.mxu0
      %v3110 = vpop.f32.mrf.mxu0
      %v3111 = vadd.f32 0.0, %v3110
      %v3112 = vpop.f32.mrf.mxu0
      %3113 = vmatprep.mubr.bf16.mxu0 0
      %3114 = vmatmul.mubr.bf16.gmra.mxu0 %v2821
      %v3115 = vpop.f32.mrf.mxu0
      %v3116 = vadd.f32 0.0, %v3115
      %v3117 = vpop.f32.mrf.mxu0
      %v3118 = vpop.f32.mrf.mxu0
      %v3119 = vadd.f32 0.0, %v3118
      %v3120 = vpop.f32.mrf.mxu0
      %3121 = vmatprep.mubr.bf16.mxu0 0
      %3122 = vmatmul.mubr.bf16.gmra.mxu0 %v2822
      %v3123 = vpop.f32.mrf.mxu0
      %v3124 = vadd.f32 0.0, %v3123
      %v3125 = vpop.f32.mrf.mxu0
      %v3126 = vpop.f32.mrf.mxu0
      %v3127 = vadd.f32 0.0, %v3126
      %v3128 = vpop.f32.mrf.mxu0
      %3129 = vmatprep.mubr.bf16.mxu0 0
      %3130 = vmatmul.mubr.bf16.gmra.mxu0 %v2823
      %v3131 = vpop.f32.mrf.mxu0
      %v3132 = vadd.f32 0.0, %v3131
      %v3133 = vpop.f32.mrf.mxu0
      %v3134 = vpop.f32.mrf.mxu0
      %v3135 = vadd.f32 0.0, %v3134
      %v3136 = vpop.f32.mrf.mxu0
      %3137 = vdwg.mxu0
      %v3138 = vadd.f32 %v2689, %v2924
      %v3139 = vadd.f32 %v2690, %v2927
      %v3140 = vadd.f32 %v2691, %v2932
      %v3141 = vadd.f32 %v2692, %v2935
      %v3142 = vadd.f32 %v2693, %v2940
      %v3143 = vadd.f32 %v2694, %v2943
      %v3144 = vadd.f32 %v2695, %v2948
      %v3145 = vadd.f32 %v2696, %v2951
      %v3146 = vadd.f32 %v2697, %v2956
      %v3147 = vadd.f32 %v2698, %v2959
      %v3148 = vadd.f32 %v2699, %v2964
      %v3149 = vadd.f32 %v2700, %v2967
      %v3150 = vadd.f32 %v2701, %v2972
      %v3151 = vadd.f32 %v2702, %v2975
      %v3152 = vadd.f32 %v2703, %v2980
      %v3153 = vadd.f32 %v2704, %v2983
      %v3154 = vadd.f32 %v2705, %v2988
      %v3155 = vadd.f32 %v2706, %v2991
      %v3156 = vadd.f32 %v2707, %v2996
      %v3157 = vadd.f32 %v2708, %v2999
      %v3158 = vadd.f32 %v2709, %v3004
      %v3159 = vadd.f32 %v2710, %v3007
      %v3160 = vadd.f32 %v2711, %v3012
      %v3161 = vadd.f32 %v2712, %v3015
      %v3162 = vadd.f32 %v2713, %v3020
      %v3163 = vadd.f32 %v2714, %v3023
      %v3164 = vadd.f32 %v2715, %v3028
      %v3165 = vadd.f32 %v2716, %v3031
      %v3166 = vadd.f32 %v2717, %v3036
      %v3167 = vadd.f32 %v2718, %v3039
      %v3168 = vadd.f32 %v2719, %v3044
      %v3169 = vadd.f32 %v2720, %v3047
      %v3170 = vadd.f32 %v2721, %v3052
      %v3171 = vadd.f32 %v2722, %v3055
      %v3172 = vadd.f32 %v2723, %v3060
      %v3173 = vadd.f32 %v2724, %v3063
      %v3174 = vadd.f32 %v2725, %v3068
      %v3175 = vadd.f32 %v2726, %v3071
      %v3176 = vadd.f32 %v2727, %v3076
      %v3177 = vadd.f32 %v2728, %v3079
      %v3178 = vadd.f32 %v2729, %v3084
      %v3179 = vadd.f32 %v2730, %v3087
      %v3180 = vadd.f32 %v2731, %v3092
      %v3181 = vadd.f32 %v2732, %v3095
      %v3182 = vadd.f32 %v2733, %v3100
      %v3183 = vadd.f32 %v2734, %v3103
      %v3184 = vadd.f32 %v2735, %v3108
      %v3185 = vadd.f32 %v2736, %v3111
      %v3186 = vadd.f32 %v2737, %v3116
      %v3187 = vadd.f32 %v2738, %v3119
      %v3188 = vadd.f32 %v2739, %v3124
      %v3189 = vadd.f32 %v2740, %v3127
      %v3190 = vadd.f32 %v2741, %v3132
      %v3191 = vadd.f32 %v2742, %v3135
      %v3192 = vld [vmem:[#allocation2 + $0x21] sm:$0xff]
      %v3193 = vld [vmem:[#allocation2 + $0x29] sm:$0xff]
      %v3194 = vld [vmem:[#allocation2 + $0x31] sm:$0xff]
      %v3195 = vld [vmem:[#allocation2 + $0x39] sm:$0xff]
      %v3196 = vld [vmem:[#allocation2 + $0x41] sm:$0xff]
      %v3197 = vld [vmem:[#allocation2 + $0x49] sm:$0xff]
      %v3198 = vld [vmem:[#allocation2 + $0x51] sm:$0xff]
      %v3199 = vld [vmem:[#allocation2 + $0x59] sm:$0xff]
      %v3200 = vld [vmem:[#allocation2 + $0x61] sm:$0xff]
      %v3201 = vld [vmem:[#allocation2 + $0x69] sm:$0xff]
      %v3202 = vld [vmem:[#allocation2 + $0x71] sm:$0xff]
      %v3203 = vld [vmem:[#allocation2 + $0x79] sm:$0xff]
      %v3204 = vld [vmem:[#allocation2 + $0x81] sm:$0xff]
      %v3205 = vld [vmem:[#allocation2 + $0x89] sm:$0xff]
      %v3206 = vld [vmem:[#allocation2 + $0x91] sm:$0xff]
      %v3207 = vld [vmem:[#allocation2 + $0x99] sm:$0xff]
      %v3208 = vld [vmem:[#allocation2 + $0xa1] sm:$0xff]
      %v3209 = vld [vmem:[#allocation2 + $0xa9] sm:$0xff]
      %v3210 = vld [vmem:[#allocation2 + $0xb1] sm:$0xff]
      %v3211 = vld [vmem:[#allocation2 + $0xb9] sm:$0xff]
      %v3212 = vld [vmem:[#allocation2 + $0xc1] sm:$0xff]
      %v3213 = vld [vmem:[#allocation2 + $0xc9] sm:$0xff]
      %v3214 = vld [vmem:[#allocation2 + $0xd1] sm:$0xff]
      %v3215 = vld [vmem:[#allocation2 + $0xd9] sm:$0xff]
      %v3216 = vld [vmem:[#allocation2 + $0xe1] sm:$0xff]
      %v3217 = vld [vmem:[#allocation2 + $0xe9] sm:$0xff]
      %v3218 = vld [vmem:[#allocation2 + $0xf1] sm:$0xff]
      %v3219 = vld [vmem:[#allocation2 + $0xf9] sm:$0xff]
      %v3220 = vld [vmem:[#allocation2 + $0x101] sm:$0xff]
      %v3221 = vld [vmem:[#allocation2 + $0x109] sm:$0xff]
      %v3222 = vld [vmem:[#allocation2 + $0x111] sm:$0xff]
      %v3223 = vld [vmem:[#allocation2 + $0x119] sm:$0xff]
      %v3224 = vld [vmem:[#allocation2 + $0x121] sm:$0xff]
      %v3225 = vld [vmem:[#allocation2 + $0x129] sm:$0xff]
      %v3226 = vld [vmem:[#allocation2 + $0x131] sm:$0xff]
      %v3227 = vld [vmem:[#allocation2 + $0x139] sm:$0xff]
      %v3228 = vld [vmem:[#allocation2 + $0x141] sm:$0xff]
      %v3229 = vld [vmem:[#allocation2 + $0x149] sm:$0xff]
      %v3230 = vld [vmem:[#allocation2 + $0x151] sm:$0xff]
      %v3231 = vld [vmem:[#allocation2 + $0x159] sm:$0xff]
      %v3232 = vld [vmem:[#allocation2 + $0x161] sm:$0xff]
      %v3233 = vld [vmem:[#allocation2 + $0x169] sm:$0xff]
      %v3234 = vld [vmem:[#allocation2 + $0x171] sm:$0xff]
      %v3235 = vld [vmem:[#allocation2 + $0x179] sm:$0xff]
      %v3236 = vld [vmem:[#allocation2 + $0x181] sm:$0xff]
      %v3237 = vld [vmem:[#allocation2 + $0x189] sm:$0xff]
      %v3238 = vld [vmem:[#allocation2 + $0x191] sm:$0xff]
      %v3239 = vld [vmem:[#allocation2 + $0x199] sm:$0xff]
      %v3240 = vld [vmem:[#allocation2 + $0x1a1] sm:$0xff]
      %v3241 = vld [vmem:[#allocation2 + $0x1a9] sm:$0xff]
      %v3242 = vld [vmem:[#allocation2 + $0x1b1] sm:$0xff]
      %v3243 = vld [vmem:[#allocation2 + $0x1b9] sm:$0xff]
      %v3244 = vld [vmem:[#allocation2 + $0x1c1] sm:$0xff]
      %v3245 = vld [vmem:[#allocation2 + $0x1c9] sm:$0xff]
      %v3246 = vpack.c.bf16 %v3193, %v3192
      %v3247 = vpack.c.bf16 %v3195, %v3194
      %v3248 = vpack.c.bf16 %v3197, %v3196
      %v3249 = vpack.c.bf16 %v3199, %v3198
      %v3250 = vpack.c.bf16 %v3201, %v3200
      %v3251 = vpack.c.bf16 %v3203, %v3202
      %v3252 = vpack.c.bf16 %v3205, %v3204
      %v3253 = vpack.c.bf16 %v3207, %v3206
      %v3254 = vpack.c.bf16 %v3209, %v3208
      %v3255 = vpack.c.bf16 %v3211, %v3210
      %v3256 = vpack.c.bf16 %v3213, %v3212
      %v3257 = vpack.c.bf16 %v3215, %v3214
      %v3258 = vpack.c.bf16 %v3217, %v3216
      %v3259 = vpack.c.bf16 %v3219, %v3218
      %v3260 = vpack.c.bf16 %v3221, %v3220
      %v3261 = vpack.c.bf16 %v3223, %v3222
      %v3262 = vpack.c.bf16 %v3225, %v3224
      %v3263 = vpack.c.bf16 %v3227, %v3226
      %v3264 = vpack.c.bf16 %v3229, %v3228
      %v3265 = vpack.c.bf16 %v3231, %v3230
      %v3266 = vpack.c.bf16 %v3233, %v3232
      %v3267 = vpack.c.bf16 %v3235, %v3234
      %v3268 = vpack.c.bf16 %v3237, %v3236
      %v3269 = vpack.c.bf16 %v3239, %v3238
      %v3270 = vpack.c.bf16 %v3241, %v3240
      %v3271 = vpack.c.bf16 %v3243, %v3242
      %v3272 = vpack.c.bf16 %v3245, %v3244
      %s3273 = scalar_lea.vmem %s1, 320
      %v3274 = vld [vmem:[%s3273] sm:$0xf]
      %v3275 = vld [vmem:[%s3273 + $0x4] sm:$0xf]
      %v3276 = vld [vmem:[%s3273 + $0x8] sm:$0xf]
      %v3277 = vld [vmem:[%s3273 + $0xc] sm:$0xf]
      %v3278 = vld [vmem:[%s3273 + $0x10] sm:$0xf]
      %v3279 = vld [vmem:[%s3273 + $0x14] sm:$0xf]
      %v3280 = vld [vmem:[%s3273 + $0x18] sm:$0xf]
      %v3281 = vld [vmem:[%s3273 + $0x1c] sm:$0xf]
      %v3282 = vld [vmem:[%s3273 + $0x20] sm:$0xf]
      %v3283 = vld [vmem:[%s3273 + $0x24] sm:$0xf]
      %v3284 = vld [vmem:[%s3273 + $0x28] sm:$0xf]
      %v3285 = vld [vmem:[%s3273 + $0x2c] sm:$0xf]
      %v3286 = vld [vmem:[%s3273 + $0x30] sm:$0xf]
      %v3287 = vld [vmem:[%s3273 + $0x34] sm:$0xf]
      %v3288 = vld [vmem:[%s3273 + $0x38] sm:$0xf]
      %v3289 = vld [vmem:[%s3273 + $0x3c] sm:$0xf]
      %v3306 = vunpack.c.l.b16 %v3274
      %v3307 = vunpack.c.l.b16 %v3275
      %v3308 = vunpack.c.l.b16 %v3276
      %v3309 = vunpack.c.l.b16 %v3277
      %v3310 = vunpack.c.l.b16 %v3278
      %v3311 = vunpack.c.l.b16 %v3279
      %v3312 = vunpack.c.l.b16 %v3280
      %v3313 = vunpack.c.l.b16 %v3281
      %v3314 = vunpack.c.l.b16 %v3282
      %v3315 = vunpack.c.l.b16 %v3283
      %v3316 = vunpack.c.l.b16 %v3284
      %v3317 = vunpack.c.l.b16 %v3285
      %v3318 = vunpack.c.l.b16 %v3286
      %v3319 = vunpack.c.l.b16 %v3287
      %v3320 = vunpack.c.l.b16 %v3288
      %v3321 = vunpack.c.l.b16 %v3289
      %v3322 = vpack.c.b16 %v3307, %v3306
      %v3323 = vpack.c.b16 %v3309, %v3308
      %v3324 = vpack.c.b16 %v3311, %v3310
      %v3325 = vpack.c.b16 %v3313, %v3312
      %v3326 = vpack.c.b16 %v3315, %v3314
      %v3327 = vpack.c.b16 %v3317, %v3316
      %v3328 = vpack.c.b16 %v3319, %v3318
      %v3329 = vpack.c.b16 %v3321, %v3320
      %3338 = vmatprep.subr.bf16.mxu0 0
      %3339 = vmatpush1.bf16.msra.mxu0 %v3329
      %3340 = vmatprep.subr.bf16.mxu0 0
      %3341 = vmatpush1.bf16.msra.mxu0 %v3328
      %3342 = vmatprep.subr.bf16.mxu0 0
      %3343 = vmatpush1.bf16.msra.mxu0 %v3327
      %3344 = vmatprep.subr.bf16.mxu0 0
      %3345 = vmatpush1.bf16.msra.mxu0 %v3326
      %3346 = vmatprep.subr.bf16.mxu0 0
      %3347 = vmatpush1.bf16.msra.mxu0 %v3325
      %3348 = vmatprep.subr.bf16.mxu0 0
      %3349 = vmatpush1.bf16.msra.mxu0 %v3324
      %3350 = vmatprep.subr.bf16.mxu0 0
      %3351 = vmatpush1.bf16.msra.mxu0 %v3323
      %3352 = vmatprep.subr.bf16.mxu0 0
      %3353 = vmatpush1.bf16.msra.mxu0 %v3322
      %3354 = vmatprep.subr.bf16.mxu0 0
      %3355 = vmatpush2.bf16.msra.mxu0 0
      %3356 = vmatprep.subr.bf16.mxu0 0
      %3357 = vmatpush2.bf16.msra.mxu0 0
      %3358 = vmatprep.subr.bf16.mxu0 0
      %3359 = vmatpush2.bf16.msra.mxu0 0
      %3360 = vmatprep.subr.bf16.mxu0 0
      %3361 = vmatpush2.bf16.msra.mxu0 0
      %3362 = vmatprep.subr.bf16.mxu0 0
      %3363 = vmatpush2.bf16.msra.mxu0 0
      %3364 = vmatprep.subr.bf16.mxu0 0
      %3365 = vmatpush2.bf16.msra.mxu0 0
      %3366 = vmatprep.subr.bf16.mxu0 0
      %3367 = vmatpush2.bf16.msra.mxu0 0
      %3368 = vmatprep.subr.bf16.mxu0 0
      %3369 = vmatpush2.bf16.msra.mxu0 0
      %3370 = vmatprep.mubr.bf16.mxu0 0
      %3371 = vmatmul.mubr.bf16.gmra.mxu0 %v3246
      %v3372 = vpop.f32.mrf.mxu0
      %v3373 = vadd.f32 0.0, %v3372
      %v3374 = vpop.f32.mrf.mxu0
      %v3375 = vpop.f32.mrf.mxu0
      %v3376 = vadd.f32 0.0, %v3375
      %v3377 = vpop.f32.mrf.mxu0
      %3378 = vmatprep.mubr.bf16.mxu0 0
      %3379 = vmatmul.mubr.bf16.gmra.mxu0 %v3247
      %v3380 = vpop.f32.mrf.mxu0
      %v3381 = vadd.f32 0.0, %v3380
      %v3382 = vpop.f32.mrf.mxu0
      %v3383 = vpop.f32.mrf.mxu0
      %v3384 = vadd.f32 0.0, %v3383
      %v3385 = vpop.f32.mrf.mxu0
      %3386 = vmatprep.mubr.bf16.mxu0 0
      %3387 = vmatmul.mubr.bf16.gmra.mxu0 %v3248
      %v3388 = vpop.f32.mrf.mxu0
      %v3389 = vadd.f32 0.0, %v3388
      %v3390 = vpop.f32.mrf.mxu0
      %v3391 = vpop.f32.mrf.mxu0
      %v3392 = vadd.f32 0.0, %v3391
      %v3393 = vpop.f32.mrf.mxu0
      %3394 = vmatprep.mubr.bf16.mxu0 0
      %3395 = vmatmul.mubr.bf16.gmra.mxu0 %v3249
      %v3396 = vpop.f32.mrf.mxu0
      %v3397 = vadd.f32 0.0, %v3396
      %v3398 = vpop.f32.mrf.mxu0
      %v3399 = vpop.f32.mrf.mxu0
      %v3400 = vadd.f32 0.0, %v3399
      %v3401 = vpop.f32.mrf.mxu0
      %3402 = vmatprep.mubr.bf16.mxu0 0
      %3403 = vmatmul.mubr.bf16.gmra.mxu0 %v3250
      %v3404 = vpop.f32.mrf.mxu0
      %v3405 = vadd.f32 0.0, %v3404
      %v3406 = vpop.f32.mrf.mxu0
      %v3407 = vpop.f32.mrf.mxu0
      %v3408 = vadd.f32 0.0, %v3407
      %v3409 = vpop.f32.mrf.mxu0
      %3410 = vmatprep.mubr.bf16.mxu0 0
      %3411 = vmatmul.mubr.bf16.gmra.mxu0 %v3251
      %v3412 = vpop.f32.mrf.mxu0
      %v3413 = vadd.f32 0.0, %v3412
      %v3414 = vpop.f32.mrf.mxu0
      %v3415 = vpop.f32.mrf.mxu0
      %v3416 = vadd.f32 0.0, %v3415
      %v3417 = vpop.f32.mrf.mxu0
      %3418 = vmatprep.mubr.bf16.mxu0 0
      %3419 = vmatmul.mubr.bf16.gmra.mxu0 %v3252
      %v3420 = vpop.f32.mrf.mxu0
      %v3421 = vadd.f32 0.0, %v3420
      %v3422 = vpop.f32.mrf.mxu0
      %v3423 = vpop.f32.mrf.mxu0
      %v3424 = vadd.f32 0.0, %v3423
      %v3425 = vpop.f32.mrf.mxu0
      %3426 = vmatprep.mubr.bf16.mxu0 0
      %3427 = vmatmul.mubr.bf16.gmra.mxu0 %v3253
      %v3428 = vpop.f32.mrf.mxu0
      %v3429 = vadd.f32 0.0, %v3428
      %v3430 = vpop.f32.mrf.mxu0
      %v3431 = vpop.f32.mrf.mxu0
      %v3432 = vadd.f32 0.0, %v3431
      %v3433 = vpop.f32.mrf.mxu0
      %3434 = vmatprep.mubr.bf16.mxu0 0
      %3435 = vmatmul.mubr.bf16.gmra.mxu0 %v3254
      %v3436 = vpop.f32.mrf.mxu0
      %v3437 = vadd.f32 0.0, %v3436
      %v3438 = vpop.f32.mrf.mxu0
      %v3439 = vpop.f32.mrf.mxu0
      %v3440 = vadd.f32 0.0, %v3439
      %v3441 = vpop.f32.mrf.mxu0
      %3442 = vmatprep.mubr.bf16.mxu0 0
      %3443 = vmatmul.mubr.bf16.gmra.mxu0 %v3255
      %v3444 = vpop.f32.mrf.mxu0
      %v3445 = vadd.f32 0.0, %v3444
      %v3446 = vpop.f32.mrf.mxu0
      %v3447 = vpop.f32.mrf.mxu0
      %v3448 = vadd.f32 0.0, %v3447
      %v3449 = vpop.f32.mrf.mxu0
      %3450 = vmatprep.mubr.bf16.mxu0 0
      %3451 = vmatmul.mubr.bf16.gmra.mxu0 %v3256
      %v3452 = vpop.f32.mrf.mxu0
      %v3453 = vadd.f32 0.0, %v3452
      %v3454 = vpop.f32.mrf.mxu0
      %v3455 = vpop.f32.mrf.mxu0
      %v3456 = vadd.f32 0.0, %v3455
      %v3457 = vpop.f32.mrf.mxu0
      %3458 = vmatprep.mubr.bf16.mxu0 0
      %3459 = vmatmul.mubr.bf16.gmra.mxu0 %v3257
      %v3460 = vpop.f32.mrf.mxu0
      %v3461 = vadd.f32 0.0, %v3460
      %v3462 = vpop.f32.mrf.mxu0
      %v3463 = vpop.f32.mrf.mxu0
      %v3464 = vadd.f32 0.0, %v3463
      %v3465 = vpop.f32.mrf.mxu0
      %3466 = vmatprep.mubr.bf16.mxu0 0
      %3467 = vmatmul.mubr.bf16.gmra.mxu0 %v3258
      %v3468 = vpop.f32.mrf.mxu0
      %v3469 = vadd.f32 0.0, %v3468
      %v3470 = vpop.f32.mrf.mxu0
      %v3471 = vpop.f32.mrf.mxu0
      %v3472 = vadd.f32 0.0, %v3471
      %v3473 = vpop.f32.mrf.mxu0
      %3474 = vmatprep.mubr.bf16.mxu0 0
      %3475 = vmatmul.mubr.bf16.gmra.mxu0 %v3259
      %v3476 = vpop.f32.mrf.mxu0
      %v3477 = vadd.f32 0.0, %v3476
      %v3478 = vpop.f32.mrf.mxu0
      %v3479 = vpop.f32.mrf.mxu0
      %v3480 = vadd.f32 0.0, %v3479
      %v3481 = vpop.f32.mrf.mxu0
      %3482 = vmatprep.mubr.bf16.mxu0 0
      %3483 = vmatmul.mubr.bf16.gmra.mxu0 %v3260
      %v3484 = vpop.f32.mrf.mxu0
      %v3485 = vadd.f32 0.0, %v3484
      %v3486 = vpop.f32.mrf.mxu0
      %v3487 = vpop.f32.mrf.mxu0
      %v3488 = vadd.f32 0.0, %v3487
      %v3489 = vpop.f32.mrf.mxu0
      %3490 = vmatprep.mubr.bf16.mxu0 0
      %3491 = vmatmul.mubr.bf16.gmra.mxu0 %v3261
      %v3492 = vpop.f32.mrf.mxu0
      %v3493 = vadd.f32 0.0, %v3492
      %v3494 = vpop.f32.mrf.mxu0
      %v3495 = vpop.f32.mrf.mxu0
      %v3496 = vadd.f32 0.0, %v3495
      %v3497 = vpop.f32.mrf.mxu0
      %3498 = vmatprep.mubr.bf16.mxu0 0
      %3499 = vmatmul.mubr.bf16.gmra.mxu0 %v3262
      %v3500 = vpop.f32.mrf.mxu0
      %v3501 = vadd.f32 0.0, %v3500
      %v3502 = vpop.f32.mrf.mxu0
      %v3503 = vpop.f32.mrf.mxu0
      %v3504 = vadd.f32 0.0, %v3503
      %v3505 = vpop.f32.mrf.mxu0
      %3506 = vmatprep.mubr.bf16.mxu0 0
      %3507 = vmatmul.mubr.bf16.gmra.mxu0 %v3263
      %v3508 = vpop.f32.mrf.mxu0
      %v3509 = vadd.f32 0.0, %v3508
      %v3510 = vpop.f32.mrf.mxu0
      %v3511 = vpop.f32.mrf.mxu0
      %v3512 = vadd.f32 0.0, %v3511
      %v3513 = vpop.f32.mrf.mxu0
      %3514 = vmatprep.mubr.bf16.mxu0 0
      %3515 = vmatmul.mubr.bf16.gmra.mxu0 %v3264
      %v3516 = vpop.f32.mrf.mxu0
      %v3517 = vadd.f32 0.0, %v3516
      %v3518 = vpop.f32.mrf.mxu0
      %v3519 = vpop.f32.mrf.mxu0
      %v3520 = vadd.f32 0.0, %v3519
      %v3521 = vpop.f32.mrf.mxu0
      %3522 = vmatprep.mubr.bf16.mxu0 0
      %3523 = vmatmul.mubr.bf16.gmra.mxu0 %v3265
      %v3524 = vpop.f32.mrf.mxu0
      %v3525 = vadd.f32 0.0, %v3524
      %v3526 = vpop.f32.mrf.mxu0
      %v3527 = vpop.f32.mrf.mxu0
      %v3528 = vadd.f32 0.0, %v3527
      %v3529 = vpop.f32.mrf.mxu0
      %3530 = vmatprep.mubr.bf16.mxu0 0
      %3531 = vmatmul.mubr.bf16.gmra.mxu0 %v3266
      %v3532 = vpop.f32.mrf.mxu0
      %v3533 = vadd.f32 0.0, %v3532
      %v3534 = vpop.f32.mrf.mxu0
      %v3535 = vpop.f32.mrf.mxu0
      %v3536 = vadd.f32 0.0, %v3535
      %v3537 = vpop.f32.mrf.mxu0
      %3538 = vmatprep.mubr.bf16.mxu0 0
      %3539 = vmatmul.mubr.bf16.gmra.mxu0 %v3267
      %v3540 = vpop.f32.mrf.mxu0
      %v3541 = vadd.f32 0.0, %v3540
      %v3542 = vpop.f32.mrf.mxu0
      %v3543 = vpop.f32.mrf.mxu0
      %v3544 = vadd.f32 0.0, %v3543
      %v3545 = vpop.f32.mrf.mxu0
      %3546 = vmatprep.mubr.bf16.mxu0 0
      %3547 = vmatmul.mubr.bf16.gmra.mxu0 %v3268
      %v3548 = vpop.f32.mrf.mxu0
      %v3549 = vadd.f32 0.0, %v3548
      %v3550 = vpop.f32.mrf.mxu0
      %v3551 = vpop.f32.mrf.mxu0
      %v3552 = vadd.f32 0.0, %v3551
      %v3553 = vpop.f32.mrf.mxu0
      %3554 = vmatprep.mubr.bf16.mxu0 0
      %3555 = vmatmul.mubr.bf16.gmra.mxu0 %v3269
      %v3556 = vpop.f32.mrf.mxu0
      %v3557 = vadd.f32 0.0, %v3556
      %v3558 = vpop.f32.mrf.mxu0
      %v3559 = vpop.f32.mrf.mxu0
      %v3560 = vadd.f32 0.0, %v3559
      %v3561 = vpop.f32.mrf.mxu0
      %3562 = vmatprep.mubr.bf16.mxu0 0
      %3563 = vmatmul.mubr.bf16.gmra.mxu0 %v3270
      %v3564 = vpop.f32.mrf.mxu0
      %v3565 = vadd.f32 0.0, %v3564
      %v3566 = vpop.f32.mrf.mxu0
      %v3567 = vpop.f32.mrf.mxu0
      %v3568 = vadd.f32 0.0, %v3567
      %v3569 = vpop.f32.mrf.mxu0
      %3570 = vmatprep.mubr.bf16.mxu0 0
      %3571 = vmatmul.mubr.bf16.gmra.mxu0 %v3271
      %v3572 = vpop.f32.mrf.mxu0
      %v3573 = vadd.f32 0.0, %v3572
      %v3574 = vpop.f32.mrf.mxu0
      %v3575 = vpop.f32.mrf.mxu0
      %v3576 = vadd.f32 0.0, %v3575
      %v3577 = vpop.f32.mrf.mxu0
      %3578 = vmatprep.mubr.bf16.mxu0 0
      %3579 = vmatmul.mubr.bf16.gmra.mxu0 %v3272
      %v3580 = vpop.f32.mrf.mxu0
      %v3581 = vadd.f32 0.0, %v3580
      %v3582 = vpop.f32.mrf.mxu0
      %v3583 = vpop.f32.mrf.mxu0
      %v3584 = vadd.f32 0.0, %v3583
      %v3585 = vpop.f32.mrf.mxu0
      %3586 = vdwg.mxu0
      %v3587 = vadd.f32 %v3138, %v3373
      %v3588 = vadd.f32 %v3139, %v3376
      %v3589 = vadd.f32 %v3140, %v3381
      %v3590 = vadd.f32 %v3141, %v3384
      %v3591 = vadd.f32 %v3142, %v3389
      %v3592 = vadd.f32 %v3143, %v3392
      %v3593 = vadd.f32 %v3144, %v3397
      %v3594 = vadd.f32 %v3145, %v3400
      %v3595 = vadd.f32 %v3146, %v3405
      %v3596 = vadd.f32 %v3147, %v3408
      %v3597 = vadd.f32 %v3148, %v3413
      %v3598 = vadd.f32 %v3149, %v3416
      %v3599 = vadd.f32 %v3150, %v3421
      %v3600 = vadd.f32 %v3151, %v3424
      %v3601 = vadd.f32 %v3152, %v3429
      %v3602 = vadd.f32 %v3153, %v3432
      %v3603 = vadd.f32 %v3154, %v3437
      %v3604 = vadd.f32 %v3155, %v3440
      %v3605 = vadd.f32 %v3156, %v3445
      %v3606 = vadd.f32 %v3157, %v3448
      %v3607 = vadd.f32 %v3158, %v3453
      %v3608 = vadd.f32 %v3159, %v3456
      %v3609 = vadd.f32 %v3160, %v3461
      %v3610 = vadd.f32 %v3161, %v3464
      %v3611 = vadd.f32 %v3162, %v3469
      %v3612 = vadd.f32 %v3163, %v3472
      %v3613 = vadd.f32 %v3164, %v3477
      %v3614 = vadd.f32 %v3165, %v3480
      %v3615 = vadd.f32 %v3166, %v3485
      %v3616 = vadd.f32 %v3167, %v3488
      %v3617 = vadd.f32 %v3168, %v3493
      %v3618 = vadd.f32 %v3169, %v3496
      %v3619 = vadd.f32 %v3170, %v3501
      %v3620 = vadd.f32 %v3171, %v3504
      %v3621 = vadd.f32 %v3172, %v3509
      %v3622 = vadd.f32 %v3173, %v3512
      %v3623 = vadd.f32 %v3174, %v3517
      %v3624 = vadd.f32 %v3175, %v3520
      %v3625 = vadd.f32 %v3176, %v3525
      %v3626 = vadd.f32 %v3177, %v3528
      %v3627 = vadd.f32 %v3178, %v3533
      %v3628 = vadd.f32 %v3179, %v3536
      %v3629 = vadd.f32 %v3180, %v3541
      %v3630 = vadd.f32 %v3181, %v3544
      %v3631 = vadd.f32 %v3182, %v3549
      %v3632 = vadd.f32 %v3183, %v3552
      %v3633 = vadd.f32 %v3184, %v3557
      %v3634 = vadd.f32 %v3185, %v3560
      %v3635 = vadd.f32 %v3186, %v3565
      %v3636 = vadd.f32 %v3187, %v3568
      %v3637 = vadd.f32 %v3188, %v3573
      %v3638 = vadd.f32 %v3189, %v3576
      %v3639 = vadd.f32 %v3190, %v3581
      %v3640 = vadd.f32 %v3191, %v3584
      %v3641 = vld [vmem:[#allocation2 + $0x37] sm:$0xff]
      %v3642 = vld [vmem:[#allocation2 + $0x3f] sm:$0xff]
      %v3643 = vld [vmem:[#allocation2 + $0x47] sm:$0xff]
      %v3644 = vld [vmem:[#allocation2 + $0x4f] sm:$0xff]
      %v3645 = vld [vmem:[#allocation2 + $0x57] sm:$0xff]
      %v3646 = vld [vmem:[#allocation2 + $0x5f] sm:$0xff]
      %v3647 = vld [vmem:[#allocation2 + $0x67] sm:$0xff]
      %v3648 = vld [vmem:[#allocation2 + $0x6f] sm:$0xff]
      %v3649 = vld [vmem:[#allocation2 + $0x77] sm:$0xff]
      %v3650 = vld [vmem:[#allocation2 + $0x7f] sm:$0xff]
      %v3651 = vld [vmem:[#allocation2 + $0x87] sm:$0xff]
      %v3652 = vld [vmem:[#allocation2 + $0x8f] sm:$0xff]
      %v3653 = vld [vmem:[#allocation2 + $0x97] sm:$0xff]
      %v3654 = vld [vmem:[#allocation2 + $0x9f] sm:$0xff]
      %v3655 = vld [vmem:[#allocation2 + $0xa7] sm:$0xff]
      %v3656 = vld [vmem:[#allocation2 + $0xaf] sm:$0xff]
      %v3657 = vld [vmem:[#allocation2 + $0xb7] sm:$0xff]
      %v3658 = vld [vmem:[#allocation2 + $0xbf] sm:$0xff]
      %v3659 = vld [vmem:[#allocation2 + $0xc7] sm:$0xff]
      %v3660 = vld [vmem:[#allocation2 + $0xcf] sm:$0xff]
      %v3661 = vld [vmem:[#allocation2 + $0xd7] sm:$0xff]
      %v3662 = vld [vmem:[#allocation2 + $0xdf] sm:$0xff]
      %v3663 = vld [vmem:[#allocation2 + $0xe7] sm:$0xff]
      %v3664 = vld [vmem:[#allocation2 + $0xef] sm:$0xff]
      %v3665 = vld [vmem:[#allocation2 + $0xf7] sm:$0xff]
      %v3666 = vld [vmem:[#allocation2 + $0xff] sm:$0xff]
      %v3667 = vld [vmem:[#allocation2 + $0x107] sm:$0xff]
      %v3668 = vld [vmem:[#allocation2 + $0x10f] sm:$0xff]
      %v3669 = vld [vmem:[#allocation2 + $0x117] sm:$0xff]
      %v3670 = vld [vmem:[#allocation2 + $0x11f] sm:$0xff]
      %v3671 = vld [vmem:[#allocation2 + $0x127] sm:$0xff]
      %v3672 = vld [vmem:[#allocation2 + $0x12f] sm:$0xff]
      %v3673 = vld [vmem:[#allocation2 + $0x137] sm:$0xff]
      %v3674 = vld [vmem:[#allocation2 + $0x13f] sm:$0xff]
      %v3675 = vld [vmem:[#allocation2 + $0x147] sm:$0xff]
      %v3676 = vld [vmem:[#allocation2 + $0x14f] sm:$0xff]
      %v3677 = vld [vmem:[#allocation2 + $0x157] sm:$0xff]
      %v3678 = vld [vmem:[#allocation2 + $0x15f] sm:$0xff]
      %v3679 = vld [vmem:[#allocation2 + $0x167] sm:$0xff]
      %v3680 = vld [vmem:[#allocation2 + $0x16f] sm:$0xff]
      %v3681 = vld [vmem:[#allocation2 + $0x177] sm:$0xff]
      %v3682 = vld [vmem:[#allocation2 + $0x17f] sm:$0xff]
      %v3683 = vld [vmem:[#allocation2 + $0x187] sm:$0xff]
      %v3684 = vld [vmem:[#allocation2 + $0x18f] sm:$0xff]
      %v3685 = vld [vmem:[#allocation2 + $0x197] sm:$0xff]
      %v3686 = vld [vmem:[#allocation2 + $0x19f] sm:$0xff]
      %v3687 = vld [vmem:[#allocation2 + $0x1a7] sm:$0xff]
      %v3688 = vld [vmem:[#allocation2 + $0x1af] sm:$0xff]
      %v3689 = vld [vmem:[#allocation2 + $0x1b7] sm:$0xff]
      %v3690 = vld [vmem:[#allocation2 + $0x1bf] sm:$0xff]
      %v3691 = vld [vmem:[#allocation2 + $0x1c7] sm:$0xff]
      %v3692 = vld [vmem:[#allocation2 + $0x1cf] sm:$0xff]
      %v3693 = vld [vmem:[#allocation2 + $0x1d7] sm:$0xff]
      %v3694 = vld [vmem:[#allocation2 + $0x1df] sm:$0xff]
      %v3695 = vpack.c.bf16 %v3642, %v3641
      %v3696 = vpack.c.bf16 %v3644, %v3643
      %v3697 = vpack.c.bf16 %v3646, %v3645
      %v3698 = vpack.c.bf16 %v3648, %v3647
      %v3699 = vpack.c.bf16 %v3650, %v3649
      %v3700 = vpack.c.bf16 %v3652, %v3651
      %v3701 = vpack.c.bf16 %v3654, %v3653
      %v3702 = vpack.c.bf16 %v3656, %v3655
      %v3703 = vpack.c.bf16 %v3658, %v3657
      %v3704 = vpack.c.bf16 %v3660, %v3659
      %v3705 = vpack.c.bf16 %v3662, %v3661
      %v3706 = vpack.c.bf16 %v3664, %v3663
      %v3707 = vpack.c.bf16 %v3666, %v3665
      %v3708 = vpack.c.bf16 %v3668, %v3667
      %v3709 = vpack.c.bf16 %v3670, %v3669
      %v3710 = vpack.c.bf16 %v3672, %v3671
      %v3711 = vpack.c.bf16 %v3674, %v3673
      %v3712 = vpack.c.bf16 %v3676, %v3675
      %v3713 = vpack.c.bf16 %v3678, %v3677
      %v3714 = vpack.c.bf16 %v3680, %v3679
      %v3715 = vpack.c.bf16 %v3682, %v3681
      %v3716 = vpack.c.bf16 %v3684, %v3683
      %v3717 = vpack.c.bf16 %v3686, %v3685
      %v3718 = vpack.c.bf16 %v3688, %v3687
      %v3719 = vpack.c.bf16 %v3690, %v3689
      %v3720 = vpack.c.bf16 %v3692, %v3691
      %v3721 = vpack.c.bf16 %v3694, %v3693
      %s3722 = scalar_lea.vmem %s1, 384
      %v3723 = vld [vmem:[%s3722] sm:$0xf]
      %v3724 = vld [vmem:[%s3722 + $0x4] sm:$0xf]
      %v3725 = vld [vmem:[%s3722 + $0x8] sm:$0xf]
      %v3726 = vld [vmem:[%s3722 + $0xc] sm:$0xf]
      %v3727 = vld [vmem:[%s3722 + $0x10] sm:$0xf]
      %v3728 = vld [vmem:[%s3722 + $0x14] sm:$0xf]
      %v3729 = vld [vmem:[%s3722 + $0x18] sm:$0xf]
      %v3730 = vld [vmem:[%s3722 + $0x1c] sm:$0xf]
      %v3731 = vld [vmem:[%s3722 + $0x20] sm:$0xf]
      %v3732 = vld [vmem:[%s3722 + $0x24] sm:$0xf]
      %v3733 = vld [vmem:[%s3722 + $0x28] sm:$0xf]
      %v3734 = vld [vmem:[%s3722 + $0x2c] sm:$0xf]
      %v3735 = vld [vmem:[%s3722 + $0x30] sm:$0xf]
      %v3736 = vld [vmem:[%s3722 + $0x34] sm:$0xf]
      %v3737 = vld [vmem:[%s3722 + $0x38] sm:$0xf]
      %v3738 = vld [vmem:[%s3722 + $0x3c] sm:$0xf]
      %v3755 = vunpack.c.l.b16 %v3723
      %v3756 = vunpack.c.l.b16 %v3724
      %v3757 = vunpack.c.l.b16 %v3725
      %v3758 = vunpack.c.l.b16 %v3726
      %v3759 = vunpack.c.l.b16 %v3727
      %v3760 = vunpack.c.l.b16 %v3728
      %v3761 = vunpack.c.l.b16 %v3729
      %v3762 = vunpack.c.l.b16 %v3730
      %v3763 = vunpack.c.l.b16 %v3731
      %v3764 = vunpack.c.l.b16 %v3732
      %v3765 = vunpack.c.l.b16 %v3733
      %v3766 = vunpack.c.l.b16 %v3734
      %v3767 = vunpack.c.l.b16 %v3735
      %v3768 = vunpack.c.l.b16 %v3736
      %v3769 = vunpack.c.l.b16 %v3737
      %v3770 = vunpack.c.l.b16 %v3738
      %v3771 = vpack.c.b16 %v3756, %v3755
      %v3772 = vpack.c.b16 %v3758, %v3757
      %v3773 = vpack.c.b16 %v3760, %v3759
      %v3774 = vpack.c.b16 %v3762, %v3761
      %v3775 = vpack.c.b16 %v3764, %v3763
      %v3776 = vpack.c.b16 %v3766, %v3765
      %v3777 = vpack.c.b16 %v3768, %v3767
      %v3778 = vpack.c.b16 %v3770, %v3769
      %3787 = vmatprep.subr.bf16.mxu0 0
      %3788 = vmatpush1.bf16.msra.mxu0 %v3778
      %3789 = vmatprep.subr.bf16.mxu0 0
      %3790 = vmatpush1.bf16.msra.mxu0 %v3777
      %3791 = vmatprep.subr.bf16.mxu0 0
      %3792 = vmatpush1.bf16.msra.mxu0 %v3776
      %3793 = vmatprep.subr.bf16.mxu0 0
      %3794 = vmatpush1.bf16.msra.mxu0 %v3775
      %3795 = vmatprep.subr.bf16.mxu0 0
      %3796 = vmatpush1.bf16.msra.mxu0 %v3774
      %3797 = vmatprep.subr.bf16.mxu0 0
      %3798 = vmatpush1.bf16.msra.mxu0 %v3773
      %3799 = vmatprep.subr.bf16.mxu0 0
      %3800 = vmatpush1.bf16.msra.mxu0 %v3772
      %3801 = vmatprep.subr.bf16.mxu0 0
      %3802 = vmatpush1.bf16.msra.mxu0 %v3771
      %3803 = vmatprep.subr.bf16.mxu0 0
      %3804 = vmatpush2.bf16.msra.mxu0 0
      %3805 = vmatprep.subr.bf16.mxu0 0
      %3806 = vmatpush2.bf16.msra.mxu0 0
      %3807 = vmatprep.subr.bf16.mxu0 0
      %3808 = vmatpush2.bf16.msra.mxu0 0
      %3809 = vmatprep.subr.bf16.mxu0 0
      %3810 = vmatpush2.bf16.msra.mxu0 0
      %3811 = vmatprep.subr.bf16.mxu0 0
      %3812 = vmatpush2.bf16.msra.mxu0 0
      %3813 = vmatprep.subr.bf16.mxu0 0
      %3814 = vmatpush2.bf16.msra.mxu0 0
      %3815 = vmatprep.subr.bf16.mxu0 0
      %3816 = vmatpush2.bf16.msra.mxu0 0
      %3817 = vmatprep.subr.bf16.mxu0 0
      %3818 = vmatpush2.bf16.msra.mxu0 0
      %3819 = vmatprep.mubr.bf16.mxu0 0
      %3820 = vmatmul.mubr.bf16.gmra.mxu0 %v3695
      %v3821 = vpop.f32.mrf.mxu0
      %v3822 = vadd.f32 0.0, %v3821
      %v3823 = vpop.f32.mrf.mxu0
      %v3824 = vpop.f32.mrf.mxu0
      %v3825 = vadd.f32 0.0, %v3824
      %v3826 = vpop.f32.mrf.mxu0
      %3827 = vmatprep.mubr.bf16.mxu0 0
      %3828 = vmatmul.mubr.bf16.gmra.mxu0 %v3696
      %v3829 = vpop.f32.mrf.mxu0
      %v3830 = vadd.f32 0.0, %v3829
      %v3831 = vpop.f32.mrf.mxu0
      %v3832 = vpop.f32.mrf.mxu0
      %v3833 = vadd.f32 0.0, %v3832
      %v3834 = vpop.f32.mrf.mxu0
      %3835 = vmatprep.mubr.bf16.mxu0 0
      %3836 = vmatmul.mubr.bf16.gmra.mxu0 %v3697
      %v3837 = vpop.f32.mrf.mxu0
      %v3838 = vadd.f32 0.0, %v3837
      %v3839 = vpop.f32.mrf.mxu0
      %v3840 = vpop.f32.mrf.mxu0
      %v3841 = vadd.f32 0.0, %v3840
      %v3842 = vpop.f32.mrf.mxu0
      %3843 = vmatprep.mubr.bf16.mxu0 0
      %3844 = vmatmul.mubr.bf16.gmra.mxu0 %v3698
      %v3845 = vpop.f32.mrf.mxu0
      %v3846 = vadd.f32 0.0, %v3845
      %v3847 = vpop.f32.mrf.mxu0
      %v3848 = vpop.f32.mrf.mxu0
      %v3849 = vadd.f32 0.0, %v3848
      %v3850 = vpop.f32.mrf.mxu0
      %3851 = vmatprep.mubr.bf16.mxu0 0
      %3852 = vmatmul.mubr.bf16.gmra.mxu0 %v3699
      %v3853 = vpop.f32.mrf.mxu0
      %v3854 = vadd.f32 0.0, %v3853
      %v3855 = vpop.f32.mrf.mxu0
      %v3856 = vpop.f32.mrf.mxu0
      %v3857 = vadd.f32 0.0, %v3856
      %v3858 = vpop.f32.mrf.mxu0
      %3859 = vmatprep.mubr.bf16.mxu0 0
      %3860 = vmatmul.mubr.bf16.gmra.mxu0 %v3700
      %v3861 = vpop.f32.mrf.mxu0
      %v3862 = vadd.f32 0.0, %v3861
      %v3863 = vpop.f32.mrf.mxu0
      %v3864 = vpop.f32.mrf.mxu0
      %v3865 = vadd.f32 0.0, %v3864
      %v3866 = vpop.f32.mrf.mxu0
      %3867 = vmatprep.mubr.bf16.mxu0 0
      %3868 = vmatmul.mubr.bf16.gmra.mxu0 %v3701
      %v3869 = vpop.f32.mrf.mxu0
      %v3870 = vadd.f32 0.0, %v3869
      %v3871 = vpop.f32.mrf.mxu0
      %v3872 = vpop.f32.mrf.mxu0
      %v3873 = vadd.f32 0.0, %v3872
      %v3874 = vpop.f32.mrf.mxu0
      %3875 = vmatprep.mubr.bf16.mxu0 0
      %3876 = vmatmul.mubr.bf16.gmra.mxu0 %v3702
      %v3877 = vpop.f32.mrf.mxu0
      %v3878 = vadd.f32 0.0, %v3877
      %v3879 = vpop.f32.mrf.mxu0
      %v3880 = vpop.f32.mrf.mxu0
      %v3881 = vadd.f32 0.0, %v3880
      %v3882 = vpop.f32.mrf.mxu0
      %3883 = vmatprep.mubr.bf16.mxu0 0
      %3884 = vmatmul.mubr.bf16.gmra.mxu0 %v3703
      %v3885 = vpop.f32.mrf.mxu0
      %v3886 = vadd.f32 0.0, %v3885
      %v3887 = vpop.f32.mrf.mxu0
      %v3888 = vpop.f32.mrf.mxu0
      %v3889 = vadd.f32 0.0, %v3888
      %v3890 = vpop.f32.mrf.mxu0
      %3891 = vmatprep.mubr.bf16.mxu0 0
      %3892 = vmatmul.mubr.bf16.gmra.mxu0 %v3704
      %v3893 = vpop.f32.mrf.mxu0
      %v3894 = vadd.f32 0.0, %v3893
      %v3895 = vpop.f32.mrf.mxu0
      %v3896 = vpop.f32.mrf.mxu0
      %v3897 = vadd.f32 0.0, %v3896
      %v3898 = vpop.f32.mrf.mxu0
      %3899 = vmatprep.mubr.bf16.mxu0 0
      %3900 = vmatmul.mubr.bf16.gmra.mxu0 %v3705
      %v3901 = vpop.f32.mrf.mxu0
      %v3902 = vadd.f32 0.0, %v3901
      %v3903 = vpop.f32.mrf.mxu0
      %v3904 = vpop.f32.mrf.mxu0
      %v3905 = vadd.f32 0.0, %v3904
      %v3906 = vpop.f32.mrf.mxu0
      %3907 = vmatprep.mubr.bf16.mxu0 0
      %3908 = vmatmul.mubr.bf16.gmra.mxu0 %v3706
      %v3909 = vpop.f32.mrf.mxu0
      %v3910 = vadd.f32 0.0, %v3909
      %v3911 = vpop.f32.mrf.mxu0
      %v3912 = vpop.f32.mrf.mxu0
      %v3913 = vadd.f32 0.0, %v3912
      %v3914 = vpop.f32.mrf.mxu0
      %3915 = vmatprep.mubr.bf16.mxu0 0
      %3916 = vmatmul.mubr.bf16.gmra.mxu0 %v3707
      %v3917 = vpop.f32.mrf.mxu0
      %v3918 = vadd.f32 0.0, %v3917
      %v3919 = vpop.f32.mrf.mxu0
      %v3920 = vpop.f32.mrf.mxu0
      %v3921 = vadd.f32 0.0, %v3920
      %v3922 = vpop.f32.mrf.mxu0
      %3923 = vmatprep.mubr.bf16.mxu0 0
      %3924 = vmatmul.mubr.bf16.gmra.mxu0 %v3708
      %v3925 = vpop.f32.mrf.mxu0
      %v3926 = vadd.f32 0.0, %v3925
      %v3927 = vpop.f32.mrf.mxu0
      %v3928 = vpop.f32.mrf.mxu0
      %v3929 = vadd.f32 0.0, %v3928
      %v3930 = vpop.f32.mrf.mxu0
      %3931 = vmatprep.mubr.bf16.mxu0 0
      %3932 = vmatmul.mubr.bf16.gmra.mxu0 %v3709
      %v3933 = vpop.f32.mrf.mxu0
      %v3934 = vadd.f32 0.0, %v3933
      %v3935 = vpop.f32.mrf.mxu0
      %v3936 = vpop.f32.mrf.mxu0
      %v3937 = vadd.f32 0.0, %v3936
      %v3938 = vpop.f32.mrf.mxu0
      %3939 = vmatprep.mubr.bf16.mxu0 0
      %3940 = vmatmul.mubr.bf16.gmra.mxu0 %v3710
      %v3941 = vpop.f32.mrf.mxu0
      %v3942 = vadd.f32 0.0, %v3941
      %v3943 = vpop.f32.mrf.mxu0
      %v3944 = vpop.f32.mrf.mxu0
      %v3945 = vadd.f32 0.0, %v3944
      %v3946 = vpop.f32.mrf.mxu0
      %3947 = vmatprep.mubr.bf16.mxu0 0
      %3948 = vmatmul.mubr.bf16.gmra.mxu0 %v3711
      %v3949 = vpop.f32.mrf.mxu0
      %v3950 = vadd.f32 0.0, %v3949
      %v3951 = vpop.f32.mrf.mxu0
      %v3952 = vpop.f32.mrf.mxu0
      %v3953 = vadd.f32 0.0, %v3952
      %v3954 = vpop.f32.mrf.mxu0
      %3955 = vmatprep.mubr.bf16.mxu0 0
      %3956 = vmatmul.mubr.bf16.gmra.mxu0 %v3712
      %v3957 = vpop.f32.mrf.mxu0
      %v3958 = vadd.f32 0.0, %v3957
      %v3959 = vpop.f32.mrf.mxu0
      %v3960 = vpop.f32.mrf.mxu0
      %v3961 = vadd.f32 0.0, %v3960
      %v3962 = vpop.f32.mrf.mxu0
      %3963 = vmatprep.mubr.bf16.mxu0 0
      %3964 = vmatmul.mubr.bf16.gmra.mxu0 %v3713
      %v3965 = vpop.f32.mrf.mxu0
      %v3966 = vadd.f32 0.0, %v3965
      %v3967 = vpop.f32.mrf.mxu0
      %v3968 = vpop.f32.mrf.mxu0
      %v3969 = vadd.f32 0.0, %v3968
      %v3970 = vpop.f32.mrf.mxu0
      %3971 = vmatprep.mubr.bf16.mxu0 0
      %3972 = vmatmul.mubr.bf16.gmra.mxu0 %v3714
      %v3973 = vpop.f32.mrf.mxu0
      %v3974 = vadd.f32 0.0, %v3973
      %v3975 = vpop.f32.mrf.mxu0
      %v3976 = vpop.f32.mrf.mxu0
      %v3977 = vadd.f32 0.0, %v3976
      %v3978 = vpop.f32.mrf.mxu0
      %3979 = vmatprep.mubr.bf16.mxu0 0
      %3980 = vmatmul.mubr.bf16.gmra.mxu0 %v3715
      %v3981 = vpop.f32.mrf.mxu0
      %v3982 = vadd.f32 0.0, %v3981
      %v3983 = vpop.f32.mrf.mxu0
      %v3984 = vpop.f32.mrf.mxu0
      %v3985 = vadd.f32 0.0, %v3984
      %v3986 = vpop.f32.mrf.mxu0
      %3987 = vmatprep.mubr.bf16.mxu0 0
      %3988 = vmatmul.mubr.bf16.gmra.mxu0 %v3716
      %v3989 = vpop.f32.mrf.mxu0
      %v3990 = vadd.f32 0.0, %v3989
      %v3991 = vpop.f32.mrf.mxu0
      %v3992 = vpop.f32.mrf.mxu0
      %v3993 = vadd.f32 0.0, %v3992
      %v3994 = vpop.f32.mrf.mxu0
      %3995 = vmatprep.mubr.bf16.mxu0 0
      %3996 = vmatmul.mubr.bf16.gmra.mxu0 %v3717
      %v3997 = vpop.f32.mrf.mxu0
      %v3998 = vadd.f32 0.0, %v3997
      %v3999 = vpop.f32.mrf.mxu0
      %v4000 = vpop.f32.mrf.mxu0
      %v4001 = vadd.f32 0.0, %v4000
      %v4002 = vpop.f32.mrf.mxu0
      %4003 = vmatprep.mubr.bf16.mxu0 0
      %4004 = vmatmul.mubr.bf16.gmra.mxu0 %v3718
      %v4005 = vpop.f32.mrf.mxu0
      %v4006 = vadd.f32 0.0, %v4005
      %v4007 = vpop.f32.mrf.mxu0
      %v4008 = vpop.f32.mrf.mxu0
      %v4009 = vadd.f32 0.0, %v4008
      %v4010 = vpop.f32.mrf.mxu0
      %4011 = vmatprep.mubr.bf16.mxu0 0
      %4012 = vmatmul.mubr.bf16.gmra.mxu0 %v3719
      %v4013 = vpop.f32.mrf.mxu0
      %v4014 = vadd.f32 0.0, %v4013
      %v4015 = vpop.f32.mrf.mxu0
      %v4016 = vpop.f32.mrf.mxu0
      %v4017 = vadd.f32 0.0, %v4016
      %v4018 = vpop.f32.mrf.mxu0
      %4019 = vmatprep.mubr.bf16.mxu0 0
      %4020 = vmatmul.mubr.bf16.gmra.mxu0 %v3720
      %v4021 = vpop.f32.mrf.mxu0
      %v4022 = vadd.f32 0.0, %v4021
      %v4023 = vpop.f32.mrf.mxu0
      %v4024 = vpop.f32.mrf.mxu0
      %v4025 = vadd.f32 0.0, %v4024
      %v4026 = vpop.f32.mrf.mxu0
      %4027 = vmatprep.mubr.bf16.mxu0 0
      %4028 = vmatmul.mubr.bf16.gmra.mxu0 %v3721
      %v4029 = vpop.f32.mrf.mxu0
      %v4030 = vadd.f32 0.0, %v4029
      %v4031 = vpop.f32.mrf.mxu0
      %v4032 = vpop.f32.mrf.mxu0
      %v4033 = vadd.f32 0.0, %v4032
      %v4034 = vpop.f32.mrf.mxu0
      %4035 = vdwg.mxu0
      %v4036 = vadd.f32 %v3587, %v3822
      %v4037 = vadd.f32 %v3588, %v3825
      %v4038 = vadd.f32 %v3589, %v3830
      %v4039 = vadd.f32 %v3590, %v3833
      %v4040 = vadd.f32 %v3591, %v3838
      %v4041 = vadd.f32 %v3592, %v3841
      %v4042 = vadd.f32 %v3593, %v3846
      %v4043 = vadd.f32 %v3594, %v3849
      %v4044 = vadd.f32 %v3595, %v3854
      %v4045 = vadd.f32 %v3596, %v3857
      %v4046 = vadd.f32 %v3597, %v3862
      %v4047 = vadd.f32 %v3598, %v3865
      %v4048 = vadd.f32 %v3599, %v3870
      %v4049 = vadd.f32 %v3600, %v3873
      %v4050 = vadd.f32 %v3601, %v3878
      %v4051 = vadd.f32 %v3602, %v3881
      %v4052 = vadd.f32 %v3603, %v3886
      %v4053 = vadd.f32 %v3604, %v3889
      %v4054 = vadd.f32 %v3605, %v3894
      %v4055 = vadd.f32 %v3606, %v3897
      %v4056 = vadd.f32 %v3607, %v3902
      %v4057 = vadd.f32 %v3608, %v3905
      %v4058 = vadd.f32 %v3609, %v3910
      %v4059 = vadd.f32 %v3610, %v3913
      %v4060 = vadd.f32 %v3611, %v3918
      %v4061 = vadd.f32 %v3612, %v3921
      %v4062 = vadd.f32 %v3613, %v3926
      %v4063 = vadd.f32 %v3614, %v3929
      %v4064 = vadd.f32 %v3615, %v3934
      %v4065 = vadd.f32 %v3616, %v3937
      %v4066 = vadd.f32 %v3617, %v3942
      %v4067 = vadd.f32 %v3618, %v3945
      %v4068 = vadd.f32 %v3619, %v3950
      %v4069 = vadd.f32 %v3620, %v3953
      %v4070 = vadd.f32 %v3621, %v3958
      %v4071 = vadd.f32 %v3622, %v3961
      %v4072 = vadd.f32 %v3623, %v3966
      %v4073 = vadd.f32 %v3624, %v3969
      %v4074 = vadd.f32 %v3625, %v3974
      %v4075 = vadd.f32 %v3626, %v3977
      %v4076 = vadd.f32 %v3627, %v3982
      %v4077 = vadd.f32 %v3628, %v3985
      %v4078 = vadd.f32 %v3629, %v3990
      %v4079 = vadd.f32 %v3630, %v3993
      %v4080 = vadd.f32 %v3631, %v3998
      %v4081 = vadd.f32 %v3632, %v4001
      %v4082 = vadd.f32 %v3633, %v4006
      %v4083 = vadd.f32 %v3634, %v4009
      %v4084 = vadd.f32 %v3635, %v4014
      %v4085 = vadd.f32 %v3636, %v4017
      %v4086 = vadd.f32 %v3637, %v4022
      %v4087 = vadd.f32 %v3638, %v4025
      %v4088 = vadd.f32 %v3639, %v4030
      %v4089 = vadd.f32 %v3640, %v4033
      %v4090 = vld [vmem:[#allocation2 + $0x38] sm:$0xff]
      %v4091 = vld [vmem:[#allocation2 + $0x40] sm:$0xff]
      %v4092 = vld [vmem:[#allocation2 + $0x48] sm:$0xff]
      %v4093 = vld [vmem:[#allocation2 + $0x50] sm:$0xff]
      %v4094 = vld [vmem:[#allocation2 + $0x58] sm:$0xff]
      %v4095 = vld [vmem:[#allocation2 + $0x60] sm:$0xff]
      %v4096 = vld [vmem:[#allocation2 + $0x68] sm:$0xff]
      %v4097 = vld [vmem:[#allocation2 + $0x70] sm:$0xff]
      %v4098 = vld [vmem:[#allocation2 + $0x78] sm:$0xff]
      %v4099 = vld [vmem:[#allocation2 + $0x80] sm:$0xff]
      %v4100 = vld [vmem:[#allocation2 + $0x88] sm:$0xff]
      %v4101 = vld [vmem:[#allocation2 + $0x90] sm:$0xff]
      %v4102 = vld [vmem:[#allocation2 + $0x98] sm:$0xff]
      %v4103 = vld [vmem:[#allocation2 + $0xa0] sm:$0xff]
      %v4104 = vld [vmem:[#allocation2 + $0xa8] sm:$0xff]
      %v4105 = vld [vmem:[#allocation2 + $0xb0] sm:$0xff]
      %v4106 = vld [vmem:[#allocation2 + $0xb8] sm:$0xff]
      %v4107 = vld [vmem:[#allocation2 + $0xc0] sm:$0xff]
      %v4108 = vld [vmem:[#allocation2 + $0xc8] sm:$0xff]
      %v4109 = vld [vmem:[#allocation2 + $0xd0] sm:$0xff]
      %v4110 = vld [vmem:[#allocation2 + $0xd8] sm:$0xff]
      %v4111 = vld [vmem:[#allocation2 + $0xe0] sm:$0xff]
      %v4112 = vld [vmem:[#allocation2 + $0xe8] sm:$0xff]
      %v4113 = vld [vmem:[#allocation2 + $0xf0] sm:$0xff]
      %v4114 = vld [vmem:[#allocation2 + $0xf8] sm:$0xff]
      %v4115 = vld [vmem:[#allocation2 + $0x100] sm:$0xff]
      %v4116 = vld [vmem:[#allocation2 + $0x108] sm:$0xff]
      %v4117 = vld [vmem:[#allocation2 + $0x110] sm:$0xff]
      %v4118 = vld [vmem:[#allocation2 + $0x118] sm:$0xff]
      %v4119 = vld [vmem:[#allocation2 + $0x120] sm:$0xff]
      %v4120 = vld [vmem:[#allocation2 + $0x128] sm:$0xff]
      %v4121 = vld [vmem:[#allocation2 + $0x130] sm:$0xff]
      %v4122 = vld [vmem:[#allocation2 + $0x138] sm:$0xff]
      %v4123 = vld [vmem:[#allocation2 + $0x140] sm:$0xff]
      %v4124 = vld [vmem:[#allocation2 + $0x148] sm:$0xff]
      %v4125 = vld [vmem:[#allocation2 + $0x150] sm:$0xff]
      %v4126 = vld [vmem:[#allocation2 + $0x158] sm:$0xff]
      %v4127 = vld [vmem:[#allocation2 + $0x160] sm:$0xff]
      %v4128 = vld [vmem:[#allocation2 + $0x168] sm:$0xff]
      %v4129 = vld [vmem:[#allocation2 + $0x170] sm:$0xff]
      %v4130 = vld [vmem:[#allocation2 + $0x178] sm:$0xff]
      %v4131 = vld [vmem:[#allocation2 + $0x180] sm:$0xff]
      %v4132 = vld [vmem:[#allocation2 + $0x188] sm:$0xff]
      %v4133 = vld [vmem:[#allocation2 + $0x190] sm:$0xff]
      %v4134 = vld [vmem:[#allocation2 + $0x198] sm:$0xff]
      %v4135 = vld [vmem:[#allocation2 + $0x1a0] sm:$0xff]
      %v4136 = vld [vmem:[#allocation2 + $0x1a8] sm:$0xff]
      %v4137 = vld [vmem:[#allocation2 + $0x1b0] sm:$0xff]
      %v4138 = vld [vmem:[#allocation2 + $0x1b8] sm:$0xff]
      %v4139 = vld [vmem:[#allocation2 + $0x1c0] sm:$0xff]
      %v4140 = vld [vmem:[#allocation2 + $0x1c8] sm:$0xff]
      %v4141 = vld [vmem:[#allocation2 + $0x1d0] sm:$0xff]
      %v4142 = vld [vmem:[#allocation2 + $0x1d8] sm:$0xff]
      %v4143 = vld [vmem:[#allocation2 + $0x1e0] sm:$0xff]
      %v4144 = vpack.c.bf16 %v4091, %v4090
      %v4145 = vpack.c.bf16 %v4093, %v4092
      %v4146 = vpack.c.bf16 %v4095, %v4094
      %v4147 = vpack.c.bf16 %v4097, %v4096
      %v4148 = vpack.c.bf16 %v4099, %v4098
      %v4149 = vpack.c.bf16 %v4101, %v4100
      %v4150 = vpack.c.bf16 %v4103, %v4102
      %v4151 = vpack.c.bf16 %v4105, %v4104
      %v4152 = vpack.c.bf16 %v4107, %v4106
      %v4153 = vpack.c.bf16 %v4109, %v4108
      %v4154 = vpack.c.bf16 %v4111, %v4110
      %v4155 = vpack.c.bf16 %v4113, %v4112
      %v4156 = vpack.c.bf16 %v4115, %v4114
      %v4157 = vpack.c.bf16 %v4117, %v4116
      %v4158 = vpack.c.bf16 %v4119, %v4118
      %v4159 = vpack.c.bf16 %v4121, %v4120
      %v4160 = vpack.c.bf16 %v4123, %v4122
      %v4161 = vpack.c.bf16 %v4125, %v4124
      %v4162 = vpack.c.bf16 %v4127, %v4126
      %v4163 = vpack.c.bf16 %v4129, %v4128
      %v4164 = vpack.c.bf16 %v4131, %v4130
      %v4165 = vpack.c.bf16 %v4133, %v4132
      %v4166 = vpack.c.bf16 %v4135, %v4134
      %v4167 = vpack.c.bf16 %v4137, %v4136
      %v4168 = vpack.c.bf16 %v4139, %v4138
      %v4169 = vpack.c.bf16 %v4141, %v4140
      %v4170 = vpack.c.bf16 %v4143, %v4142
      %s4171 = scalar_lea.vmem %s1, 448
      %v4172 = vld [vmem:[%s4171] sm:$0xf]
      %v4173 = vld [vmem:[%s4171 + $0x4] sm:$0xf]
      %v4174 = vld [vmem:[%s4171 + $0x8] sm:$0xf]
      %v4175 = vld [vmem:[%s4171 + $0xc] sm:$0xf]
      %v4176 = vld [vmem:[%s4171 + $0x10] sm:$0xf]
      %v4177 = vld [vmem:[%s4171 + $0x14] sm:$0xf]
      %v4178 = vld [vmem:[%s4171 + $0x18] sm:$0xf]
      %v4179 = vld [vmem:[%s4171 + $0x1c] sm:$0xf]
      %v4180 = vld [vmem:[%s4171 + $0x20] sm:$0xf]
      %v4181 = vld [vmem:[%s4171 + $0x24] sm:$0xf]
      %v4182 = vld [vmem:[%s4171 + $0x28] sm:$0xf]
      %v4183 = vld [vmem:[%s4171 + $0x2c] sm:$0xf]
      %v4184 = vld [vmem:[%s4171 + $0x30] sm:$0xf]
      %v4185 = vld [vmem:[%s4171 + $0x34] sm:$0xf]
      %v4186 = vld [vmem:[%s4171 + $0x38] sm:$0xf]
      %v4187 = vld [vmem:[%s4171 + $0x3c] sm:$0xf]
      %v4204 = vunpack.c.l.b16 %v4172
      %v4205 = vunpack.c.l.b16 %v4173
      %v4206 = vunpack.c.l.b16 %v4174
      %v4207 = vunpack.c.l.b16 %v4175
      %v4208 = vunpack.c.l.b16 %v4176
      %v4209 = vunpack.c.l.b16 %v4177
      %v4210 = vunpack.c.l.b16 %v4178
      %v4211 = vunpack.c.l.b16 %v4179
      %v4212 = vunpack.c.l.b16 %v4180
      %v4213 = vunpack.c.l.b16 %v4181
      %v4214 = vunpack.c.l.b16 %v4182
      %v4215 = vunpack.c.l.b16 %v4183
      %v4216 = vunpack.c.l.b16 %v4184
      %v4217 = vunpack.c.l.b16 %v4185
      %v4218 = vunpack.c.l.b16 %v4186
      %v4219 = vunpack.c.l.b16 %v4187
      %v4220 = vpack.c.b16 %v4205, %v4204
      %v4221 = vpack.c.b16 %v4207, %v4206
      %v4222 = vpack.c.b16 %v4209, %v4208
      %v4223 = vpack.c.b16 %v4211, %v4210
      %v4224 = vpack.c.b16 %v4213, %v4212
      %v4225 = vpack.c.b16 %v4215, %v4214
      %v4226 = vpack.c.b16 %v4217, %v4216
      %v4227 = vpack.c.b16 %v4219, %v4218
      %4236 = vmatprep.subr.bf16.mxu0 0
      %4237 = vmatpush1.bf16.msra.mxu0 %v4227
      %4238 = vmatprep.subr.bf16.mxu0 0
      %4239 = vmatpush1.bf16.msra.mxu0 %v4226
      %4240 = vmatprep.subr.bf16.mxu0 0
      %4241 = vmatpush1.bf16.msra.mxu0 %v4225
      %4242 = vmatprep.subr.bf16.mxu0 0
      %4243 = vmatpush1.bf16.msra.mxu0 %v4224
      %4244 = vmatprep.subr.bf16.mxu0 0
      %4245 = vmatpush1.bf16.msra.mxu0 %v4223
      %4246 = vmatprep.subr.bf16.mxu0 0
      %4247 = vmatpush1.bf16.msra.mxu0 %v4222
      %4248 = vmatprep.subr.bf16.mxu0 0
      %4249 = vmatpush1.bf16.msra.mxu0 %v4221
      %4250 = vmatprep.subr.bf16.mxu0 0
      %4251 = vmatpush1.bf16.msra.mxu0 %v4220
      %4252 = vmatprep.subr.bf16.mxu0 0
      %4253 = vmatpush2.bf16.msra.mxu0 0
      %4254 = vmatprep.subr.bf16.mxu0 0
      %4255 = vmatpush2.bf16.msra.mxu0 0
      %4256 = vmatprep.subr.bf16.mxu0 0
      %4257 = vmatpush2.bf16.msra.mxu0 0
      %4258 = vmatprep.subr.bf16.mxu0 0
      %4259 = vmatpush2.bf16.msra.mxu0 0
      %4260 = vmatprep.subr.bf16.mxu0 0
      %4261 = vmatpush2.bf16.msra.mxu0 0
      %4262 = vmatprep.subr.bf16.mxu0 0
      %4263 = vmatpush2.bf16.msra.mxu0 0
      %4264 = vmatprep.subr.bf16.mxu0 0
      %4265 = vmatpush2.bf16.msra.mxu0 0
      %4266 = vmatprep.subr.bf16.mxu0 0
      %4267 = vmatpush2.bf16.msra.mxu0 0
      %4268 = vmatprep.mubr.bf16.mxu0 0
      %4269 = vmatmul.mubr.bf16.gmra.mxu0 %v4144
      %v4270 = vpop.f32.mrf.mxu0
      %v4271 = vadd.f32 0.0, %v4270
      %v4272 = vpop.f32.mrf.mxu0
      %v4273 = vpop.f32.mrf.mxu0
      %v4274 = vadd.f32 0.0, %v4273
      %v4275 = vpop.f32.mrf.mxu0
      %4276 = vmatprep.mubr.bf16.mxu0 0
      %4277 = vmatmul.mubr.bf16.gmra.mxu0 %v4145
      %v4278 = vpop.f32.mrf.mxu0
      %v4279 = vadd.f32 0.0, %v4278
      %v4280 = vpop.f32.mrf.mxu0
      %v4281 = vpop.f32.mrf.mxu0
      %v4282 = vadd.f32 0.0, %v4281
      %v4283 = vpop.f32.mrf.mxu0
      %4284 = vmatprep.mubr.bf16.mxu0 0
      %4285 = vmatmul.mubr.bf16.gmra.mxu0 %v4146
      %v4286 = vpop.f32.mrf.mxu0
      %v4287 = vadd.f32 0.0, %v4286
      %v4288 = vpop.f32.mrf.mxu0
      %v4289 = vpop.f32.mrf.mxu0
      %v4290 = vadd.f32 0.0, %v4289
      %v4291 = vpop.f32.mrf.mxu0
      %4292 = vmatprep.mubr.bf16.mxu0 0
      %4293 = vmatmul.mubr.bf16.gmra.mxu0 %v4147
      %v4294 = vpop.f32.mrf.mxu0
      %v4295 = vadd.f32 0.0, %v4294
      %v4296 = vpop.f32.mrf.mxu0
      %v4297 = vpop.f32.mrf.mxu0
      %v4298 = vadd.f32 0.0, %v4297
      %v4299 = vpop.f32.mrf.mxu0
      %4300 = vmatprep.mubr.bf16.mxu0 0
      %4301 = vmatmul.mubr.bf16.gmra.mxu0 %v4148
      %v4302 = vpop.f32.mrf.mxu0
      %v4303 = vadd.f32 0.0, %v4302
      %v4304 = vpop.f32.mrf.mxu0
      %v4305 = vpop.f32.mrf.mxu0
      %v4306 = vadd.f32 0.0, %v4305
      %v4307 = vpop.f32.mrf.mxu0
      %4308 = vmatprep.mubr.bf16.mxu0 0
      %4309 = vmatmul.mubr.bf16.gmra.mxu0 %v4149
      %v4310 = vpop.f32.mrf.mxu0
      %v4311 = vadd.f32 0.0, %v4310
      %v4312 = vpop.f32.mrf.mxu0
      %v4313 = vpop.f32.mrf.mxu0
      %v4314 = vadd.f32 0.0, %v4313
      %v4315 = vpop.f32.mrf.mxu0
      %4316 = vmatprep.mubr.bf16.mxu0 0
      %4317 = vmatmul.mubr.bf16.gmra.mxu0 %v4150
      %v4318 = vpop.f32.mrf.mxu0
      %v4319 = vadd.f32 0.0, %v4318
      %v4320 = vpop.f32.mrf.mxu0
      %v4321 = vpop.f32.mrf.mxu0
      %v4322 = vadd.f32 0.0, %v4321
      %v4323 = vpop.f32.mrf.mxu0
      %4324 = vmatprep.mubr.bf16.mxu0 0
      %4325 = vmatmul.mubr.bf16.gmra.mxu0 %v4151
      %v4326 = vpop.f32.mrf.mxu0
      %v4327 = vadd.f32 0.0, %v4326
      %v4328 = vpop.f32.mrf.mxu0
      %v4329 = vpop.f32.mrf.mxu0
      %v4330 = vadd.f32 0.0, %v4329
      %v4331 = vpop.f32.mrf.mxu0
      %4332 = vmatprep.mubr.bf16.mxu0 0
      %4333 = vmatmul.mubr.bf16.gmra.mxu0 %v4152
      %v4334 = vpop.f32.mrf.mxu0
      %v4335 = vadd.f32 0.0, %v4334
      %v4336 = vpop.f32.mrf.mxu0
      %v4337 = vpop.f32.mrf.mxu0
      %v4338 = vadd.f32 0.0, %v4337
      %v4339 = vpop.f32.mrf.mxu0
      %4340 = vmatprep.mubr.bf16.mxu0 0
      %4341 = vmatmul.mubr.bf16.gmra.mxu0 %v4153
      %v4342 = vpop.f32.mrf.mxu0
      %v4343 = vadd.f32 0.0, %v4342
      %v4344 = vpop.f32.mrf.mxu0
      %v4345 = vpop.f32.mrf.mxu0
      %v4346 = vadd.f32 0.0, %v4345
      %v4347 = vpop.f32.mrf.mxu0
      %4348 = vmatprep.mubr.bf16.mxu0 0
      %4349 = vmatmul.mubr.bf16.gmra.mxu0 %v4154
      %v4350 = vpop.f32.mrf.mxu0
      %v4351 = vadd.f32 0.0, %v4350
      %v4352 = vpop.f32.mrf.mxu0
      %v4353 = vpop.f32.mrf.mxu0
      %v4354 = vadd.f32 0.0, %v4353
      %v4355 = vpop.f32.mrf.mxu0
      %4356 = vmatprep.mubr.bf16.mxu0 0
      %4357 = vmatmul.mubr.bf16.gmra.mxu0 %v4155
      %v4358 = vpop.f32.mrf.mxu0
      %v4359 = vadd.f32 0.0, %v4358
      %v4360 = vpop.f32.mrf.mxu0
      %v4361 = vpop.f32.mrf.mxu0
      %v4362 = vadd.f32 0.0, %v4361
      %v4363 = vpop.f32.mrf.mxu0
      %4364 = vmatprep.mubr.bf16.mxu0 0
      %4365 = vmatmul.mubr.bf16.gmra.mxu0 %v4156
      %v4366 = vpop.f32.mrf.mxu0
      %v4367 = vadd.f32 0.0, %v4366
      %v4368 = vpop.f32.mrf.mxu0
      %v4369 = vpop.f32.mrf.mxu0
      %v4370 = vadd.f32 0.0, %v4369
      %v4371 = vpop.f32.mrf.mxu0
      %4372 = vmatprep.mubr.bf16.mxu0 0
      %4373 = vmatmul.mubr.bf16.gmra.mxu0 %v4157
      %v4374 = vpop.f32.mrf.mxu0
      %v4375 = vadd.f32 0.0, %v4374
      %v4376 = vpop.f32.mrf.mxu0
      %v4377 = vpop.f32.mrf.mxu0
      %v4378 = vadd.f32 0.0, %v4377
      %v4379 = vpop.f32.mrf.mxu0
      %4380 = vmatprep.mubr.bf16.mxu0 0
      %4381 = vmatmul.mubr.bf16.gmra.mxu0 %v4158
      %v4382 = vpop.f32.mrf.mxu0
      %v4383 = vadd.f32 0.0, %v4382
      %v4384 = vpop.f32.mrf.mxu0
      %v4385 = vpop.f32.mrf.mxu0
      %v4386 = vadd.f32 0.0, %v4385
      %v4387 = vpop.f32.mrf.mxu0
      %4388 = vmatprep.mubr.bf16.mxu0 0
      %4389 = vmatmul.mubr.bf16.gmra.mxu0 %v4159
      %v4390 = vpop.f32.mrf.mxu0
      %v4391 = vadd.f32 0.0, %v4390
      %v4392 = vpop.f32.mrf.mxu0
      %v4393 = vpop.f32.mrf.mxu0
      %v4394 = vadd.f32 0.0, %v4393
      %v4395 = vpop.f32.mrf.mxu0
      %4396 = vmatprep.mubr.bf16.mxu0 0
      %4397 = vmatmul.mubr.bf16.gmra.mxu0 %v4160
      %v4398 = vpop.f32.mrf.mxu0
      %v4399 = vadd.f32 0.0, %v4398
      %v4400 = vpop.f32.mrf.mxu0
      %v4401 = vpop.f32.mrf.mxu0
      %v4402 = vadd.f32 0.0, %v4401
      %v4403 = vpop.f32.mrf.mxu0
      %4404 = vmatprep.mubr.bf16.mxu0 0
      %4405 = vmatmul.mubr.bf16.gmra.mxu0 %v4161
      %v4406 = vpop.f32.mrf.mxu0
      %v4407 = vadd.f32 0.0, %v4406
      %v4408 = vpop.f32.mrf.mxu0
      %v4409 = vpop.f32.mrf.mxu0
      %v4410 = vadd.f32 0.0, %v4409
      %v4411 = vpop.f32.mrf.mxu0
      %4412 = vmatprep.mubr.bf16.mxu0 0
      %4413 = vmatmul.mubr.bf16.gmra.mxu0 %v4162
      %v4414 = vpop.f32.mrf.mxu0
      %v4415 = vadd.f32 0.0, %v4414
      %v4416 = vpop.f32.mrf.mxu0
      %v4417 = vpop.f32.mrf.mxu0
      %v4418 = vadd.f32 0.0, %v4417
      %v4419 = vpop.f32.mrf.mxu0
      %4420 = vmatprep.mubr.bf16.mxu0 0
      %4421 = vmatmul.mubr.bf16.gmra.mxu0 %v4163
      %v4422 = vpop.f32.mrf.mxu0
      %v4423 = vadd.f32 0.0, %v4422
      %v4424 = vpop.f32.mrf.mxu0
      %v4425 = vpop.f32.mrf.mxu0
      %v4426 = vadd.f32 0.0, %v4425
      %v4427 = vpop.f32.mrf.mxu0
      %4428 = vmatprep.mubr.bf16.mxu0 0
      %4429 = vmatmul.mubr.bf16.gmra.mxu0 %v4164
      %v4430 = vpop.f32.mrf.mxu0
      %v4431 = vadd.f32 0.0, %v4430
      %v4432 = vpop.f32.mrf.mxu0
      %v4433 = vpop.f32.mrf.mxu0
      %v4434 = vadd.f32 0.0, %v4433
      %v4435 = vpop.f32.mrf.mxu0
      %4436 = vmatprep.mubr.bf16.mxu0 0
      %4437 = vmatmul.mubr.bf16.gmra.mxu0 %v4165
      %v4438 = vpop.f32.mrf.mxu0
      %v4439 = vadd.f32 0.0, %v4438
      %v4440 = vpop.f32.mrf.mxu0
      %v4441 = vpop.f32.mrf.mxu0
      %v4442 = vadd.f32 0.0, %v4441
      %v4443 = vpop.f32.mrf.mxu0
      %4444 = vmatprep.mubr.bf16.mxu0 0
      %4445 = vmatmul.mubr.bf16.gmra.mxu0 %v4166
      %v4446 = vpop.f32.mrf.mxu0
      %v4447 = vadd.f32 0.0, %v4446
      %v4448 = vpop.f32.mrf.mxu0
      %v4449 = vpop.f32.mrf.mxu0
      %v4450 = vadd.f32 0.0, %v4449
      %v4451 = vpop.f32.mrf.mxu0
      %4452 = vmatprep.mubr.bf16.mxu0 0
      %4453 = vmatmul.mubr.bf16.gmra.mxu0 %v4167
      %v4454 = vpop.f32.mrf.mxu0
      %v4455 = vadd.f32 0.0, %v4454
      %v4456 = vpop.f32.mrf.mxu0
      %v4457 = vpop.f32.mrf.mxu0
      %v4458 = vadd.f32 0.0, %v4457
      %v4459 = vpop.f32.mrf.mxu0
      %4460 = vmatprep.mubr.bf16.mxu0 0
      %4461 = vmatmul.mubr.bf16.gmra.mxu0 %v4168
      %v4462 = vpop.f32.mrf.mxu0
      %v4463 = vadd.f32 0.0, %v4462
      %v4464 = vpop.f32.mrf.mxu0
      %v4465 = vpop.f32.mrf.mxu0
      %v4466 = vadd.f32 0.0, %v4465
      %v4467 = vpop.f32.mrf.mxu0
      %4468 = vmatprep.mubr.bf16.mxu0 0
      %4469 = vmatmul.mubr.bf16.gmra.mxu0 %v4169
      %v4470 = vpop.f32.mrf.mxu0
      %v4471 = vadd.f32 0.0, %v4470
      %v4472 = vpop.f32.mrf.mxu0
      %v4473 = vpop.f32.mrf.mxu0
      %v4474 = vadd.f32 0.0, %v4473
      %v4475 = vpop.f32.mrf.mxu0
      %4476 = vmatprep.mubr.bf16.mxu0 0
      %4477 = vmatmul.mubr.bf16.gmra.mxu0 %v4170
      %v4478 = vpop.f32.mrf.mxu0
      %v4479 = vadd.f32 0.0, %v4478
      %v4480 = vpop.f32.mrf.mxu0
      %v4481 = vpop.f32.mrf.mxu0
      %v4482 = vadd.f32 0.0, %v4481
      %v4483 = vpop.f32.mrf.mxu0
      %4484 = vdwg.mxu0
      %v4485 = vadd.f32 %v4036, %v4271
      %v4486 = vadd.f32 %v4037, %v4274
      %v4487 = vadd.f32 %v4038, %v4279
      %v4488 = vadd.f32 %v4039, %v4282
      %v4489 = vadd.f32 %v4040, %v4287
      %v4490 = vadd.f32 %v4041, %v4290
      %v4491 = vadd.f32 %v4042, %v4295
      %v4492 = vadd.f32 %v4043, %v4298
      %v4493 = vadd.f32 %v4044, %v4303
      %v4494 = vadd.f32 %v4045, %v4306
      %v4495 = vadd.f32 %v4046, %v4311
      %v4496 = vadd.f32 %v4047, %v4314
      %v4497 = vadd.f32 %v4048, %v4319
      %v4498 = vadd.f32 %v4049, %v4322
      %v4499 = vadd.f32 %v4050, %v4327
      %v4500 = vadd.f32 %v4051, %v4330
      %v4501 = vadd.f32 %v4052, %v4335
      %v4502 = vadd.f32 %v4053, %v4338
      %v4503 = vadd.f32 %v4054, %v4343
      %v4504 = vadd.f32 %v4055, %v4346
      %v4505 = vadd.f32 %v4056, %v4351
      %v4506 = vadd.f32 %v4057, %v4354
      %v4507 = vadd.f32 %v4058, %v4359
      %v4508 = vadd.f32 %v4059, %v4362
      %v4509 = vadd.f32 %v4060, %v4367
      %v4510 = vadd.f32 %v4061, %v4370
      %v4511 = vadd.f32 %v4062, %v4375
      %v4512 = vadd.f32 %v4063, %v4378
      %v4513 = vadd.f32 %v4064, %v4383
      %v4514 = vadd.f32 %v4065, %v4386
      %v4515 = vadd.f32 %v4066, %v4391
      %v4516 = vadd.f32 %v4067, %v4394
      %v4517 = vadd.f32 %v4068, %v4399
      %v4518 = vadd.f32 %v4069, %v4402
      %v4519 = vadd.f32 %v4070, %v4407
      %v4520 = vadd.f32 %v4071, %v4410
      %v4521 = vadd.f32 %v4072, %v4415
      %v4522 = vadd.f32 %v4073, %v4418
      %v4523 = vadd.f32 %v4074, %v4423
      %v4524 = vadd.f32 %v4075, %v4426
      %v4525 = vadd.f32 %v4076, %v4431
      %v4526 = vadd.f32 %v4077, %v4434
      %v4527 = vadd.f32 %v4078, %v4439
      %v4528 = vadd.f32 %v4079, %v4442
      %v4529 = vadd.f32 %v4080, %v4447
      %v4530 = vadd.f32 %v4081, %v4450
      %v4531 = vadd.f32 %v4082, %v4455
      %v4532 = vadd.f32 %v4083, %v4458
      %v4533 = vadd.f32 %v4084, %v4463
      %v4534 = vadd.f32 %v4085, %v4466
      %v4535 = vadd.f32 %v4086, %v4471
      %v4536 = vadd.f32 %v4087, %v4474
      %v4537 = vadd.f32 %v4088, %v4479
      %v4538 = vadd.f32 %v4089, %v4482
      %v4539 = vld [vmem:[#allocation2 + $0x39] sm:$0xff]
      %v4540 = vld [vmem:[#allocation2 + $0x41] sm:$0xff]
      %v4541 = vld [vmem:[#allocation2 + $0x49] sm:$0xff]
      %v4542 = vld [vmem:[#allocation2 + $0x51] sm:$0xff]
      %v4543 = vld [vmem:[#allocation2 + $0x59] sm:$0xff]
      %v4544 = vld [vmem:[#allocation2 + $0x61] sm:$0xff]
      %v4545 = vld [vmem:[#allocation2 + $0x69] sm:$0xff]
      %v4546 = vld [vmem:[#allocation2 + $0x71] sm:$0xff]
      %v4547 = vld [vmem:[#allocation2 + $0x79] sm:$0xff]
      %v4548 = vld [vmem:[#allocation2 + $0x81] sm:$0xff]
      %v4549 = vld [vmem:[#allocation2 + $0x89] sm:$0xff]
      %v4550 = vld [vmem:[#allocation2 + $0x91] sm:$0xff]
      %v4551 = vld [vmem:[#allocation2 + $0x99] sm:$0xff]
      %v4552 = vld [vmem:[#allocation2 + $0xa1] sm:$0xff]
      %v4553 = vld [vmem:[#allocation2 + $0xa9] sm:$0xff]
      %v4554 = vld [vmem:[#allocation2 + $0xb1] sm:$0xff]
      %v4555 = vld [vmem:[#allocation2 + $0xb9] sm:$0xff]
      %v4556 = vld [vmem:[#allocation2 + $0xc1] sm:$0xff]
      %v4557 = vld [vmem:[#allocation2 + $0xc9] sm:$0xff]
      %v4558 = vld [vmem:[#allocation2 + $0xd1] sm:$0xff]
      %v4559 = vld [vmem:[#allocation2 + $0xd9] sm:$0xff]
      %v4560 = vld [vmem:[#allocation2 + $0xe1] sm:$0xff]
      %v4561 = vld [vmem:[#allocation2 + $0xe9] sm:$0xff]
      %v4562 = vld [vmem:[#allocation2 + $0xf1] sm:$0xff]
      %v4563 = vld [vmem:[#allocation2 + $0xf9] sm:$0xff]
      %v4564 = vld [vmem:[#allocation2 + $0x101] sm:$0xff]
      %v4565 = vld [vmem:[#allocation2 + $0x109] sm:$0xff]
      %v4566 = vld [vmem:[#allocation2 + $0x111] sm:$0xff]
      %v4567 = vld [vmem:[#allocation2 + $0x119] sm:$0xff]
      %v4568 = vld [vmem:[#allocation2 + $0x121] sm:$0xff]
      %v4569 = vld [vmem:[#allocation2 + $0x129] sm:$0xff]
      %v4570 = vld [vmem:[#allocation2 + $0x131] sm:$0xff]
      %v4571 = vld [vmem:[#allocation2 + $0x139] sm:$0xff]
      %v4572 = vld [vmem:[#allocation2 + $0x141] sm:$0xff]
      %v4573 = vld [vmem:[#allocation2 + $0x149] sm:$0xff]
      %v4574 = vld [vmem:[#allocation2 + $0x151] sm:$0xff]
      %v4575 = vld [vmem:[#allocation2 + $0x159] sm:$0xff]
      %v4576 = vld [vmem:[#allocation2 + $0x161] sm:$0xff]
      %v4577 = vld [vmem:[#allocation2 + $0x169] sm:$0xff]
      %v4578 = vld [vmem:[#allocation2 + $0x171] sm:$0xff]
      %v4579 = vld [vmem:[#allocation2 + $0x179] sm:$0xff]
      %v4580 = vld [vmem:[#allocation2 + $0x181] sm:$0xff]
      %v4581 = vld [vmem:[#allocation2 + $0x189] sm:$0xff]
      %v4582 = vld [vmem:[#allocation2 + $0x191] sm:$0xff]
      %v4583 = vld [vmem:[#allocation2 + $0x199] sm:$0xff]
      %v4584 = vld [vmem:[#allocation2 + $0x1a1] sm:$0xff]
      %v4585 = vld [vmem:[#allocation2 + $0x1a9] sm:$0xff]
      %v4586 = vld [vmem:[#allocation2 + $0x1b1] sm:$0xff]
      %v4587 = vld [vmem:[#allocation2 + $0x1b9] sm:$0xff]
      %v4588 = vld [vmem:[#allocation2 + $0x1c1] sm:$0xff]
      %v4589 = vld [vmem:[#allocation2 + $0x1c9] sm:$0xff]
      %v4590 = vld [vmem:[#allocation2 + $0x1d1] sm:$0xff]
      %v4591 = vld [vmem:[#allocation2 + $0x1d9] sm:$0xff]
      %v4592 = vld [vmem:[#allocation2 + $0x1e1] sm:$0xff]
      %v4593 = vpack.c.bf16 %v4540, %v4539
      %v4594 = vpack.c.bf16 %v4542, %v4541
      %v4595 = vpack.c.bf16 %v4544, %v4543
      %v4596 = vpack.c.bf16 %v4546, %v4545
      %v4597 = vpack.c.bf16 %v4548, %v4547
      %v4598 = vpack.c.bf16 %v4550, %v4549
      %v4599 = vpack.c.bf16 %v4552, %v4551
      %v4600 = vpack.c.bf16 %v4554, %v4553
      %v4601 = vpack.c.bf16 %v4556, %v4555
      %v4602 = vpack.c.bf16 %v4558, %v4557
      %v4603 = vpack.c.bf16 %v4560, %v4559
      %v4604 = vpack.c.bf16 %v4562, %v4561
      %v4605 = vpack.c.bf16 %v4564, %v4563
      %v4606 = vpack.c.bf16 %v4566, %v4565
      %v4607 = vpack.c.bf16 %v4568, %v4567
      %v4608 = vpack.c.bf16 %v4570, %v4569
      %v4609 = vpack.c.bf16 %v4572, %v4571
      %v4610 = vpack.c.bf16 %v4574, %v4573
      %v4611 = vpack.c.bf16 %v4576, %v4575
      %v4612 = vpack.c.bf16 %v4578, %v4577
      %v4613 = vpack.c.bf16 %v4580, %v4579
      %v4614 = vpack.c.bf16 %v4582, %v4581
      %v4615 = vpack.c.bf16 %v4584, %v4583
      %v4616 = vpack.c.bf16 %v4586, %v4585
      %v4617 = vpack.c.bf16 %v4588, %v4587
      %v4618 = vpack.c.bf16 %v4590, %v4589
      %v4619 = vpack.c.bf16 %v4592, %v4591
      %s4620 = scalar_lea.vmem %s1, 512
      %v4621 = vld [vmem:[%s4620] sm:$0xf]
      %v4622 = vld [vmem:[%s4620 + $0x4] sm:$0xf]
      %v4623 = vld [vmem:[%s4620 + $0x8] sm:$0xf]
      %v4624 = vld [vmem:[%s4620 + $0xc] sm:$0xf]
      %v4625 = vld [vmem:[%s4620 + $0x10] sm:$0xf]
      %v4626 = vld [vmem:[%s4620 + $0x14] sm:$0xf]
      %v4627 = vld [vmem:[%s4620 + $0x18] sm:$0xf]
      %v4628 = vld [vmem:[%s4620 + $0x1c] sm:$0xf]
      %v4629 = vld [vmem:[%s4620 + $0x20] sm:$0xf]
      %v4630 = vld [vmem:[%s4620 + $0x24] sm:$0xf]
      %v4631 = vld [vmem:[%s4620 + $0x28] sm:$0xf]
      %v4632 = vld [vmem:[%s4620 + $0x2c] sm:$0xf]
      %v4633 = vld [vmem:[%s4620 + $0x30] sm:$0xf]
      %v4634 = vld [vmem:[%s4620 + $0x34] sm:$0xf]
      %v4635 = vld [vmem:[%s4620 + $0x38] sm:$0xf]
      %v4636 = vld [vmem:[%s4620 + $0x3c] sm:$0xf]
      %v4653 = vunpack.c.l.b16 %v4621
      %v4654 = vunpack.c.l.b16 %v4622
      %v4655 = vunpack.c.l.b16 %v4623
      %v4656 = vunpack.c.l.b16 %v4624
      %v4657 = vunpack.c.l.b16 %v4625
      %v4658 = vunpack.c.l.b16 %v4626
      %v4659 = vunpack.c.l.b16 %v4627
      %v4660 = vunpack.c.l.b16 %v4628
      %v4661 = vunpack.c.l.b16 %v4629
      %v4662 = vunpack.c.l.b16 %v4630
      %v4663 = vunpack.c.l.b16 %v4631
      %v4664 = vunpack.c.l.b16 %v4632
      %v4665 = vunpack.c.l.b16 %v4633
      %v4666 = vunpack.c.l.b16 %v4634
      %v4667 = vunpack.c.l.b16 %v4635
      %v4668 = vunpack.c.l.b16 %v4636
      %v4669 = vpack.c.b16 %v4654, %v4653
      %v4670 = vpack.c.b16 %v4656, %v4655
      %v4671 = vpack.c.b16 %v4658, %v4657
      %v4672 = vpack.c.b16 %v4660, %v4659
      %v4673 = vpack.c.b16 %v4662, %v4661
      %v4674 = vpack.c.b16 %v4664, %v4663
      %v4675 = vpack.c.b16 %v4666, %v4665
      %v4676 = vpack.c.b16 %v4668, %v4667
      %4685 = vmatprep.subr.bf16.mxu0 0
      %4686 = vmatpush1.bf16.msra.mxu0 %v4676
      %4687 = vmatprep.subr.bf16.mxu0 0
      %4688 = vmatpush1.bf16.msra.mxu0 %v4675
      %4689 = vmatprep.subr.bf16.mxu0 0
      %4690 = vmatpush1.bf16.msra.mxu0 %v4674
      %4691 = vmatprep.subr.bf16.mxu0 0
      %4692 = vmatpush1.bf16.msra.mxu0 %v4673
      %4693 = vmatprep.subr.bf16.mxu0 0
      %4694 = vmatpush1.bf16.msra.mxu0 %v4672
      %4695 = vmatprep.subr.bf16.mxu0 0
      %4696 = vmatpush1.bf16.msra.mxu0 %v4671
      %4697 = vmatprep.subr.bf16.mxu0 0
      %4698 = vmatpush1.bf16.msra.mxu0 %v4670
      %4699 = vmatprep.subr.bf16.mxu0 0
      %4700 = vmatpush1.bf16.msra.mxu0 %v4669
      %4701 = vmatprep.subr.bf16.mxu0 0
      %4702 = vmatpush2.bf16.msra.mxu0 0
      %4703 = vmatprep.subr.bf16.mxu0 0
      %4704 = vmatpush2.bf16.msra.mxu0 0
      %4705 = vmatprep.subr.bf16.mxu0 0
      %4706 = vmatpush2.bf16.msra.mxu0 0
      %4707 = vmatprep.subr.bf16.mxu0 0
      %4708 = vmatpush2.bf16.msra.mxu0 0
      %4709 = vmatprep.subr.bf16.mxu0 0
      %4710 = vmatpush2.bf16.msra.mxu0 0
      %4711 = vmatprep.subr.bf16.mxu0 0
      %4712 = vmatpush2.bf16.msra.mxu0 0
      %4713 = vmatprep.subr.bf16.mxu0 0
      %4714 = vmatpush2.bf16.msra.mxu0 0
      %4715 = vmatprep.subr.bf16.mxu0 0
      %4716 = vmatpush2.bf16.msra.mxu0 0
      %4717 = vmatprep.mubr.bf16.mxu0 0
      %4718 = vmatmul.mubr.bf16.gmra.mxu0 %v4593
      %v4719 = vpop.f32.mrf.mxu0
      %v4720 = vadd.f32 0.0, %v4719
      %v4721 = vpop.f32.mrf.mxu0
      %v4722 = vpop.f32.mrf.mxu0
      %v4723 = vadd.f32 0.0, %v4722
      %v4724 = vpop.f32.mrf.mxu0
      %4725 = vmatprep.mubr.bf16.mxu0 0
      %4726 = vmatmul.mubr.bf16.gmra.mxu0 %v4594
      %v4727 = vpop.f32.mrf.mxu0
      %v4728 = vadd.f32 0.0, %v4727
      %v4729 = vpop.f32.mrf.mxu0
      %v4730 = vpop.f32.mrf.mxu0
      %v4731 = vadd.f32 0.0, %v4730
      %v4732 = vpop.f32.mrf.mxu0
      %4733 = vmatprep.mubr.bf16.mxu0 0
      %4734 = vmatmul.mubr.bf16.gmra.mxu0 %v4595
      %v4735 = vpop.f32.mrf.mxu0
      %v4736 = vadd.f32 0.0, %v4735
      %v4737 = vpop.f32.mrf.mxu0
      %v4738 = vpop.f32.mrf.mxu0
      %v4739 = vadd.f32 0.0, %v4738
      %v4740 = vpop.f32.mrf.mxu0
      %4741 = vmatprep.mubr.bf16.mxu0 0
      %4742 = vmatmul.mubr.bf16.gmra.mxu0 %v4596
      %v4743 = vpop.f32.mrf.mxu0
      %v4744 = vadd.f32 0.0, %v4743
      %v4745 = vpop.f32.mrf.mxu0
      %v4746 = vpop.f32.mrf.mxu0
      %v4747 = vadd.f32 0.0, %v4746
      %v4748 = vpop.f32.mrf.mxu0
      %4749 = vmatprep.mubr.bf16.mxu0 0
      %4750 = vmatmul.mubr.bf16.gmra.mxu0 %v4597
      %v4751 = vpop.f32.mrf.mxu0
      %v4752 = vadd.f32 0.0, %v4751
      %v4753 = vpop.f32.mrf.mxu0
      %v4754 = vpop.f32.mrf.mxu0
      %v4755 = vadd.f32 0.0, %v4754
      %v4756 = vpop.f32.mrf.mxu0
      %4757 = vmatprep.mubr.bf16.mxu0 0
      %4758 = vmatmul.mubr.bf16.gmra.mxu0 %v4598
      %v4759 = vpop.f32.mrf.mxu0
      %v4760 = vadd.f32 0.0, %v4759
      %v4761 = vpop.f32.mrf.mxu0
      %v4762 = vpop.f32.mrf.mxu0
      %v4763 = vadd.f32 0.0, %v4762
      %v4764 = vpop.f32.mrf.mxu0
      %4765 = vmatprep.mubr.bf16.mxu0 0
      %4766 = vmatmul.mubr.bf16.gmra.mxu0 %v4599
      %v4767 = vpop.f32.mrf.mxu0
      %v4768 = vadd.f32 0.0, %v4767
      %v4769 = vpop.f32.mrf.mxu0
      %v4770 = vpop.f32.mrf.mxu0
      %v4771 = vadd.f32 0.0, %v4770
      %v4772 = vpop.f32.mrf.mxu0
      %4773 = vmatprep.mubr.bf16.mxu0 0
      %4774 = vmatmul.mubr.bf16.gmra.mxu0 %v4600
      %v4775 = vpop.f32.mrf.mxu0
      %v4776 = vadd.f32 0.0, %v4775
      %v4777 = vpop.f32.mrf.mxu0
      %v4778 = vpop.f32.mrf.mxu0
      %v4779 = vadd.f32 0.0, %v4778
      %v4780 = vpop.f32.mrf.mxu0
      %4781 = vmatprep.mubr.bf16.mxu0 0
      %4782 = vmatmul.mubr.bf16.gmra.mxu0 %v4601
      %v4783 = vpop.f32.mrf.mxu0
      %v4784 = vadd.f32 0.0, %v4783
      %v4785 = vpop.f32.mrf.mxu0
      %v4786 = vpop.f32.mrf.mxu0
      %v4787 = vadd.f32 0.0, %v4786
      %v4788 = vpop.f32.mrf.mxu0
      %4789 = vmatprep.mubr.bf16.mxu0 0
      %4790 = vmatmul.mubr.bf16.gmra.mxu0 %v4602
      %v4791 = vpop.f32.mrf.mxu0
      %v4792 = vadd.f32 0.0, %v4791
      %v4793 = vpop.f32.mrf.mxu0
      %v4794 = vpop.f32.mrf.mxu0
      %v4795 = vadd.f32 0.0, %v4794
      %v4796 = vpop.f32.mrf.mxu0
      %4797 = vmatprep.mubr.bf16.mxu0 0
      %4798 = vmatmul.mubr.bf16.gmra.mxu0 %v4603
      %v4799 = vpop.f32.mrf.mxu0
      %v4800 = vadd.f32 0.0, %v4799
      %v4801 = vpop.f32.mrf.mxu0
      %v4802 = vpop.f32.mrf.mxu0
      %v4803 = vadd.f32 0.0, %v4802
      %v4804 = vpop.f32.mrf.mxu0
      %4805 = vmatprep.mubr.bf16.mxu0 0
      %4806 = vmatmul.mubr.bf16.gmra.mxu0 %v4604
      %v4807 = vpop.f32.mrf.mxu0
      %v4808 = vadd.f32 0.0, %v4807
      %v4809 = vpop.f32.mrf.mxu0
      %v4810 = vpop.f32.mrf.mxu0
      %v4811 = vadd.f32 0.0, %v4810
      %v4812 = vpop.f32.mrf.mxu0
      %4813 = vmatprep.mubr.bf16.mxu0 0
      %4814 = vmatmul.mubr.bf16.gmra.mxu0 %v4605
      %v4815 = vpop.f32.mrf.mxu0
      %v4816 = vadd.f32 0.0, %v4815
      %v4817 = vpop.f32.mrf.mxu0
      %v4818 = vpop.f32.mrf.mxu0
      %v4819 = vadd.f32 0.0, %v4818
      %v4820 = vpop.f32.mrf.mxu0
      %4821 = vmatprep.mubr.bf16.mxu0 0
      %4822 = vmatmul.mubr.bf16.gmra.mxu0 %v4606
      %v4823 = vpop.f32.mrf.mxu0
      %v4824 = vadd.f32 0.0, %v4823
      %v4825 = vpop.f32.mrf.mxu0
      %v4826 = vpop.f32.mrf.mxu0
      %v4827 = vadd.f32 0.0, %v4826
      %v4828 = vpop.f32.mrf.mxu0
      %4829 = vmatprep.mubr.bf16.mxu0 0
      %4830 = vmatmul.mubr.bf16.gmra.mxu0 %v4607
      %v4831 = vpop.f32.mrf.mxu0
      %v4832 = vadd.f32 0.0, %v4831
      %v4833 = vpop.f32.mrf.mxu0
      %v4834 = vpop.f32.mrf.mxu0
      %v4835 = vadd.f32 0.0, %v4834
      %v4836 = vpop.f32.mrf.mxu0
      %4837 = vmatprep.mubr.bf16.mxu0 0
      %4838 = vmatmul.mubr.bf16.gmra.mxu0 %v4608
      %v4839 = vpop.f32.mrf.mxu0
      %v4840 = vadd.f32 0.0, %v4839
      %v4841 = vpop.f32.mrf.mxu0
      %v4842 = vpop.f32.mrf.mxu0
      %v4843 = vadd.f32 0.0, %v4842
      %v4844 = vpop.f32.mrf.mxu0
      %4845 = vmatprep.mubr.bf16.mxu0 0
      %4846 = vmatmul.mubr.bf16.gmra.mxu0 %v4609
      %v4847 = vpop.f32.mrf.mxu0
      %v4848 = vadd.f32 0.0, %v4847
      %v4849 = vpop.f32.mrf.mxu0
      %v4850 = vpop.f32.mrf.mxu0
      %v4851 = vadd.f32 0.0, %v4850
      %v4852 = vpop.f32.mrf.mxu0
      %4853 = vmatprep.mubr.bf16.mxu0 0
      %4854 = vmatmul.mubr.bf16.gmra.mxu0 %v4610
      %v4855 = vpop.f32.mrf.mxu0
      %v4856 = vadd.f32 0.0, %v4855
      %v4857 = vpop.f32.mrf.mxu0
      %v4858 = vpop.f32.mrf.mxu0
      %v4859 = vadd.f32 0.0, %v4858
      %v4860 = vpop.f32.mrf.mxu0
      %4861 = vmatprep.mubr.bf16.mxu0 0
      %4862 = vmatmul.mubr.bf16.gmra.mxu0 %v4611
      %v4863 = vpop.f32.mrf.mxu0
      %v4864 = vadd.f32 0.0, %v4863
      %v4865 = vpop.f32.mrf.mxu0
      %v4866 = vpop.f32.mrf.mxu0
      %v4867 = vadd.f32 0.0, %v4866
      %v4868 = vpop.f32.mrf.mxu0
      %4869 = vmatprep.mubr.bf16.mxu0 0
      %4870 = vmatmul.mubr.bf16.gmra.mxu0 %v4612
      %v4871 = vpop.f32.mrf.mxu0
      %v4872 = vadd.f32 0.0, %v4871
      %v4873 = vpop.f32.mrf.mxu0
      %v4874 = vpop.f32.mrf.mxu0
      %v4875 = vadd.f32 0.0, %v4874
      %v4876 = vpop.f32.mrf.mxu0
      %4877 = vmatprep.mubr.bf16.mxu0 0
      %4878 = vmatmul.mubr.bf16.gmra.mxu0 %v4613
      %v4879 = vpop.f32.mrf.mxu0
      %v4880 = vadd.f32 0.0, %v4879
      %v4881 = vpop.f32.mrf.mxu0
      %v4882 = vpop.f32.mrf.mxu0
      %v4883 = vadd.f32 0.0, %v4882
      %v4884 = vpop.f32.mrf.mxu0
      %4885 = vmatprep.mubr.bf16.mxu0 0
      %4886 = vmatmul.mubr.bf16.gmra.mxu0 %v4614
      %v4887 = vpop.f32.mrf.mxu0
      %v4888 = vadd.f32 0.0, %v4887
      %v4889 = vpop.f32.mrf.mxu0
      %v4890 = vpop.f32.mrf.mxu0
      %v4891 = vadd.f32 0.0, %v4890
      %v4892 = vpop.f32.mrf.mxu0
      %4893 = vmatprep.mubr.bf16.mxu0 0
      %4894 = vmatmul.mubr.bf16.gmra.mxu0 %v4615
      %v4895 = vpop.f32.mrf.mxu0
      %v4896 = vadd.f32 0.0, %v4895
      %v4897 = vpop.f32.mrf.mxu0
      %v4898 = vpop.f32.mrf.mxu0
      %v4899 = vadd.f32 0.0, %v4898
      %v4900 = vpop.f32.mrf.mxu0
      %4901 = vmatprep.mubr.bf16.mxu0 0
      %4902 = vmatmul.mubr.bf16.gmra.mxu0 %v4616
      %v4903 = vpop.f32.mrf.mxu0
      %v4904 = vadd.f32 0.0, %v4903
      %v4905 = vpop.f32.mrf.mxu0
      %v4906 = vpop.f32.mrf.mxu0
      %v4907 = vadd.f32 0.0, %v4906
      %v4908 = vpop.f32.mrf.mxu0
      %4909 = vmatprep.mubr.bf16.mxu0 0
      %4910 = vmatmul.mubr.bf16.gmra.mxu0 %v4617
      %v4911 = vpop.f32.mrf.mxu0
      %v4912 = vadd.f32 0.0, %v4911
      %v4913 = vpop.f32.mrf.mxu0
      %v4914 = vpop.f32.mrf.mxu0
      %v4915 = vadd.f32 0.0, %v4914
      %v4916 = vpop.f32.mrf.mxu0
      %4917 = vmatprep.mubr.bf16.mxu0 0
      %4918 = vmatmul.mubr.bf16.gmra.mxu0 %v4618
      %v4919 = vpop.f32.mrf.mxu0
      %v4920 = vadd.f32 0.0, %v4919
      %v4921 = vpop.f32.mrf.mxu0
      %v4922 = vpop.f32.mrf.mxu0
      %v4923 = vadd.f32 0.0, %v4922
      %v4924 = vpop.f32.mrf.mxu0
      %4925 = vmatprep.mubr.bf16.mxu0 0
      %4926 = vmatmul.mubr.bf16.gmra.mxu0 %v4619
      %v4927 = vpop.f32.mrf.mxu0
      %v4928 = vadd.f32 0.0, %v4927
      %v4929 = vpop.f32.mrf.mxu0
      %v4930 = vpop.f32.mrf.mxu0
      %v4931 = vadd.f32 0.0, %v4930
      %v4932 = vpop.f32.mrf.mxu0
      %4933 = vdwg.mxu0
      %v4934 = vadd.f32 %v4485, %v4720
      %v4935 = vadd.f32 %v4486, %v4723
      %v4936 = vadd.f32 %v4487, %v4728
      %v4937 = vadd.f32 %v4488, %v4731
      %v4938 = vadd.f32 %v4489, %v4736
      %v4939 = vadd.f32 %v4490, %v4739
      %v4940 = vadd.f32 %v4491, %v4744
      %v4941 = vadd.f32 %v4492, %v4747
      %v4942 = vadd.f32 %v4493, %v4752
      %v4943 = vadd.f32 %v4494, %v4755
      %v4944 = vadd.f32 %v4495, %v4760
      %v4945 = vadd.f32 %v4496, %v4763
      %v4946 = vadd.f32 %v4497, %v4768
      %v4947 = vadd.f32 %v4498, %v4771
      %v4948 = vadd.f32 %v4499, %v4776
      %v4949 = vadd.f32 %v4500, %v4779
      %v4950 = vadd.f32 %v4501, %v4784
      %v4951 = vadd.f32 %v4502, %v4787
      %v4952 = vadd.f32 %v4503, %v4792
      %v4953 = vadd.f32 %v4504, %v4795
      %v4954 = vadd.f32 %v4505, %v4800
      %v4955 = vadd.f32 %v4506, %v4803
      %v4956 = vadd.f32 %v4507, %v4808
      %v4957 = vadd.f32 %v4508, %v4811
      %v4958 = vadd.f32 %v4509, %v4816
      %v4959 = vadd.f32 %v4510, %v4819
      %v4960 = vadd.f32 %v4511, %v4824
      %v4961 = vadd.f32 %v4512, %v4827
      %v4962 = vadd.f32 %v4513, %v4832
      %v4963 = vadd.f32 %v4514, %v4835
      %v4964 = vadd.f32 %v4515, %v4840
      %v4965 = vadd.f32 %v4516, %v4843
      %v4966 = vadd.f32 %v4517, %v4848
      %v4967 = vadd.f32 %v4518, %v4851
      %v4968 = vadd.f32 %v4519, %v4856
      %v4969 = vadd.f32 %v4520, %v4859
      %v4970 = vadd.f32 %v4521, %v4864
      %v4971 = vadd.f32 %v4522, %v4867
      %v4972 = vadd.f32 %v4523, %v4872
      %v4973 = vadd.f32 %v4524, %v4875
      %v4974 = vadd.f32 %v4525, %v4880
      %v4975 = vadd.f32 %v4526, %v4883
      %v4976 = vadd.f32 %v4527, %v4888
      %v4977 = vadd.f32 %v4528, %v4891
      %v4978 = vadd.f32 %v4529, %v4896
      %v4979 = vadd.f32 %v4530, %v4899
      %v4980 = vadd.f32 %v4531, %v4904
      %v4981 = vadd.f32 %v4532, %v4907
      %v4982 = vadd.f32 %v4533, %v4912
      %v4983 = vadd.f32 %v4534, %v4915
      %v4984 = vadd.f32 %v4535, %v4920
      %v4985 = vadd.f32 %v4536, %v4923
      %v4986 = vadd.f32 %v4537, %v4928
      %v4987 = vadd.f32 %v4538, %v4931
      %v4988 = vsel %vm541, %v4934, 0.0
      %v4989 = vsel %vm542, %v4935, 0.0
      %v4990 = vsel %vm543, %v4936, 0.0
      %v4991 = vsel %vm544, %v4937, 0.0
      %v4992 = vsel %vm545, %v4938, 0.0
      %v4993 = vsel %vm546, %v4939, 0.0
      %v4994 = vsel %vm547, %v4940, 0.0
      %v4995 = vsel %vm548, %v4941, 0.0
      %v4996 = vsel %vm549, %v4942, 0.0
      %v4997 = vsel %vm550, %v4943, 0.0
      %v4998 = vsel %vm551, %v4944, 0.0
      %v4999 = vsel %vm552, %v4945, 0.0
      %v5000 = vsel %vm553, %v4946, 0.0
      %v5001 = vsel %vm554, %v4947, 0.0
      %v5002 = vsel %vm555, %v4948, 0.0
      %v5003 = vsel %vm556, %v4949, 0.0
      %v5004 = vsel %vm557, %v4950, 0.0
      %v5005 = vsel %vm558, %v4951, 0.0
      %v5006 = vsel %vm559, %v4952, 0.0
      %v5007 = vsel %vm560, %v4953, 0.0
      %v5008 = vsel %vm561, %v4954, 0.0
      %v5009 = vsel %vm562, %v4955, 0.0
      %v5010 = vsel %vm563, %v4956, 0.0
      %v5011 = vsel %vm564, %v4957, 0.0
      %v5012 = vsel %vm565, %v4958, 0.0
      %v5013 = vsel %vm566, %v4959, 0.0
      %v5014 = vsel %vm567, %v4960, 0.0
      %v5015 = vsel %vm568, %v4961, 0.0
      %v5016 = vsel %vm569, %v4962, 0.0
      %v5017 = vsel %vm570, %v4963, 0.0
      %v5018 = vsel %vm571, %v4964, 0.0
      %v5019 = vsel %vm572, %v4965, 0.0
      %v5020 = vsel %vm573, %v4966, 0.0
      %v5021 = vsel %vm574, %v4967, 0.0
      %v5022 = vsel %vm575, %v4968, 0.0
      %v5023 = vsel %vm576, %v4969, 0.0
      %v5024 = vsel %vm577, %v4970, 0.0
      %v5025 = vsel %vm578, %v4971, 0.0
      %v5026 = vsel %vm579, %v4972, 0.0
      %v5027 = vsel %vm580, %v4973, 0.0
      %v5028 = vsel %vm581, %v4974, 0.0
      %v5029 = vsel %vm582, %v4975, 0.0
      %v5030 = vsel %vm583, %v4976, 0.0
      %v5031 = vsel %vm584, %v4977, 0.0
      %v5032 = vsel %vm585, %v4978, 0.0
      %v5033 = vsel %vm586, %v4979, 0.0
      %v5034 = vsel %vm587, %v4980, 0.0
      %v5035 = vsel %vm588, %v4981, 0.0
      %v5036 = vsel %vm589, %v4982, 0.0
      %v5037 = vsel %vm590, %v4983, 0.0
      %v5038 = vsel %vm591, %v4984, 0.0
      %v5039 = vsel %vm592, %v4985, 0.0
      %v5040 = vsel %vm593, %v4986, 0.0
      %v5041 = vsel %vm594, %v4987, 0.0
      %v5042 = vadd.f32 %v4988, %v4989
      %v5043 = vadd.f32 %v5042, %v4990
      %v5044 = vadd.f32 %v5043, %v4991
      %v5045 = vadd.f32 %v5044, %v4992
      %v5046 = vadd.f32 %v5045, %v4993
      %v5047 = vadd.f32 %v5046, %v4994
      %v5048 = vadd.f32 %v5047, %v4995
      %v5049 = vadd.f32 %v5048, %v4996
      %v5050 = vadd.f32 %v5049, %v4997
      %v5051 = vadd.f32 %v5050, %v4998
      %v5052 = vadd.f32 %v5051, %v4999
      %v5053 = vadd.f32 %v5052, %v5000
      %v5054 = vadd.f32 %v5053, %v5001
      %v5055 = vadd.f32 %v5054, %v5002
      %v5056 = vadd.f32 %v5055, %v5003
      %v5057 = vadd.f32 %v5056, %v5004
      %v5058 = vadd.f32 %v5057, %v5005
      %v5059 = vadd.f32 %v5058, %v5006
      %v5060 = vadd.f32 %v5059, %v5007
      %v5061 = vadd.f32 %v5060, %v5008
      %v5062 = vadd.f32 %v5061, %v5009
      %v5063 = vadd.f32 %v5062, %v5010
      %v5064 = vadd.f32 %v5063, %v5011
      %v5065 = vadd.f32 %v5064, %v5012
      %v5066 = vadd.f32 %v5065, %v5013
      %v5067 = vadd.f32 %v5066, %v5014
      %v5068 = vadd.f32 %v5067, %v5015
      %v5069 = vadd.f32 %v5068, %v5016
      %v5070 = vadd.f32 %v5069, %v5017
      %v5071 = vadd.f32 %v5070, %v5018
      %v5072 = vadd.f32 %v5071, %v5019
      %v5073 = vadd.f32 %v5072, %v5020
      %v5074 = vadd.f32 %v5073, %v5021
      %v5075 = vadd.f32 %v5074, %v5022
      %v5076 = vadd.f32 %v5075, %v5023
      %v5077 = vadd.f32 %v5076, %v5024
      %v5078 = vadd.f32 %v5077, %v5025
      %v5079 = vadd.f32 %v5078, %v5026
      %v5080 = vadd.f32 %v5079, %v5027
      %v5081 = vadd.f32 %v5080, %v5028
      %v5082 = vadd.f32 %v5081, %v5029
      %v5083 = vadd.f32 %v5082, %v5030
      %v5084 = vadd.f32 %v5083, %v5031
      %v5085 = vadd.f32 %v5084, %v5032
      %v5086 = vadd.f32 %v5085, %v5033
      %v5087 = vadd.f32 %v5086, %v5034
      %v5088 = vadd.f32 %v5087, %v5035
      %v5089 = vadd.f32 %v5088, %v5036
      %v5090 = vadd.f32 %v5089, %v5037
      %v5091 = vadd.f32 %v5090, %v5038
      %v5092 = vadd.f32 %v5091, %v5039
      %v5093 = vadd.f32 %v5092, %v5040
      %v5094 = vadd.f32 %v5093, %v5041
      %v5095 = vrot.slane %v5094, 4
      %v5096 = vadd.f32 %v5094, %v5095
      %v5097 = vrot.slane %v5096, 2
      %v5098 = vadd.f32 %v5096, %v5097
      %v5099 = vrot.slane %v5098, 1
      %v5100 = vadd.f32 %v5098, %v5099
      %5101 = vst [vmem:[%s262] sm:$0x1] %v5100
      %v5102 = vmul.f32 %v4988, %v4988
      %v5103 = vmul.f32 %v4989, %v4989
      %v5104 = vmul.f32 %v4990, %v4990
      %v5105 = vmul.f32 %v4991, %v4991
      %v5106 = vmul.f32 %v4992, %v4992
      %v5107 = vmul.f32 %v4993, %v4993
      %v5108 = vmul.f32 %v4994, %v4994
      %v5109 = vmul.f32 %v4995, %v4995
      %v5110 = vmul.f32 %v4996, %v4996
      %v5111 = vmul.f32 %v4997, %v4997
      %v5112 = vmul.f32 %v4998, %v4998
      %v5113 = vmul.f32 %v4999, %v4999
      %v5114 = vmul.f32 %v5000, %v5000
      %v5115 = vmul.f32 %v5001, %v5001
      %v5116 = vmul.f32 %v5002, %v5002
      %v5117 = vmul.f32 %v5003, %v5003
      %v5118 = vmul.f32 %v5004, %v5004
      %v5119 = vmul.f32 %v5005, %v5005
      %v5120 = vmul.f32 %v5006, %v5006
      %v5121 = vmul.f32 %v5007, %v5007
      %v5122 = vmul.f32 %v5008, %v5008
      %v5123 = vmul.f32 %v5009, %v5009
      %v5124 = vmul.f32 %v5010, %v5010
      %v5125 = vmul.f32 %v5011, %v5011
      %v5126 = vmul.f32 %v5012, %v5012
      %v5127 = vmul.f32 %v5013, %v5013
      %v5128 = vmul.f32 %v5014, %v5014
      %v5129 = vmul.f32 %v5015, %v5015
      %v5130 = vmul.f32 %v5016, %v5016
      %v5131 = vmul.f32 %v5017, %v5017
      %v5132 = vmul.f32 %v5018, %v5018
      %v5133 = vmul.f32 %v5019, %v5019
      %v5134 = vmul.f32 %v5020, %v5020
      %v5135 = vmul.f32 %v5021, %v5021
      %v5136 = vmul.f32 %v5022, %v5022
      %v5137 = vmul.f32 %v5023, %v5023
      %v5138 = vmul.f32 %v5024, %v5024
      %v5139 = vmul.f32 %v5025, %v5025
      %v5140 = vmul.f32 %v5026, %v5026
      %v5141 = vmul.f32 %v5027, %v5027
      %v5142 = vmul.f32 %v5028, %v5028
      %v5143 = vmul.f32 %v5029, %v5029
      %v5144 = vmul.f32 %v5030, %v5030
      %v5145 = vmul.f32 %v5031, %v5031
      %v5146 = vmul.f32 %v5032, %v5032
      %v5147 = vmul.f32 %v5033, %v5033
      %v5148 = vmul.f32 %v5034, %v5034
      %v5149 = vmul.f32 %v5035, %v5035
      %v5150 = vmul.f32 %v5036, %v5036
      %v5151 = vmul.f32 %v5037, %v5037
      %v5152 = vmul.f32 %v5038, %v5038
      %v5153 = vmul.f32 %v5039, %v5039
      %v5154 = vmul.f32 %v5040, %v5040
      %v5155 = vmul.f32 %v5041, %v5041
      %v5156 = vadd.f32 %v5102, %v5103
      %v5157 = vadd.f32 %v5156, %v5104
      %v5158 = vadd.f32 %v5157, %v5105
      %v5159 = vadd.f32 %v5158, %v5106
      %v5160 = vadd.f32 %v5159, %v5107
      %v5161 = vadd.f32 %v5160, %v5108
      %v5162 = vadd.f32 %v5161, %v5109
      %v5163 = vadd.f32 %v5162, %v5110
      %v5164 = vadd.f32 %v5163, %v5111
      %v5165 = vadd.f32 %v5164, %v5112
      %v5166 = vadd.f32 %v5165, %v5113
      %v5167 = vadd.f32 %v5166, %v5114
      %v5168 = vadd.f32 %v5167, %v5115
      %v5169 = vadd.f32 %v5168, %v5116
      %v5170 = vadd.f32 %v5169, %v5117
      %v5171 = vadd.f32 %v5170, %v5118
      %v5172 = vadd.f32 %v5171, %v5119
      %v5173 = vadd.f32 %v5172, %v5120
      %v5174 = vadd.f32 %v5173, %v5121
      %v5175 = vadd.f32 %v5174, %v5122
      %v5176 = vadd.f32 %v5175, %v5123
      %v5177 = vadd.f32 %v5176, %v5124
      %v5178 = vadd.f32 %v5177, %v5125
      %v5179 = vadd.f32 %v5178, %v5126
      %v5180 = vadd.f32 %v5179, %v5127
      %v5181 = vadd.f32 %v5180, %v5128
      %v5182 = vadd.f32 %v5181, %v5129
      %v5183 = vadd.f32 %v5182, %v5130
      %v5184 = vadd.f32 %v5183, %v5131
      %v5185 = vadd.f32 %v5184, %v5132
      %v5186 = vadd.f32 %v5185, %v5133
      %v5187 = vadd.f32 %v5186, %v5134
      %v5188 = vadd.f32 %v5187, %v5135
      %v5189 = vadd.f32 %v5188, %v5136
      %v5190 = vadd.f32 %v5189, %v5137
      %v5191 = vadd.f32 %v5190, %v5138
      %v5192 = vadd.f32 %v5191, %v5139
      %v5193 = vadd.f32 %v5192, %v5140
      %v5194 = vadd.f32 %v5193, %v5141
      %v5195 = vadd.f32 %v5194, %v5142
      %v5196 = vadd.f32 %v5195, %v5143
      %v5197 = vadd.f32 %v5196, %v5144
      %v5198 = vadd.f32 %v5197, %v5145
      %v5199 = vadd.f32 %v5198, %v5146
      %v5200 = vadd.f32 %v5199, %v5147
      %v5201 = vadd.f32 %v5200, %v5148
      %v5202 = vadd.f32 %v5201, %v5149
      %v5203 = vadd.f32 %v5202, %v5150
      %v5204 = vadd.f32 %v5203, %v5151
      %v5205 = vadd.f32 %v5204, %v5152
      %v5206 = vadd.f32 %v5205, %v5153
      %v5207 = vadd.f32 %v5206, %v5154
      %v5208 = vadd.f32 %v5207, %v5155
      %v5209 = vrot.slane %v5208, 4
      %v5210 = vadd.f32 %v5208, %v5209
      %v5211 = vrot.slane %v5210, 2
      %v5212 = vadd.f32 %v5210, %v5211
      %v5213 = vrot.slane %v5212, 1
      %v5214 = vadd.f32 %v5212, %v5213
      %5215 = vst [vmem:[%s262 + $0x1] sm:$0x1] %v5214
      %5216 = vst [vmem:[%s258] sm:$0xff] 0.0
      %5217 = vst [vmem:[%s258 + $0x8] sm:$0xff] 0.0
      %5218 = vst [vmem:[%s258 + $0x10] sm:$0xff] 0.0
      %5219 = vst [vmem:[%s258 + $0x18] sm:$0xff] 0.0
      %5220 = vst [vmem:[%s258 + $0x1d0] sm:$0xff] 0.0
      %5221 = vst [vmem:[%s258 + $0x1d8] sm:$0xff] 0.0
      %5222 = vst [vmem:[%s258 + $0x1e0] sm:$0xff] 0.0
      %5223 = vst [vmem:[%s258 + $0x1e8] sm:$0xff] 0.0
      %5224 = vst [vmem:[%s258 + $0x20] sm:$0xff] %v4934
      %5225 = vst [vmem:[%s258 + $0x28] sm:$0xff] %v4935
      %5226 = vst [vmem:[%s258 + $0x30] sm:$0xff] %v4936
      %5227 = vst [vmem:[%s258 + $0x38] sm:$0xff] %v4937
      %5228 = vst [vmem:[%s258 + $0x40] sm:$0xff] %v4938
      %5229 = vst [vmem:[%s258 + $0x48] sm:$0xff] %v4939
      %5230 = vst [vmem:[%s258 + $0x50] sm:$0xff] %v4940
      %5231 = vst [vmem:[%s258 + $0x58] sm:$0xff] %v4941
      %5232 = vst [vmem:[%s258 + $0x60] sm:$0xff] %v4942
      %5233 = vst [vmem:[%s258 + $0x68] sm:$0xff] %v4943
      %5234 = vst [vmem:[%s258 + $0x70] sm:$0xff] %v4944
      %5235 = vst [vmem:[%s258 + $0x78] sm:$0xff] %v4945
      %5236 = vst [vmem:[%s258 + $0x80] sm:$0xff] %v4946
      %5237 = vst [vmem:[%s258 + $0x88] sm:$0xff] %v4947
      %5238 = vst [vmem:[%s258 + $0x90] sm:$0xff] %v4948
      %5239 = vst [vmem:[%s258 + $0x98] sm:$0xff] %v4949
      %5240 = vst [vmem:[%s258 + $0xa0] sm:$0xff] %v4950
      %5241 = vst [vmem:[%s258 + $0xa8] sm:$0xff] %v4951
      %5242 = vst [vmem:[%s258 + $0xb0] sm:$0xff] %v4952
      %5243 = vst [vmem:[%s258 + $0xb8] sm:$0xff] %v4953
      %5244 = vst [vmem:[%s258 + $0xc0] sm:$0xff] %v4954
      %5245 = vst [vmem:[%s258 + $0xc8] sm:$0xff] %v4955
      %5246 = vst [vmem:[%s258 + $0xd0] sm:$0xff] %v4956
      %5247 = vst [vmem:[%s258 + $0xd8] sm:$0xff] %v4957
      %5248 = vst [vmem:[%s258 + $0xe0] sm:$0xff] %v4958
      %5249 = vst [vmem:[%s258 + $0xe8] sm:$0xff] %v4959
      %5250 = vst [vmem:[%s258 + $0xf0] sm:$0xff] %v4960
      %5251 = vst [vmem:[%s258 + $0xf8] sm:$0xff] %v4961
      %5252 = vst [vmem:[%s258 + $0x100] sm:$0xff] %v4962
      %5253 = vst [vmem:[%s258 + $0x108] sm:$0xff] %v4963
      %5254 = vst [vmem:[%s258 + $0x110] sm:$0xff] %v4964
      %5255 = vst [vmem:[%s258 + $0x118] sm:$0xff] %v4965
      %5256 = vst [vmem:[%s258 + $0x120] sm:$0xff] %v4966
      %5257 = vst [vmem:[%s258 + $0x128] sm:$0xff] %v4967
      %5258 = vst [vmem:[%s258 + $0x130] sm:$0xff] %v4968
      %5259 = vst [vmem:[%s258 + $0x138] sm:$0xff] %v4969
      %5260 = vst [vmem:[%s258 + $0x140] sm:$0xff] %v4970
      %5261 = vst [vmem:[%s258 + $0x148] sm:$0xff] %v4971
      %5262 = vst [vmem:[%s258 + $0x150] sm:$0xff] %v4972
      %5263 = vst [vmem:[%s258 + $0x158] sm:$0xff] %v4973
      %5264 = vst [vmem:[%s258 + $0x160] sm:$0xff] %v4974
      %5265 = vst [vmem:[%s258 + $0x168] sm:$0xff] %v4975
      %5266 = vst [vmem:[%s258 + $0x170] sm:$0xff] %v4976
      %5267 = vst [vmem:[%s258 + $0x178] sm:$0xff] %v4977
      %5268 = vst [vmem:[%s258 + $0x180] sm:$0xff] %v4978
      %5269 = vst [vmem:[%s258 + $0x188] sm:$0xff] %v4979
      %5270 = vst [vmem:[%s258 + $0x190] sm:$0xff] %v4980
      %5271 = vst [vmem:[%s258 + $0x198] sm:$0xff] %v4981
      %5272 = vst [vmem:[%s258 + $0x1a0] sm:$0xff] %v4982
      %5273 = vst [vmem:[%s258 + $0x1a8] sm:$0xff] %v4983
      %5274 = vst [vmem:[%s258 + $0x1b0] sm:$0xff] %v4984
      %5275 = vst [vmem:[%s258 + $0x1b8] sm:$0xff] %v4985
      %5276 = vst [vmem:[%s258 + $0x1c0] sm:$0xff] %v4986
      %5277 = vst [vmem:[%s258 + $0x1c8] sm:$0xff] %v4987
      %p5278 = scmp.lt.s32.totalorder %s18, 1
      %s5279 = scalar_select %p5278, %s18, 1
      %s5280 = smul.addr %s5279, 62
      %s5281 = smul.addr %s5280, 8
      %s5282 = scalar_lea.vmem %s5, %s5281
      %p5283 = scmp.lt.s32.totalorder %s18, 1
      %s5284 = scalar_select %p5283, %s18, 1
      %s5285 = smul.addr %s5284, 2
      %s5286 = scalar_lea.vmem %s6, %s5285
      // Predicated region
      $region41: #{residual_block.4} parent=39 // pred_check
        %p5287 = pneg %p146
      $region42: #{residual_block.4} parent=39 // pred_check_branch
        %5289 = sbr.rel (%p5287) target = $region44
      $region43: #{residual_block.4} parent=39 // pred_region
        _
      $region44: #{residual_block.4} parent=39 // pred_fallthru
        _
      // Predicated region
      $region45: #{residual_block.4} parent=39 // pred_check
        %p5290 = pneg %p172
      $region46: #{residual_block.4} parent=39 // pred_check_branch
        %5292 = sbr.rel (%p5290) target = $region48
      $region47: #{residual_block.4} parent=39 // pred_region
        _
      $region48: #{residual_block.4} parent=39 // pred_fallthru
        _
    $region40: #{residual_block.4} parent=5 // pred_fallthru
      _
    %p5293 = scmp.le.s32.totalorder 2, %s13
    // Predicated region
    $region49: #{residual_block.4} parent=5 // pred_check
      %p5294 = pneg %p5293
    $region50: #{residual_block.4} parent=5 // pred_check_branch
      %5296 = sbr.rel (%p5294) target = $region52
    $region51: #{residual_block.4} parent=5 // pred_region
      %s5297 = ssub.s32 %s13, 2
      // Predicated region
      $region53: #{residual_block.4} parent=51 // pred_check
        %p5298 = pneg %p152
      $region54: #{residual_block.4} parent=51 // pred_check_branch
        %5300 = sbr.rel (%p5298) target = $region56
      $region55: #{residual_block.4} parent=51 // pred_region
        %p5301 = scmp.lt.s32.totalorder %s19, 1
        %s5302 = scalar_select %p5301, %s19, 1
        %s5303 = smul.addr %s5302, 62
        %s5304 = smul.addr %s5303, 8
        %s5305 = scalar_lea.vmem %s5, %s5304
      $region56: #{residual_block.4} parent=51 // pred_fallthru
        _
      // Predicated region
      $region57: #{residual_block.4} parent=51 // pred_check
        %p5306 = pneg %p178
      $region58: #{residual_block.4} parent=51 // pred_check_branch
        %5308 = sbr.rel (%p5306) target = $region60
      $region59: #{residual_block.4} parent=51 // pred_region
        %p5309 = scmp.lt.s32.totalorder %s19, 1
        %s5310 = scalar_select %p5309, %s19, 1
        %s5311 = smul.addr %s5310, 2
        %s5312 = scalar_lea.vmem %s6, %s5311
      $region60: #{residual_block.4} parent=51 // pred_fallthru
        _
    $region52: #{residual_block.4} parent=5 // pred_fallthru
      _
  $region6: #{residual_block.4} parent=0 // loop_footer
    %s17 = sadd.s32 1, %s13
  $region7: #{residual_block.4} parent=0 // loop_footer_branch
    %12 = sbr.rel target = $region3
  $region8: #{residual_block.4} parent=0 // loop_exit
    _

// kernel: residual_block.3
$region0: #{residual_block.3}
  #allocation0 [shape = 'u32[]', space=smem, size = 0x4, offset = 0x4, fixed_abs, tag = 'smem constant byte address 0x4 - core index']
  #allocation1 [shape = 'u32[144,128]{1,0:T(1,128)}', space=vmem, size = 0x12000, scoped, tag = 'internal scratch']
  #allocation2 [shape = 'f32[496,128]{1,0:T(8,128)}', space=vmem, size = 0x3e000, scoped, tag = 'scratch operand']
  %s0 = inlined_call_operand.vmem [shape: f32[2,496,128], index: 0, kind: input, shape index: {}]
  %s1 = inlined_call_operand.vmem [shape: bf16[9,128,128], index: 1, kind: input, shape index: {}]
  %s2 = inlined_call_operand.vmem [shape: f32[1,128], index: 2, kind: input, shape index: {}, may-alias: {2,3,4}]
  %s3 = inlined_call_operand.vmem [shape: f32[1,128], index: 3, kind: input, shape index: {}, may-alias: {2,3,4}]
  %s4 = inlined_call_operand.vmem [shape: f32[1,128], index: 4, kind: input, shape index: {}, may-alias: {2,3,4}]
  %s5 = inlined_call_operand.vmem [shape: f32[2,496,128], index: 5, kind: output, shape index: {0}]
  %s6 = inlined_call_operand.vmem [shape: f32[2,2,128], index: 6, kind: output, shape index: {1}]
  %7 = xla_tuple %s5, %s6
  %s8 = sld [smem:[#allocation0]]
  $region61: #{residual_block.3} parent=0
    _
  %s10 = ssub.s32 1, %s8
  %s11 = scalar_select 0, %s10, %s8
  loop: start=0, step=1, limit=4
  $region2: #{residual_block.3} parent=0 // loop_pre_header
    _
  $region3: #{residual_block.3} parent=0 // loop_header
    %s13 = sphi 0, %s17
    %p14 = scmp.ge.s32.totalorder %s13, 4
    %s23 = sphi 0, %s25
    %s26 = sphi 0, %s23
    %s27 = sphi 0, %s26
    %s43 = sphi 0, %s27
    %s47 = sphi 0, %s47
    %s49 = sphi 0, %s47
    %s50 = sphi 0, %s49
    %s64 = sphi 0, %s50
    %s68 = sphi 0, %s68
    %s70 = sphi 0, %s68
    %s71 = sphi 0, %s70
    %s85 = sphi 0, %s71
    %s89 = sphi 0, %s89
    %s91 = sphi 0, %s89
    %s92 = sphi 0, %s91
    %s106 = sphi 0, %s92
    %s110 = sphi 0, %s110
    %s112 = sphi 0, %s110
    %s113 = sphi 0, %s112
    %s127 = sphi 0, %s113
    %s133 = sphi 0, %s135
    %s136 = sphi 0, %s133
    %s137 = sphi 0, %s136
    %s153 = sphi 0, %s137
    %s159 = sphi 0, %s161
    %s162 = sphi 0, %s159
    %s163 = sphi 0, %s162
    %s179 = sphi 0, %s163
  $region4: #{residual_block.3} parent=0 // loop_header_branch
    %16 = sbr.rel (%p14) target = $region8
  $region5: #{residual_block.3} parent=0 // loop_body
    %s18 = ssub.s32 %s13, 1
    %s19 = ssub.s32 %s13, 2
    %s20 = sadd.s32 %s13, 1
    %s21 = ssub.s32 %s13, %s20
    %p22 = scmp.eq.s32.totalorder %s21, 0
    %s24 = sadd.s32 %s23, 1
    %s25 = scalar_select %p22, %s23, %s24
    %p28 = pneg %p22
    %p29 = scmp.eq.s32.totalorder %s13, 1
    %p30 = por %p28, %p29
    %p31 = scmp.ne.s32.totalorder %s23, %s26
    %p32 = scmp.eq.s32.totalorder %s13, 0
    %p33 = por %p31, %p32
    %p34 = scmp.ne.s32.totalorder %s23, %s26
    %p35 = scmp.eq.s32.totalorder %s18, 1
    %p36 = por %p34, %p35
    %p37 = scmp.ne.s32.totalorder %s26, %s27
    %p38 = scmp.eq.s32.totalorder %s18, 0
    %p39 = por %p37, %p38
    %p40 = scmp.ne.s32.totalorder %s26, %s27
    %p41 = scmp.eq.s32.totalorder %s19, 1
    %p42 = por %p40, %p41
    %p44 = scmp.ne.s32.totalorder %s27, %s43
    %p45 = scmp.eq.s32.totalorder %s19, 0
    %p46 = por %p44, %p45
    %s48 = sadd.s32 %s47, 1
    %p51 = scmp.eq.s32.totalorder %s13, 1
    %p52 = scmp.ne.s32.totalorder %s47, %s49
    %p53 = scmp.eq.s32.totalorder %s13, 0
    %p54 = por %p52, %p53
    %p55 = scmp.ne.s32.totalorder %s47, %s49
    %p56 = scmp.eq.s32.totalorder %s18, 1
    %p57 = por %p55, %p56
    %p58 = scmp.ne.s32.totalorder %s49, %s50
    %p59 = scmp.eq.s32.totalorder %s18, 0
    %p60 = por %p58, %p59
    %p61 = scmp.ne.s32.totalorder %s49, %s50
    %p62 = scmp.eq.s32.totalorder %s19, 1
    %p63 = por %p61, %p62
    %p65 = scmp.ne.s32.totalorder %s50, %s64
    %p66 = scmp.eq.s32.totalorder %s19, 0
    %p67 = por %p65, %p66
    %s69 = sadd.s32 %s68, 1
    %p72 = scmp.eq.s32.totalorder %s13, 1
    %p73 = scmp.ne.s32.totalorder %s68, %s70
    %p74 = scmp.eq.s32.totalorder %s13, 0
    %p75 = por %p73, %p74
    %p76 = scmp.ne.s32.totalorder %s68, %s70
    %p77 = scmp.eq.s32.totalorder %s18, 1
    %p78 = por %p76, %p77
    %p79 = scmp.ne.s32.totalorder %s70, %s71
    %p80 = scmp.eq.s32.totalorder %s18, 0
    %p81 = por %p79, %p80
    %p82 = scmp.ne.s32.totalorder %s70, %s71
    %p83 = scmp.eq.s32.totalorder %s19, 1
    %p84 = por %p82, %p83
    %p86 = scmp.ne.s32.totalorder %s71, %s85
    %p87 = scmp.eq.s32.totalorder %s19, 0
    %p88 = por %p86, %p87
    %s90 = sadd.s32 %s89, 1
    %p93 = scmp.eq.s32.totalorder %s13, 1
    %p94 = scmp.ne.s32.totalorder %s89, %s91
    %p95 = scmp.eq.s32.totalorder %s13, 0
    %p96 = por %p94, %p95
    %p97 = scmp.ne.s32.totalorder %s89, %s91
    %p98 = scmp.eq.s32.totalorder %s18, 1
    %p99 = por %p97, %p98
    %p100 = scmp.ne.s32.totalorder %s91, %s92
    %p101 = scmp.eq.s32.totalorder %s18, 0
    %p102 = por %p100, %p101
    %p103 = scmp.ne.s32.totalorder %s91, %s92
    %p104 = scmp.eq.s32.totalorder %s19, 1
    %p105 = por %p103, %p104
    %p107 = scmp.ne.s32.totalorder %s92, %s106
    %p108 = scmp.eq.s32.totalorder %s19, 0
    %p109 = por %p107, %p108
    %s111 = sadd.s32 %s110, 1
    %p114 = scmp.eq.s32.totalorder %s13, 1
    %p115 = scmp.ne.s32.totalorder %s110, %s112
    %p116 = scmp.eq.s32.totalorder %s13, 0
    %p117 = por %p115, %p116
    %p118 = scmp.ne.s32.totalorder %s110, %s112
    %p119 = scmp.eq.s32.totalorder %s18, 1
    %p120 = por %p118, %p119
    %p121 = scmp.ne.s32.totalorder %s112, %s113
    %p122 = scmp.eq.s32.totalorder %s18, 0
    %p123 = por %p121, %p122
    %p124 = scmp.ne.s32.totalorder %s112, %s113
    %p125 = scmp.eq.s32.totalorder %s19, 1
    %p126 = por %p124, %p125
    %p128 = scmp.ne.s32.totalorder %s113, %s127
    %p129 = scmp.eq.s32.totalorder %s19, 0
    %p130 = por %p128, %p129
    %s131 = ssub.s32 %s13, %s20
    %p132 = scmp.eq.s32.totalorder %s131, 0
    %s134 = sadd.s32 %s133, 1
    %s135 = scalar_select %p132, %s133, %s134
    %p138 = pneg %p132
    %p139 = scmp.eq.s32.totalorder %s13, 1
    %p140 = por %p138, %p139
    %p141 = scmp.ne.s32.totalorder %s133, %s136
    %p142 = scmp.eq.s32.totalorder %s13, 0
    %p143 = por %p141, %p142
    %p144 = scmp.ne.s32.totalorder %s133, %s136
    %p145 = scmp.eq.s32.totalorder %s18, 1
    %p146 = por %p144, %p145
    %p147 = scmp.ne.s32.totalorder %s136, %s137
    %p148 = scmp.eq.s32.totalorder %s18, 0
    %p149 = por %p147, %p148
    %p150 = scmp.ne.s32.totalorder %s136, %s137
    %p151 = scmp.eq.s32.totalorder %s19, 1
    %p152 = por %p150, %p151
    %p154 = scmp.ne.s32.totalorder %s137, %s153
    %p155 = scmp.eq.s32.totalorder %s19, 0
    %p156 = por %p154, %p155
    %s157 = ssub.s32 %s13, %s20
    %p158 = scmp.eq.s32.totalorder %s157, 0
    %s160 = sadd.s32 %s159, 1
    %s161 = scalar_select %p158, %s159, %s160
    %p164 = pneg %p158
    %p165 = scmp.eq.s32.totalorder %s13, 1
    %p166 = por %p164, %p165
    %p167 = scmp.ne.s32.totalorder %s159, %s162
    %p168 = scmp.eq.s32.totalorder %s13, 0
    %p169 = por %p167, %p168
    %p170 = scmp.ne.s32.totalorder %s159, %s162
    %p171 = scmp.eq.s32.totalorder %s18, 1
    %p172 = por %p170, %p171
    %p173 = scmp.ne.s32.totalorder %s162, %s163
    %p174 = scmp.eq.s32.totalorder %s18, 0
    %p175 = por %p173, %p174
    %p176 = scmp.ne.s32.totalorder %s162, %s163
    %p177 = scmp.eq.s32.totalorder %s19, 1
    %p178 = por %p176, %p177
    %p180 = scmp.ne.s32.totalorder %s163, %s179
    %p181 = scmp.eq.s32.totalorder %s19, 0
    %p182 = por %p180, %p181
    %p183 = scmp.le.s32.totalorder 1, %s13
    %p184 = scmp.lt.s32.totalorder %s13, 3
    %p185 = pnand %p183, %p184
    %p186 = pneg %p185
    // Predicated region
    $region9: #{residual_block.3} parent=5 // pred_check
      _
    $region10: #{residual_block.3} parent=5 // pred_check_branch
      %188 = sbr.rel (%p185) target = $region12
    $region11: #{residual_block.3} parent=5 // pred_region
      %s189 = ssub.s32 %s13, 1
      // Predicated region
      $region13: #{residual_block.3} parent=11 // pred_check
        %p190 = pneg %p60
      $region14: #{residual_block.3} parent=11 // pred_check_branch
        %192 = sbr.rel (%p190) target = $region16
      $region15: #{residual_block.3} parent=11 // pred_region
        _
      $region16: #{residual_block.3} parent=11 // pred_fallthru
        _
      // Predicated region
      $region17: #{residual_block.3} parent=11 // pred_check
        %p193 = pneg %p81
      $region18: #{residual_block.3} parent=11 // pred_check_branch
        %195 = sbr.rel (%p193) target = $region20
      $region19: #{residual_block.3} parent=11 // pred_region
        _
      $region20: #{residual_block.3} parent=11 // pred_fallthru
        _
      // Predicated region
      $region21: #{residual_block.3} parent=11 // pred_check
        %p196 = pneg %p102
      $region22: #{residual_block.3} parent=11 // pred_check_branch
        %198 = sbr.rel (%p196) target = $region24
      $region23: #{residual_block.3} parent=11 // pred_region
        _
      $region24: #{residual_block.3} parent=11 // pred_fallthru
        _
      // Predicated region
      $region25: #{residual_block.3} parent=11 // pred_check
        %p199 = pneg %p123
      $region26: #{residual_block.3} parent=11 // pred_check_branch
        %201 = sbr.rel (%p199) target = $region28
      $region27: #{residual_block.3} parent=11 // pred_region
        _
      $region28: #{residual_block.3} parent=11 // pred_fallthru
        _
    $region12: #{residual_block.3} parent=5 // pred_fallthru
      _
    %p202 = scmp.lt.s32.totalorder %s13, 2
    // Predicated region
    $region29: #{residual_block.3} parent=5 // pred_check
      %p203 = pneg %p202
    $region30: #{residual_block.3} parent=5 // pred_check_branch
      %205 = sbr.rel (%p203) target = $region32
    $region31: #{residual_block.3} parent=5 // pred_region
      // Predicated region
      $region33: #{residual_block.3} parent=31 // pred_check
        %p206 = pneg %p33
      $region34: #{residual_block.3} parent=31 // pred_check_branch
        %208 = sbr.rel (%p206) target = $region36
      $region35: #{residual_block.3} parent=31 // pred_region
        %p209 = scmp.lt.s32.totalorder %s13, 1
        %s210 = scalar_select %p209, %s13, 1
        %s211 = smul.addr %s210, 62
        %s212 = smul.addr %s211, 8
        %s213 = scalar_lea.vmem %s0, %s212
      $region36: #{residual_block.3} parent=31 // pred_fallthru
        _
    $region32: #{residual_block.3} parent=5 // pred_fallthru
      _
    %p214 = scmp.le.s32.totalorder 1, %s13
    %p215 = scmp.lt.s32.totalorder %s13, 3
    %p216 = pnand %p214, %p215
    %p217 = pneg %p216
    // Predicated region
    $region37: #{residual_block.3} parent=5 // pred_check
      _
    $region38: #{residual_block.3} parent=5 // pred_check_branch
      %219 = sbr.rel (%p216) target = $region40
    $region39: #{residual_block.3} parent=5 // pred_region
      %s220 = ssub.s32 %s13, 1
      %p221 = scmp.lt.s32.totalorder %s18, 1
      %s222 = scalar_select %p221, %s18, 1
      %s223 = smul.addr %s222, 62
      %s224 = smul.addr %s223, 8
      %s225 = scalar_lea.vmem %s0, %s224
      %p226 = pneg %p39
      %p227 = pneg %p36
      %p228 = pneg %p60
      %p229 = pneg %p57
      %p230 = pneg %p81
      %p231 = pneg %p78
      %p232 = pneg %p102
      %p233 = pneg %p99
      %p234 = pneg %p123
      %p235 = pneg %p120
      %p236 = pneg %p149
      %p237 = pneg %p146
      %p238 = scmp.lt.s32.totalorder %s18, 1
      %s239 = scalar_select %p238, %s18, 1
      %s240 = smul.addr %s239, 62
      %s241 = smul.addr %s240, 8
      %s242 = scalar_lea.vmem %s5, %s241
      %p243 = pneg %p175
      %p244 = pneg %p172
      %p245 = scmp.lt.s32.totalorder %s18, 1
      %s246 = scalar_select %p245, %s18, 1
      %s247 = smul.addr %s246, 2
      %s248 = scalar_lea.vmem %s6, %s247
      %p249 = scmp.lt.s32.totalorder %s18, 1
      %s250 = scalar_select %p249, %s18, 1
      %s251 = smul.addr %s250, 62
      %s252 = smul.addr %s251, 8
      %s253 = scalar_lea.vmem %s0, %s252
      %p254 = scmp.lt.s32.totalorder %s18, 1
      %s255 = scalar_select %p254, %s18, 1
      %s256 = smul.addr %s255, 62
      %s257 = smul.addr %s256, 8
      %s258 = scalar_lea.vmem %s5, %s257
      %p259 = scmp.lt.s32.totalorder %s18, 1
      %s260 = scalar_select %p259, %s18, 1
      %s261 = smul.addr %s260, 2
      %s262 = scalar_lea.vmem %s6, %s261
      %v264 = vlaneseq
      %v265 = vshrl.u32 %v264, 7
      %v266 = vadd.s32 %v265, 8
      %v267 = vadd.s32 %v265, 16
      %v268 = vadd.s32 %v265, 24
      %v269 = vadd.s32 %v265, 32
      %v270 = vadd.s32 %v265, 40
      %v271 = vadd.s32 %v265, 48
      %v272 = vadd.s32 %v265, 56
      %v273 = vadd.s32 %v265, 64
      %v274 = vadd.s32 %v265, 72
      %v275 = vadd.s32 %v265, 80
      %v276 = vadd.s32 %v265, 88
      %v277 = vadd.s32 %v265, 96
      %v278 = vadd.s32 %v265, 104
      %v279 = vadd.s32 %v265, 112
      %v280 = vadd.s32 %v265, 120
      %v281 = vadd.s32 %v265, 128
      %v282 = vadd.s32 %v265, 136
      %v283 = vadd.s32 %v265, 144
      %v284 = vadd.s32 %v265, 152
      %v285 = vadd.s32 %v265, 160
      %v286 = vadd.s32 %v265, 168
      %v287 = vadd.s32 %v265, 176
      %v288 = vadd.s32 %v265, 184
      %v289 = vadd.s32 %v265, 192
      %v290 = vadd.s32 %v265, 200
      %v291 = vadd.s32 %v265, 208
      %v292 = vadd.s32 %v265, 216
      %v293 = vadd.s32 %v265, 224
      %v294 = vadd.s32 %v265, 232
      %v295 = vadd.s32 %v265, 240
      %v296 = vadd.s32 %v265, 248
      %v297 = vadd.s32 %v265, 256
      %v298 = vadd.s32 %v265, 264
      %v299 = vadd.s32 %v265, 272
      %v300 = vadd.s32 %v265, 280
      %v301 = vadd.s32 %v265, 288
      %v302 = vadd.s32 %v265, 296
      %v303 = vadd.s32 %v265, 304
      %v304 = vadd.s32 %v265, 312
      %v305 = vadd.s32 %v265, 320
      %v306 = vadd.s32 %v265, 328
      %v307 = vadd.s32 %v265, 336
      %v308 = vadd.s32 %v265, 344
      %v309 = vadd.s32 %v265, 352
      %v310 = vadd.s32 %v265, 360
      %v311 = vadd.s32 %v265, 368
      %v312 = vadd.s32 %v265, 376
      %v313 = vadd.s32 %v265, 384
      %v314 = vadd.s32 %v265, 392
      %v315 = vadd.s32 %v265, 400
      %v316 = vadd.s32 %v265, 408
      %v317 = vadd.s32 %v265, 416
      %v318 = vadd.s32 %v265, 424
      %vm319 = vcmp.ge.s32.totalorder %v265, 24
      %vm320 = vcmp.ge.s32.totalorder %v266, 24
      %vm321 = vcmp.ge.s32.totalorder %v267, 24
      %vm322 = vcmp.ge.s32.totalorder %v268, 24
      %vm323 = vcmp.ge.s32.totalorder %v269, 24
      %vm324 = vcmp.ge.s32.totalorder %v270, 24
      %vm325 = vcmp.ge.s32.totalorder %v271, 24
      %vm326 = vcmp.ge.s32.totalorder %v272, 24
      %vm327 = vcmp.ge.s32.totalorder %v273, 24
      %vm328 = vcmp.ge.s32.totalorder %v274, 24
      %vm329 = vcmp.ge.s32.totalorder %v275, 24
      %vm330 = vcmp.ge.s32.totalorder %v276, 24
      %vm331 = vcmp.ge.s32.totalorder %v277, 24
      %vm332 = vcmp.ge.s32.totalorder %v278, 24
      %vm333 = vcmp.ge.s32.totalorder %v279, 24
      %vm334 = vcmp.ge.s32.totalorder %v280, 24
      %vm335 = vcmp.ge.s32.totalorder %v281, 24
      %vm336 = vcmp.ge.s32.totalorder %v282, 24
      %vm337 = vcmp.ge.s32.totalorder %v283, 24
      %vm338 = vcmp.ge.s32.totalorder %v284, 24
      %vm339 = vcmp.ge.s32.totalorder %v285, 24
      %vm340 = vcmp.ge.s32.totalorder %v286, 24
      %vm341 = vcmp.ge.s32.totalorder %v287, 24
      %vm342 = vcmp.ge.s32.totalorder %v288, 24
      %vm343 = vcmp.ge.s32.totalorder %v289, 24
      %vm344 = vcmp.ge.s32.totalorder %v290, 24
      %vm345 = vcmp.ge.s32.totalorder %v291, 24
      %vm346 = vcmp.ge.s32.totalorder %v292, 24
      %vm347 = vcmp.ge.s32.totalorder %v293, 24
      %vm348 = vcmp.ge.s32.totalorder %v294, 24
      %vm349 = vcmp.ge.s32.totalorder %v295, 24
      %vm350 = vcmp.ge.s32.totalorder %v296, 24
      %vm351 = vcmp.ge.s32.totalorder %v297, 24
      %vm352 = vcmp.ge.s32.totalorder %v298, 24
      %vm353 = vcmp.ge.s32.totalorder %v299, 24
      %vm354 = vcmp.ge.s32.totalorder %v300, 24
      %vm355 = vcmp.ge.s32.totalorder %v301, 24
      %vm356 = vcmp.ge.s32.totalorder %v302, 24
      %vm357 = vcmp.ge.s32.totalorder %v303, 24
      %vm358 = vcmp.ge.s32.totalorder %v304, 24
      %vm359 = vcmp.ge.s32.totalorder %v305, 24
      %vm360 = vcmp.ge.s32.totalorder %v306, 24
      %vm361 = vcmp.ge.s32.totalorder %v307, 24
      %vm362 = vcmp.ge.s32.totalorder %v308, 24
      %vm363 = vcmp.ge.s32.totalorder %v309, 24
      %vm364 = vcmp.ge.s32.totalorder %v310, 24
      %vm365 = vcmp.ge.s32.totalorder %v311, 24
      %vm366 = vcmp.ge.s32.totalorder %v312, 24
      %vm367 = vcmp.ge.s32.totalorder %v313, 24
      %vm368 = vcmp.ge.s32.totalorder %v314, 24
      %vm369 = vcmp.ge.s32.totalorder %v315, 24
      %vm370 = vcmp.ge.s32.totalorder %v316, 24
      %vm371 = vcmp.ge.s32.totalorder %v317, 24
      %vm372 = vcmp.ge.s32.totalorder %v318, 24
      %vm373 = vcmp.lt.s32.totalorder %v265, 408
      %vm374 = vcmp.lt.s32.totalorder %v266, 408
      %vm375 = vcmp.lt.s32.totalorder %v267, 408
      %vm376 = vcmp.lt.s32.totalorder %v268, 408
      %vm377 = vcmp.lt.s32.totalorder %v269, 408
      %vm378 = vcmp.lt.s32.totalorder %v270, 408
      %vm379 = vcmp.lt.s32.totalorder %v271, 408
      %vm380 = vcmp.lt.s32.totalorder %v272, 408
      %vm381 = vcmp.lt.s32.totalorder %v273, 408
      %vm382 = vcmp.lt.s32.totalorder %v274, 408
      %vm383 = vcmp.lt.s32.totalorder %v275, 408
      %vm384 = vcmp.lt.s32.totalorder %v276, 408
      %vm385 = vcmp.lt.s32.totalorder %v277, 408
      %vm386 = vcmp.lt.s32.totalorder %v278, 408
      %vm387 = vcmp.lt.s32.totalorder %v279, 408
      %vm388 = vcmp.lt.s32.totalorder %v280, 408
      %vm389 = vcmp.lt.s32.totalorder %v281, 408
      %vm390 = vcmp.lt.s32.totalorder %v282, 408
      %vm391 = vcmp.lt.s32.totalorder %v283, 408
      %vm392 = vcmp.lt.s32.totalorder %v284, 408
      %vm393 = vcmp.lt.s32.totalorder %v285, 408
      %vm394 = vcmp.lt.s32.totalorder %v286, 408
      %vm395 = vcmp.lt.s32.totalorder %v287, 408
      %vm396 = vcmp.lt.s32.totalorder %v288, 408
      %vm397 = vcmp.lt.s32.totalorder %v289, 408
      %vm398 = vcmp.lt.s32.totalorder %v290, 408
      %vm399 = vcmp.lt.s32.totalorder %v291, 408
      %vm400 = vcmp.lt.s32.totalorder %v292, 408
      %vm401 = vcmp.lt.s32.totalorder %v293, 408
      %vm402 = vcmp.lt.s32.totalorder %v294, 408
      %vm403 = vcmp.lt.s32.totalorder %v295, 408
      %vm404 = vcmp.lt.s32.totalorder %v296, 408
      %vm405 = vcmp.lt.s32.totalorder %v297, 408
      %vm406 = vcmp.lt.s32.totalorder %v298, 408
      %vm407 = vcmp.lt.s32.totalorder %v299, 408
      %vm408 = vcmp.lt.s32.totalorder %v300, 408
      %vm409 = vcmp.lt.s32.totalorder %v301, 408
      %vm410 = vcmp.lt.s32.totalorder %v302, 408
      %vm411 = vcmp.lt.s32.totalorder %v303, 408
      %vm412 = vcmp.lt.s32.totalorder %v304, 408
      %vm413 = vcmp.lt.s32.totalorder %v305, 408
      %vm414 = vcmp.lt.s32.totalorder %v306, 408
      %vm415 = vcmp.lt.s32.totalorder %v307, 408
      %vm416 = vcmp.lt.s32.totalorder %v308, 408
      %vm417 = vcmp.lt.s32.totalorder %v309, 408
      %vm418 = vcmp.lt.s32.totalorder %v310, 408
      %vm419 = vcmp.lt.s32.totalorder %v311, 408
      %vm420 = vcmp.lt.s32.totalorder %v312, 408
      %vm421 = vcmp.lt.s32.totalorder %v313, 408
      %vm422 = vcmp.lt.s32.totalorder %v314, 408
      %vm423 = vcmp.lt.s32.totalorder %v315, 408
      %vm424 = vcmp.lt.s32.totalorder %v316, 408
      %vm425 = vcmp.lt.s32.totalorder %v317, 408
      %vm426 = vcmp.lt.s32.totalorder %v318, 408
      %vm427 = vmand %vm319, %vm373
      %vm428 = vmand %vm320, %vm374
      %vm429 = vmand %vm321, %vm375
      %vm430 = vmand %vm322, %vm376
      %vm431 = vmand %vm323, %vm377
      %vm432 = vmand %vm324, %vm378
      %vm433 = vmand %vm325, %vm379
      %vm434 = vmand %vm326, %vm380
      %vm435 = vmand %vm327, %vm381
      %vm436 = vmand %vm328, %vm382
      %vm437 = vmand %vm329, %vm383
      %vm438 = vmand %vm330, %vm384
      %vm439 = vmand %vm331, %vm385
      %vm440 = vmand %vm332, %vm386
      %vm441 = vmand %vm333, %vm387
      %vm442 = vmand %vm334, %vm388
      %vm443 = vmand %vm335, %vm389
      %vm444 = vmand %vm336, %vm390
      %vm445 = vmand %vm337, %vm391
      %vm446 = vmand %vm338, %vm392
      %vm447 = vmand %vm339, %vm393
      %vm448 = vmand %vm340, %vm394
      %vm449 = vmand %vm341, %vm395
      %vm450 = vmand %vm342, %vm396
      %vm451 = vmand %vm343, %vm397
      %vm452 = vmand %vm344, %vm398
      %vm453 = vmand %vm345, %vm399
      %vm454 = vmand %vm346, %vm400
      %vm455 = vmand %vm347, %vm401
      %vm456 = vmand %vm348, %vm402
      %vm457 = vmand %vm349, %vm403
      %vm458 = vmand %vm350, %vm404
      %vm459 = vmand %vm351, %vm405
      %vm460 = vmand %vm352, %vm406
      %vm461 = vmand %vm353, %vm407
      %vm462 = vmand %vm354, %vm408
      %vm463 = vmand %vm355, %vm409
      %vm464 = vmand %vm356, %vm410
      %vm465 = vmand %vm357, %vm411
      %vm466 = vmand %vm358, %vm412
      %vm467 = vmand %vm359, %vm413
      %vm468 = vmand %vm360, %vm414
      %vm469 = vmand %vm361, %vm415
      %vm470 = vmand %vm362, %vm416
      %vm471 = vmand %vm363, %vm417
      %vm472 = vmand %vm364, %vm418
      %vm473 = vmand %vm365, %vm419
      %vm474 = vmand %vm366, %vm420
      %vm475 = vmand %vm367, %vm421
      %vm476 = vmand %vm368, %vm422
      %vm477 = vmand %vm369, %vm423
      %vm478 = vmand %vm370, %vm424
      %vm479 = vmand %vm371, %vm425
      %vm480 = vmand %vm372, %vm426
      %vm481 = vcmp.ge.s32.totalorder %v265, 1
      %vm482 = vcmp.ge.s32.totalorder %v266, 1
      %vm483 = vcmp.ge.s32.totalorder %v267, 1
      %vm484 = vmand %vm427, %vm481
      %vm485 = vmand %vm428, %vm482
      %vm486 = vmand %vm429, %vm483
      %vm487 = vmand %vm430, %vm481
      %vm488 = vmand %vm431, %vm482
      %vm489 = vmand %vm432, %vm483
      %vm490 = vmand %vm433, %vm481
      %vm491 = vmand %vm434, %vm482
      %vm492 = vmand %vm435, %vm483
      %vm493 = vmand %vm436, %vm481
      %vm494 = vmand %vm437, %vm482
      %vm495 = vmand %vm438, %vm483
      %vm496 = vmand %vm439, %vm481
      %vm497 = vmand %vm440, %vm482
      %vm498 = vmand %vm441, %vm483
      %vm499 = vmand %vm442, %vm481
      %vm500 = vmand %vm443, %vm482
      %vm501 = vmand %vm444, %vm483
      %vm502 = vmand %vm445, %vm481
      %vm503 = vmand %vm446, %vm482
      %vm504 = vmand %vm447, %vm483
      %vm505 = vmand %vm448, %vm481
      %vm506 = vmand %vm449, %vm482
      %vm507 = vmand %vm450, %vm483
      %vm508 = vmand %vm451, %vm481
      %vm509 = vmand %vm452, %vm482
      %vm510 = vmand %vm453, %vm483
      %vm511 = vmand %vm454, %vm481
      %vm512 = vmand %vm455, %vm482
      %vm513 = vmand %vm456, %vm483
      %vm514 = vmand %vm457, %vm481
      %vm515 = vmand %vm458, %vm482
      %vm516 = vmand %vm459, %vm483
      %vm517 = vmand %vm460, %vm481
      %vm518 = vmand %vm461, %vm482
      %vm519 = vmand %vm462, %vm483
      %vm520 = vmand %vm463, %vm481
      %vm521 = vmand %vm464, %vm482
      %vm522 = vmand %vm465, %vm483
      %vm523 = vmand %vm466, %vm481
      %vm524 = vmand %vm467, %vm482
      %vm525 = vmand %vm468, %vm483
      %vm526 = vmand %vm469, %vm481
      %vm527 = vmand %vm470, %vm482
      %vm528 = vmand %vm471, %vm483
      %vm529 = vmand %vm472, %vm481
      %vm530 = vmand %vm473, %vm482
      %vm531 = vmand %vm474, %vm483
      %vm532 = vmand %vm475, %vm481
      %vm533 = vmand %vm476, %vm482
      %vm534 = vmand %vm477, %vm483
      %vm535 = vmand %vm478, %vm481
      %vm536 = vmand %vm479, %vm482
      %vm537 = vmand %vm480, %vm483
      %vm538 = vcmp.le.s32.totalorder %v265, 16
      %vm539 = vcmp.le.s32.totalorder %v266, 16
      %vm540 = vcmp.le.s32.totalorder %v267, 16
      %vm541 = vmand %vm484, %vm538
      %vm542 = vmand %vm485, %vm539
      %vm543 = vmand %vm486, %vm540
      %vm544 = vmand %vm487, %vm538
      %vm545 = vmand %vm488, %vm539
      %vm546 = vmand %vm489, %vm540
      %vm547 = vmand %vm490, %vm538
      %vm548 = vmand %vm491, %vm539
      %vm549 = vmand %vm492, %vm540
      %vm550 = vmand %vm493, %vm538
      %vm551 = vmand %vm494, %vm539
      %vm552 = vmand %vm495, %vm540
      %vm553 = vmand %vm496, %vm538
      %vm554 = vmand %vm497, %vm539
      %vm555 = vmand %vm498, %vm540
      %vm556 = vmand %vm499, %vm538
      %vm557 = vmand %vm500, %vm539
      %vm558 = vmand %vm501, %vm540
      %vm559 = vmand %vm502, %vm538
      %vm560 = vmand %vm503, %vm539
      %vm561 = vmand %vm504, %vm540
      %vm562 = vmand %vm505, %vm538
      %vm563 = vmand %vm506, %vm539
      %vm564 = vmand %vm507, %vm540
      %vm565 = vmand %vm508, %vm538
      %vm566 = vmand %vm509, %vm539
      %vm567 = vmand %vm510, %vm540
      %vm568 = vmand %vm511, %vm538
      %vm569 = vmand %vm512, %vm539
      %vm570 = vmand %vm513, %vm540
      %vm571 = vmand %vm514, %vm538
      %vm572 = vmand %vm515, %vm539
      %vm573 = vmand %vm516, %vm540
      %vm574 = vmand %vm517, %vm538
      %vm575 = vmand %vm518, %vm539
      %vm576 = vmand %vm519, %vm540
      %vm577 = vmand %vm520, %vm538
      %vm578 = vmand %vm521, %vm539
      %vm579 = vmand %vm522, %vm540
      %vm580 = vmand %vm523, %vm538
      %vm581 = vmand %vm524, %vm539
      %vm582 = vmand %vm525, %vm540
      %vm583 = vmand %vm526, %vm538
      %vm584 = vmand %vm527, %vm539
      %vm585 = vmand %vm528, %vm540
      %vm586 = vmand %vm529, %vm538
      %vm587 = vmand %vm530, %vm539
      %vm588 = vmand %vm531, %vm540
      %vm589 = vmand %vm532, %vm538
      %vm590 = vmand %vm533, %vm539
      %vm591 = vmand %vm534, %vm540
      %vm592 = vmand %vm535, %vm538
      %vm593 = vmand %vm536, %vm539
      %vm594 = vmand %vm537, %vm540
      %v595 = vld [vmem:[%s253 + $0x7] sm:$0xff]
      %v596 = vld [vmem:[%s253 + $0xf] sm:$0xff]
      %v597 = vld [vmem:[%s253 + $0x17] sm:$0xff]
      %v598 = vld [vmem:[%s253 + $0x1f] sm:$0xff]
      %v599 = vld [vmem:[%s253 + $0x27] sm:$0xff]
      %v600 = vld [vmem:[%s253 + $0x2f] sm:$0xff]
      %v601 = vld [vmem:[%s253 + $0x37] sm:$0xff]
      %v602 = vld [vmem:[%s253 + $0x3f] sm:$0xff]
      %v603 = vld [vmem:[%s253 + $0x47] sm:$0xff]
      %v604 = vld [vmem:[%s253 + $0x4f] sm:$0xff]
      %v605 = vld [vmem:[%s253 + $0x57] sm:$0xff]
      %v606 = vld [vmem:[%s253 + $0x5f] sm:$0xff]
      %v607 = vld [vmem:[%s253 + $0x67] sm:$0xff]
      %v608 = vld [vmem:[%s253 + $0x6f] sm:$0xff]
      %v609 = vld [vmem:[%s253 + $0x77] sm:$0xff]
      %v610 = vld [vmem:[%s253 + $0x7f] sm:$0xff]
      %v611 = vld [vmem:[%s253 + $0x87] sm:$0xff]
      %v612 = vld [vmem:[%s253 + $0x8f] sm:$0xff]
      %v613 = vld [vmem:[%s253 + $0x97] sm:$0xff]
      %v614 = vld [vmem:[%s253 + $0x9f] sm:$0xff]
      %v615 = vld [vmem:[%s253 + $0xa7] sm:$0xff]
      %v616 = vld [vmem:[%s253 + $0xaf] sm:$0xff]
      %v617 = vld [vmem:[%s253 + $0xb7] sm:$0xff]
      %v618 = vld [vmem:[%s253 + $0xbf] sm:$0xff]
      %v619 = vld [vmem:[%s253 + $0xc7] sm:$0xff]
      %v620 = vld [vmem:[%s253 + $0xcf] sm:$0xff]
      %v621 = vld [vmem:[%s253 + $0xd7] sm:$0xff]
      %v622 = vld [vmem:[%s253 + $0xdf] sm:$0xff]
      %v623 = vld [vmem:[%s253 + $0xe7] sm:$0xff]
      %v624 = vld [vmem:[%s253 + $0xef] sm:$0xff]
      %v625 = vld [vmem:[%s253 + $0xf7] sm:$0xff]
      %v626 = vld [vmem:[%s253 + $0xff] sm:$0xff]
      %v627 = vld [vmem:[%s253 + $0x107] sm:$0xff]
      %v628 = vld [vmem:[%s253 + $0x10f] sm:$0xff]
      %v629 = vld [vmem:[%s253 + $0x117] sm:$0xff]
      %v630 = vld [vmem:[%s253 + $0x11f] sm:$0xff]
      %v631 = vld [vmem:[%s253 + $0x127] sm:$0xff]
      %v632 = vld [vmem:[%s253 + $0x12f] sm:$0xff]
      %v633 = vld [vmem:[%s253 + $0x137] sm:$0xff]
      %v634 = vld [vmem:[%s253 + $0x13f] sm:$0xff]
      %v635 = vld [vmem:[%s253 + $0x147] sm:$0xff]
      %v636 = vld [vmem:[%s253 + $0x14f] sm:$0xff]
      %v637 = vld [vmem:[%s253 + $0x157] sm:$0xff]
      %v638 = vld [vmem:[%s253 + $0x15f] sm:$0xff]
      %v639 = vld [vmem:[%s253 + $0x167] sm:$0xff]
      %v640 = vld [vmem:[%s253 + $0x16f] sm:$0xff]
      %v641 = vld [vmem:[%s253 + $0x177] sm:$0xff]
      %v642 = vld [vmem:[%s253 + $0x17f] sm:$0xff]
      %v643 = vld [vmem:[%s253 + $0x187] sm:$0xff]
      %v644 = vld [vmem:[%s253 + $0x18f] sm:$0xff]
      %v645 = vld [vmem:[%s253 + $0x197] sm:$0xff]
      %v646 = vld [vmem:[%s253 + $0x19f] sm:$0xff]
      %v647 = vld [vmem:[%s253 + $0x1a7] sm:$0xff]
      %v648 = vld [vmem:[%s253 + $0x1af] sm:$0xff]
      %v649 = vpack.c.bf16 %v596, %v595
      %v650 = vpack.c.bf16 %v598, %v597
      %v651 = vpack.c.bf16 %v600, %v599
      %v652 = vpack.c.bf16 %v602, %v601
      %v653 = vpack.c.bf16 %v604, %v603
      %v654 = vpack.c.bf16 %v606, %v605
      %v655 = vpack.c.bf16 %v608, %v607
      %v656 = vpack.c.bf16 %v610, %v609
      %v657 = vpack.c.bf16 %v612, %v611
      %v658 = vpack.c.bf16 %v614, %v613
      %v659 = vpack.c.bf16 %v616, %v615
      %v660 = vpack.c.bf16 %v618, %v617
      %v661 = vpack.c.bf16 %v620, %v619
      %v662 = vpack.c.bf16 %v622, %v621
      %v663 = vpack.c.bf16 %v624, %v623
      %v664 = vpack.c.bf16 %v626, %v625
      %v665 = vpack.c.bf16 %v628, %v627
      %v666 = vpack.c.bf16 %v630, %v629
      %v667 = vpack.c.bf16 %v632, %v631
      %v668 = vpack.c.bf16 %v634, %v633
      %v669 = vpack.c.bf16 %v636, %v635
      %v670 = vpack.c.bf16 %v638, %v637
      %v671 = vpack.c.bf16 %v640, %v639
      %v672 = vpack.c.bf16 %v642, %v641
      %v673 = vpack.c.bf16 %v644, %v643
      %v674 = vpack.c.bf16 %v646, %v645
      %v675 = vpack.c.bf16 %v648, %v647
      %v676 = vld [vmem:[%s1] sm:$0xf]
      %v677 = vld [vmem:[%s1 + $0x4] sm:$0xf]
      %v678 = vld [vmem:[%s1 + $0x8] sm:$0xf]
      %v679 = vld [vmem:[%s1 + $0xc] sm:$0xf]
      %v680 = vld [vmem:[%s1 + $0x10] sm:$0xf]
      %v681 = vld [vmem:[%s1 + $0x14] sm:$0xf]
      %v682 = vld [vmem:[%s1 + $0x18] sm:$0xf]
      %v683 = vld [vmem:[%s1 + $0x1c] sm:$0xf]
      %v684 = vld [vmem:[%s1 + $0x20] sm:$0xf]
      %v685 = vld [vmem:[%s1 + $0x24] sm:$0xf]
      %v686 = vld [vmem:[%s1 + $0x28] sm:$0xf]
      %v687 = vld [vmem:[%s1 + $0x2c] sm:$0xf]
      %v688 = vld [vmem:[%s1 + $0x30] sm:$0xf]
      %v689 = vld [vmem:[%s1 + $0x34] sm:$0xf]
      %v690 = vld [vmem:[%s1 + $0x38] sm:$0xf]
      %v691 = vld [vmem:[%s1 + $0x3c] sm:$0xf]
      %v692 = vld [vmem:[%s253 + $0x8] sm:$0xff]
      %v693 = vld [vmem:[%s253 + $0x10] sm:$0xff]
      %v694 = vld [vmem:[%s253 + $0x18] sm:$0xff]
      %v695 = vld [vmem:[%s253 + $0x20] sm:$0xff]
      %v696 = vld [vmem:[%s253 + $0x28] sm:$0xff]
      %v697 = vld [vmem:[%s253 + $0x30] sm:$0xff]
      %v698 = vld [vmem:[%s253 + $0x38] sm:$0xff]
      %v699 = vld [vmem:[%s253 + $0x40] sm:$0xff]
      %v700 = vld [vmem:[%s253 + $0x48] sm:$0xff]
      %v701 = vld [vmem:[%s253 + $0x50] sm:$0xff]
      %v702 = vld [vmem:[%s253 + $0x58] sm:$0xff]
      %v703 = vld [vmem:[%s253 + $0x60] sm:$0xff]
      %v704 = vld [vmem:[%s253 + $0x68] sm:$0xff]
      %v705 = vld [vmem:[%s253 + $0x70] sm:$0xff]
      %v706 = vld [vmem:[%s253 + $0x78] sm:$0xff]
      %v707 = vld [vmem:[%s253 + $0x80] sm:$0xff]
      %v708 = vld [vmem:[%s253 + $0x88] sm:$0xff]
      %v709 = vld [vmem:[%s253 + $0x90] sm:$0xff]
      %v710 = vld [vmem:[%s253 + $0x98] sm:$0xff]
      %v711 = vld [vmem:[%s253 + $0xa0] sm:$0xff]
      %v712 = vld [vmem:[%s253 + $0xa8] sm:$0xff]
      %v713 = vld [vmem:[%s253 + $0xb0] sm:$0xff]
      %v714 = vld [vmem:[%s253 + $0xb8] sm:$0xff]
      %v715 = vld [vmem:[%s253 + $0xc0] sm:$0xff]
      %v716 = vld [vmem:[%s253 + $0xc8] sm:$0xff]
      %v717 = vld [vmem:[%s253 + $0xd0] sm:$0xff]
      %v718 = vld [vmem:[%s253 + $0xd8] sm:$0xff]
      %v719 = vld [vmem:[%s253 + $0xe0] sm:$0xff]
      %v720 = vld [vmem:[%s253 + $0xe8] sm:$0xff]
      %v721 = vld [vmem:[%s253 + $0xf0] sm:$0xff]
      %v722 = vld [vmem:[%s253 + $0xf8] sm:$0xff]
      %v723 = vld [vmem:[%s253 + $0x100] sm:$0xff]
      %v724 = vld [vmem:[%s253 + $0x108] sm:$0xff]
      %v725 = vld [vmem:[%s253 + $0x110] sm:$0xff]
      %v726 = vld [vmem:[%s253 + $0x118] sm:$0xff]
      %v727 = vld [vmem:[%s253 + $0x120] sm:$0xff]
      %v728 = vld [vmem:[%s253 + $0x128] sm:$0xff]
      %v729 = vld [vmem:[%s253 + $0x130] sm:$0xff]
      %v730 = vld [vmem:[%s253 + $0x138] sm:$0xff]
      %v731 = vld [vmem:[%s253 + $0x140] sm:$0xff]
      %v732 = vld [vmem:[%s253 + $0x148] sm:$0xff]
      %v733 = vld [vmem:[%s253 + $0x150] sm:$0xff]
      %v734 = vld [vmem:[%s253 + $0x158] sm:$0xff]
      %v735 = vld [vmem:[%s253 + $0x160] sm:$0xff]
      %v736 = vld [vmem:[%s253 + $0x168] sm:$0xff]
      %v737 = vld [vmem:[%s253 + $0x170] sm:$0xff]
      %v738 = vld [vmem:[%s253 + $0x178] sm:$0xff]
      %v739 = vld [vmem:[%s253 + $0x180] sm:$0xff]
      %v740 = vld [vmem:[%s253 + $0x188] sm:$0xff]
      %v741 = vld [vmem:[%s253 + $0x190] sm:$0xff]
      %v742 = vld [vmem:[%s253 + $0x198] sm:$0xff]
      %v743 = vld [vmem:[%s253 + $0x1a0] sm:$0xff]
      %v744 = vld [vmem:[%s253 + $0x1a8] sm:$0xff]
      %v745 = vld [vmem:[%s253 + $0x1b0] sm:$0xff]
      %v746 = vpack.c.bf16 %v693, %v692
      %v747 = vpack.c.bf16 %v695, %v694
      %v748 = vpack.c.bf16 %v697, %v696
      %v749 = vpack.c.bf16 %v699, %v698
      %v750 = vpack.c.bf16 %v701, %v700
      %v751 = vpack.c.bf16 %v703, %v702
      %v752 = vpack.c.bf16 %v705, %v704
      %v753 = vpack.c.bf16 %v707, %v706
      %v754 = vpack.c.bf16 %v709, %v708
      %v755 = vpack.c.bf16 %v711, %v710
      %v756 = vpack.c.bf16 %v713, %v712
      %v757 = vpack.c.bf16 %v715, %v714
      %v758 = vpack.c.bf16 %v717, %v716
      %v759 = vpack.c.bf16 %v719, %v718
      %v760 = vpack.c.bf16 %v721, %v720
      %v761 = vpack.c.bf16 %v723, %v722
      %v762 = vpack.c.bf16 %v725, %v724
      %v763 = vpack.c.bf16 %v727, %v726
      %v764 = vpack.c.bf16 %v729, %v728
      %v765 = vpack.c.bf16 %v731, %v730
      %v766 = vpack.c.bf16 %v733, %v732
      %v767 = vpack.c.bf16 %v735, %v734
      %v768 = vpack.c.bf16 %v737, %v736
      %v769 = vpack.c.bf16 %v739, %v738
      %v770 = vpack.c.bf16 %v741, %v740
      %v771 = vpack.c.bf16 %v743, %v742
      %v772 = vpack.c.bf16 %v745, %v744
      %s773 = scalar_lea.vmem %s1, 64
      %v774 = vld [vmem:[%s773] sm:$0xf]
      %v775 = vld [vmem:[%s773 + $0x4] sm:$0xf]
      %v776 = vld [vmem:[%s773 + $0x8] sm:$0xf]
      %v777 = vld [vmem:[%s773 + $0xc] sm:$0xf]
      %v778 = vld [vmem:[%s773 + $0x10] sm:$0xf]
      %v779 = vld [vmem:[%s773 + $0x14] sm:$0xf]
      %v780 = vld [vmem:[%s773 + $0x18] sm:$0xf]
      %v781 = vld [vmem:[%s773 + $0x1c] sm:$0xf]
      %v782 = vld [vmem:[%s773 + $0x20] sm:$0xf]
      %v783 = vld [vmem:[%s773 + $0x24] sm:$0xf]
      %v784 = vld [vmem:[%s773 + $0x28] sm:$0xf]
      %v785 = vld [vmem:[%s773 + $0x2c] sm:$0xf]
      %v786 = vld [vmem:[%s773 + $0x30] sm:$0xf]
      %v787 = vld [vmem:[%s773 + $0x34] sm:$0xf]
      %v788 = vld [vmem:[%s773 + $0x38] sm:$0xf]
      %v789 = vld [vmem:[%s773 + $0x3c] sm:$0xf]
      %v806 = vunpack.c.l.b16 %v774
      %v807 = vunpack.c.l.b16 %v775
      %v808 = vunpack.c.l.b16 %v776
      %v809 = vunpack.c.l.b16 %v777
      %v810 = vunpack.c.l.b16 %v778
      %v811 = vunpack.c.l.b16 %v779
      %v812 = vunpack.c.l.b16 %v780
      %v813 = vunpack.c.l.b16 %v781
      %v814 = vunpack.c.l.b16 %v782
      %v815 = vunpack.c.l.b16 %v783
      %v816 = vunpack.c.l.b16 %v784
      %v817 = vunpack.c.l.b16 %v785
      %v818 = vunpack.c.l.b16 %v786
      %v819 = vunpack.c.l.b16 %v787
      %v820 = vunpack.c.l.b16 %v788
      %v821 = vunpack.c.l.b16 %v789
      %v822 = vpack.c.b16 %v807, %v806
      %v823 = vpack.c.b16 %v809, %v808
      %v824 = vpack.c.b16 %v811, %v810
      %v825 = vpack.c.b16 %v813, %v812
      %v826 = vpack.c.b16 %v815, %v814
      %v827 = vpack.c.b16 %v817, %v816
      %v828 = vpack.c.b16 %v819, %v818
      %v829 = vpack.c.b16 %v821, %v820
      %838 = vmatprep.subr.bf16.mxu0 0
      %839 = vmatpush1.bf16.msra.mxu0 %v829
      %840 = vmatprep.subr.bf16.mxu0 0
      %841 = vmatpush1.bf16.msra.mxu0 %v828
      %842 = vmatprep.subr.bf16.mxu0 0
      %843 = vmatpush1.bf16.msra.mxu0 %v827
      %844 = vmatprep.subr.bf16.mxu0 0
      %845 = vmatpush1.bf16.msra.mxu0 %v826
      %846 = vmatprep.subr.bf16.mxu0 0
      %847 = vmatpush1.bf16.msra.mxu0 %v825
      %848 = vmatprep.subr.bf16.mxu0 0
      %849 = vmatpush1.bf16.msra.mxu0 %v824
      %850 = vmatprep.subr.bf16.mxu0 0
      %851 = vmatpush1.bf16.msra.mxu0 %v823
      %852 = vmatprep.subr.bf16.mxu0 0
      %853 = vmatpush1.bf16.msra.mxu0 %v822
      %854 = vmatprep.subr.bf16.mxu0 0
      %855 = vmatpush2.bf16.msra.mxu0 0
      %856 = vmatprep.subr.bf16.mxu0 0
      %857 = vmatpush2.bf16.msra.mxu0 0
      %858 = vmatprep.subr.bf16.mxu0 0
      %859 = vmatpush2.bf16.msra.mxu0 0
      %860 = vmatprep.subr.bf16.mxu0 0
      %861 = vmatpush2.bf16.msra.mxu0 0
      %862 = vmatprep.subr.bf16.mxu0 0
      %863 = vmatpush2.bf16.msra.mxu0 0
      %864 = vmatprep.subr.bf16.mxu0 0
      %865 = vmatpush2.bf16.msra.mxu0 0
      %866 = vmatprep.subr.bf16.mxu0 0
      %867 = vmatpush2.bf16.msra.mxu0 0
      %868 = vmatprep.subr.bf16.mxu0 0
      %869 = vmatpush2.bf16.msra.mxu0 0
      %870 = vmatprep.mubr.bf16.mxu0 0
      %871 = vmatmul.mubr.bf16.gmra.mxu0 %v746
      %v872 = vpop.f32.mrf.mxu0
      %v873 = vadd.f32 0.0, %v872
      %v874 = vpop.f32.mrf.mxu0
      %v875 = vpop.f32.mrf.mxu0
      %v876 = vadd.f32 0.0, %v875
      %v877 = vpop.f32.mrf.mxu0
      %878 = vmatprep.mubr.bf16.mxu0 0
      %879 = vmatmul.mubr.bf16.gmra.mxu0 %v747
      %v880 = vpop.f32.mrf.mxu0
      %v881 = vadd.f32 0.0, %v880
      %v882 = vpop.f32.mrf.mxu0
      %v883 = vpop.f32.mrf.mxu0
      %v884 = vadd.f32 0.0, %v883
      %v885 = vpop.f32.mrf.mxu0
      %886 = vmatprep.mubr.bf16.mxu0 0
      %887 = vmatmul.mubr.bf16.gmra.mxu0 %v748
      %v888 = vpop.f32.mrf.mxu0
      %v889 = vadd.f32 0.0, %v888
      %v890 = vpop.f32.mrf.mxu0
      %v891 = vpop.f32.mrf.mxu0
      %v892 = vadd.f32 0.0, %v891
      %v893 = vpop.f32.mrf.mxu0
      %894 = vmatprep.mubr.bf16.mxu0 0
      %895 = vmatmul.mubr.bf16.gmra.mxu0 %v749
      %v896 = vpop.f32.mrf.mxu0
      %v897 = vadd.f32 0.0, %v896
      %v898 = vpop.f32.mrf.mxu0
      %v899 = vpop.f32.mrf.mxu0
      %v900 = vadd.f32 0.0, %v899
      %v901 = vpop.f32.mrf.mxu0
      %902 = vmatprep.mubr.bf16.mxu0 0
      %903 = vmatmul.mubr.bf16.gmra.mxu0 %v750
      %v904 = vpop.f32.mrf.mxu0
      %v905 = vadd.f32 0.0, %v904
      %v906 = vpop.f32.mrf.mxu0
      %v907 = vpop.f32.mrf.mxu0
      %v908 = vadd.f32 0.0, %v907
      %v909 = vpop.f32.mrf.mxu0
      %910 = vmatprep.mubr.bf16.mxu0 0
      %911 = vmatmul.mubr.bf16.gmra.mxu0 %v751
      %v912 = vpop.f32.mrf.mxu0
      %v913 = vadd.f32 0.0, %v912
      %v914 = vpop.f32.mrf.mxu0
      %v915 = vpop.f32.mrf.mxu0
      %v916 = vadd.f32 0.0, %v915
      %v917 = vpop.f32.mrf.mxu0
      %918 = vmatprep.mubr.bf16.mxu0 0
      %919 = vmatmul.mubr.bf16.gmra.mxu0 %v752
      %v920 = vpop.f32.mrf.mxu0
      %v921 = vadd.f32 0.0, %v920
      %v922 = vpop.f32.mrf.mxu0
      %v923 = vpop.f32.mrf.mxu0
      %v924 = vadd.f32 0.0, %v923
      %v925 = vpop.f32.mrf.mxu0
      %926 = vmatprep.mubr.bf16.mxu0 0
      %927 = vmatmul.mubr.bf16.gmra.mxu0 %v753
      %v928 = vpop.f32.mrf.mxu0
      %v929 = vadd.f32 0.0, %v928
      %v930 = vpop.f32.mrf.mxu0
      %v931 = vpop.f32.mrf.mxu0
      %v932 = vadd.f32 0.0, %v931
      %v933 = vpop.f32.mrf.mxu0
      %934 = vmatprep.mubr.bf16.mxu0 0
      %935 = vmatmul.mubr.bf16.gmra.mxu0 %v754
      %v936 = vpop.f32.mrf.mxu0
      %v937 = vadd.f32 0.0, %v936
      %v938 = vpop.f32.mrf.mxu0
      %v939 = vpop.f32.mrf.mxu0
      %v940 = vadd.f32 0.0, %v939
      %v941 = vpop.f32.mrf.mxu0
      %942 = vmatprep.mubr.bf16.mxu0 0
      %943 = vmatmul.mubr.bf16.gmra.mxu0 %v755
      %v944 = vpop.f32.mrf.mxu0
      %v945 = vadd.f32 0.0, %v944
      %v946 = vpop.f32.mrf.mxu0
      %v947 = vpop.f32.mrf.mxu0
      %v948 = vadd.f32 0.0, %v947
      %v949 = vpop.f32.mrf.mxu0
      %950 = vmatprep.mubr.bf16.mxu0 0
      %951 = vmatmul.mubr.bf16.gmra.mxu0 %v756
      %v952 = vpop.f32.mrf.mxu0
      %v953 = vadd.f32 0.0, %v952
      %v954 = vpop.f32.mrf.mxu0
      %v955 = vpop.f32.mrf.mxu0
      %v956 = vadd.f32 0.0, %v955
      %v957 = vpop.f32.mrf.mxu0
      %958 = vmatprep.mubr.bf16.mxu0 0
      %959 = vmatmul.mubr.bf16.gmra.mxu0 %v757
      %v960 = vpop.f32.mrf.mxu0
      %v961 = vadd.f32 0.0, %v960
      %v962 = vpop.f32.mrf.mxu0
      %v963 = vpop.f32.mrf.mxu0
      %v964 = vadd.f32 0.0, %v963
      %v965 = vpop.f32.mrf.mxu0
      %966 = vmatprep.mubr.bf16.mxu0 0
      %967 = vmatmul.mubr.bf16.gmra.mxu0 %v758
      %v968 = vpop.f32.mrf.mxu0
      %v969 = vadd.f32 0.0, %v968
      %v970 = vpop.f32.mrf.mxu0
      %v971 = vpop.f32.mrf.mxu0
      %v972 = vadd.f32 0.0, %v971
      %v973 = vpop.f32.mrf.mxu0
      %974 = vmatprep.mubr.bf16.mxu0 0
      %975 = vmatmul.mubr.bf16.gmra.mxu0 %v759
      %v976 = vpop.f32.mrf.mxu0
      %v977 = vadd.f32 0.0, %v976
      %v978 = vpop.f32.mrf.mxu0
      %v979 = vpop.f32.mrf.mxu0
      %v980 = vadd.f32 0.0, %v979
      %v981 = vpop.f32.mrf.mxu0
      %982 = vmatprep.mubr.bf16.mxu0 0
      %983 = vmatmul.mubr.bf16.gmra.mxu0 %v760
      %v984 = vpop.f32.mrf.mxu0
      %v985 = vadd.f32 0.0, %v984
      %v986 = vpop.f32.mrf.mxu0
      %v987 = vpop.f32.mrf.mxu0
      %v988 = vadd.f32 0.0, %v987
      %v989 = vpop.f32.mrf.mxu0
      %990 = vmatprep.mubr.bf16.mxu0 0
      %991 = vmatmul.mubr.bf16.gmra.mxu0 %v761
      %v992 = vpop.f32.mrf.mxu0
      %v993 = vadd.f32 0.0, %v992
      %v994 = vpop.f32.mrf.mxu0
      %v995 = vpop.f32.mrf.mxu0
      %v996 = vadd.f32 0.0, %v995
      %v997 = vpop.f32.mrf.mxu0
      %998 = vmatprep.mubr.bf16.mxu0 0
      %999 = vmatmul.mubr.bf16.gmra.mxu0 %v762
      %v1000 = vpop.f32.mrf.mxu0
      %v1001 = vadd.f32 0.0, %v1000
      %v1002 = vpop.f32.mrf.mxu0
      %v1003 = vpop.f32.mrf.mxu0
      %v1004 = vadd.f32 0.0, %v1003
      %v1005 = vpop.f32.mrf.mxu0
      %1006 = vmatprep.mubr.bf16.mxu0 0
      %1007 = vmatmul.mubr.bf16.gmra.mxu0 %v763
      %v1008 = vpop.f32.mrf.mxu0
      %v1009 = vadd.f32 0.0, %v1008
      %v1010 = vpop.f32.mrf.mxu0
      %v1011 = vpop.f32.mrf.mxu0
      %v1012 = vadd.f32 0.0, %v1011
      %v1013 = vpop.f32.mrf.mxu0
      %1014 = vmatprep.mubr.bf16.mxu0 0
      %1015 = vmatmul.mubr.bf16.gmra.mxu0 %v764
      %v1016 = vpop.f32.mrf.mxu0
      %v1017 = vadd.f32 0.0, %v1016
      %v1018 = vpop.f32.mrf.mxu0
      %v1019 = vpop.f32.mrf.mxu0
      %v1020 = vadd.f32 0.0, %v1019
      %v1021 = vpop.f32.mrf.mxu0
      %1022 = vmatprep.mubr.bf16.mxu0 0
      %1023 = vmatmul.mubr.bf16.gmra.mxu0 %v765
      %v1024 = vpop.f32.mrf.mxu0
      %v1025 = vadd.f32 0.0, %v1024
      %v1026 = vpop.f32.mrf.mxu0
      %v1027 = vpop.f32.mrf.mxu0
      %v1028 = vadd.f32 0.0, %v1027
      %v1029 = vpop.f32.mrf.mxu0
      %1030 = vmatprep.mubr.bf16.mxu0 0
      %1031 = vmatmul.mubr.bf16.gmra.mxu0 %v766
      %v1032 = vpop.f32.mrf.mxu0
      %v1033 = vadd.f32 0.0, %v1032
      %v1034 = vpop.f32.mrf.mxu0
      %v1035 = vpop.f32.mrf.mxu0
      %v1036 = vadd.f32 0.0, %v1035
      %v1037 = vpop.f32.mrf.mxu0
      %1038 = vmatprep.mubr.bf16.mxu0 0
      %1039 = vmatmul.mubr.bf16.gmra.mxu0 %v767
      %v1040 = vpop.f32.mrf.mxu0
      %v1041 = vadd.f32 0.0, %v1040
      %v1042 = vpop.f32.mrf.mxu0
      %v1043 = vpop.f32.mrf.mxu0
      %v1044 = vadd.f32 0.0, %v1043
      %v1045 = vpop.f32.mrf.mxu0
      %1046 = vmatprep.mubr.bf16.mxu0 0
      %1047 = vmatmul.mubr.bf16.gmra.mxu0 %v768
      %v1048 = vpop.f32.mrf.mxu0
      %v1049 = vadd.f32 0.0, %v1048
      %v1050 = vpop.f32.mrf.mxu0
      %v1051 = vpop.f32.mrf.mxu0
      %v1052 = vadd.f32 0.0, %v1051
      %v1053 = vpop.f32.mrf.mxu0
      %1054 = vmatprep.mubr.bf16.mxu0 0
      %1055 = vmatmul.mubr.bf16.gmra.mxu0 %v769
      %v1056 = vpop.f32.mrf.mxu0
      %v1057 = vadd.f32 0.0, %v1056
      %v1058 = vpop.f32.mrf.mxu0
      %v1059 = vpop.f32.mrf.mxu0
      %v1060 = vadd.f32 0.0, %v1059
      %v1061 = vpop.f32.mrf.mxu0
      %1062 = vmatprep.mubr.bf16.mxu0 0
      %1063 = vmatmul.mubr.bf16.gmra.mxu0 %v770
      %v1064 = vpop.f32.mrf.mxu0
      %v1065 = vadd.f32 0.0, %v1064
      %v1066 = vpop.f32.mrf.mxu0
      %v1067 = vpop.f32.mrf.mxu0
      %v1068 = vadd.f32 0.0, %v1067
      %v1069 = vpop.f32.mrf.mxu0
      %1070 = vmatprep.mubr.bf16.mxu0 0
      %1071 = vmatmul.mubr.bf16.gmra.mxu0 %v771
      %v1072 = vpop.f32.mrf.mxu0
      %v1073 = vadd.f32 0.0, %v1072
      %v1074 = vpop.f32.mrf.mxu0
      %v1075 = vpop.f32.mrf.mxu0
      %v1076 = vadd.f32 0.0, %v1075
      %v1077 = vpop.f32.mrf.mxu0
      %1078 = vmatprep.mubr.bf16.mxu0 0
      %1079 = vmatmul.mubr.bf16.gmra.mxu0 %v772
      %v1080 = vpop.f32.mrf.mxu0
      %v1081 = vadd.f32 0.0, %v1080
      %v1082 = vpop.f32.mrf.mxu0
      %v1083 = vpop.f32.mrf.mxu0
      %v1084 = vadd.f32 0.0, %v1083
      %v1085 = vpop.f32.mrf.mxu0
      %1086 = vdwg.mxu0
      %v1103 = vunpack.c.l.b16 %v676
      %v1104 = vunpack.c.l.b16 %v677
      %v1105 = vunpack.c.l.b16 %v678
      %v1106 = vunpack.c.l.b16 %v679
      %v1107 = vunpack.c.l.b16 %v680
      %v1108 = vunpack.c.l.b16 %v681
      %v1109 = vunpack.c.l.b16 %v682
      %v1110 = vunpack.c.l.b16 %v683
      %v1111 = vunpack.c.l.b16 %v684
      %v1112 = vunpack.c.l.b16 %v685
      %v1113 = vunpack.c.l.b16 %v686
      %v1114 = vunpack.c.l.b16 %v687
      %v1115 = vunpack.c.l.b16 %v688
      %v1116 = vunpack.c.l.b16 %v689
      %v1117 = vunpack.c.l.b16 %v690
      %v1118 = vunpack.c.l.b16 %v691
      %v1119 = vpack.c.b16 %v1104, %v1103
      %v1120 = vpack.c.b16 %v1106, %v1105
      %v1121 = vpack.c.b16 %v1108, %v1107
      %v1122 = vpack.c.b16 %v1110, %v1109
      %v1123 = vpack.c.b16 %v1112, %v1111
      %v1124 = vpack.c.b16 %v1114, %v1113
      %v1125 = vpack.c.b16 %v1116, %v1115
      %v1126 = vpack.c.b16 %v1118, %v1117
      %1135 = vmatprep.subr.bf16.mxu0 0
      %1136 = vmatpush1.bf16.msra.mxu0 %v1126
      %1137 = vmatprep.subr.bf16.mxu0 0
      %1138 = vmatpush1.bf16.msra.mxu0 %v1125
      %1139 = vmatprep.subr.bf16.mxu0 0
      %1140 = vmatpush1.bf16.msra.mxu0 %v1124
      %1141 = vmatprep.subr.bf16.mxu0 0
      %1142 = vmatpush1.bf16.msra.mxu0 %v1123
      %1143 = vmatprep.subr.bf16.mxu0 0
      %1144 = vmatpush1.bf16.msra.mxu0 %v1122
      %1145 = vmatprep.subr.bf16.mxu0 0
      %1146 = vmatpush1.bf16.msra.mxu0 %v1121
      %1147 = vmatprep.subr.bf16.mxu0 0
      %1148 = vmatpush1.bf16.msra.mxu0 %v1120
      %1149 = vmatprep.subr.bf16.mxu0 0
      %1150 = vmatpush1.bf16.msra.mxu0 %v1119
      %1151 = vmatprep.subr.bf16.mxu0 0
      %1152 = vmatpush2.bf16.msra.mxu0 0
      %1153 = vmatprep.subr.bf16.mxu0 0
      %1154 = vmatpush2.bf16.msra.mxu0 0
      %1155 = vmatprep.subr.bf16.mxu0 0
      %1156 = vmatpush2.bf16.msra.mxu0 0
      %1157 = vmatprep.subr.bf16.mxu0 0
      %1158 = vmatpush2.bf16.msra.mxu0 0
      %1159 = vmatprep.subr.bf16.mxu0 0
      %1160 = vmatpush2.bf16.msra.mxu0 0
      %1161 = vmatprep.subr.bf16.mxu0 0
      %1162 = vmatpush2.bf16.msra.mxu0 0
      %1163 = vmatprep.subr.bf16.mxu0 0
      %1164 = vmatpush2.bf16.msra.mxu0 0
      %1165 = vmatprep.subr.bf16.mxu0 0
      %1166 = vmatpush2.bf16.msra.mxu0 0
      %1167 = vmatprep.mubr.bf16.mxu0 0
      %1168 = vmatmul.mubr.bf16.gmra.mxu0 %v649
      %v1169 = vpop.f32.mrf.mxu0
      %v1170 = vadd.f32 %v873, %v1169
      %v1171 = vpop.f32.mrf.mxu0
      %v1172 = vpop.f32.mrf.mxu0
      %v1173 = vadd.f32 %v876, %v1172
      %v1174 = vpop.f32.mrf.mxu0
      %1175 = vmatprep.mubr.bf16.mxu0 0
      %1176 = vmatmul.mubr.bf16.gmra.mxu0 %v650
      %v1177 = vpop.f32.mrf.mxu0
      %v1178 = vadd.f32 %v881, %v1177
      %v1179 = vpop.f32.mrf.mxu0
      %v1180 = vpop.f32.mrf.mxu0
      %v1181 = vadd.f32 %v884, %v1180
      %v1182 = vpop.f32.mrf.mxu0
      %1183 = vmatprep.mubr.bf16.mxu0 0
      %1184 = vmatmul.mubr.bf16.gmra.mxu0 %v651
      %v1185 = vpop.f32.mrf.mxu0
      %v1186 = vadd.f32 %v889, %v1185
      %v1187 = vpop.f32.mrf.mxu0
      %v1188 = vpop.f32.mrf.mxu0
      %v1189 = vadd.f32 %v892, %v1188
      %v1190 = vpop.f32.mrf.mxu0
      %1191 = vmatprep.mubr.bf16.mxu0 0
      %1192 = vmatmul.mubr.bf16.gmra.mxu0 %v652
      %v1193 = vpop.f32.mrf.mxu0
      %v1194 = vadd.f32 %v897, %v1193
      %v1195 = vpop.f32.mrf.mxu0
      %v1196 = vpop.f32.mrf.mxu0
      %v1197 = vadd.f32 %v900, %v1196
      %v1198 = vpop.f32.mrf.mxu0
      %1199 = vmatprep.mubr.bf16.mxu0 0
      %1200 = vmatmul.mubr.bf16.gmra.mxu0 %v653
      %v1201 = vpop.f32.mrf.mxu0
      %v1202 = vadd.f32 %v905, %v1201
      %v1203 = vpop.f32.mrf.mxu0
      %v1204 = vpop.f32.mrf.mxu0
      %v1205 = vadd.f32 %v908, %v1204
      %v1206 = vpop.f32.mrf.mxu0
      %1207 = vmatprep.mubr.bf16.mxu0 0
      %1208 = vmatmul.mubr.bf16.gmra.mxu0 %v654
      %v1209 = vpop.f32.mrf.mxu0
      %v1210 = vadd.f32 %v913, %v1209
      %v1211 = vpop.f32.mrf.mxu0
      %v1212 = vpop.f32.mrf.mxu0
      %v1213 = vadd.f32 %v916, %v1212
      %v1214 = vpop.f32.mrf.mxu0
      %1215 = vmatprep.mubr.bf16.mxu0 0
      %1216 = vmatmul.mubr.bf16.gmra.mxu0 %v655
      %v1217 = vpop.f32.mrf.mxu0
      %v1218 = vadd.f32 %v921, %v1217
      %v1219 = vpop.f32.mrf.mxu0
      %v1220 = vpop.f32.mrf.mxu0
      %v1221 = vadd.f32 %v924, %v1220
      %v1222 = vpop.f32.mrf.mxu0
      %1223 = vmatprep.mubr.bf16.mxu0 0
      %1224 = vmatmul.mubr.bf16.gmra.mxu0 %v656
      %v1225 = vpop.f32.mrf.mxu0
      %v1226 = vadd.f32 %v929, %v1225
      %v1227 = vpop.f32.mrf.mxu0
      %v1228 = vpop.f32.mrf.mxu0
      %v1229 = vadd.f32 %v932, %v1228
      %v1230 = vpop.f32.mrf.mxu0
      %1231 = vmatprep.mubr.bf16.mxu0 0
      %1232 = vmatmul.mubr.bf16.gmra.mxu0 %v657
      %v1233 = vpop.f32.mrf.mxu0
      %v1234 = vadd.f32 %v937, %v1233
      %v1235 = vpop.f32.mrf.mxu0
      %v1236 = vpop.f32.mrf.mxu0
      %v1237 = vadd.f32 %v940, %v1236
      %v1238 = vpop.f32.mrf.mxu0
      %1239 = vmatprep.mubr.bf16.mxu0 0
      %1240 = vmatmul.mubr.bf16.gmra.mxu0 %v658
      %v1241 = vpop.f32.mrf.mxu0
      %v1242 = vadd.f32 %v945, %v1241
      %v1243 = vpop.f32.mrf.mxu0
      %v1244 = vpop.f32.mrf.mxu0
      %v1245 = vadd.f32 %v948, %v1244
      %v1246 = vpop.f32.mrf.mxu0
      %1247 = vmatprep.mubr.bf16.mxu0 0
      %1248 = vmatmul.mubr.bf16.gmra.mxu0 %v659
      %v1249 = vpop.f32.mrf.mxu0
      %v1250 = vadd.f32 %v953, %v1249
      %v1251 = vpop.f32.mrf.mxu0
      %v1252 = vpop.f32.mrf.mxu0
      %v1253 = vadd.f32 %v956, %v1252
      %v1254 = vpop.f32.mrf.mxu0
      %1255 = vmatprep.mubr.bf16.mxu0 0
      %1256 = vmatmul.mubr.bf16.gmra.mxu0 %v660
      %v1257 = vpop.f32.mrf.mxu0
      %v1258 = vadd.f32 %v961, %v1257
      %v1259 = vpop.f32.mrf.mxu0
      %v1260 = vpop.f32.mrf.mxu0
      %v1261 = vadd.f32 %v964, %v1260
      %v1262 = vpop.f32.mrf.mxu0
      %1263 = vmatprep.mubr.bf16.mxu0 0
      %1264 = vmatmul.mubr.bf16.gmra.mxu0 %v661
      %v1265 = vpop.f32.mrf.mxu0
      %v1266 = vadd.f32 %v969, %v1265
      %v1267 = vpop.f32.mrf.mxu0
      %v1268 = vpop.f32.mrf.mxu0
      %v1269 = vadd.f32 %v972, %v1268
      %v1270 = vpop.f32.mrf.mxu0
      %1271 = vmatprep.mubr.bf16.mxu0 0
      %1272 = vmatmul.mubr.bf16.gmra.mxu0 %v662
      %v1273 = vpop.f32.mrf.mxu0
      %v1274 = vadd.f32 %v977, %v1273
      %v1275 = vpop.f32.mrf.mxu0
      %v1276 = vpop.f32.mrf.mxu0
      %v1277 = vadd.f32 %v980, %v1276
      %v1278 = vpop.f32.mrf.mxu0
      %1279 = vmatprep.mubr.bf16.mxu0 0
      %1280 = vmatmul.mubr.bf16.gmra.mxu0 %v663
      %v1281 = vpop.f32.mrf.mxu0
      %v1282 = vadd.f32 %v985, %v1281
      %v1283 = vpop.f32.mrf.mxu0
      %v1284 = vpop.f32.mrf.mxu0
      %v1285 = vadd.f32 %v988, %v1284
      %v1286 = vpop.f32.mrf.mxu0
      %1287 = vmatprep.mubr.bf16.mxu0 0
      %1288 = vmatmul.mubr.bf16.gmra.mxu0 %v664
      %v1289 = vpop.f32.mrf.mxu0
      %v1290 = vadd.f32 %v993, %v1289
      %v1291 = vpop.f32.mrf.mxu0
      %v1292 = vpop.f32.mrf.mxu0
      %v1293 = vadd.f32 %v996, %v1292
      %v1294 = vpop.f32.mrf.mxu0
      %1295 = vmatprep.mubr.bf16.mxu0 0
      %1296 = vmatmul.mubr.bf16.gmra.mxu0 %v665
      %v1297 = vpop.f32.mrf.mxu0
      %v1298 = vadd.f32 %v1001, %v1297
      %v1299 = vpop.f32.mrf.mxu0
      %v1300 = vpop.f32.mrf.mxu0
      %v1301 = vadd.f32 %v1004, %v1300
      %v1302 = vpop.f32.mrf.mxu0
      %1303 = vmatprep.mubr.bf16.mxu0 0
      %1304 = vmatmul.mubr.bf16.gmra.mxu0 %v666
      %v1305 = vpop.f32.mrf.mxu0
      %v1306 = vadd.f32 %v1009, %v1305
      %v1307 = vpop.f32.mrf.mxu0
      %v1308 = vpop.f32.mrf.mxu0
      %v1309 = vadd.f32 %v1012, %v1308
      %v1310 = vpop.f32.mrf.mxu0
      %1311 = vmatprep.mubr.bf16.mxu0 0
      %1312 = vmatmul.mubr.bf16.gmra.mxu0 %v667
      %v1313 = vpop.f32.mrf.mxu0
      %v1314 = vadd.f32 %v1017, %v1313
      %v1315 = vpop.f32.mrf.mxu0
      %v1316 = vpop.f32.mrf.mxu0
      %v1317 = vadd.f32 %v1020, %v1316
      %v1318 = vpop.f32.mrf.mxu0
      %1319 = vmatprep.mubr.bf16.mxu0 0
      %1320 = vmatmul.mubr.bf16.gmra.mxu0 %v668
      %v1321 = vpop.f32.mrf.mxu0
      %v1322 = vadd.f32 %v1025, %v1321
      %v1323 = vpop.f32.mrf.mxu0
      %v1324 = vpop.f32.mrf.mxu0
      %v1325 = vadd.f32 %v1028, %v1324
      %v1326 = vpop.f32.mrf.mxu0
      %1327 = vmatprep.mubr.bf16.mxu0 0
      %1328 = vmatmul.mubr.bf16.gmra.mxu0 %v669
      %v1329 = vpop.f32.mrf.mxu0
      %v1330 = vadd.f32 %v1033, %v1329
      %v1331 = vpop.f32.mrf.mxu0
      %v1332 = vpop.f32.mrf.mxu0
      %v1333 = vadd.f32 %v1036, %v1332
      %v1334 = vpop.f32.mrf.mxu0
      %1335 = vmatprep.mubr.bf16.mxu0 0
      %1336 = vmatmul.mubr.bf16.gmra.mxu0 %v670
      %v1337 = vpop.f32.mrf.mxu0
      %v1338 = vadd.f32 %v1041, %v1337
      %v1339 = vpop.f32.mrf.mxu0
      %v1340 = vpop.f32.mrf.mxu0
      %v1341 = vadd.f32 %v1044, %v1340
      %v1342 = vpop.f32.mrf.mxu0
      %1343 = vmatprep.mubr.bf16.mxu0 0
      %1344 = vmatmul.mubr.bf16.gmra.mxu0 %v671
      %v1345 = vpop.f32.mrf.mxu0
      %v1346 = vadd.f32 %v1049, %v1345
      %v1347 = vpop.f32.mrf.mxu0
      %v1348 = vpop.f32.mrf.mxu0
      %v1349 = vadd.f32 %v1052, %v1348
      %v1350 = vpop.f32.mrf.mxu0
      %1351 = vmatprep.mubr.bf16.mxu0 0
      %1352 = vmatmul.mubr.bf16.gmra.mxu0 %v672
      %v1353 = vpop.f32.mrf.mxu0
      %v1354 = vadd.f32 %v1057, %v1353
      %v1355 = vpop.f32.mrf.mxu0
      %v1356 = vpop.f32.mrf.mxu0
      %v1357 = vadd.f32 %v1060, %v1356
      %v1358 = vpop.f32.mrf.mxu0
      %1359 = vmatprep.mubr.bf16.mxu0 0
      %1360 = vmatmul.mubr.bf16.gmra.mxu0 %v673
      %v1361 = vpop.f32.mrf.mxu0
      %v1362 = vadd.f32 %v1065, %v1361
      %v1363 = vpop.f32.mrf.mxu0
      %v1364 = vpop.f32.mrf.mxu0
      %v1365 = vadd.f32 %v1068, %v1364
      %v1366 = vpop.f32.mrf.mxu0
      %1367 = vmatprep.mubr.bf16.mxu0 0
      %1368 = vmatmul.mubr.bf16.gmra.mxu0 %v674
      %v1369 = vpop.f32.mrf.mxu0
      %v1370 = vadd.f32 %v1073, %v1369
      %v1371 = vpop.f32.mrf.mxu0
      %v1372 = vpop.f32.mrf.mxu0
      %v1373 = vadd.f32 %v1076, %v1372
      %v1374 = vpop.f32.mrf.mxu0
      %1375 = vmatprep.mubr.bf16.mxu0 0
      %1376 = vmatmul.mubr.bf16.gmra.mxu0 %v675
      %v1377 = vpop.f32.mrf.mxu0
      %v1378 = vadd.f32 %v1081, %v1377
      %v1379 = vpop.f32.mrf.mxu0
      %v1380 = vpop.f32.mrf.mxu0
      %v1381 = vadd.f32 %v1084, %v1380
      %v1382 = vpop.f32.mrf.mxu0
      %1383 = vdwg.mxu0
      %v1384 = vld [vmem:[%s253 + $0x9] sm:$0xff]
      %v1385 = vld [vmem:[%s253 + $0x11] sm:$0xff]
      %v1386 = vld [vmem:[%s253 + $0x19] sm:$0xff]
      %v1387 = vld [vmem:[%s253 + $0x21] sm:$0xff]
      %v1388 = vld [vmem:[%s253 + $0x29] sm:$0xff]
      %v1389 = vld [vmem:[%s253 + $0x31] sm:$0xff]
      %v1390 = vld [vmem:[%s253 + $0x39] sm:$0xff]
      %v1391 = vld [vmem:[%s253 + $0x41] sm:$0xff]
      %v1392 = vld [vmem:[%s253 + $0x49] sm:$0xff]
      %v1393 = vld [vmem:[%s253 + $0x51] sm:$0xff]
      %v1394 = vld [vmem:[%s253 + $0x59] sm:$0xff]
      %v1395 = vld [vmem:[%s253 + $0x61] sm:$0xff]
      %v1396 = vld [vmem:[%s253 + $0x69] sm:$0xff]
      %v1397 = vld [vmem:[%s253 + $0x71] sm:$0xff]
      %v1398 = vld [vmem:[%s253 + $0x79] sm:$0xff]
      %v1399 = vld [vmem:[%s253 + $0x81] sm:$0xff]
      %v1400 = vld [vmem:[%s253 + $0x89] sm:$0xff]
      %v1401 = vld [vmem:[%s253 + $0x91] sm:$0xff]
      %v1402 = vld [vmem:[%s253 + $0x99] sm:$0xff]
      %v1403 = vld [vmem:[%s253 + $0xa1] sm:$0xff]
      %v1404 = vld [vmem:[%s253 + $0xa9] sm:$0xff]
      %v1405 = vld [vmem:[%s253 + $0xb1] sm:$0xff]
      %v1406 = vld [vmem:[%s253 + $0xb9] sm:$0xff]
      %v1407 = vld [vmem:[%s253 + $0xc1] sm:$0xff]
      %v1408 = vld [vmem:[%s253 + $0xc9] sm:$0xff]
      %v1409 = vld [vmem:[%s253 + $0xd1] sm:$0xff]
      %v1410 = vld [vmem:[%s253 + $0xd9] sm:$0xff]
      %v1411 = vld [vmem:[%s253 + $0xe1] sm:$0xff]
      %v1412 = vld [vmem:[%s253 + $0xe9] sm:$0xff]
      %v1413 = vld [vmem:[%s253 + $0xf1] sm:$0xff]
      %v1414 = vld [vmem:[%s253 + $0xf9] sm:$0xff]
      %v1415 = vld [vmem:[%s253 + $0x101] sm:$0xff]
      %v1416 = vld [vmem:[%s253 + $0x109] sm:$0xff]
      %v1417 = vld [vmem:[%s253 + $0x111] sm:$0xff]
      %v1418 = vld [vmem:[%s253 + $0x119] sm:$0xff]
      %v1419 = vld [vmem:[%s253 + $0x121] sm:$0xff]
      %v1420 = vld [vmem:[%s253 + $0x129] sm:$0xff]
      %v1421 = vld [vmem:[%s253 + $0x131] sm:$0xff]
      %v1422 = vld [vmem:[%s253 + $0x139] sm:$0xff]
      %v1423 = vld [vmem:[%s253 + $0x141] sm:$0xff]
      %v1424 = vld [vmem:[%s253 + $0x149] sm:$0xff]
      %v1425 = vld [vmem:[%s253 + $0x151] sm:$0xff]
      %v1426 = vld [vmem:[%s253 + $0x159] sm:$0xff]
      %v1427 = vld [vmem:[%s253 + $0x161] sm:$0xff]
      %v1428 = vld [vmem:[%s253 + $0x169] sm:$0xff]
      %v1429 = vld [vmem:[%s253 + $0x171] sm:$0xff]
      %v1430 = vld [vmem:[%s253 + $0x179] sm:$0xff]
      %v1431 = vld [vmem:[%s253 + $0x181] sm:$0xff]
      %v1432 = vld [vmem:[%s253 + $0x189] sm:$0xff]
      %v1433 = vld [vmem:[%s253 + $0x191] sm:$0xff]
      %v1434 = vld [vmem:[%s253 + $0x199] sm:$0xff]
      %v1435 = vld [vmem:[%s253 + $0x1a1] sm:$0xff]
      %v1436 = vld [vmem:[%s253 + $0x1a9] sm:$0xff]
      %v1437 = vld [vmem:[%s253 + $0x1b1] sm:$0xff]
      %v1438 = vpack.c.bf16 %v1385, %v1384
      %v1439 = vpack.c.bf16 %v1387, %v1386
      %v1440 = vpack.c.bf16 %v1389, %v1388
      %v1441 = vpack.c.bf16 %v1391, %v1390
      %v1442 = vpack.c.bf16 %v1393, %v1392
      %v1443 = vpack.c.bf16 %v1395, %v1394
      %v1444 = vpack.c.bf16 %v1397, %v1396
      %v1445 = vpack.c.bf16 %v1399, %v1398
      %v1446 = vpack.c.bf16 %v1401, %v1400
      %v1447 = vpack.c.bf16 %v1403, %v1402
      %v1448 = vpack.c.bf16 %v1405, %v1404
      %v1449 = vpack.c.bf16 %v1407, %v1406
      %v1450 = vpack.c.bf16 %v1409, %v1408
      %v1451 = vpack.c.bf16 %v1411, %v1410
      %v1452 = vpack.c.bf16 %v1413, %v1412
      %v1453 = vpack.c.bf16 %v1415, %v1414
      %v1454 = vpack.c.bf16 %v1417, %v1416
      %v1455 = vpack.c.bf16 %v1419, %v1418
      %v1456 = vpack.c.bf16 %v1421, %v1420
      %v1457 = vpack.c.bf16 %v1423, %v1422
      %v1458 = vpack.c.bf16 %v1425, %v1424
      %v1459 = vpack.c.bf16 %v1427, %v1426
      %v1460 = vpack.c.bf16 %v1429, %v1428
      %v1461 = vpack.c.bf16 %v1431, %v1430
      %v1462 = vpack.c.bf16 %v1433, %v1432
      %v1463 = vpack.c.bf16 %v1435, %v1434
      %v1464 = vpack.c.bf16 %v1437, %v1436
      %s1465 = scalar_lea.vmem %s1, 128
      %v1466 = vld [vmem:[%s1465] sm:$0xf]
      %v1467 = vld [vmem:[%s1465 + $0x4] sm:$0xf]
      %v1468 = vld [vmem:[%s1465 + $0x8] sm:$0xf]
      %v1469 = vld [vmem:[%s1465 + $0xc] sm:$0xf]
      %v1470 = vld [vmem:[%s1465 + $0x10] sm:$0xf]
      %v1471 = vld [vmem:[%s1465 + $0x14] sm:$0xf]
      %v1472 = vld [vmem:[%s1465 + $0x18] sm:$0xf]
      %v1473 = vld [vmem:[%s1465 + $0x1c] sm:$0xf]
      %v1474 = vld [vmem:[%s1465 + $0x20] sm:$0xf]
      %v1475 = vld [vmem:[%s1465 + $0x24] sm:$0xf]
      %v1476 = vld [vmem:[%s1465 + $0x28] sm:$0xf]
      %v1477 = vld [vmem:[%s1465 + $0x2c] sm:$0xf]
      %v1478 = vld [vmem:[%s1465 + $0x30] sm:$0xf]
      %v1479 = vld [vmem:[%s1465 + $0x34] sm:$0xf]
      %v1480 = vld [vmem:[%s1465 + $0x38] sm:$0xf]
      %v1481 = vld [vmem:[%s1465 + $0x3c] sm:$0xf]
      %v1498 = vunpack.c.l.b16 %v1466
      %v1499 = vunpack.c.l.b16 %v1467
      %v1500 = vunpack.c.l.b16 %v1468
      %v1501 = vunpack.c.l.b16 %v1469
      %v1502 = vunpack.c.l.b16 %v1470
      %v1503 = vunpack.c.l.b16 %v1471
      %v1504 = vunpack.c.l.b16 %v1472
      %v1505 = vunpack.c.l.b16 %v1473
      %v1506 = vunpack.c.l.b16 %v1474
      %v1507 = vunpack.c.l.b16 %v1475
      %v1508 = vunpack.c.l.b16 %v1476
      %v1509 = vunpack.c.l.b16 %v1477
      %v1510 = vunpack.c.l.b16 %v1478
      %v1511 = vunpack.c.l.b16 %v1479
      %v1512 = vunpack.c.l.b16 %v1480
      %v1513 = vunpack.c.l.b16 %v1481
      %v1514 = vpack.c.b16 %v1499, %v1498
      %v1515 = vpack.c.b16 %v1501, %v1500
      %v1516 = vpack.c.b16 %v1503, %v1502
      %v1517 = vpack.c.b16 %v1505, %v1504
      %v1518 = vpack.c.b16 %v1507, %v1506
      %v1519 = vpack.c.b16 %v1509, %v1508
      %v1520 = vpack.c.b16 %v1511, %v1510
      %v1521 = vpack.c.b16 %v1513, %v1512
      %1530 = vmatprep.subr.bf16.mxu0 0
      %1531 = vmatpush1.bf16.msra.mxu0 %v1521
      %1532 = vmatprep.subr.bf16.mxu0 0
      %1533 = vmatpush1.bf16.msra.mxu0 %v1520
      %1534 = vmatprep.subr.bf16.mxu0 0
      %1535 = vmatpush1.bf16.msra.mxu0 %v1519
      %1536 = vmatprep.subr.bf16.mxu0 0
      %1537 = vmatpush1.bf16.msra.mxu0 %v1518
      %1538 = vmatprep.subr.bf16.mxu0 0
      %1539 = vmatpush1.bf16.msra.mxu0 %v1517
      %1540 = vmatprep.subr.bf16.mxu0 0
      %1541 = vmatpush1.bf16.msra.mxu0 %v1516
      %1542 = vmatprep.subr.bf16.mxu0 0
      %1543 = vmatpush1.bf16.msra.mxu0 %v1515
      %1544 = vmatprep.subr.bf16.mxu0 0
      %1545 = vmatpush1.bf16.msra.mxu0 %v1514
      %1546 = vmatprep.subr.bf16.mxu0 0
      %1547 = vmatpush2.bf16.msra.mxu0 0
      %1548 = vmatprep.subr.bf16.mxu0 0
      %1549 = vmatpush2.bf16.msra.mxu0 0
      %1550 = vmatprep.subr.bf16.mxu0 0
      %1551 = vmatpush2.bf16.msra.mxu0 0
      %1552 = vmatprep.subr.bf16.mxu0 0
      %1553 = vmatpush2.bf16.msra.mxu0 0
      %1554 = vmatprep.subr.bf16.mxu0 0
      %1555 = vmatpush2.bf16.msra.mxu0 0
      %1556 = vmatprep.subr.bf16.mxu0 0
      %1557 = vmatpush2.bf16.msra.mxu0 0
      %1558 = vmatprep.subr.bf16.mxu0 0
      %1559 = vmatpush2.bf16.msra.mxu0 0
      %1560 = vmatprep.subr.bf16.mxu0 0
      %1561 = vmatpush2.bf16.msra.mxu0 0
      %1562 = vmatprep.mubr.bf16.mxu0 0
      %1563 = vmatmul.mubr.bf16.gmra.mxu0 %v1438
      %v1564 = vpop.f32.mrf.mxu0
      %v1565 = vadd.f32 0.0, %v1564
      %v1566 = vpop.f32.mrf.mxu0
      %v1567 = vpop.f32.mrf.mxu0
      %v1568 = vadd.f32 0.0, %v1567
      %v1569 = vpop.f32.mrf.mxu0
      %1570 = vmatprep.mubr.bf16.mxu0 0
      %1571 = vmatmul.mubr.bf16.gmra.mxu0 %v1439
      %v1572 = vpop.f32.mrf.mxu0
      %v1573 = vadd.f32 0.0, %v1572
      %v1574 = vpop.f32.mrf.mxu0
      %v1575 = vpop.f32.mrf.mxu0
      %v1576 = vadd.f32 0.0, %v1575
      %v1577 = vpop.f32.mrf.mxu0
      %1578 = vmatprep.mubr.bf16.mxu0 0
      %1579 = vmatmul.mubr.bf16.gmra.mxu0 %v1440
      %v1580 = vpop.f32.mrf.mxu0
      %v1581 = vadd.f32 0.0, %v1580
      %v1582 = vpop.f32.mrf.mxu0
      %v1583 = vpop.f32.mrf.mxu0
      %v1584 = vadd.f32 0.0, %v1583
      %v1585 = vpop.f32.mrf.mxu0
      %1586 = vmatprep.mubr.bf16.mxu0 0
      %1587 = vmatmul.mubr.bf16.gmra.mxu0 %v1441
      %v1588 = vpop.f32.mrf.mxu0
      %v1589 = vadd.f32 0.0, %v1588
      %v1590 = vpop.f32.mrf.mxu0
      %v1591 = vpop.f32.mrf.mxu0
      %v1592 = vadd.f32 0.0, %v1591
      %v1593 = vpop.f32.mrf.mxu0
      %1594 = vmatprep.mubr.bf16.mxu0 0
      %1595 = vmatmul.mubr.bf16.gmra.mxu0 %v1442
      %v1596 = vpop.f32.mrf.mxu0
      %v1597 = vadd.f32 0.0, %v1596
      %v1598 = vpop.f32.mrf.mxu0
      %v1599 = vpop.f32.mrf.mxu0
      %v1600 = vadd.f32 0.0, %v1599
      %v1601 = vpop.f32.mrf.mxu0
      %1602 = vmatprep.mubr.bf16.mxu0 0
      %1603 = vmatmul.mubr.bf16.gmra.mxu0 %v1443
      %v1604 = vpop.f32.mrf.mxu0
      %v1605 = vadd.f32 0.0, %v1604
      %v1606 = vpop.f32.mrf.mxu0
      %v1607 = vpop.f32.mrf.mxu0
      %v1608 = vadd.f32 0.0, %v1607
      %v1609 = vpop.f32.mrf.mxu0
      %1610 = vmatprep.mubr.bf16.mxu0 0
      %1611 = vmatmul.mubr.bf16.gmra.mxu0 %v1444
      %v1612 = vpop.f32.mrf.mxu0
      %v1613 = vadd.f32 0.0, %v1612
      %v1614 = vpop.f32.mrf.mxu0
      %v1615 = vpop.f32.mrf.mxu0
      %v1616 = vadd.f32 0.0, %v1615
      %v1617 = vpop.f32.mrf.mxu0
      %1618 = vmatprep.mubr.bf16.mxu0 0
      %1619 = vmatmul.mubr.bf16.gmra.mxu0 %v1445
      %v1620 = vpop.f32.mrf.mxu0
      %v1621 = vadd.f32 0.0, %v1620
      %v1622 = vpop.f32.mrf.mxu0
      %v1623 = vpop.f32.mrf.mxu0
      %v1624 = vadd.f32 0.0, %v1623
      %v1625 = vpop.f32.mrf.mxu0
      %1626 = vmatprep.mubr.bf16.mxu0 0
      %1627 = vmatmul.mubr.bf16.gmra.mxu0 %v1446
      %v1628 = vpop.f32.mrf.mxu0
      %v1629 = vadd.f32 0.0, %v1628
      %v1630 = vpop.f32.mrf.mxu0
      %v1631 = vpop.f32.mrf.mxu0
      %v1632 = vadd.f32 0.0, %v1631
      %v1633 = vpop.f32.mrf.mxu0
      %1634 = vmatprep.mubr.bf16.mxu0 0
      %1635 = vmatmul.mubr.bf16.gmra.mxu0 %v1447
      %v1636 = vpop.f32.mrf.mxu0
      %v1637 = vadd.f32 0.0, %v1636
      %v1638 = vpop.f32.mrf.mxu0
      %v1639 = vpop.f32.mrf.mxu0
      %v1640 = vadd.f32 0.0, %v1639
      %v1641 = vpop.f32.mrf.mxu0
      %1642 = vmatprep.mubr.bf16.mxu0 0
      %1643 = vmatmul.mubr.bf16.gmra.mxu0 %v1448
      %v1644 = vpop.f32.mrf.mxu0
      %v1645 = vadd.f32 0.0, %v1644
      %v1646 = vpop.f32.mrf.mxu0
      %v1647 = vpop.f32.mrf.mxu0
      %v1648 = vadd.f32 0.0, %v1647
      %v1649 = vpop.f32.mrf.mxu0
      %1650 = vmatprep.mubr.bf16.mxu0 0
      %1651 = vmatmul.mubr.bf16.gmra.mxu0 %v1449
      %v1652 = vpop.f32.mrf.mxu0
      %v1653 = vadd.f32 0.0, %v1652
      %v1654 = vpop.f32.mrf.mxu0
      %v1655 = vpop.f32.mrf.mxu0
      %v1656 = vadd.f32 0.0, %v1655
      %v1657 = vpop.f32.mrf.mxu0
      %1658 = vmatprep.mubr.bf16.mxu0 0
      %1659 = vmatmul.mubr.bf16.gmra.mxu0 %v1450
      %v1660 = vpop.f32.mrf.mxu0
      %v1661 = vadd.f32 0.0, %v1660
      %v1662 = vpop.f32.mrf.mxu0
      %v1663 = vpop.f32.mrf.mxu0
      %v1664 = vadd.f32 0.0, %v1663
      %v1665 = vpop.f32.mrf.mxu0
      %1666 = vmatprep.mubr.bf16.mxu0 0
      %1667 = vmatmul.mubr.bf16.gmra.mxu0 %v1451
      %v1668 = vpop.f32.mrf.mxu0
      %v1669 = vadd.f32 0.0, %v1668
      %v1670 = vpop.f32.mrf.mxu0
      %v1671 = vpop.f32.mrf.mxu0
      %v1672 = vadd.f32 0.0, %v1671
      %v1673 = vpop.f32.mrf.mxu0
      %1674 = vmatprep.mubr.bf16.mxu0 0
      %1675 = vmatmul.mubr.bf16.gmra.mxu0 %v1452
      %v1676 = vpop.f32.mrf.mxu0
      %v1677 = vadd.f32 0.0, %v1676
      %v1678 = vpop.f32.mrf.mxu0
      %v1679 = vpop.f32.mrf.mxu0
      %v1680 = vadd.f32 0.0, %v1679
      %v1681 = vpop.f32.mrf.mxu0
      %1682 = vmatprep.mubr.bf16.mxu0 0
      %1683 = vmatmul.mubr.bf16.gmra.mxu0 %v1453
      %v1684 = vpop.f32.mrf.mxu0
      %v1685 = vadd.f32 0.0, %v1684
      %v1686 = vpop.f32.mrf.mxu0
      %v1687 = vpop.f32.mrf.mxu0
      %v1688 = vadd.f32 0.0, %v1687
      %v1689 = vpop.f32.mrf.mxu0
      %1690 = vmatprep.mubr.bf16.mxu0 0
      %1691 = vmatmul.mubr.bf16.gmra.mxu0 %v1454
      %v1692 = vpop.f32.mrf.mxu0
      %v1693 = vadd.f32 0.0, %v1692
      %v1694 = vpop.f32.mrf.mxu0
      %v1695 = vpop.f32.mrf.mxu0
      %v1696 = vadd.f32 0.0, %v1695
      %v1697 = vpop.f32.mrf.mxu0
      %1698 = vmatprep.mubr.bf16.mxu0 0
      %1699 = vmatmul.mubr.bf16.gmra.mxu0 %v1455
      %v1700 = vpop.f32.mrf.mxu0
      %v1701 = vadd.f32 0.0, %v1700
      %v1702 = vpop.f32.mrf.mxu0
      %v1703 = vpop.f32.mrf.mxu0
      %v1704 = vadd.f32 0.0, %v1703
      %v1705 = vpop.f32.mrf.mxu0
      %1706 = vmatprep.mubr.bf16.mxu0 0
      %1707 = vmatmul.mubr.bf16.gmra.mxu0 %v1456
      %v1708 = vpop.f32.mrf.mxu0
      %v1709 = vadd.f32 0.0, %v1708
      %v1710 = vpop.f32.mrf.mxu0
      %v1711 = vpop.f32.mrf.mxu0
      %v1712 = vadd.f32 0.0, %v1711
      %v1713 = vpop.f32.mrf.mxu0
      %1714 = vmatprep.mubr.bf16.mxu0 0
      %1715 = vmatmul.mubr.bf16.gmra.mxu0 %v1457
      %v1716 = vpop.f32.mrf.mxu0
      %v1717 = vadd.f32 0.0, %v1716
      %v1718 = vpop.f32.mrf.mxu0
      %v1719 = vpop.f32.mrf.mxu0
      %v1720 = vadd.f32 0.0, %v1719
      %v1721 = vpop.f32.mrf.mxu0
      %1722 = vmatprep.mubr.bf16.mxu0 0
      %1723 = vmatmul.mubr.bf16.gmra.mxu0 %v1458
      %v1724 = vpop.f32.mrf.mxu0
      %v1725 = vadd.f32 0.0, %v1724
      %v1726 = vpop.f32.mrf.mxu0
      %v1727 = vpop.f32.mrf.mxu0
      %v1728 = vadd.f32 0.0, %v1727
      %v1729 = vpop.f32.mrf.mxu0
      %1730 = vmatprep.mubr.bf16.mxu0 0
      %1731 = vmatmul.mubr.bf16.gmra.mxu0 %v1459
      %v1732 = vpop.f32.mrf.mxu0
      %v1733 = vadd.f32 0.0, %v1732
      %v1734 = vpop.f32.mrf.mxu0
      %v1735 = vpop.f32.mrf.mxu0
      %v1736 = vadd.f32 0.0, %v1735
      %v1737 = vpop.f32.mrf.mxu0
      %1738 = vmatprep.mubr.bf16.mxu0 0
      %1739 = vmatmul.mubr.bf16.gmra.mxu0 %v1460
      %v1740 = vpop.f32.mrf.mxu0
      %v1741 = vadd.f32 0.0, %v1740
      %v1742 = vpop.f32.mrf.mxu0
      %v1743 = vpop.f32.mrf.mxu0
      %v1744 = vadd.f32 0.0, %v1743
      %v1745 = vpop.f32.mrf.mxu0
      %1746 = vmatprep.mubr.bf16.mxu0 0
      %1747 = vmatmul.mubr.bf16.gmra.mxu0 %v1461
      %v1748 = vpop.f32.mrf.mxu0
      %v1749 = vadd.f32 0.0, %v1748
      %v1750 = vpop.f32.mrf.mxu0
      %v1751 = vpop.f32.mrf.mxu0
      %v1752 = vadd.f32 0.0, %v1751
      %v1753 = vpop.f32.mrf.mxu0
      %1754 = vmatprep.mubr.bf16.mxu0 0
      %1755 = vmatmul.mubr.bf16.gmra.mxu0 %v1462
      %v1756 = vpop.f32.mrf.mxu0
      %v1757 = vadd.f32 0.0, %v1756
      %v1758 = vpop.f32.mrf.mxu0
      %v1759 = vpop.f32.mrf.mxu0
      %v1760 = vadd.f32 0.0, %v1759
      %v1761 = vpop.f32.mrf.mxu0
      %1762 = vmatprep.mubr.bf16.mxu0 0
      %1763 = vmatmul.mubr.bf16.gmra.mxu0 %v1463
      %v1764 = vpop.f32.mrf.mxu0
      %v1765 = vadd.f32 0.0, %v1764
      %v1766 = vpop.f32.mrf.mxu0
      %v1767 = vpop.f32.mrf.mxu0
      %v1768 = vadd.f32 0.0, %v1767
      %v1769 = vpop.f32.mrf.mxu0
      %1770 = vmatprep.mubr.bf16.mxu0 0
      %1771 = vmatmul.mubr.bf16.gmra.mxu0 %v1464
      %v1772 = vpop.f32.mrf.mxu0
      %v1773 = vadd.f32 0.0, %v1772
      %v1774 = vpop.f32.mrf.mxu0
      %v1775 = vpop.f32.mrf.mxu0
      %v1776 = vadd.f32 0.0, %v1775
      %v1777 = vpop.f32.mrf.mxu0
      %1778 = vdwg.mxu0
      %v1779 = vadd.f32 %v1170, %v1565
      %v1780 = vadd.f32 %v1173, %v1568
      %v1781 = vadd.f32 %v1178, %v1573
      %v1782 = vadd.f32 %v1181, %v1576
      %v1783 = vadd.f32 %v1186, %v1581
      %v1784 = vadd.f32 %v1189, %v1584
      %v1785 = vadd.f32 %v1194, %v1589
      %v1786 = vadd.f32 %v1197, %v1592
      %v1787 = vadd.f32 %v1202, %v1597
      %v1788 = vadd.f32 %v1205, %v1600
      %v1789 = vadd.f32 %v1210, %v1605
      %v1790 = vadd.f32 %v1213, %v1608
      %v1791 = vadd.f32 %v1218, %v1613
      %v1792 = vadd.f32 %v1221, %v1616
      %v1793 = vadd.f32 %v1226, %v1621
      %v1794 = vadd.f32 %v1229, %v1624
      %v1795 = vadd.f32 %v1234, %v1629
      %v1796 = vadd.f32 %v1237, %v1632
      %v1797 = vadd.f32 %v1242, %v1637
      %v1798 = vadd.f32 %v1245, %v1640
      %v1799 = vadd.f32 %v1250, %v1645
      %v1800 = vadd.f32 %v1253, %v1648
      %v1801 = vadd.f32 %v1258, %v1653
      %v1802 = vadd.f32 %v1261, %v1656
      %v1803 = vadd.f32 %v1266, %v1661
      %v1804 = vadd.f32 %v1269, %v1664
      %v1805 = vadd.f32 %v1274, %v1669
      %v1806 = vadd.f32 %v1277, %v1672
      %v1807 = vadd.f32 %v1282, %v1677
      %v1808 = vadd.f32 %v1285, %v1680
      %v1809 = vadd.f32 %v1290, %v1685
      %v1810 = vadd.f32 %v1293, %v1688
      %v1811 = vadd.f32 %v1298, %v1693
      %v1812 = vadd.f32 %v1301, %v1696
      %v1813 = vadd.f32 %v1306, %v1701
      %v1814 = vadd.f32 %v1309, %v1704
      %v1815 = vadd.f32 %v1314, %v1709
      %v1816 = vadd.f32 %v1317, %v1712
      %v1817 = vadd.f32 %v1322, %v1717
      %v1818 = vadd.f32 %v1325, %v1720
      %v1819 = vadd.f32 %v1330, %v1725
      %v1820 = vadd.f32 %v1333, %v1728
      %v1821 = vadd.f32 %v1338, %v1733
      %v1822 = vadd.f32 %v1341, %v1736
      %v1823 = vadd.f32 %v1346, %v1741
      %v1824 = vadd.f32 %v1349, %v1744
      %v1825 = vadd.f32 %v1354, %v1749
      %v1826 = vadd.f32 %v1357, %v1752
      %v1827 = vadd.f32 %v1362, %v1757
      %v1828 = vadd.f32 %v1365, %v1760
      %v1829 = vadd.f32 %v1370, %v1765
      %v1830 = vadd.f32 %v1373, %v1768
      %v1831 = vadd.f32 %v1378, %v1773
      %v1832 = vadd.f32 %v1381, %v1776
      %v1833 = vld [vmem:[%s253 + $0x1f] sm:$0xff]
      %v1834 = vld [vmem:[%s253 + $0x27] sm:$0xff]
      %v1835 = vld [vmem:[%s253 + $0x2f] sm:$0xff]
      %v1836 = vld [vmem:[%s253 + $0x37] sm:$0xff]
      %v1837 = vld [vmem:[%s253 + $0x3f] sm:$0xff]
      %v1838 = vld [vmem:[%s253 + $0x47] sm:$0xff]
      %v1839 = vld [vmem:[%s253 + $0x4f] sm:$0xff]
      %v1840 = vld [vmem:[%s253 + $0x57] sm:$0xff]
      %v1841 = vld [vmem:[%s253 + $0x5f] sm:$0xff]
      %v1842 = vld [vmem:[%s253 + $0x67] sm:$0xff]
      %v1843 = vld [vmem:[%s253 + $0x6f] sm:$0xff]
      %v1844 = vld [vmem:[%s253 + $0x77] sm:$0xff]
      %v1845 = vld [vmem:[%s253 + $0x7f] sm:$0xff]
      %v1846 = vld [vmem:[%s253 + $0x87] sm:$0xff]
      %v1847 = vld [vmem:[%s253 + $0x8f] sm:$0xff]
      %v1848 = vld [vmem:[%s253 + $0x97] sm:$0xff]
      %v1849 = vld [vmem:[%s253 + $0x9f] sm:$0xff]
      %v1850 = vld [vmem:[%s253 + $0xa7] sm:$0xff]
      %v1851 = vld [vmem:[%s253 + $0xaf] sm:$0xff]
      %v1852 = vld [vmem:[%s253 + $0xb7] sm:$0xff]
      %v1853 = vld [vmem:[%s253 + $0xbf] sm:$0xff]
      %v1854 = vld [vmem:[%s253 + $0xc7] sm:$0xff]
      %v1855 = vld [vmem:[%s253 + $0xcf] sm:$0xff]
      %v1856 = vld [vmem:[%s253 + $0xd7] sm:$0xff]
      %v1857 = vld [vmem:[%s253 + $0xdf] sm:$0xff]
      %v1858 = vld [vmem:[%s253 + $0xe7] sm:$0xff]
      %v1859 = vld [vmem:[%s253 + $0xef] sm:$0xff]
      %v1860 = vld [vmem:[%s253 + $0xf7] sm:$0xff]
      %v1861 = vld [vmem:[%s253 + $0xff] sm:$0xff]
      %v1862 = vld [vmem:[%s253 + $0x107] sm:$0xff]
      %v1863 = vld [vmem:[%s253 + $0x10f] sm:$0xff]
      %v1864 = vld [vmem:[%s253 + $0x117] sm:$0xff]
      %v1865 = vld [vmem:[%s253 + $0x11f] sm:$0xff]
      %v1866 = vld [vmem:[%s253 + $0x127] sm:$0xff]
      %v1867 = vld [vmem:[%s253 + $0x12f] sm:$0xff]
      %v1868 = vld [vmem:[%s253 + $0x137] sm:$0xff]
      %v1869 = vld [vmem:[%s253 + $0x13f] sm:$0xff]
      %v1870 = vld [vmem:[%s253 + $0x147] sm:$0xff]
      %v1871 = vld [vmem:[%s253 + $0x14f] sm:$0xff]
      %v1872 = vld [vmem:[%s253 + $0x157] sm:$0xff]
      %v1873 = vld [vmem:[%s253 + $0x15f] sm:$0xff]
      %v1874 = vld [vmem:[%s253 + $0x167] sm:$0xff]
      %v1875 = vld [vmem:[%s253 + $0x16f] sm:$0xff]
      %v1876 = vld [vmem:[%s253 + $0x177] sm:$0xff]
      %v1877 = vld [vmem:[%s253 + $0x17f] sm:$0xff]
      %v1878 = vld [vmem:[%s253 + $0x187] sm:$0xff]
      %v1879 = vld [vmem:[%s253 + $0x18f] sm:$0xff]
      %v1880 = vld [vmem:[%s253 + $0x197] sm:$0xff]
      %v1881 = vld [vmem:[%s253 + $0x19f] sm:$0xff]
      %v1882 = vld [vmem:[%s253 + $0x1a7] sm:$0xff]
      %v1883 = vld [vmem:[%s253 + $0x1af] sm:$0xff]
      %v1884 = vld [vmem:[%s253 + $0x1b7] sm:$0xff]
      %v1885 = vld [vmem:[%s253 + $0x1bf] sm:$0xff]
      %v1886 = vld [vmem:[%s253 + $0x1c7] sm:$0xff]
      %v1887 = vpack.c.bf16 %v1834, %v1833
      %v1888 = vpack.c.bf16 %v1836, %v1835
      %v1889 = vpack.c.bf16 %v1838, %v1837
      %v1890 = vpack.c.bf16 %v1840, %v1839
      %v1891 = vpack.c.bf16 %v1842, %v1841
      %v1892 = vpack.c.bf16 %v1844, %v1843
      %v1893 = vpack.c.bf16 %v1846, %v1845
      %v1894 = vpack.c.bf16 %v1848, %v1847
      %v1895 = vpack.c.bf16 %v1850, %v1849
      %v1896 = vpack.c.bf16 %v1852, %v1851
      %v1897 = vpack.c.bf16 %v1854, %v1853
      %v1898 = vpack.c.bf16 %v1856, %v1855
      %v1899 = vpack.c.bf16 %v1858, %v1857
      %v1900 = vpack.c.bf16 %v1860, %v1859
      %v1901 = vpack.c.bf16 %v1862, %v1861
      %v1902 = vpack.c.bf16 %v1864, %v1863
      %v1903 = vpack.c.bf16 %v1866, %v1865
      %v1904 = vpack.c.bf16 %v1868, %v1867
      %v1905 = vpack.c.bf16 %v1870, %v1869
      %v1906 = vpack.c.bf16 %v1872, %v1871
      %v1907 = vpack.c.bf16 %v1874, %v1873
      %v1908 = vpack.c.bf16 %v1876, %v1875
      %v1909 = vpack.c.bf16 %v1878, %v1877
      %v1910 = vpack.c.bf16 %v1880, %v1879
      %v1911 = vpack.c.bf16 %v1882, %v1881
      %v1912 = vpack.c.bf16 %v1884, %v1883
      %v1913 = vpack.c.bf16 %v1886, %v1885
      %s1914 = scalar_lea.vmem %s1, 192
      %v1915 = vld [vmem:[%s1914] sm:$0xf]
      %v1916 = vld [vmem:[%s1914 + $0x4] sm:$0xf]
      %v1917 = vld [vmem:[%s1914 + $0x8] sm:$0xf]
      %v1918 = vld [vmem:[%s1914 + $0xc] sm:$0xf]
      %v1919 = vld [vmem:[%s1914 + $0x10] sm:$0xf]
      %v1920 = vld [vmem:[%s1914 + $0x14] sm:$0xf]
      %v1921 = vld [vmem:[%s1914 + $0x18] sm:$0xf]
      %v1922 = vld [vmem:[%s1914 + $0x1c] sm:$0xf]
      %v1923 = vld [vmem:[%s1914 + $0x20] sm:$0xf]
      %v1924 = vld [vmem:[%s1914 + $0x24] sm:$0xf]
      %v1925 = vld [vmem:[%s1914 + $0x28] sm:$0xf]
      %v1926 = vld [vmem:[%s1914 + $0x2c] sm:$0xf]
      %v1927 = vld [vmem:[%s1914 + $0x30] sm:$0xf]
      %v1928 = vld [vmem:[%s1914 + $0x34] sm:$0xf]
      %v1929 = vld [vmem:[%s1914 + $0x38] sm:$0xf]
      %v1930 = vld [vmem:[%s1914 + $0x3c] sm:$0xf]
      %v1947 = vunpack.c.l.b16 %v1915
      %v1948 = vunpack.c.l.b16 %v1916
      %v1949 = vunpack.c.l.b16 %v1917
      %v1950 = vunpack.c.l.b16 %v1918
      %v1951 = vunpack.c.l.b16 %v1919
      %v1952 = vunpack.c.l.b16 %v1920
      %v1953 = vunpack.c.l.b16 %v1921
      %v1954 = vunpack.c.l.b16 %v1922
      %v1955 = vunpack.c.l.b16 %v1923
      %v1956 = vunpack.c.l.b16 %v1924
      %v1957 = vunpack.c.l.b16 %v1925
      %v1958 = vunpack.c.l.b16 %v1926
      %v1959 = vunpack.c.l.b16 %v1927
      %v1960 = vunpack.c.l.b16 %v1928
      %v1961 = vunpack.c.l.b16 %v1929
      %v1962 = vunpack.c.l.b16 %v1930
      %v1963 = vpack.c.b16 %v1948, %v1947
      %v1964 = vpack.c.b16 %v1950, %v1949
      %v1965 = vpack.c.b16 %v1952, %v1951
      %v1966 = vpack.c.b16 %v1954, %v1953
      %v1967 = vpack.c.b16 %v1956, %v1955
      %v1968 = vpack.c.b16 %v1958, %v1957
      %v1969 = vpack.c.b16 %v1960, %v1959
      %v1970 = vpack.c.b16 %v1962, %v1961
      %1979 = vmatprep.subr.bf16.mxu0 0
      %1980 = vmatpush1.bf16.msra.mxu0 %v1970
      %1981 = vmatprep.subr.bf16.mxu0 0
      %1982 = vmatpush1.bf16.msra.mxu0 %v1969
      %1983 = vmatprep.subr.bf16.mxu0 0
      %1984 = vmatpush1.bf16.msra.mxu0 %v1968
      %1985 = vmatprep.subr.bf16.mxu0 0
      %1986 = vmatpush1.bf16.msra.mxu0 %v1967
      %1987 = vmatprep.subr.bf16.mxu0 0
      %1988 = vmatpush1.bf16.msra.mxu0 %v1966
      %1989 = vmatprep.subr.bf16.mxu0 0
      %1990 = vmatpush1.bf16.msra.mxu0 %v1965
      %1991 = vmatprep.subr.bf16.mxu0 0
      %1992 = vmatpush1.bf16.msra.mxu0 %v1964
      %1993 = vmatprep.subr.bf16.mxu0 0
      %1994 = vmatpush1.bf16.msra.mxu0 %v1963
      %1995 = vmatprep.subr.bf16.mxu0 0
      %1996 = vmatpush2.bf16.msra.mxu0 0
      %1997 = vmatprep.subr.bf16.mxu0 0
      %1998 = vmatpush2.bf16.msra.mxu0 0
      %1999 = vmatprep.subr.bf16.mxu0 0
      %2000 = vmatpush2.bf16.msra.mxu0 0
      %2001 = vmatprep.subr.bf16.mxu0 0
      %2002 = vmatpush2.bf16.msra.mxu0 0
      %2003 = vmatprep.subr.bf16.mxu0 0
      %2004 = vmatpush2.bf16.msra.mxu0 0
      %2005 = vmatprep.subr.bf16.mxu0 0
      %2006 = vmatpush2.bf16.msra.mxu0 0
      %2007 = vmatprep.subr.bf16.mxu0 0
      %2008 = vmatpush2.bf16.msra.mxu0 0
      %2009 = vmatprep.subr.bf16.mxu0 0
      %2010 = vmatpush2.bf16.msra.mxu0 0
      %2011 = vmatprep.mubr.bf16.mxu0 0
      %2012 = vmatmul.mubr.bf16.gmra.mxu0 %v1887
      %v2013 = vpop.f32.mrf.mxu0
      %v2014 = vadd.f32 0.0, %v2013
      %v2015 = vpop.f32.mrf.mxu0
      %v2016 = vpop.f32.mrf.mxu0
      %v2017 = vadd.f32 0.0, %v2016
      %v2018 = vpop.f32.mrf.mxu0
      %2019 = vmatprep.mubr.bf16.mxu0 0
      %2020 = vmatmul.mubr.bf16.gmra.mxu0 %v1888
      %v2021 = vpop.f32.mrf.mxu0
      %v2022 = vadd.f32 0.0, %v2021
      %v2023 = vpop.f32.mrf.mxu0
      %v2024 = vpop.f32.mrf.mxu0
      %v2025 = vadd.f32 0.0, %v2024
      %v2026 = vpop.f32.mrf.mxu0
      %2027 = vmatprep.mubr.bf16.mxu0 0
      %2028 = vmatmul.mubr.bf16.gmra.mxu0 %v1889
      %v2029 = vpop.f32.mrf.mxu0
      %v2030 = vadd.f32 0.0, %v2029
      %v2031 = vpop.f32.mrf.mxu0
      %v2032 = vpop.f32.mrf.mxu0
      %v2033 = vadd.f32 0.0, %v2032
      %v2034 = vpop.f32.mrf.mxu0
      %2035 = vmatprep.mubr.bf16.mxu0 0
      %2036 = vmatmul.mubr.bf16.gmra.mxu0 %v1890
      %v2037 = vpop.f32.mrf.mxu0
      %v2038 = vadd.f32 0.0, %v2037
      %v2039 = vpop.f32.mrf.mxu0
      %v2040 = vpop.f32.mrf.mxu0
      %v2041 = vadd.f32 0.0, %v2040
      %v2042 = vpop.f32.mrf.mxu0
      %2043 = vmatprep.mubr.bf16.mxu0 0
      %2044 = vmatmul.mubr.bf16.gmra.mxu0 %v1891
      %v2045 = vpop.f32.mrf.mxu0
      %v2046 = vadd.f32 0.0, %v2045
      %v2047 = vpop.f32.mrf.mxu0
      %v2048 = vpop.f32.mrf.mxu0
      %v2049 = vadd.f32 0.0, %v2048
      %v2050 = vpop.f32.mrf.mxu0
      %2051 = vmatprep.mubr.bf16.mxu0 0
      %2052 = vmatmul.mubr.bf16.gmra.mxu0 %v1892
      %v2053 = vpop.f32.mrf.mxu0
      %v2054 = vadd.f32 0.0, %v2053
      %v2055 = vpop.f32.mrf.mxu0
      %v2056 = vpop.f32.mrf.mxu0
      %v2057 = vadd.f32 0.0, %v2056
      %v2058 = vpop.f32.mrf.mxu0
      %2059 = vmatprep.mubr.bf16.mxu0 0
      %2060 = vmatmul.mubr.bf16.gmra.mxu0 %v1893
      %v2061 = vpop.f32.mrf.mxu0
      %v2062 = vadd.f32 0.0, %v2061
      %v2063 = vpop.f32.mrf.mxu0
      %v2064 = vpop.f32.mrf.mxu0
      %v2065 = vadd.f32 0.0, %v2064
      %v2066 = vpop.f32.mrf.mxu0
      %2067 = vmatprep.mubr.bf16.mxu0 0
      %2068 = vmatmul.mubr.bf16.gmra.mxu0 %v1894
      %v2069 = vpop.f32.mrf.mxu0
      %v2070 = vadd.f32 0.0, %v2069
      %v2071 = vpop.f32.mrf.mxu0
      %v2072 = vpop.f32.mrf.mxu0
      %v2073 = vadd.f32 0.0, %v2072
      %v2074 = vpop.f32.mrf.mxu0
      %2075 = vmatprep.mubr.bf16.mxu0 0
      %2076 = vmatmul.mubr.bf16.gmra.mxu0 %v1895
      %v2077 = vpop.f32.mrf.mxu0
      %v2078 = vadd.f32 0.0, %v2077
      %v2079 = vpop.f32.mrf.mxu0
      %v2080 = vpop.f32.mrf.mxu0
      %v2081 = vadd.f32 0.0, %v2080
      %v2082 = vpop.f32.mrf.mxu0
      %2083 = vmatprep.mubr.bf16.mxu0 0
      %2084 = vmatmul.mubr.bf16.gmra.mxu0 %v1896
      %v2085 = vpop.f32.mrf.mxu0
      %v2086 = vadd.f32 0.0, %v2085
      %v2087 = vpop.f32.mrf.mxu0
      %v2088 = vpop.f32.mrf.mxu0
      %v2089 = vadd.f32 0.0, %v2088
      %v2090 = vpop.f32.mrf.mxu0
      %2091 = vmatprep.mubr.bf16.mxu0 0
      %2092 = vmatmul.mubr.bf16.gmra.mxu0 %v1897
      %v2093 = vpop.f32.mrf.mxu0
      %v2094 = vadd.f32 0.0, %v2093
      %v2095 = vpop.f32.mrf.mxu0
      %v2096 = vpop.f32.mrf.mxu0
      %v2097 = vadd.f32 0.0, %v2096
      %v2098 = vpop.f32.mrf.mxu0
      %2099 = vmatprep.mubr.bf16.mxu0 0
      %2100 = vmatmul.mubr.bf16.gmra.mxu0 %v1898
      %v2101 = vpop.f32.mrf.mxu0
      %v2102 = vadd.f32 0.0, %v2101
      %v2103 = vpop.f32.mrf.mxu0
      %v2104 = vpop.f32.mrf.mxu0
      %v2105 = vadd.f32 0.0, %v2104
      %v2106 = vpop.f32.mrf.mxu0
      %2107 = vmatprep.mubr.bf16.mxu0 0
      %2108 = vmatmul.mubr.bf16.gmra.mxu0 %v1899
      %v2109 = vpop.f32.mrf.mxu0
      %v2110 = vadd.f32 0.0, %v2109
      %v2111 = vpop.f32.mrf.mxu0
      %v2112 = vpop.f32.mrf.mxu0
      %v2113 = vadd.f32 0.0, %v2112
      %v2114 = vpop.f32.mrf.mxu0
      %2115 = vmatprep.mubr.bf16.mxu0 0
      %2116 = vmatmul.mubr.bf16.gmra.mxu0 %v1900
      %v2117 = vpop.f32.mrf.mxu0
      %v2118 = vadd.f32 0.0, %v2117
      %v2119 = vpop.f32.mrf.mxu0
      %v2120 = vpop.f32.mrf.mxu0
      %v2121 = vadd.f32 0.0, %v2120
      %v2122 = vpop.f32.mrf.mxu0
      %2123 = vmatprep.mubr.bf16.mxu0 0
      %2124 = vmatmul.mubr.bf16.gmra.mxu0 %v1901
      %v2125 = vpop.f32.mrf.mxu0
      %v2126 = vadd.f32 0.0, %v2125
      %v2127 = vpop.f32.mrf.mxu0
      %v2128 = vpop.f32.mrf.mxu0
      %v2129 = vadd.f32 0.0, %v2128
      %v2130 = vpop.f32.mrf.mxu0
      %2131 = vmatprep.mubr.bf16.mxu0 0
      %2132 = vmatmul.mubr.bf16.gmra.mxu0 %v1902
      %v2133 = vpop.f32.mrf.mxu0
      %v2134 = vadd.f32 0.0, %v2133
      %v2135 = vpop.f32.mrf.mxu0
      %v2136 = vpop.f32.mrf.mxu0
      %v2137 = vadd.f32 0.0, %v2136
      %v2138 = vpop.f32.mrf.mxu0
      %2139 = vmatprep.mubr.bf16.mxu0 0
      %2140 = vmatmul.mubr.bf16.gmra.mxu0 %v1903
      %v2141 = vpop.f32.mrf.mxu0
      %v2142 = vadd.f32 0.0, %v2141
      %v2143 = vpop.f32.mrf.mxu0
      %v2144 = vpop.f32.mrf.mxu0
      %v2145 = vadd.f32 0.0, %v2144
      %v2146 = vpop.f32.mrf.mxu0
      %2147 = vmatprep.mubr.bf16.mxu0 0
      %2148 = vmatmul.mubr.bf16.gmra.mxu0 %v1904
      %v2149 = vpop.f32.mrf.mxu0
      %v2150 = vadd.f32 0.0, %v2149
      %v2151 = vpop.f32.mrf.mxu0
      %v2152 = vpop.f32.mrf.mxu0
      %v2153 = vadd.f32 0.0, %v2152
      %v2154 = vpop.f32.mrf.mxu0
      %2155 = vmatprep.mubr.bf16.mxu0 0
      %2156 = vmatmul.mubr.bf16.gmra.mxu0 %v1905
      %v2157 = vpop.f32.mrf.mxu0
      %v2158 = vadd.f32 0.0, %v2157
      %v2159 = vpop.f32.mrf.mxu0
      %v2160 = vpop.f32.mrf.mxu0
      %v2161 = vadd.f32 0.0, %v2160
      %v2162 = vpop.f32.mrf.mxu0
      %2163 = vmatprep.mubr.bf16.mxu0 0
      %2164 = vmatmul.mubr.bf16.gmra.mxu0 %v1906
      %v2165 = vpop.f32.mrf.mxu0
      %v2166 = vadd.f32 0.0, %v2165
      %v2167 = vpop.f32.mrf.mxu0
      %v2168 = vpop.f32.mrf.mxu0
      %v2169 = vadd.f32 0.0, %v2168
      %v2170 = vpop.f32.mrf.mxu0
      %2171 = vmatprep.mubr.bf16.mxu0 0
      %2172 = vmatmul.mubr.bf16.gmra.mxu0 %v1907
      %v2173 = vpop.f32.mrf.mxu0
      %v2174 = vadd.f32 0.0, %v2173
      %v2175 = vpop.f32.mrf.mxu0
      %v2176 = vpop.f32.mrf.mxu0
      %v2177 = vadd.f32 0.0, %v2176
      %v2178 = vpop.f32.mrf.mxu0
      %2179 = vmatprep.mubr.bf16.mxu0 0
      %2180 = vmatmul.mubr.bf16.gmra.mxu0 %v1908
      %v2181 = vpop.f32.mrf.mxu0
      %v2182 = vadd.f32 0.0, %v2181
      %v2183 = vpop.f32.mrf.mxu0
      %v2184 = vpop.f32.mrf.mxu0
      %v2185 = vadd.f32 0.0, %v2184
      %v2186 = vpop.f32.mrf.mxu0
      %2187 = vmatprep.mubr.bf16.mxu0 0
      %2188 = vmatmul.mubr.bf16.gmra.mxu0 %v1909
      %v2189 = vpop.f32.mrf.mxu0
      %v2190 = vadd.f32 0.0, %v2189
      %v2191 = vpop.f32.mrf.mxu0
      %v2192 = vpop.f32.mrf.mxu0
      %v2193 = vadd.f32 0.0, %v2192
      %v2194 = vpop.f32.mrf.mxu0
      %2195 = vmatprep.mubr.bf16.mxu0 0
      %2196 = vmatmul.mubr.bf16.gmra.mxu0 %v1910
      %v2197 = vpop.f32.mrf.mxu0
      %v2198 = vadd.f32 0.0, %v2197
      %v2199 = vpop.f32.mrf.mxu0
      %v2200 = vpop.f32.mrf.mxu0
      %v2201 = vadd.f32 0.0, %v2200
      %v2202 = vpop.f32.mrf.mxu0
      %2203 = vmatprep.mubr.bf16.mxu0 0
      %2204 = vmatmul.mubr.bf16.gmra.mxu0 %v1911
      %v2205 = vpop.f32.mrf.mxu0
      %v2206 = vadd.f32 0.0, %v2205
      %v2207 = vpop.f32.mrf.mxu0
      %v2208 = vpop.f32.mrf.mxu0
      %v2209 = vadd.f32 0.0, %v2208
      %v2210 = vpop.f32.mrf.mxu0
      %2211 = vmatprep.mubr.bf16.mxu0 0
      %2212 = vmatmul.mubr.bf16.gmra.mxu0 %v1912
      %v2213 = vpop.f32.mrf.mxu0
      %v2214 = vadd.f32 0.0, %v2213
      %v2215 = vpop.f32.mrf.mxu0
      %v2216 = vpop.f32.mrf.mxu0
      %v2217 = vadd.f32 0.0, %v2216
      %v2218 = vpop.f32.mrf.mxu0
      %2219 = vmatprep.mubr.bf16.mxu0 0
      %2220 = vmatmul.mubr.bf16.gmra.mxu0 %v1913
      %v2221 = vpop.f32.mrf.mxu0
      %v2222 = vadd.f32 0.0, %v2221
      %v2223 = vpop.f32.mrf.mxu0
      %v2224 = vpop.f32.mrf.mxu0
      %v2225 = vadd.f32 0.0, %v2224
      %v2226 = vpop.f32.mrf.mxu0
      %2227 = vdwg.mxu0
      %v2228 = vadd.f32 %v1779, %v2014
      %v2229 = vadd.f32 %v1780, %v2017
      %v2230 = vadd.f32 %v1781, %v2022
      %v2231 = vadd.f32 %v1782, %v2025
      %v2232 = vadd.f32 %v1783, %v2030
      %v2233 = vadd.f32 %v1784, %v2033
      %v2234 = vadd.f32 %v1785, %v2038
      %v2235 = vadd.f32 %v1786, %v2041
      %v2236 = vadd.f32 %v1787, %v2046
      %v2237 = vadd.f32 %v1788, %v2049
      %v2238 = vadd.f32 %v1789, %v2054
      %v2239 = vadd.f32 %v1790, %v2057
      %v2240 = vadd.f32 %v1791, %v2062
      %v2241 = vadd.f32 %v1792, %v2065
      %v2242 = vadd.f32 %v1793, %v2070
      %v2243 = vadd.f32 %v1794, %v2073
      %v2244 = vadd.f32 %v1795, %v2078
      %v2245 = vadd.f32 %v1796, %v2081
      %v2246 = vadd.f32 %v1797, %v2086
      %v2247 = vadd.f32 %v1798, %v2089
      %v2248 = vadd.f32 %v1799, %v2094
      %v2249 = vadd.f32 %v1800, %v2097
      %v2250 = vadd.f32 %v1801, %v2102
      %v2251 = vadd.f32 %v1802, %v2105
      %v2252 = vadd.f32 %v1803, %v2110
      %v2253 = vadd.f32 %v1804, %v2113
      %v2254 = vadd.f32 %v1805, %v2118
      %v2255 = vadd.f32 %v1806, %v2121
      %v2256 = vadd.f32 %v1807, %v2126
      %v2257 = vadd.f32 %v1808, %v2129
      %v2258 = vadd.f32 %v1809, %v2134
      %v2259 = vadd.f32 %v1810, %v2137
      %v2260 = vadd.f32 %v1811, %v2142
      %v2261 = vadd.f32 %v1812, %v2145
      %v2262 = vadd.f32 %v1813, %v2150
      %v2263 = vadd.f32 %v1814, %v2153
      %v2264 = vadd.f32 %v1815, %v2158
      %v2265 = vadd.f32 %v1816, %v2161
      %v2266 = vadd.f32 %v1817, %v2166
      %v2267 = vadd.f32 %v1818, %v2169
      %v2268 = vadd.f32 %v1819, %v2174
      %v2269 = vadd.f32 %v1820, %v2177
      %v2270 = vadd.f32 %v1821, %v2182
      %v2271 = vadd.f32 %v1822, %v2185
      %v2272 = vadd.f32 %v1823, %v2190
      %v2273 = vadd.f32 %v1824, %v2193
      %v2274 = vadd.f32 %v1825, %v2198
      %v2275 = vadd.f32 %v1826, %v2201
      %v2276 = vadd.f32 %v1827, %v2206
      %v2277 = vadd.f32 %v1828, %v2209
      %v2278 = vadd.f32 %v1829, %v2214
      %v2279 = vadd.f32 %v1830, %v2217
      %v2280 = vadd.f32 %v1831, %v2222
      %v2281 = vadd.f32 %v1832, %v2225
      %v2282 = vld [vmem:[%s253 + $0x20] sm:$0xff]
      %v2283 = vld [vmem:[%s253 + $0x28] sm:$0xff]
      %v2284 = vld [vmem:[%s253 + $0x30] sm:$0xff]
      %v2285 = vld [vmem:[%s253 + $0x38] sm:$0xff]
      %v2286 = vld [vmem:[%s253 + $0x40] sm:$0xff]
      %v2287 = vld [vmem:[%s253 + $0x48] sm:$0xff]
      %v2288 = vld [vmem:[%s253 + $0x50] sm:$0xff]
      %v2289 = vld [vmem:[%s253 + $0x58] sm:$0xff]
      %v2290 = vld [vmem:[%s253 + $0x60] sm:$0xff]
      %v2291 = vld [vmem:[%s253 + $0x68] sm:$0xff]
      %v2292 = vld [vmem:[%s253 + $0x70] sm:$0xff]
      %v2293 = vld [vmem:[%s253 + $0x78] sm:$0xff]
      %v2294 = vld [vmem:[%s253 + $0x80] sm:$0xff]
      %v2295 = vld [vmem:[%s253 + $0x88] sm:$0xff]
      %v2296 = vld [vmem:[%s253 + $0x90] sm:$0xff]
      %v2297 = vld [vmem:[%s253 + $0x98] sm:$0xff]
      %v2298 = vld [vmem:[%s253 + $0xa0] sm:$0xff]
      %v2299 = vld [vmem:[%s253 + $0xa8] sm:$0xff]
      %v2300 = vld [vmem:[%s253 + $0xb0] sm:$0xff]
      %v2301 = vld [vmem:[%s253 + $0xb8] sm:$0xff]
      %v2302 = vld [vmem:[%s253 + $0xc0] sm:$0xff]
      %v2303 = vld [vmem:[%s253 + $0xc8] sm:$0xff]
      %v2304 = vld [vmem:[%s253 + $0xd0] sm:$0xff]
      %v2305 = vld [vmem:[%s253 + $0xd8] sm:$0xff]
      %v2306 = vld [vmem:[%s253 + $0xe0] sm:$0xff]
      %v2307 = vld [vmem:[%s253 + $0xe8] sm:$0xff]
      %v2308 = vld [vmem:[%s253 + $0xf0] sm:$0xff]
      %v2309 = vld [vmem:[%s253 + $0xf8] sm:$0xff]
      %v2310 = vld [vmem:[%s253 + $0x100] sm:$0xff]
      %v2311 = vld [vmem:[%s253 + $0x108] sm:$0xff]
      %v2312 = vld [vmem:[%s253 + $0x110] sm:$0xff]
      %v2313 = vld [vmem:[%s253 + $0x118] sm:$0xff]
      %v2314 = vld [vmem:[%s253 + $0x120] sm:$0xff]
      %v2315 = vld [vmem:[%s253 + $0x128] sm:$0xff]
      %v2316 = vld [vmem:[%s253 + $0x130] sm:$0xff]
      %v2317 = vld [vmem:[%s253 + $0x138] sm:$0xff]
      %v2318 = vld [vmem:[%s253 + $0x140] sm:$0xff]
      %v2319 = vld [vmem:[%s253 + $0x148] sm:$0xff]
      %v2320 = vld [vmem:[%s253 + $0x150] sm:$0xff]
      %v2321 = vld [vmem:[%s253 + $0x158] sm:$0xff]
      %v2322 = vld [vmem:[%s253 + $0x160] sm:$0xff]
      %v2323 = vld [vmem:[%s253 + $0x168] sm:$0xff]
      %v2324 = vld [vmem:[%s253 + $0x170] sm:$0xff]
      %v2325 = vld [vmem:[%s253 + $0x178] sm:$0xff]
      %v2326 = vld [vmem:[%s253 + $0x180] sm:$0xff]
      %v2327 = vld [vmem:[%s253 + $0x188] sm:$0xff]
      %v2328 = vld [vmem:[%s253 + $0x190] sm:$0xff]
      %v2329 = vld [vmem:[%s253 + $0x198] sm:$0xff]
      %v2330 = vld [vmem:[%s253 + $0x1a0] sm:$0xff]
      %v2331 = vld [vmem:[%s253 + $0x1a8] sm:$0xff]
      %v2332 = vld [vmem:[%s253 + $0x1b0] sm:$0xff]
      %v2333 = vld [vmem:[%s253 + $0x1b8] sm:$0xff]
      %v2334 = vld [vmem:[%s253 + $0x1c0] sm:$0xff]
      %v2335 = vld [vmem:[%s253 + $0x1c8] sm:$0xff]
      %v2336 = vpack.c.bf16 %v2283, %v2282
      %v2337 = vpack.c.bf16 %v2285, %v2284
      %v2338 = vpack.c.bf16 %v2287, %v2286
      %v2339 = vpack.c.bf16 %v2289, %v2288
      %v2340 = vpack.c.bf16 %v2291, %v2290
      %v2341 = vpack.c.bf16 %v2293, %v2292
      %v2342 = vpack.c.bf16 %v2295, %v2294
      %v2343 = vpack.c.bf16 %v2297, %v2296
      %v2344 = vpack.c.bf16 %v2299, %v2298
      %v2345 = vpack.c.bf16 %v2301, %v2300
      %v2346 = vpack.c.bf16 %v2303, %v2302
      %v2347 = vpack.c.bf16 %v2305, %v2304
      %v2348 = vpack.c.bf16 %v2307, %v2306
      %v2349 = vpack.c.bf16 %v2309, %v2308
      %v2350 = vpack.c.bf16 %v2311, %v2310
      %v2351 = vpack.c.bf16 %v2313, %v2312
      %v2352 = vpack.c.bf16 %v2315, %v2314
      %v2353 = vpack.c.bf16 %v2317, %v2316
      %v2354 = vpack.c.bf16 %v2319, %v2318
      %v2355 = vpack.c.bf16 %v2321, %v2320
      %v2356 = vpack.c.bf16 %v2323, %v2322
      %v2357 = vpack.c.bf16 %v2325, %v2324
      %v2358 = vpack.c.bf16 %v2327, %v2326
      %v2359 = vpack.c.bf16 %v2329, %v2328
      %v2360 = vpack.c.bf16 %v2331, %v2330
      %v2361 = vpack.c.bf16 %v2333, %v2332
      %v2362 = vpack.c.bf16 %v2335, %v2334
      %s2363 = scalar_lea.vmem %s1, 256
      %v2364 = vld [vmem:[%s2363] sm:$0xf]
      %v2365 = vld [vmem:[%s2363 + $0x4] sm:$0xf]
      %v2366 = vld [vmem:[%s2363 + $0x8] sm:$0xf]
      %v2367 = vld [vmem:[%s2363 + $0xc] sm:$0xf]
      %v2368 = vld [vmem:[%s2363 + $0x10] sm:$0xf]
      %v2369 = vld [vmem:[%s2363 + $0x14] sm:$0xf]
      %v2370 = vld [vmem:[%s2363 + $0x18] sm:$0xf]
      %v2371 = vld [vmem:[%s2363 + $0x1c] sm:$0xf]
      %v2372 = vld [vmem:[%s2363 + $0x20] sm:$0xf]
      %v2373 = vld [vmem:[%s2363 + $0x24] sm:$0xf]
      %v2374 = vld [vmem:[%s2363 + $0x28] sm:$0xf]
      %v2375 = vld [vmem:[%s2363 + $0x2c] sm:$0xf]
      %v2376 = vld [vmem:[%s2363 + $0x30] sm:$0xf]
      %v2377 = vld [vmem:[%s2363 + $0x34] sm:$0xf]
      %v2378 = vld [vmem:[%s2363 + $0x38] sm:$0xf]
      %v2379 = vld [vmem:[%s2363 + $0x3c] sm:$0xf]
      %v2396 = vunpack.c.l.b16 %v2364
      %v2397 = vunpack.c.l.b16 %v2365
      %v2398 = vunpack.c.l.b16 %v2366
      %v2399 = vunpack.c.l.b16 %v2367
      %v2400 = vunpack.c.l.b16 %v2368
      %v2401 = vunpack.c.l.b16 %v2369
      %v2402 = vunpack.c.l.b16 %v2370
      %v2403 = vunpack.c.l.b16 %v2371
      %v2404 = vunpack.c.l.b16 %v2372
      %v2405 = vunpack.c.l.b16 %v2373
      %v2406 = vunpack.c.l.b16 %v2374
      %v2407 = vunpack.c.l.b16 %v2375
      %v2408 = vunpack.c.l.b16 %v2376
      %v2409 = vunpack.c.l.b16 %v2377
      %v2410 = vunpack.c.l.b16 %v2378
      %v2411 = vunpack.c.l.b16 %v2379
      %v2412 = vpack.c.b16 %v2397, %v2396
      %v2413 = vpack.c.b16 %v2399, %v2398
      %v2414 = vpack.c.b16 %v2401, %v2400
      %v2415 = vpack.c.b16 %v2403, %v2402
      %v2416 = vpack.c.b16 %v2405, %v2404
      %v2417 = vpack.c.b16 %v2407, %v2406
      %v2418 = vpack.c.b16 %v2409, %v2408
      %v2419 = vpack.c.b16 %v2411, %v2410
      %2428 = vmatprep.subr.bf16.mxu0 0
      %2429 = vmatpush1.bf16.msra.mxu0 %v2419
      %2430 = vmatprep.subr.bf16.mxu0 0
      %2431 = vmatpush1.bf16.msra.mxu0 %v2418
      %2432 = vmatprep.subr.bf16.mxu0 0
      %2433 = vmatpush1.bf16.msra.mxu0 %v2417
      %2434 = vmatprep.subr.bf16.mxu0 0
      %2435 = vmatpush1.bf16.msra.mxu0 %v2416
      %2436 = vmatprep.subr.bf16.mxu0 0
      %2437 = vmatpush1.bf16.msra.mxu0 %v2415
      %2438 = vmatprep.subr.bf16.mxu0 0
      %2439 = vmatpush1.bf16.msra.mxu0 %v2414
      %2440 = vmatprep.subr.bf16.mxu0 0
      %2441 = vmatpush1.bf16.msra.mxu0 %v2413
      %2442 = vmatprep.subr.bf16.mxu0 0
      %2443 = vmatpush1.bf16.msra.mxu0 %v2412
      %2444 = vmatprep.subr.bf16.mxu0 0
      %2445 = vmatpush2.bf16.msra.mxu0 0
      %2446 = vmatprep.subr.bf16.mxu0 0
      %2447 = vmatpush2.bf16.msra.mxu0 0
      %2448 = vmatprep.subr.bf16.mxu0 0
      %2449 = vmatpush2.bf16.msra.mxu0 0
      %2450 = vmatprep.subr.bf16.mxu0 0
      %2451 = vmatpush2.bf16.msra.mxu0 0
      %2452 = vmatprep.subr.bf16.mxu0 0
      %2453 = vmatpush2.bf16.msra.mxu0 0
      %2454 = vmatprep.subr.bf16.mxu0 0
      %2455 = vmatpush2.bf16.msra.mxu0 0
      %2456 = vmatprep.subr.bf16.mxu0 0
      %2457 = vmatpush2.bf16.msra.mxu0 0
      %2458 = vmatprep.subr.bf16.mxu0 0
      %2459 = vmatpush2.bf16.msra.mxu0 0
      %2460 = vmatprep.mubr.bf16.mxu0 0
      %2461 = vmatmul.mubr.bf16.gmra.mxu0 %v2336
      %v2462 = vpop.f32.mrf.mxu0
      %v2463 = vadd.f32 0.0, %v2462
      %v2464 = vpop.f32.mrf.mxu0
      %v2465 = vpop.f32.mrf.mxu0
      %v2466 = vadd.f32 0.0, %v2465
      %v2467 = vpop.f32.mrf.mxu0
      %2468 = vmatprep.mubr.bf16.mxu0 0
      %2469 = vmatmul.mubr.bf16.gmra.mxu0 %v2337
      %v2470 = vpop.f32.mrf.mxu0
      %v2471 = vadd.f32 0.0, %v2470
      %v2472 = vpop.f32.mrf.mxu0
      %v2473 = vpop.f32.mrf.mxu0
      %v2474 = vadd.f32 0.0, %v2473
      %v2475 = vpop.f32.mrf.mxu0
      %2476 = vmatprep.mubr.bf16.mxu0 0
      %2477 = vmatmul.mubr.bf16.gmra.mxu0 %v2338
      %v2478 = vpop.f32.mrf.mxu0
      %v2479 = vadd.f32 0.0, %v2478
      %v2480 = vpop.f32.mrf.mxu0
      %v2481 = vpop.f32.mrf.mxu0
      %v2482 = vadd.f32 0.0, %v2481
      %v2483 = vpop.f32.mrf.mxu0
      %2484 = vmatprep.mubr.bf16.mxu0 0
      %2485 = vmatmul.mubr.bf16.gmra.mxu0 %v2339
      %v2486 = vpop.f32.mrf.mxu0
      %v2487 = vadd.f32 0.0, %v2486
      %v2488 = vpop.f32.mrf.mxu0
      %v2489 = vpop.f32.mrf.mxu0
      %v2490 = vadd.f32 0.0, %v2489
      %v2491 = vpop.f32.mrf.mxu0
      %2492 = vmatprep.mubr.bf16.mxu0 0
      %2493 = vmatmul.mubr.bf16.gmra.mxu0 %v2340
      %v2494 = vpop.f32.mrf.mxu0
      %v2495 = vadd.f32 0.0, %v2494
      %v2496 = vpop.f32.mrf.mxu0
      %v2497 = vpop.f32.mrf.mxu0
      %v2498 = vadd.f32 0.0, %v2497
      %v2499 = vpop.f32.mrf.mxu0
      %2500 = vmatprep.mubr.bf16.mxu0 0
      %2501 = vmatmul.mubr.bf16.gmra.mxu0 %v2341
      %v2502 = vpop.f32.mrf.mxu0
      %v2503 = vadd.f32 0.0, %v2502
      %v2504 = vpop.f32.mrf.mxu0
      %v2505 = vpop.f32.mrf.mxu0
      %v2506 = vadd.f32 0.0, %v2505
      %v2507 = vpop.f32.mrf.mxu0
      %2508 = vmatprep.mubr.bf16.mxu0 0
      %2509 = vmatmul.mubr.bf16.gmra.mxu0 %v2342
      %v2510 = vpop.f32.mrf.mxu0
      %v2511 = vadd.f32 0.0, %v2510
      %v2512 = vpop.f32.mrf.mxu0
      %v2513 = vpop.f32.mrf.mxu0
      %v2514 = vadd.f32 0.0, %v2513
      %v2515 = vpop.f32.mrf.mxu0
      %2516 = vmatprep.mubr.bf16.mxu0 0
      %2517 = vmatmul.mubr.bf16.gmra.mxu0 %v2343
      %v2518 = vpop.f32.mrf.mxu0
      %v2519 = vadd.f32 0.0, %v2518
      %v2520 = vpop.f32.mrf.mxu0
      %v2521 = vpop.f32.mrf.mxu0
      %v2522 = vadd.f32 0.0, %v2521
      %v2523 = vpop.f32.mrf.mxu0
      %2524 = vmatprep.mubr.bf16.mxu0 0
      %2525 = vmatmul.mubr.bf16.gmra.mxu0 %v2344
      %v2526 = vpop.f32.mrf.mxu0
      %v2527 = vadd.f32 0.0, %v2526
      %v2528 = vpop.f32.mrf.mxu0
      %v2529 = vpop.f32.mrf.mxu0
      %v2530 = vadd.f32 0.0, %v2529
      %v2531 = vpop.f32.mrf.mxu0
      %2532 = vmatprep.mubr.bf16.mxu0 0
      %2533 = vmatmul.mubr.bf16.gmra.mxu0 %v2345
      %v2534 = vpop.f32.mrf.mxu0
      %v2535 = vadd.f32 0.0, %v2534
      %v2536 = vpop.f32.mrf.mxu0
      %v2537 = vpop.f32.mrf.mxu0
      %v2538 = vadd.f32 0.0, %v2537
      %v2539 = vpop.f32.mrf.mxu0
      %2540 = vmatprep.mubr.bf16.mxu0 0
      %2541 = vmatmul.mubr.bf16.gmra.mxu0 %v2346
      %v2542 = vpop.f32.mrf.mxu0
      %v2543 = vadd.f32 0.0, %v2542
      %v2544 = vpop.f32.mrf.mxu0
      %v2545 = vpop.f32.mrf.mxu0
      %v2546 = vadd.f32 0.0, %v2545
      %v2547 = vpop.f32.mrf.mxu0
      %2548 = vmatprep.mubr.bf16.mxu0 0
      %2549 = vmatmul.mubr.bf16.gmra.mxu0 %v2347
      %v2550 = vpop.f32.mrf.mxu0
      %v2551 = vadd.f32 0.0, %v2550
      %v2552 = vpop.f32.mrf.mxu0
      %v2553 = vpop.f32.mrf.mxu0
      %v2554 = vadd.f32 0.0, %v2553
      %v2555 = vpop.f32.mrf.mxu0
      %2556 = vmatprep.mubr.bf16.mxu0 0
      %2557 = vmatmul.mubr.bf16.gmra.mxu0 %v2348
      %v2558 = vpop.f32.mrf.mxu0
      %v2559 = vadd.f32 0.0, %v2558
      %v2560 = vpop.f32.mrf.mxu0
      %v2561 = vpop.f32.mrf.mxu0
      %v2562 = vadd.f32 0.0, %v2561
      %v2563 = vpop.f32.mrf.mxu0
      %2564 = vmatprep.mubr.bf16.mxu0 0
      %2565 = vmatmul.mubr.bf16.gmra.mxu0 %v2349
      %v2566 = vpop.f32.mrf.mxu0
      %v2567 = vadd.f32 0.0, %v2566
      %v2568 = vpop.f32.mrf.mxu0
      %v2569 = vpop.f32.mrf.mxu0
      %v2570 = vadd.f32 0.0, %v2569
      %v2571 = vpop.f32.mrf.mxu0
      %2572 = vmatprep.mubr.bf16.mxu0 0
      %2573 = vmatmul.mubr.bf16.gmra.mxu0 %v2350
      %v2574 = vpop.f32.mrf.mxu0
      %v2575 = vadd.f32 0.0, %v2574
      %v2576 = vpop.f32.mrf.mxu0
      %v2577 = vpop.f32.mrf.mxu0
      %v2578 = vadd.f32 0.0, %v2577
      %v2579 = vpop.f32.mrf.mxu0
      %2580 = vmatprep.mubr.bf16.mxu0 0
      %2581 = vmatmul.mubr.bf16.gmra.mxu0 %v2351
      %v2582 = vpop.f32.mrf.mxu0
      %v2583 = vadd.f32 0.0, %v2582
      %v2584 = vpop.f32.mrf.mxu0
      %v2585 = vpop.f32.mrf.mxu0
      %v2586 = vadd.f32 0.0, %v2585
      %v2587 = vpop.f32.mrf.mxu0
      %2588 = vmatprep.mubr.bf16.mxu0 0
      %2589 = vmatmul.mubr.bf16.gmra.mxu0 %v2352
      %v2590 = vpop.f32.mrf.mxu0
      %v2591 = vadd.f32 0.0, %v2590
      %v2592 = vpop.f32.mrf.mxu0
      %v2593 = vpop.f32.mrf.mxu0
      %v2594 = vadd.f32 0.0, %v2593
      %v2595 = vpop.f32.mrf.mxu0
      %2596 = vmatprep.mubr.bf16.mxu0 0
      %2597 = vmatmul.mubr.bf16.gmra.mxu0 %v2353
      %v2598 = vpop.f32.mrf.mxu0
      %v2599 = vadd.f32 0.0, %v2598
      %v2600 = vpop.f32.mrf.mxu0
      %v2601 = vpop.f32.mrf.mxu0
      %v2602 = vadd.f32 0.0, %v2601
      %v2603 = vpop.f32.mrf.mxu0
      %2604 = vmatprep.mubr.bf16.mxu0 0
      %2605 = vmatmul.mubr.bf16.gmra.mxu0 %v2354
      %v2606 = vpop.f32.mrf.mxu0
      %v2607 = vadd.f32 0.0, %v2606
      %v2608 = vpop.f32.mrf.mxu0
      %v2609 = vpop.f32.mrf.mxu0
      %v2610 = vadd.f32 0.0, %v2609
      %v2611 = vpop.f32.mrf.mxu0
      %2612 = vmatprep.mubr.bf16.mxu0 0
      %2613 = vmatmul.mubr.bf16.gmra.mxu0 %v2355
      %v2614 = vpop.f32.mrf.mxu0
      %v2615 = vadd.f32 0.0, %v2614
      %v2616 = vpop.f32.mrf.mxu0
      %v2617 = vpop.f32.mrf.mxu0
      %v2618 = vadd.f32 0.0, %v2617
      %v2619 = vpop.f32.mrf.mxu0
      %2620 = vmatprep.mubr.bf16.mxu0 0
      %2621 = vmatmul.mubr.bf16.gmra.mxu0 %v2356
      %v2622 = vpop.f32.mrf.mxu0
      %v2623 = vadd.f32 0.0, %v2622
      %v2624 = vpop.f32.mrf.mxu0
      %v2625 = vpop.f32.mrf.mxu0
      %v2626 = vadd.f32 0.0, %v2625
      %v2627 = vpop.f32.mrf.mxu0
      %2628 = vmatprep.mubr.bf16.mxu0 0
      %2629 = vmatmul.mubr.bf16.gmra.mxu0 %v2357
      %v2630 = vpop.f32.mrf.mxu0
      %v2631 = vadd.f32 0.0, %v2630
      %v2632 = vpop.f32.mrf.mxu0
      %v2633 = vpop.f32.mrf.mxu0
      %v2634 = vadd.f32 0.0, %v2633
      %v2635 = vpop.f32.mrf.mxu0
      %2636 = vmatprep.mubr.bf16.mxu0 0
      %2637 = vmatmul.mubr.bf16.gmra.mxu0 %v2358
      %v2638 = vpop.f32.mrf.mxu0
      %v2639 = vadd.f32 0.0, %v2638
      %v2640 = vpop.f32.mrf.mxu0
      %v2641 = vpop.f32.mrf.mxu0
      %v2642 = vadd.f32 0.0, %v2641
      %v2643 = vpop.f32.mrf.mxu0
      %2644 = vmatprep.mubr.bf16.mxu0 0
      %2645 = vmatmul.mubr.bf16.gmra.mxu0 %v2359
      %v2646 = vpop.f32.mrf.mxu0
      %v2647 = vadd.f32 0.0, %v2646
      %v2648 = vpop.f32.mrf.mxu0
      %v2649 = vpop.f32.mrf.mxu0
      %v2650 = vadd.f32 0.0, %v2649
      %v2651 = vpop.f32.mrf.mxu0
      %2652 = vmatprep.mubr.bf16.mxu0 0
      %2653 = vmatmul.mubr.bf16.gmra.mxu0 %v2360
      %v2654 = vpop.f32.mrf.mxu0
      %v2655 = vadd.f32 0.0, %v2654
      %v2656 = vpop.f32.mrf.mxu0
      %v2657 = vpop.f32.mrf.mxu0
      %v2658 = vadd.f32 0.0, %v2657
      %v2659 = vpop.f32.mrf.mxu0
      %2660 = vmatprep.mubr.bf16.mxu0 0
      %2661 = vmatmul.mubr.bf16.gmra.mxu0 %v2361
      %v2662 = vpop.f32.mrf.mxu0
      %v2663 = vadd.f32 0.0, %v2662
      %v2664 = vpop.f32.mrf.mxu0
      %v2665 = vpop.f32.mrf.mxu0
      %v2666 = vadd.f32 0.0, %v2665
      %v2667 = vpop.f32.mrf.mxu0
      %2668 = vmatprep.mubr.bf16.mxu0 0
      %2669 = vmatmul.mubr.bf16.gmra.mxu0 %v2362
      %v2670 = vpop.f32.mrf.mxu0
      %v2671 = vadd.f32 0.0, %v2670
      %v2672 = vpop.f32.mrf.mxu0
      %v2673 = vpop.f32.mrf.mxu0
      %v2674 = vadd.f32 0.0, %v2673
      %v2675 = vpop.f32.mrf.mxu0
      %2676 = vdwg.mxu0
      %v2677 = vadd.f32 %v2228, %v2463
      %v2678 = vadd.f32 %v2229, %v2466
      %v2679 = vadd.f32 %v2230, %v2471
      %v2680 = vadd.f32 %v2231, %v2474
      %v2681 = vadd.f32 %v2232, %v2479
      %v2682 = vadd.f32 %v2233, %v2482
      %v2683 = vadd.f32 %v2234, %v2487
      %v2684 = vadd.f32 %v2235, %v2490
      %v2685 = vadd.f32 %v2236, %v2495
      %v2686 = vadd.f32 %v2237, %v2498
      %v2687 = vadd.f32 %v2238, %v2503
      %v2688 = vadd.f32 %v2239, %v2506
      %v2689 = vadd.f32 %v2240, %v2511
      %v2690 = vadd.f32 %v2241, %v2514
      %v2691 = vadd.f32 %v2242, %v2519
      %v2692 = vadd.f32 %v2243, %v2522
      %v2693 = vadd.f32 %v2244, %v2527
      %v2694 = vadd.f32 %v2245, %v2530
      %v2695 = vadd.f32 %v2246, %v2535
      %v2696 = vadd.f32 %v2247, %v2538
      %v2697 = vadd.f32 %v2248, %v2543
      %v2698 = vadd.f32 %v2249, %v2546
      %v2699 = vadd.f32 %v2250, %v2551
      %v2700 = vadd.f32 %v2251, %v2554
      %v2701 = vadd.f32 %v2252, %v2559
      %v2702 = vadd.f32 %v2253, %v2562
      %v2703 = vadd.f32 %v2254, %v2567
      %v2704 = vadd.f32 %v2255, %v2570
      %v2705 = vadd.f32 %v2256, %v2575
      %v2706 = vadd.f32 %v2257, %v2578
      %v2707 = vadd.f32 %v2258, %v2583
      %v2708 = vadd.f32 %v2259, %v2586
      %v2709 = vadd.f32 %v2260, %v2591
      %v2710 = vadd.f32 %v2261, %v2594
      %v2711 = vadd.f32 %v2262, %v2599
      %v2712 = vadd.f32 %v2263, %v2602
      %v2713 = vadd.f32 %v2264, %v2607
      %v2714 = vadd.f32 %v2265, %v2610
      %v2715 = vadd.f32 %v2266, %v2615
      %v2716 = vadd.f32 %v2267, %v2618
      %v2717 = vadd.f32 %v2268, %v2623
      %v2718 = vadd.f32 %v2269, %v2626
      %v2719 = vadd.f32 %v2270, %v2631
      %v2720 = vadd.f32 %v2271, %v2634
      %v2721 = vadd.f32 %v2272, %v2639
      %v2722 = vadd.f32 %v2273, %v2642
      %v2723 = vadd.f32 %v2274, %v2647
      %v2724 = vadd.f32 %v2275, %v2650
      %v2725 = vadd.f32 %v2276, %v2655
      %v2726 = vadd.f32 %v2277, %v2658
      %v2727 = vadd.f32 %v2278, %v2663
      %v2728 = vadd.f32 %v2279, %v2666
      %v2729 = vadd.f32 %v2280, %v2671
      %v2730 = vadd.f32 %v2281, %v2674
      %v2731 = vld [vmem:[%s253 + $0x21] sm:$0xff]
      %v2732 = vld [vmem:[%s253 + $0x29] sm:$0xff]
      %v2733 = vld [vmem:[%s253 + $0x31] sm:$0xff]
      %v2734 = vld [vmem:[%s253 + $0x39] sm:$0xff]
      %v2735 = vld [vmem:[%s253 + $0x41] sm:$0xff]
      %v2736 = vld [vmem:[%s253 + $0x49] sm:$0xff]
      %v2737 = vld [vmem:[%s253 + $0x51] sm:$0xff]
      %v2738 = vld [vmem:[%s253 + $0x59] sm:$0xff]
      %v2739 = vld [vmem:[%s253 + $0x61] sm:$0xff]
      %v2740 = vld [vmem:[%s253 + $0x69] sm:$0xff]
      %v2741 = vld [vmem:[%s253 + $0x71] sm:$0xff]
      %v2742 = vld [vmem:[%s253 + $0x79] sm:$0xff]
      %v2743 = vld [vmem:[%s253 + $0x81] sm:$0xff]
      %v2744 = vld [vmem:[%s253 + $0x89] sm:$0xff]
      %v2745 = vld [vmem:[%s253 + $0x91] sm:$0xff]
      %v2746 = vld [vmem:[%s253 + $0x99] sm:$0xff]
      %v2747 = vld [vmem:[%s253 + $0xa1] sm:$0xff]
      %v2748 = vld [vmem:[%s253 + $0xa9] sm:$0xff]
      %v2749 = vld [vmem:[%s253 + $0xb1] sm:$0xff]
      %v2750 = vld [vmem:[%s253 + $0xb9] sm:$0xff]
      %v2751 = vld [vmem:[%s253 + $0xc1] sm:$0xff]
      %v2752 = vld [vmem:[%s253 + $0xc9] sm:$0xff]
      %v2753 = vld [vmem:[%s253 + $0xd1] sm:$0xff]
      %v2754 = vld [vmem:[%s253 + $0xd9] sm:$0xff]
      %v2755 = vld [vmem:[%s253 + $0xe1] sm:$0xff]
      %v2756 = vld [vmem:[%s253 + $0xe9] sm:$0xff]
      %v2757 = vld [vmem:[%s253 + $0xf1] sm:$0xff]
      %v2758 = vld [vmem:[%s253 + $0xf9] sm:$0xff]
      %v2759 = vld [vmem:[%s253 + $0x101] sm:$0xff]
      %v2760 = vld [vmem:[%s253 + $0x109] sm:$0xff]
      %v2761 = vld [vmem:[%s253 + $0x111] sm:$0xff]
      %v2762 = vld [vmem:[%s253 + $0x119] sm:$0xff]
      %v2763 = vld [vmem:[%s253 + $0x121] sm:$0xff]
      %v2764 = vld [vmem:[%s253 + $0x129] sm:$0xff]
      %v2765 = vld [vmem:[%s253 + $0x131] sm:$0xff]
      %v2766 = vld [vmem:[%s253 + $0x139] sm:$0xff]
      %v2767 = vld [vmem:[%s253 + $0x141] sm:$0xff]
      %v2768 = vld [vmem:[%s253 + $0x149] sm:$0xff]
      %v2769 = vld [vmem:[%s253 + $0x151] sm:$0xff]
      %v2770 = vld [vmem:[%s253 + $0x159] sm:$0xff]
      %v2771 = vld [vmem:[%s253 + $0x161] sm:$0xff]
      %v2772 = vld [vmem:[%s253 + $0x169] sm:$0xff]
      %v2773 = vld [vmem:[%s253 + $0x171] sm:$0xff]
      %v2774 = vld [vmem:[%s253 + $0x179] sm:$0xff]
      %v2775 = vld [vmem:[%s253 + $0x181] sm:$0xff]
      %v2776 = vld [vmem:[%s253 + $0x189] sm:$0xff]
      %v2777 = vld [vmem:[%s253 + $0x191] sm:$0xff]
      %v2778 = vld [vmem:[%s253 + $0x199] sm:$0xff]
      %v2779 = vld [vmem:[%s253 + $0x1a1] sm:$0xff]
      %v2780 = vld [vmem:[%s253 + $0x1a9] sm:$0xff]
      %v2781 = vld [vmem:[%s253 + $0x1b1] sm:$0xff]
      %v2782 = vld [vmem:[%s253 + $0x1b9] sm:$0xff]
      %v2783 = vld [vmem:[%s253 + $0x1c1] sm:$0xff]
      %v2784 = vld [vmem:[%s253 + $0x1c9] sm:$0xff]
      %v2785 = vpack.c.bf16 %v2732, %v2731
      %v2786 = vpack.c.bf16 %v2734, %v2733
      %v2787 = vpack.c.bf16 %v2736, %v2735
      %v2788 = vpack.c.bf16 %v2738, %v2737
      %v2789 = vpack.c.bf16 %v2740, %v2739
      %v2790 = vpack.c.bf16 %v2742, %v2741
      %v2791 = vpack.c.bf16 %v2744, %v2743
      %v2792 = vpack.c.bf16 %v2746, %v2745
      %v2793 = vpack.c.bf16 %v2748, %v2747
      %v2794 = vpack.c.bf16 %v2750, %v2749
      %v2795 = vpack.c.bf16 %v2752, %v2751
      %v2796 = vpack.c.bf16 %v2754, %v2753
      %v2797 = vpack.c.bf16 %v2756, %v2755
      %v2798 = vpack.c.bf16 %v2758, %v2757
      %v2799 = vpack.c.bf16 %v2760, %v2759
      %v2800 = vpack.c.bf16 %v2762, %v2761
      %v2801 = vpack.c.bf16 %v2764, %v2763
      %v2802 = vpack.c.bf16 %v2766, %v2765
      %v2803 = vpack.c.bf16 %v2768, %v2767
      %v2804 = vpack.c.bf16 %v2770, %v2769
      %v2805 = vpack.c.bf16 %v2772, %v2771
      %v2806 = vpack.c.bf16 %v2774, %v2773
      %v2807 = vpack.c.bf16 %v2776, %v2775
      %v2808 = vpack.c.bf16 %v2778, %v2777
      %v2809 = vpack.c.bf16 %v2780, %v2779
      %v2810 = vpack.c.bf16 %v2782, %v2781
      %v2811 = vpack.c.bf16 %v2784, %v2783
      %s2812 = scalar_lea.vmem %s1, 320
      %v2813 = vld [vmem:[%s2812] sm:$0xf]
      %v2814 = vld [vmem:[%s2812 + $0x4] sm:$0xf]
      %v2815 = vld [vmem:[%s2812 + $0x8] sm:$0xf]
      %v2816 = vld [vmem:[%s2812 + $0xc] sm:$0xf]
      %v2817 = vld [vmem:[%s2812 + $0x10] sm:$0xf]
      %v2818 = vld [vmem:[%s2812 + $0x14] sm:$0xf]
      %v2819 = vld [vmem:[%s2812 + $0x18] sm:$0xf]
      %v2820 = vld [vmem:[%s2812 + $0x1c] sm:$0xf]
      %v2821 = vld [vmem:[%s2812 + $0x20] sm:$0xf]
      %v2822 = vld [vmem:[%s2812 + $0x24] sm:$0xf]
      %v2823 = vld [vmem:[%s2812 + $0x28] sm:$0xf]
      %v2824 = vld [vmem:[%s2812 + $0x2c] sm:$0xf]
      %v2825 = vld [vmem:[%s2812 + $0x30] sm:$0xf]
      %v2826 = vld [vmem:[%s2812 + $0x34] sm:$0xf]
      %v2827 = vld [vmem:[%s2812 + $0x38] sm:$0xf]
      %v2828 = vld [vmem:[%s2812 + $0x3c] sm:$0xf]
      %v2845 = vunpack.c.l.b16 %v2813
      %v2846 = vunpack.c.l.b16 %v2814
      %v2847 = vunpack.c.l.b16 %v2815
      %v2848 = vunpack.c.l.b16 %v2816
      %v2849 = vunpack.c.l.b16 %v2817
      %v2850 = vunpack.c.l.b16 %v2818
      %v2851 = vunpack.c.l.b16 %v2819
      %v2852 = vunpack.c.l.b16 %v2820
      %v2853 = vunpack.c.l.b16 %v2821
      %v2854 = vunpack.c.l.b16 %v2822
      %v2855 = vunpack.c.l.b16 %v2823
      %v2856 = vunpack.c.l.b16 %v2824
      %v2857 = vunpack.c.l.b16 %v2825
      %v2858 = vunpack.c.l.b16 %v2826
      %v2859 = vunpack.c.l.b16 %v2827
      %v2860 = vunpack.c.l.b16 %v2828
      %v2861 = vpack.c.b16 %v2846, %v2845
      %v2862 = vpack.c.b16 %v2848, %v2847
      %v2863 = vpack.c.b16 %v2850, %v2849
      %v2864 = vpack.c.b16 %v2852, %v2851
      %v2865 = vpack.c.b16 %v2854, %v2853
      %v2866 = vpack.c.b16 %v2856, %v2855
      %v2867 = vpack.c.b16 %v2858, %v2857
      %v2868 = vpack.c.b16 %v2860, %v2859
      %2877 = vmatprep.subr.bf16.mxu0 0
      %2878 = vmatpush1.bf16.msra.mxu0 %v2868
      %2879 = vmatprep.subr.bf16.mxu0 0
      %2880 = vmatpush1.bf16.msra.mxu0 %v2867
      %2881 = vmatprep.subr.bf16.mxu0 0
      %2882 = vmatpush1.bf16.msra.mxu0 %v2866
      %2883 = vmatprep.subr.bf16.mxu0 0
      %2884 = vmatpush1.bf16.msra.mxu0 %v2865
      %2885 = vmatprep.subr.bf16.mxu0 0
      %2886 = vmatpush1.bf16.msra.mxu0 %v2864
      %2887 = vmatprep.subr.bf16.mxu0 0
      %2888 = vmatpush1.bf16.msra.mxu0 %v2863
      %2889 = vmatprep.subr.bf16.mxu0 0
      %2890 = vmatpush1.bf16.msra.mxu0 %v2862
      %2891 = vmatprep.subr.bf16.mxu0 0
      %2892 = vmatpush1.bf16.msra.mxu0 %v2861
      %2893 = vmatprep.subr.bf16.mxu0 0
      %2894 = vmatpush2.bf16.msra.mxu0 0
      %2895 = vmatprep.subr.bf16.mxu0 0
      %2896 = vmatpush2.bf16.msra.mxu0 0
      %2897 = vmatprep.subr.bf16.mxu0 0
      %2898 = vmatpush2.bf16.msra.mxu0 0
      %2899 = vmatprep.subr.bf16.mxu0 0
      %2900 = vmatpush2.bf16.msra.mxu0 0
      %2901 = vmatprep.subr.bf16.mxu0 0
      %2902 = vmatpush2.bf16.msra.mxu0 0
      %2903 = vmatprep.subr.bf16.mxu0 0
      %2904 = vmatpush2.bf16.msra.mxu0 0
      %2905 = vmatprep.subr.bf16.mxu0 0
      %2906 = vmatpush2.bf16.msra.mxu0 0
      %2907 = vmatprep.subr.bf16.mxu0 0
      %2908 = vmatpush2.bf16.msra.mxu0 0
      %2909 = vmatprep.mubr.bf16.mxu0 0
      %2910 = vmatmul.mubr.bf16.gmra.mxu0 %v2785
      %v2911 = vpop.f32.mrf.mxu0
      %v2912 = vadd.f32 0.0, %v2911
      %v2913 = vpop.f32.mrf.mxu0
      %v2914 = vpop.f32.mrf.mxu0
      %v2915 = vadd.f32 0.0, %v2914
      %v2916 = vpop.f32.mrf.mxu0
      %2917 = vmatprep.mubr.bf16.mxu0 0
      %2918 = vmatmul.mubr.bf16.gmra.mxu0 %v2786
      %v2919 = vpop.f32.mrf.mxu0
      %v2920 = vadd.f32 0.0, %v2919
      %v2921 = vpop.f32.mrf.mxu0
      %v2922 = vpop.f32.mrf.mxu0
      %v2923 = vadd.f32 0.0, %v2922
      %v2924 = vpop.f32.mrf.mxu0
      %2925 = vmatprep.mubr.bf16.mxu0 0
      %2926 = vmatmul.mubr.bf16.gmra.mxu0 %v2787
      %v2927 = vpop.f32.mrf.mxu0
      %v2928 = vadd.f32 0.0, %v2927
      %v2929 = vpop.f32.mrf.mxu0
      %v2930 = vpop.f32.mrf.mxu0
      %v2931 = vadd.f32 0.0, %v2930
      %v2932 = vpop.f32.mrf.mxu0
      %2933 = vmatprep.mubr.bf16.mxu0 0
      %2934 = vmatmul.mubr.bf16.gmra.mxu0 %v2788
      %v2935 = vpop.f32.mrf.mxu0
      %v2936 = vadd.f32 0.0, %v2935
      %v2937 = vpop.f32.mrf.mxu0
      %v2938 = vpop.f32.mrf.mxu0
      %v2939 = vadd.f32 0.0, %v2938
      %v2940 = vpop.f32.mrf.mxu0
      %2941 = vmatprep.mubr.bf16.mxu0 0
      %2942 = vmatmul.mubr.bf16.gmra.mxu0 %v2789
      %v2943 = vpop.f32.mrf.mxu0
      %v2944 = vadd.f32 0.0, %v2943
      %v2945 = vpop.f32.mrf.mxu0
      %v2946 = vpop.f32.mrf.mxu0
      %v2947 = vadd.f32 0.0, %v2946
      %v2948 = vpop.f32.mrf.mxu0
      %2949 = vmatprep.mubr.bf16.mxu0 0
      %2950 = vmatmul.mubr.bf16.gmra.mxu0 %v2790
      %v2951 = vpop.f32.mrf.mxu0
      %v2952 = vadd.f32 0.0, %v2951
      %v2953 = vpop.f32.mrf.mxu0
      %v2954 = vpop.f32.mrf.mxu0
      %v2955 = vadd.f32 0.0, %v2954
      %v2956 = vpop.f32.mrf.mxu0
      %2957 = vmatprep.mubr.bf16.mxu0 0
      %2958 = vmatmul.mubr.bf16.gmra.mxu0 %v2791
      %v2959 = vpop.f32.mrf.mxu0
      %v2960 = vadd.f32 0.0, %v2959
      %v2961 = vpop.f32.mrf.mxu0
      %v2962 = vpop.f32.mrf.mxu0
      %v2963 = vadd.f32 0.0, %v2962
      %v2964 = vpop.f32.mrf.mxu0
      %2965 = vmatprep.mubr.bf16.mxu0 0
      %2966 = vmatmul.mubr.bf16.gmra.mxu0 %v2792
      %v2967 = vpop.f32.mrf.mxu0
      %v2968 = vadd.f32 0.0, %v2967
      %v2969 = vpop.f32.mrf.mxu0
      %v2970 = vpop.f32.mrf.mxu0
      %v2971 = vadd.f32 0.0, %v2970
      %v2972 = vpop.f32.mrf.mxu0
      %2973 = vmatprep.mubr.bf16.mxu0 0
      %2974 = vmatmul.mubr.bf16.gmra.mxu0 %v2793
      %v2975 = vpop.f32.mrf.mxu0
      %v2976 = vadd.f32 0.0, %v2975
      %v2977 = vpop.f32.mrf.mxu0
      %v2978 = vpop.f32.mrf.mxu0
      %v2979 = vadd.f32 0.0, %v2978
      %v2980 = vpop.f32.mrf.mxu0
      %2981 = vmatprep.mubr.bf16.mxu0 0
      %2982 = vmatmul.mubr.bf16.gmra.mxu0 %v2794
      %v2983 = vpop.f32.mrf.mxu0
      %v2984 = vadd.f32 0.0, %v2983
      %v2985 = vpop.f32.mrf.mxu0
      %v2986 = vpop.f32.mrf.mxu0
      %v2987 = vadd.f32 0.0, %v2986
      %v2988 = vpop.f32.mrf.mxu0
      %2989 = vmatprep.mubr.bf16.mxu0 0
      %2990 = vmatmul.mubr.bf16.gmra.mxu0 %v2795
      %v2991 = vpop.f32.mrf.mxu0
      %v2992 = vadd.f32 0.0, %v2991
      %v2993 = vpop.f32.mrf.mxu0
      %v2994 = vpop.f32.mrf.mxu0
      %v2995 = vadd.f32 0.0, %v2994
      %v2996 = vpop.f32.mrf.mxu0
      %2997 = vmatprep.mubr.bf16.mxu0 0
      %2998 = vmatmul.mubr.bf16.gmra.mxu0 %v2796
      %v2999 = vpop.f32.mrf.mxu0
      %v3000 = vadd.f32 0.0, %v2999
      %v3001 = vpop.f32.mrf.mxu0
      %v3002 = vpop.f32.mrf.mxu0
      %v3003 = vadd.f32 0.0, %v3002
      %v3004 = vpop.f32.mrf.mxu0
      %3005 = vmatprep.mubr.bf16.mxu0 0
      %3006 = vmatmul.mubr.bf16.gmra.mxu0 %v2797
      %v3007 = vpop.f32.mrf.mxu0
      %v3008 = vadd.f32 0.0, %v3007
      %v3009 = vpop.f32.mrf.mxu0
      %v3010 = vpop.f32.mrf.mxu0
      %v3011 = vadd.f32 0.0, %v3010
      %v3012 = vpop.f32.mrf.mxu0
      %3013 = vmatprep.mubr.bf16.mxu0 0
      %3014 = vmatmul.mubr.bf16.gmra.mxu0 %v2798
      %v3015 = vpop.f32.mrf.mxu0
      %v3016 = vadd.f32 0.0, %v3015
      %v3017 = vpop.f32.mrf.mxu0
      %v3018 = vpop.f32.mrf.mxu0
      %v3019 = vadd.f32 0.0, %v3018
      %v3020 = vpop.f32.mrf.mxu0
      %3021 = vmatprep.mubr.bf16.mxu0 0
      %3022 = vmatmul.mubr.bf16.gmra.mxu0 %v2799
      %v3023 = vpop.f32.mrf.mxu0
      %v3024 = vadd.f32 0.0, %v3023
      %v3025 = vpop.f32.mrf.mxu0
      %v3026 = vpop.f32.mrf.mxu0
      %v3027 = vadd.f32 0.0, %v3026
      %v3028 = vpop.f32.mrf.mxu0
      %3029 = vmatprep.mubr.bf16.mxu0 0
      %3030 = vmatmul.mubr.bf16.gmra.mxu0 %v2800
      %v3031 = vpop.f32.mrf.mxu0
      %v3032 = vadd.f32 0.0, %v3031
      %v3033 = vpop.f32.mrf.mxu0
      %v3034 = vpop.f32.mrf.mxu0
      %v3035 = vadd.f32 0.0, %v3034
      %v3036 = vpop.f32.mrf.mxu0
      %3037 = vmatprep.mubr.bf16.mxu0 0
      %3038 = vmatmul.mubr.bf16.gmra.mxu0 %v2801
      %v3039 = vpop.f32.mrf.mxu0
      %v3040 = vadd.f32 0.0, %v3039
      %v3041 = vpop.f32.mrf.mxu0
      %v3042 = vpop.f32.mrf.mxu0
      %v3043 = vadd.f32 0.0, %v3042
      %v3044 = vpop.f32.mrf.mxu0
      %3045 = vmatprep.mubr.bf16.mxu0 0
      %3046 = vmatmul.mubr.bf16.gmra.mxu0 %v2802
      %v3047 = vpop.f32.mrf.mxu0
      %v3048 = vadd.f32 0.0, %v3047
      %v3049 = vpop.f32.mrf.mxu0
      %v3050 = vpop.f32.mrf.mxu0
      %v3051 = vadd.f32 0.0, %v3050
      %v3052 = vpop.f32.mrf.mxu0
      %3053 = vmatprep.mubr.bf16.mxu0 0
      %3054 = vmatmul.mubr.bf16.gmra.mxu0 %v2803
      %v3055 = vpop.f32.mrf.mxu0
      %v3056 = vadd.f32 0.0, %v3055
      %v3057 = vpop.f32.mrf.mxu0
      %v3058 = vpop.f32.mrf.mxu0
      %v3059 = vadd.f32 0.0, %v3058
      %v3060 = vpop.f32.mrf.mxu0
      %3061 = vmatprep.mubr.bf16.mxu0 0
      %3062 = vmatmul.mubr.bf16.gmra.mxu0 %v2804
      %v3063 = vpop.f32.mrf.mxu0
      %v3064 = vadd.f32 0.0, %v3063
      %v3065 = vpop.f32.mrf.mxu0
      %v3066 = vpop.f32.mrf.mxu0
      %v3067 = vadd.f32 0.0, %v3066
      %v3068 = vpop.f32.mrf.mxu0
      %3069 = vmatprep.mubr.bf16.mxu0 0
      %3070 = vmatmul.mubr.bf16.gmra.mxu0 %v2805
      %v3071 = vpop.f32.mrf.mxu0
      %v3072 = vadd.f32 0.0, %v3071
      %v3073 = vpop.f32.mrf.mxu0
      %v3074 = vpop.f32.mrf.mxu0
      %v3075 = vadd.f32 0.0, %v3074
      %v3076 = vpop.f32.mrf.mxu0
      %3077 = vmatprep.mubr.bf16.mxu0 0
      %3078 = vmatmul.mubr.bf16.gmra.mxu0 %v2806
      %v3079 = vpop.f32.mrf.mxu0
      %v3080 = vadd.f32 0.0, %v3079
      %v3081 = vpop.f32.mrf.mxu0
      %v3082 = vpop.f32.mrf.mxu0
      %v3083 = vadd.f32 0.0, %v3082
      %v3084 = vpop.f32.mrf.mxu0
      %3085 = vmatprep.mubr.bf16.mxu0 0
      %3086 = vmatmul.mubr.bf16.gmra.mxu0 %v2807
      %v3087 = vpop.f32.mrf.mxu0
      %v3088 = vadd.f32 0.0, %v3087
      %v3089 = vpop.f32.mrf.mxu0
      %v3090 = vpop.f32.mrf.mxu0
      %v3091 = vadd.f32 0.0, %v3090
      %v3092 = vpop.f32.mrf.mxu0
      %3093 = vmatprep.mubr.bf16.mxu0 0
      %3094 = vmatmul.mubr.bf16.gmra.mxu0 %v2808
      %v3095 = vpop.f32.mrf.mxu0
      %v3096 = vadd.f32 0.0, %v3095
      %v3097 = vpop.f32.mrf.mxu0
      %v3098 = vpop.f32.mrf.mxu0
      %v3099 = vadd.f32 0.0, %v3098
      %v3100 = vpop.f32.mrf.mxu0
      %3101 = vmatprep.mubr.bf16.mxu0 0
      %3102 = vmatmul.mubr.bf16.gmra.mxu0 %v2809
      %v3103 = vpop.f32.mrf.mxu0
      %v3104 = vadd.f32 0.0, %v3103
      %v3105 = vpop.f32.mrf.mxu0
      %v3106 = vpop.f32.mrf.mxu0
      %v3107 = vadd.f32 0.0, %v3106
      %v3108 = vpop.f32.mrf.mxu0
      %3109 = vmatprep.mubr.bf16.mxu0 0
      %3110 = vmatmul.mubr.bf16.gmra.mxu0 %v2810
      %v3111 = vpop.f32.mrf.mxu0
      %v3112 = vadd.f32 0.0, %v3111
      %v3113 = vpop.f32.mrf.mxu0
      %v3114 = vpop.f32.mrf.mxu0
      %v3115 = vadd.f32 0.0, %v3114
      %v3116 = vpop.f32.mrf.mxu0
      %3117 = vmatprep.mubr.bf16.mxu0 0
      %3118 = vmatmul.mubr.bf16.gmra.mxu0 %v2811
      %v3119 = vpop.f32.mrf.mxu0
      %v3120 = vadd.f32 0.0, %v3119
      %v3121 = vpop.f32.mrf.mxu0
      %v3122 = vpop.f32.mrf.mxu0
      %v3123 = vadd.f32 0.0, %v3122
      %v3124 = vpop.f32.mrf.mxu0
      %3125 = vdwg.mxu0
      %v3126 = vadd.f32 %v2677, %v2912
      %v3127 = vadd.f32 %v2678, %v2915
      %v3128 = vadd.f32 %v2679, %v2920
      %v3129 = vadd.f32 %v2680, %v2923
      %v3130 = vadd.f32 %v2681, %v2928
      %v3131 = vadd.f32 %v2682, %v2931
      %v3132 = vadd.f32 %v2683, %v2936
      %v3133 = vadd.f32 %v2684, %v2939
      %v3134 = vadd.f32 %v2685, %v2944
      %v3135 = vadd.f32 %v2686, %v2947
      %v3136 = vadd.f32 %v2687, %v2952
      %v3137 = vadd.f32 %v2688, %v2955
      %v3138 = vadd.f32 %v2689, %v2960
      %v3139 = vadd.f32 %v2690, %v2963
      %v3140 = vadd.f32 %v2691, %v2968
      %v3141 = vadd.f32 %v2692, %v2971
      %v3142 = vadd.f32 %v2693, %v2976
      %v3143 = vadd.f32 %v2694, %v2979
      %v3144 = vadd.f32 %v2695, %v2984
      %v3145 = vadd.f32 %v2696, %v2987
      %v3146 = vadd.f32 %v2697, %v2992
      %v3147 = vadd.f32 %v2698, %v2995
      %v3148 = vadd.f32 %v2699, %v3000
      %v3149 = vadd.f32 %v2700, %v3003
      %v3150 = vadd.f32 %v2701, %v3008
      %v3151 = vadd.f32 %v2702, %v3011
      %v3152 = vadd.f32 %v2703, %v3016
      %v3153 = vadd.f32 %v2704, %v3019
      %v3154 = vadd.f32 %v2705, %v3024
      %v3155 = vadd.f32 %v2706, %v3027
      %v3156 = vadd.f32 %v2707, %v3032
      %v3157 = vadd.f32 %v2708, %v3035
      %v3158 = vadd.f32 %v2709, %v3040
      %v3159 = vadd.f32 %v2710, %v3043
      %v3160 = vadd.f32 %v2711, %v3048
      %v3161 = vadd.f32 %v2712, %v3051
      %v3162 = vadd.f32 %v2713, %v3056
      %v3163 = vadd.f32 %v2714, %v3059
      %v3164 = vadd.f32 %v2715, %v3064
      %v3165 = vadd.f32 %v2716, %v3067
      %v3166 = vadd.f32 %v2717, %v3072
      %v3167 = vadd.f32 %v2718, %v3075
      %v3168 = vadd.f32 %v2719, %v3080
      %v3169 = vadd.f32 %v2720, %v3083
      %v3170 = vadd.f32 %v2721, %v3088
      %v3171 = vadd.f32 %v2722, %v3091
      %v3172 = vadd.f32 %v2723, %v3096
      %v3173 = vadd.f32 %v2724, %v3099
      %v3174 = vadd.f32 %v2725, %v3104
      %v3175 = vadd.f32 %v2726, %v3107
      %v3176 = vadd.f32 %v2727, %v3112
      %v3177 = vadd.f32 %v2728, %v3115
      %v3178 = vadd.f32 %v2729, %v3120
      %v3179 = vadd.f32 %v2730, %v3123
      %v3180 = vld [vmem:[%s253 + $0x37] sm:$0xff]
      %v3181 = vld [vmem:[%s253 + $0x3f] sm:$0xff]
      %v3182 = vld [vmem:[%s253 + $0x47] sm:$0xff]
      %v3183 = vld [vmem:[%s253 + $0x4f] sm:$0xff]
      %v3184 = vld [vmem:[%s253 + $0x57] sm:$0xff]
      %v3185 = vld [vmem:[%s253 + $0x5f] sm:$0xff]
      %v3186 = vld [vmem:[%s253 + $0x67] sm:$0xff]
      %v3187 = vld [vmem:[%s253 + $0x6f] sm:$0xff]
      %v3188 = vld [vmem:[%s253 + $0x77] sm:$0xff]
      %v3189 = vld [vmem:[%s253 + $0x7f] sm:$0xff]
      %v3190 = vld [vmem:[%s253 + $0x87] sm:$0xff]
      %v3191 = vld [vmem:[%s253 + $0x8f] sm:$0xff]
      %v3192 = vld [vmem:[%s253 + $0x97] sm:$0xff]
      %v3193 = vld [vmem:[%s253 + $0x9f] sm:$0xff]
      %v3194 = vld [vmem:[%s253 + $0xa7] sm:$0xff]
      %v3195 = vld [vmem:[%s253 + $0xaf] sm:$0xff]
      %v3196 = vld [vmem:[%s253 + $0xb7] sm:$0xff]
      %v3197 = vld [vmem:[%s253 + $0xbf] sm:$0xff]
      %v3198 = vld [vmem:[%s253 + $0xc7] sm:$0xff]
      %v3199 = vld [vmem:[%s253 + $0xcf] sm:$0xff]
      %v3200 = vld [vmem:[%s253 + $0xd7] sm:$0xff]
      %v3201 = vld [vmem:[%s253 + $0xdf] sm:$0xff]
      %v3202 = vld [vmem:[%s253 + $0xe7] sm:$0xff]
      %v3203 = vld [vmem:[%s253 + $0xef] sm:$0xff]
      %v3204 = vld [vmem:[%s253 + $0xf7] sm:$0xff]
      %v3205 = vld [vmem:[%s253 + $0xff] sm:$0xff]
      %v3206 = vld [vmem:[%s253 + $0x107] sm:$0xff]
      %v3207 = vld [vmem:[%s253 + $0x10f] sm:$0xff]
      %v3208 = vld [vmem:[%s253 + $0x117] sm:$0xff]
      %v3209 = vld [vmem:[%s253 + $0x11f] sm:$0xff]
      %v3210 = vld [vmem:[%s253 + $0x127] sm:$0xff]
      %v3211 = vld [vmem:[%s253 + $0x12f] sm:$0xff]
      %v3212 = vld [vmem:[%s253 + $0x137] sm:$0xff]
      %v3213 = vld [vmem:[%s253 + $0x13f] sm:$0xff]
      %v3214 = vld [vmem:[%s253 + $0x147] sm:$0xff]
      %v3215 = vld [vmem:[%s253 + $0x14f] sm:$0xff]
      %v3216 = vld [vmem:[%s253 + $0x157] sm:$0xff]
      %v3217 = vld [vmem:[%s253 + $0x15f] sm:$0xff]
      %v3218 = vld [vmem:[%s253 + $0x167] sm:$0xff]
      %v3219 = vld [vmem:[%s253 + $0x16f] sm:$0xff]
      %v3220 = vld [vmem:[%s253 + $0x177] sm:$0xff]
      %v3221 = vld [vmem:[%s253 + $0x17f] sm:$0xff]
      %v3222 = vld [vmem:[%s253 + $0x187] sm:$0xff]
      %v3223 = vld [vmem:[%s253 + $0x18f] sm:$0xff]
      %v3224 = vld [vmem:[%s253 + $0x197] sm:$0xff]
      %v3225 = vld [vmem:[%s253 + $0x19f] sm:$0xff]
      %v3226 = vld [vmem:[%s253 + $0x1a7] sm:$0xff]
      %v3227 = vld [vmem:[%s253 + $0x1af] sm:$0xff]
      %v3228 = vld [vmem:[%s253 + $0x1b7] sm:$0xff]
      %v3229 = vld [vmem:[%s253 + $0x1bf] sm:$0xff]
      %v3230 = vld [vmem:[%s253 + $0x1c7] sm:$0xff]
      %v3231 = vld [vmem:[%s253 + $0x1cf] sm:$0xff]
      %v3232 = vld [vmem:[%s253 + $0x1d7] sm:$0xff]
      %v3233 = vld [vmem:[%s253 + $0x1df] sm:$0xff]
      %v3234 = vpack.c.bf16 %v3181, %v3180
      %v3235 = vpack.c.bf16 %v3183, %v3182
      %v3236 = vpack.c.bf16 %v3185, %v3184
      %v3237 = vpack.c.bf16 %v3187, %v3186
      %v3238 = vpack.c.bf16 %v3189, %v3188
      %v3239 = vpack.c.bf16 %v3191, %v3190
      %v3240 = vpack.c.bf16 %v3193, %v3192
      %v3241 = vpack.c.bf16 %v3195, %v3194
      %v3242 = vpack.c.bf16 %v3197, %v3196
      %v3243 = vpack.c.bf16 %v3199, %v3198
      %v3244 = vpack.c.bf16 %v3201, %v3200
      %v3245 = vpack.c.bf16 %v3203, %v3202
      %v3246 = vpack.c.bf16 %v3205, %v3204
      %v3247 = vpack.c.bf16 %v3207, %v3206
      %v3248 = vpack.c.bf16 %v3209, %v3208
      %v3249 = vpack.c.bf16 %v3211, %v3210
      %v3250 = vpack.c.bf16 %v3213, %v3212
      %v3251 = vpack.c.bf16 %v3215, %v3214
      %v3252 = vpack.c.bf16 %v3217, %v3216
      %v3253 = vpack.c.bf16 %v3219, %v3218
      %v3254 = vpack.c.bf16 %v3221, %v3220
      %v3255 = vpack.c.bf16 %v3223, %v3222
      %v3256 = vpack.c.bf16 %v3225, %v3224
      %v3257 = vpack.c.bf16 %v3227, %v3226
      %v3258 = vpack.c.bf16 %v3229, %v3228
      %v3259 = vpack.c.bf16 %v3231, %v3230
      %v3260 = vpack.c.bf16 %v3233, %v3232
      %s3261 = scalar_lea.vmem %s1, 384
      %v3262 = vld [vmem:[%s3261] sm:$0xf]
      %v3263 = vld [vmem:[%s3261 + $0x4] sm:$0xf]
      %v3264 = vld [vmem:[%s3261 + $0x8] sm:$0xf]
      %v3265 = vld [vmem:[%s3261 + $0xc] sm:$0xf]
      %v3266 = vld [vmem:[%s3261 + $0x10] sm:$0xf]
      %v3267 = vld [vmem:[%s3261 + $0x14] sm:$0xf]
      %v3268 = vld [vmem:[%s3261 + $0x18] sm:$0xf]
      %v3269 = vld [vmem:[%s3261 + $0x1c] sm:$0xf]
      %v3270 = vld [vmem:[%s3261 + $0x20] sm:$0xf]
      %v3271 = vld [vmem:[%s3261 + $0x24] sm:$0xf]
      %v3272 = vld [vmem:[%s3261 + $0x28] sm:$0xf]
      %v3273 = vld [vmem:[%s3261 + $0x2c] sm:$0xf]
      %v3274 = vld [vmem:[%s3261 + $0x30] sm:$0xf]
      %v3275 = vld [vmem:[%s3261 + $0x34] sm:$0xf]
      %v3276 = vld [vmem:[%s3261 + $0x38] sm:$0xf]
      %v3277 = vld [vmem:[%s3261 + $0x3c] sm:$0xf]
      %v3294 = vunpack.c.l.b16 %v3262
      %v3295 = vunpack.c.l.b16 %v3263
      %v3296 = vunpack.c.l.b16 %v3264
      %v3297 = vunpack.c.l.b16 %v3265
      %v3298 = vunpack.c.l.b16 %v3266
      %v3299 = vunpack.c.l.b16 %v3267
      %v3300 = vunpack.c.l.b16 %v3268
      %v3301 = vunpack.c.l.b16 %v3269
      %v3302 = vunpack.c.l.b16 %v3270
      %v3303 = vunpack.c.l.b16 %v3271
      %v3304 = vunpack.c.l.b16 %v3272
      %v3305 = vunpack.c.l.b16 %v3273
      %v3306 = vunpack.c.l.b16 %v3274
      %v3307 = vunpack.c.l.b16 %v3275
      %v3308 = vunpack.c.l.b16 %v3276
      %v3309 = vunpack.c.l.b16 %v3277
      %v3310 = vpack.c.b16 %v3295, %v3294
      %v3311 = vpack.c.b16 %v3297, %v3296
      %v3312 = vpack.c.b16 %v3299, %v3298
      %v3313 = vpack.c.b16 %v3301, %v3300
      %v3314 = vpack.c.b16 %v3303, %v3302
      %v3315 = vpack.c.b16 %v3305, %v3304
      %v3316 = vpack.c.b16 %v3307, %v3306
      %v3317 = vpack.c.b16 %v3309, %v3308
      %3326 = vmatprep.subr.bf16.mxu0 0
      %3327 = vmatpush1.bf16.msra.mxu0 %v3317
      %3328 = vmatprep.subr.bf16.mxu0 0
      %3329 = vmatpush1.bf16.msra.mxu0 %v3316
      %3330 = vmatprep.subr.bf16.mxu0 0
      %3331 = vmatpush1.bf16.msra.mxu0 %v3315
      %3332 = vmatprep.subr.bf16.mxu0 0
      %3333 = vmatpush1.bf16.msra.mxu0 %v3314
      %3334 = vmatprep.subr.bf16.mxu0 0
      %3335 = vmatpush1.bf16.msra.mxu0 %v3313
      %3336 = vmatprep.subr.bf16.mxu0 0
      %3337 = vmatpush1.bf16.msra.mxu0 %v3312
      %3338 = vmatprep.subr.bf16.mxu0 0
      %3339 = vmatpush1.bf16.msra.mxu0 %v3311
      %3340 = vmatprep.subr.bf16.mxu0 0
      %3341 = vmatpush1.bf16.msra.mxu0 %v3310
      %3342 = vmatprep.subr.bf16.mxu0 0
      %3343 = vmatpush2.bf16.msra.mxu0 0
      %3344 = vmatprep.subr.bf16.mxu0 0
      %3345 = vmatpush2.bf16.msra.mxu0 0
      %3346 = vmatprep.subr.bf16.mxu0 0
      %3347 = vmatpush2.bf16.msra.mxu0 0
      %3348 = vmatprep.subr.bf16.mxu0 0
      %3349 = vmatpush2.bf16.msra.mxu0 0
      %3350 = vmatprep.subr.bf16.mxu0 0
      %3351 = vmatpush2.bf16.msra.mxu0 0
      %3352 = vmatprep.subr.bf16.mxu0 0
      %3353 = vmatpush2.bf16.msra.mxu0 0
      %3354 = vmatprep.subr.bf16.mxu0 0
      %3355 = vmatpush2.bf16.msra.mxu0 0
      %3356 = vmatprep.subr.bf16.mxu0 0
      %3357 = vmatpush2.bf16.msra.mxu0 0
      %3358 = vmatprep.mubr.bf16.mxu0 0
      %3359 = vmatmul.mubr.bf16.gmra.mxu0 %v3234
      %v3360 = vpop.f32.mrf.mxu0
      %v3361 = vadd.f32 0.0, %v3360
      %v3362 = vpop.f32.mrf.mxu0
      %v3363 = vpop.f32.mrf.mxu0
      %v3364 = vadd.f32 0.0, %v3363
      %v3365 = vpop.f32.mrf.mxu0
      %3366 = vmatprep.mubr.bf16.mxu0 0
      %3367 = vmatmul.mubr.bf16.gmra.mxu0 %v3235
      %v3368 = vpop.f32.mrf.mxu0
      %v3369 = vadd.f32 0.0, %v3368
      %v3370 = vpop.f32.mrf.mxu0
      %v3371 = vpop.f32.mrf.mxu0
      %v3372 = vadd.f32 0.0, %v3371
      %v3373 = vpop.f32.mrf.mxu0
      %3374 = vmatprep.mubr.bf16.mxu0 0
      %3375 = vmatmul.mubr.bf16.gmra.mxu0 %v3236
      %v3376 = vpop.f32.mrf.mxu0
      %v3377 = vadd.f32 0.0, %v3376
      %v3378 = vpop.f32.mrf.mxu0
      %v3379 = vpop.f32.mrf.mxu0
      %v3380 = vadd.f32 0.0, %v3379
      %v3381 = vpop.f32.mrf.mxu0
      %3382 = vmatprep.mubr.bf16.mxu0 0
      %3383 = vmatmul.mubr.bf16.gmra.mxu0 %v3237
      %v3384 = vpop.f32.mrf.mxu0
      %v3385 = vadd.f32 0.0, %v3384
      %v3386 = vpop.f32.mrf.mxu0
      %v3387 = vpop.f32.mrf.mxu0
      %v3388 = vadd.f32 0.0, %v3387
      %v3389 = vpop.f32.mrf.mxu0
      %3390 = vmatprep.mubr.bf16.mxu0 0
      %3391 = vmatmul.mubr.bf16.gmra.mxu0 %v3238
      %v3392 = vpop.f32.mrf.mxu0
      %v3393 = vadd.f32 0.0, %v3392
      %v3394 = vpop.f32.mrf.mxu0
      %v3395 = vpop.f32.mrf.mxu0
      %v3396 = vadd.f32 0.0, %v3395
      %v3397 = vpop.f32.mrf.mxu0
      %3398 = vmatprep.mubr.bf16.mxu0 0
      %3399 = vmatmul.mubr.bf16.gmra.mxu0 %v3239
      %v3400 = vpop.f32.mrf.mxu0
      %v3401 = vadd.f32 0.0, %v3400
      %v3402 = vpop.f32.mrf.mxu0
      %v3403 = vpop.f32.mrf.mxu0
      %v3404 = vadd.f32 0.0, %v3403
      %v3405 = vpop.f32.mrf.mxu0
      %3406 = vmatprep.mubr.bf16.mxu0 0
      %3407 = vmatmul.mubr.bf16.gmra.mxu0 %v3240
      %v3408 = vpop.f32.mrf.mxu0
      %v3409 = vadd.f32 0.0, %v3408
      %v3410 = vpop.f32.mrf.mxu0
      %v3411 = vpop.f32.mrf.mxu0
      %v3412 = vadd.f32 0.0, %v3411
      %v3413 = vpop.f32.mrf.mxu0
      %3414 = vmatprep.mubr.bf16.mxu0 0
      %3415 = vmatmul.mubr.bf16.gmra.mxu0 %v3241
      %v3416 = vpop.f32.mrf.mxu0
      %v3417 = vadd.f32 0.0, %v3416
      %v3418 = vpop.f32.mrf.mxu0
      %v3419 = vpop.f32.mrf.mxu0
      %v3420 = vadd.f32 0.0, %v3419
      %v3421 = vpop.f32.mrf.mxu0
      %3422 = vmatprep.mubr.bf16.mxu0 0
      %3423 = vmatmul.mubr.bf16.gmra.mxu0 %v3242
      %v3424 = vpop.f32.mrf.mxu0
      %v3425 = vadd.f32 0.0, %v3424
      %v3426 = vpop.f32.mrf.mxu0
      %v3427 = vpop.f32.mrf.mxu0
      %v3428 = vadd.f32 0.0, %v3427
      %v3429 = vpop.f32.mrf.mxu0
      %3430 = vmatprep.mubr.bf16.mxu0 0
      %3431 = vmatmul.mubr.bf16.gmra.mxu0 %v3243
      %v3432 = vpop.f32.mrf.mxu0
      %v3433 = vadd.f32 0.0, %v3432
      %v3434 = vpop.f32.mrf.mxu0
      %v3435 = vpop.f32.mrf.mxu0
      %v3436 = vadd.f32 0.0, %v3435
      %v3437 = vpop.f32.mrf.mxu0
      %3438 = vmatprep.mubr.bf16.mxu0 0
      %3439 = vmatmul.mubr.bf16.gmra.mxu0 %v3244
      %v3440 = vpop.f32.mrf.mxu0
      %v3441 = vadd.f32 0.0, %v3440
      %v3442 = vpop.f32.mrf.mxu0
      %v3443 = vpop.f32.mrf.mxu0
      %v3444 = vadd.f32 0.0, %v3443
      %v3445 = vpop.f32.mrf.mxu0
      %3446 = vmatprep.mubr.bf16.mxu0 0
      %3447 = vmatmul.mubr.bf16.gmra.mxu0 %v3245
      %v3448 = vpop.f32.mrf.mxu0
      %v3449 = vadd.f32 0.0, %v3448
      %v3450 = vpop.f32.mrf.mxu0
      %v3451 = vpop.f32.mrf.mxu0
      %v3452 = vadd.f32 0.0, %v3451
      %v3453 = vpop.f32.mrf.mxu0
      %3454 = vmatprep.mubr.bf16.mxu0 0
      %3455 = vmatmul.mubr.bf16.gmra.mxu0 %v3246
      %v3456 = vpop.f32.mrf.mxu0
      %v3457 = vadd.f32 0.0, %v3456
      %v3458 = vpop.f32.mrf.mxu0
      %v3459 = vpop.f32.mrf.mxu0
      %v3460 = vadd.f32 0.0, %v3459
      %v3461 = vpop.f32.mrf.mxu0
      %3462 = vmatprep.mubr.bf16.mxu0 0
      %3463 = vmatmul.mubr.bf16.gmra.mxu0 %v3247
      %v3464 = vpop.f32.mrf.mxu0
      %v3465 = vadd.f32 0.0, %v3464
      %v3466 = vpop.f32.mrf.mxu0
      %v3467 = vpop.f32.mrf.mxu0
      %v3468 = vadd.f32 0.0, %v3467
      %v3469 = vpop.f32.mrf.mxu0
      %3470 = vmatprep.mubr.bf16.mxu0 0
      %3471 = vmatmul.mubr.bf16.gmra.mxu0 %v3248
      %v3472 = vpop.f32.mrf.mxu0
      %v3473 = vadd.f32 0.0, %v3472
      %v3474 = vpop.f32.mrf.mxu0
      %v3475 = vpop.f32.mrf.mxu0
      %v3476 = vadd.f32 0.0, %v3475
      %v3477 = vpop.f32.mrf.mxu0
      %3478 = vmatprep.mubr.bf16.mxu0 0
      %3479 = vmatmul.mubr.bf16.gmra.mxu0 %v3249
      %v3480 = vpop.f32.mrf.mxu0
      %v3481 = vadd.f32 0.0, %v3480
      %v3482 = vpop.f32.mrf.mxu0
      %v3483 = vpop.f32.mrf.mxu0
      %v3484 = vadd.f32 0.0, %v3483
      %v3485 = vpop.f32.mrf.mxu0
      %3486 = vmatprep.mubr.bf16.mxu0 0
      %3487 = vmatmul.mubr.bf16.gmra.mxu0 %v3250
      %v3488 = vpop.f32.mrf.mxu0
      %v3489 = vadd.f32 0.0, %v3488
      %v3490 = vpop.f32.mrf.mxu0
      %v3491 = vpop.f32.mrf.mxu0
      %v3492 = vadd.f32 0.0, %v3491
      %v3493 = vpop.f32.mrf.mxu0
      %3494 = vmatprep.mubr.bf16.mxu0 0
      %3495 = vmatmul.mubr.bf16.gmra.mxu0 %v3251
      %v3496 = vpop.f32.mrf.mxu0
      %v3497 = vadd.f32 0.0, %v3496
      %v3498 = vpop.f32.mrf.mxu0
      %v3499 = vpop.f32.mrf.mxu0
      %v3500 = vadd.f32 0.0, %v3499
      %v3501 = vpop.f32.mrf.mxu0
      %3502 = vmatprep.mubr.bf16.mxu0 0
      %3503 = vmatmul.mubr.bf16.gmra.mxu0 %v3252
      %v3504 = vpop.f32.mrf.mxu0
      %v3505 = vadd.f32 0.0, %v3504
      %v3506 = vpop.f32.mrf.mxu0
      %v3507 = vpop.f32.mrf.mxu0
      %v3508 = vadd.f32 0.0, %v3507
      %v3509 = vpop.f32.mrf.mxu0
      %3510 = vmatprep.mubr.bf16.mxu0 0
      %3511 = vmatmul.mubr.bf16.gmra.mxu0 %v3253
      %v3512 = vpop.f32.mrf.mxu0
      %v3513 = vadd.f32 0.0, %v3512
      %v3514 = vpop.f32.mrf.mxu0
      %v3515 = vpop.f32.mrf.mxu0
      %v3516 = vadd.f32 0.0, %v3515
      %v3517 = vpop.f32.mrf.mxu0
      %3518 = vmatprep.mubr.bf16.mxu0 0
      %3519 = vmatmul.mubr.bf16.gmra.mxu0 %v3254
      %v3520 = vpop.f32.mrf.mxu0
      %v3521 = vadd.f32 0.0, %v3520
      %v3522 = vpop.f32.mrf.mxu0
      %v3523 = vpop.f32.mrf.mxu0
      %v3524 = vadd.f32 0.0, %v3523
      %v3525 = vpop.f32.mrf.mxu0
      %3526 = vmatprep.mubr.bf16.mxu0 0
      %3527 = vmatmul.mubr.bf16.gmra.mxu0 %v3255
      %v3528 = vpop.f32.mrf.mxu0
      %v3529 = vadd.f32 0.0, %v3528
      %v3530 = vpop.f32.mrf.mxu0
      %v3531 = vpop.f32.mrf.mxu0
      %v3532 = vadd.f32 0.0, %v3531
      %v3533 = vpop.f32.mrf.mxu0
      %3534 = vmatprep.mubr.bf16.mxu0 0
      %3535 = vmatmul.mubr.bf16.gmra.mxu0 %v3256
      %v3536 = vpop.f32.mrf.mxu0
      %v3537 = vadd.f32 0.0, %v3536
      %v3538 = vpop.f32.mrf.mxu0
      %v3539 = vpop.f32.mrf.mxu0
      %v3540 = vadd.f32 0.0, %v3539
      %v3541 = vpop.f32.mrf.mxu0
      %3542 = vmatprep.mubr.bf16.mxu0 0
      %3543 = vmatmul.mubr.bf16.gmra.mxu0 %v3257
      %v3544 = vpop.f32.mrf.mxu0
      %v3545 = vadd.f32 0.0, %v3544
      %v3546 = vpop.f32.mrf.mxu0
      %v3547 = vpop.f32.mrf.mxu0
      %v3548 = vadd.f32 0.0, %v3547
      %v3549 = vpop.f32.mrf.mxu0
      %3550 = vmatprep.mubr.bf16.mxu0 0
      %3551 = vmatmul.mubr.bf16.gmra.mxu0 %v3258
      %v3552 = vpop.f32.mrf.mxu0
      %v3553 = vadd.f32 0.0, %v3552
      %v3554 = vpop.f32.mrf.mxu0
      %v3555 = vpop.f32.mrf.mxu0
      %v3556 = vadd.f32 0.0, %v3555
      %v3557 = vpop.f32.mrf.mxu0
      %3558 = vmatprep.mubr.bf16.mxu0 0
      %3559 = vmatmul.mubr.bf16.gmra.mxu0 %v3259
      %v3560 = vpop.f32.mrf.mxu0
      %v3561 = vadd.f32 0.0, %v3560
      %v3562 = vpop.f32.mrf.mxu0
      %v3563 = vpop.f32.mrf.mxu0
      %v3564 = vadd.f32 0.0, %v3563
      %v3565 = vpop.f32.mrf.mxu0
      %3566 = vmatprep.mubr.bf16.mxu0 0
      %3567 = vmatmul.mubr.bf16.gmra.mxu0 %v3260
      %v3568 = vpop.f32.mrf.mxu0
      %v3569 = vadd.f32 0.0, %v3568
      %v3570 = vpop.f32.mrf.mxu0
      %v3571 = vpop.f32.mrf.mxu0
      %v3572 = vadd.f32 0.0, %v3571
      %v3573 = vpop.f32.mrf.mxu0
      %3574 = vdwg.mxu0
      %v3575 = vadd.f32 %v3126, %v3361
      %v3576 = vadd.f32 %v3127, %v3364
      %v3577 = vadd.f32 %v3128, %v3369
      %v3578 = vadd.f32 %v3129, %v3372
      %v3579 = vadd.f32 %v3130, %v3377
      %v3580 = vadd.f32 %v3131, %v3380
      %v3581 = vadd.f32 %v3132, %v3385
      %v3582 = vadd.f32 %v3133, %v3388
      %v3583 = vadd.f32 %v3134, %v3393
      %v3584 = vadd.f32 %v3135, %v3396
      %v3585 = vadd.f32 %v3136, %v3401
      %v3586 = vadd.f32 %v3137, %v3404
      %v3587 = vadd.f32 %v3138, %v3409
      %v3588 = vadd.f32 %v3139, %v3412
      %v3589 = vadd.f32 %v3140, %v3417
      %v3590 = vadd.f32 %v3141, %v3420
      %v3591 = vadd.f32 %v3142, %v3425
      %v3592 = vadd.f32 %v3143, %v3428
      %v3593 = vadd.f32 %v3144, %v3433
      %v3594 = vadd.f32 %v3145, %v3436
      %v3595 = vadd.f32 %v3146, %v3441
      %v3596 = vadd.f32 %v3147, %v3444
      %v3597 = vadd.f32 %v3148, %v3449
      %v3598 = vadd.f32 %v3149, %v3452
      %v3599 = vadd.f32 %v3150, %v3457
      %v3600 = vadd.f32 %v3151, %v3460
      %v3601 = vadd.f32 %v3152, %v3465
      %v3602 = vadd.f32 %v3153, %v3468
      %v3603 = vadd.f32 %v3154, %v3473
      %v3604 = vadd.f32 %v3155, %v3476
      %v3605 = vadd.f32 %v3156, %v3481
      %v3606 = vadd.f32 %v3157, %v3484
      %v3607 = vadd.f32 %v3158, %v3489
      %v3608 = vadd.f32 %v3159, %v3492
      %v3609 = vadd.f32 %v3160, %v3497
      %v3610 = vadd.f32 %v3161, %v3500
      %v3611 = vadd.f32 %v3162, %v3505
      %v3612 = vadd.f32 %v3163, %v3508
      %v3613 = vadd.f32 %v3164, %v3513
      %v3614 = vadd.f32 %v3165, %v3516
      %v3615 = vadd.f32 %v3166, %v3521
      %v3616 = vadd.f32 %v3167, %v3524
      %v3617 = vadd.f32 %v3168, %v3529
      %v3618 = vadd.f32 %v3169, %v3532
      %v3619 = vadd.f32 %v3170, %v3537
      %v3620 = vadd.f32 %v3171, %v3540
      %v3621 = vadd.f32 %v3172, %v3545
      %v3622 = vadd.f32 %v3173, %v3548
      %v3623 = vadd.f32 %v3174, %v3553
      %v3624 = vadd.f32 %v3175, %v3556
      %v3625 = vadd.f32 %v3176, %v3561
      %v3626 = vadd.f32 %v3177, %v3564
      %v3627 = vadd.f32 %v3178, %v3569
      %v3628 = vadd.f32 %v3179, %v3572
      %v3629 = vld [vmem:[%s253 + $0x38] sm:$0xff]
      %v3630 = vld [vmem:[%s253 + $0x40] sm:$0xff]
      %v3631 = vld [vmem:[%s253 + $0x48] sm:$0xff]
      %v3632 = vld [vmem:[%s253 + $0x50] sm:$0xff]
      %v3633 = vld [vmem:[%s253 + $0x58] sm:$0xff]
      %v3634 = vld [vmem:[%s253 + $0x60] sm:$0xff]
      %v3635 = vld [vmem:[%s253 + $0x68] sm:$0xff]
      %v3636 = vld [vmem:[%s253 + $0x70] sm:$0xff]
      %v3637 = vld [vmem:[%s253 + $0x78] sm:$0xff]
      %v3638 = vld [vmem:[%s253 + $0x80] sm:$0xff]
      %v3639 = vld [vmem:[%s253 + $0x88] sm:$0xff]
      %v3640 = vld [vmem:[%s253 + $0x90] sm:$0xff]
      %v3641 = vld [vmem:[%s253 + $0x98] sm:$0xff]
      %v3642 = vld [vmem:[%s253 + $0xa0] sm:$0xff]
      %v3643 = vld [vmem:[%s253 + $0xa8] sm:$0xff]
      %v3644 = vld [vmem:[%s253 + $0xb0] sm:$0xff]
      %v3645 = vld [vmem:[%s253 + $0xb8] sm:$0xff]
      %v3646 = vld [vmem:[%s253 + $0xc0] sm:$0xff]
      %v3647 = vld [vmem:[%s253 + $0xc8] sm:$0xff]
      %v3648 = vld [vmem:[%s253 + $0xd0] sm:$0xff]
      %v3649 = vld [vmem:[%s253 + $0xd8] sm:$0xff]
      %v3650 = vld [vmem:[%s253 + $0xe0] sm:$0xff]
      %v3651 = vld [vmem:[%s253 + $0xe8] sm:$0xff]
      %v3652 = vld [vmem:[%s253 + $0xf0] sm:$0xff]
      %v3653 = vld [vmem:[%s253 + $0xf8] sm:$0xff]
      %v3654 = vld [vmem:[%s253 + $0x100] sm:$0xff]
      %v3655 = vld [vmem:[%s253 + $0x108] sm:$0xff]
      %v3656 = vld [vmem:[%s253 + $0x110] sm:$0xff]
      %v3657 = vld [vmem:[%s253 + $0x118] sm:$0xff]
      %v3658 = vld [vmem:[%s253 + $0x120] sm:$0xff]
      %v3659 = vld [vmem:[%s253 + $0x128] sm:$0xff]
      %v3660 = vld [vmem:[%s253 + $0x130] sm:$0xff]
      %v3661 = vld [vmem:[%s253 + $0x138] sm:$0xff]
      %v3662 = vld [vmem:[%s253 + $0x140] sm:$0xff]
      %v3663 = vld [vmem:[%s253 + $0x148] sm:$0xff]
      %v3664 = vld [vmem:[%s253 + $0x150] sm:$0xff]
      %v3665 = vld [vmem:[%s253 + $0x158] sm:$0xff]
      %v3666 = vld [vmem:[%s253 + $0x160] sm:$0xff]
      %v3667 = vld [vmem:[%s253 + $0x168] sm:$0xff]
      %v3668 = vld [vmem:[%s253 + $0x170] sm:$0xff]
      %v3669 = vld [vmem:[%s253 + $0x178] sm:$0xff]
      %v3670 = vld [vmem:[%s253 + $0x180] sm:$0xff]
      %v3671 = vld [vmem:[%s253 + $0x188] sm:$0xff]
      %v3672 = vld [vmem:[%s253 + $0x190] sm:$0xff]
      %v3673 = vld [vmem:[%s253 + $0x198] sm:$0xff]
      %v3674 = vld [vmem:[%s253 + $0x1a0] sm:$0xff]
      %v3675 = vld [vmem:[%s253 + $0x1a8] sm:$0xff]
      %v3676 = vld [vmem:[%s253 + $0x1b0] sm:$0xff]
      %v3677 = vld [vmem:[%s253 + $0x1b8] sm:$0xff]
      %v3678 = vld [vmem:[%s253 + $0x1c0] sm:$0xff]
      %v3679 = vld [vmem:[%s253 + $0x1c8] sm:$0xff]
      %v3680 = vld [vmem:[%s253 + $0x1d0] sm:$0xff]
      %v3681 = vld [vmem:[%s253 + $0x1d8] sm:$0xff]
      %v3682 = vld [vmem:[%s253 + $0x1e0] sm:$0xff]
      %v3683 = vpack.c.bf16 %v3630, %v3629
      %v3684 = vpack.c.bf16 %v3632, %v3631
      %v3685 = vpack.c.bf16 %v3634, %v3633
      %v3686 = vpack.c.bf16 %v3636, %v3635
      %v3687 = vpack.c.bf16 %v3638, %v3637
      %v3688 = vpack.c.bf16 %v3640, %v3639
      %v3689 = vpack.c.bf16 %v3642, %v3641
      %v3690 = vpack.c.bf16 %v3644, %v3643
      %v3691 = vpack.c.bf16 %v3646, %v3645
      %v3692 = vpack.c.bf16 %v3648, %v3647
      %v3693 = vpack.c.bf16 %v3650, %v3649
      %v3694 = vpack.c.bf16 %v3652, %v3651
      %v3695 = vpack.c.bf16 %v3654, %v3653
      %v3696 = vpack.c.bf16 %v3656, %v3655
      %v3697 = vpack.c.bf16 %v3658, %v3657
      %v3698 = vpack.c.bf16 %v3660, %v3659
      %v3699 = vpack.c.bf16 %v3662, %v3661
      %v3700 = vpack.c.bf16 %v3664, %v3663
      %v3701 = vpack.c.bf16 %v3666, %v3665
      %v3702 = vpack.c.bf16 %v3668, %v3667
      %v3703 = vpack.c.bf16 %v3670, %v3669
      %v3704 = vpack.c.bf16 %v3672, %v3671
      %v3705 = vpack.c.bf16 %v3674, %v3673
      %v3706 = vpack.c.bf16 %v3676, %v3675
      %v3707 = vpack.c.bf16 %v3678, %v3677
      %v3708 = vpack.c.bf16 %v3680, %v3679
      %v3709 = vpack.c.bf16 %v3682, %v3681
      %s3710 = scalar_lea.vmem %s1, 448
      %v3711 = vld [vmem:[%s3710] sm:$0xf]
      %v3712 = vld [vmem:[%s3710 + $0x4] sm:$0xf]
      %v3713 = vld [vmem:[%s3710 + $0x8] sm:$0xf]
      %v3714 = vld [vmem:[%s3710 + $0xc] sm:$0xf]
      %v3715 = vld [vmem:[%s3710 + $0x10] sm:$0xf]
      %v3716 = vld [vmem:[%s3710 + $0x14] sm:$0xf]
      %v3717 = vld [vmem:[%s3710 + $0x18] sm:$0xf]
      %v3718 = vld [vmem:[%s3710 + $0x1c] sm:$0xf]
      %v3719 = vld [vmem:[%s3710 + $0x20] sm:$0xf]
      %v3720 = vld [vmem:[%s3710 + $0x24] sm:$0xf]
      %v3721 = vld [vmem:[%s3710 + $0x28] sm:$0xf]
      %v3722 = vld [vmem:[%s3710 + $0x2c] sm:$0xf]
      %v3723 = vld [vmem:[%s3710 + $0x30] sm:$0xf]
      %v3724 = vld [vmem:[%s3710 + $0x34] sm:$0xf]
      %v3725 = vld [vmem:[%s3710 + $0x38] sm:$0xf]
      %v3726 = vld [vmem:[%s3710 + $0x3c] sm:$0xf]
      %v3743 = vunpack.c.l.b16 %v3711
      %v3744 = vunpack.c.l.b16 %v3712
      %v3745 = vunpack.c.l.b16 %v3713
      %v3746 = vunpack.c.l.b16 %v3714
      %v3747 = vunpack.c.l.b16 %v3715
      %v3748 = vunpack.c.l.b16 %v3716
      %v3749 = vunpack.c.l.b16 %v3717
      %v3750 = vunpack.c.l.b16 %v3718
      %v3751 = vunpack.c.l.b16 %v3719
      %v3752 = vunpack.c.l.b16 %v3720
      %v3753 = vunpack.c.l.b16 %v3721
      %v3754 = vunpack.c.l.b16 %v3722
      %v3755 = vunpack.c.l.b16 %v3723
      %v3756 = vunpack.c.l.b16 %v3724
      %v3757 = vunpack.c.l.b16 %v3725
      %v3758 = vunpack.c.l.b16 %v3726
      %v3759 = vpack.c.b16 %v3744, %v3743
      %v3760 = vpack.c.b16 %v3746, %v3745
      %v3761 = vpack.c.b16 %v3748, %v3747
      %v3762 = vpack.c.b16 %v3750, %v3749
      %v3763 = vpack.c.b16 %v3752, %v3751
      %v3764 = vpack.c.b16 %v3754, %v3753
      %v3765 = vpack.c.b16 %v3756, %v3755
      %v3766 = vpack.c.b16 %v3758, %v3757
      %3775 = vmatprep.subr.bf16.mxu0 0
      %3776 = vmatpush1.bf16.msra.mxu0 %v3766
      %3777 = vmatprep.subr.bf16.mxu0 0
      %3778 = vmatpush1.bf16.msra.mxu0 %v3765
      %3779 = vmatprep.subr.bf16.mxu0 0
      %3780 = vmatpush1.bf16.msra.mxu0 %v3764
      %3781 = vmatprep.subr.bf16.mxu0 0
      %3782 = vmatpush1.bf16.msra.mxu0 %v3763
      %3783 = vmatprep.subr.bf16.mxu0 0
      %3784 = vmatpush1.bf16.msra.mxu0 %v3762
      %3785 = vmatprep.subr.bf16.mxu0 0
      %3786 = vmatpush1.bf16.msra.mxu0 %v3761
      %3787 = vmatprep.subr.bf16.mxu0 0
      %3788 = vmatpush1.bf16.msra.mxu0 %v3760
      %3789 = vmatprep.subr.bf16.mxu0 0
      %3790 = vmatpush1.bf16.msra.mxu0 %v3759
      %3791 = vmatprep.subr.bf16.mxu0 0
      %3792 = vmatpush2.bf16.msra.mxu0 0
      %3793 = vmatprep.subr.bf16.mxu0 0
      %3794 = vmatpush2.bf16.msra.mxu0 0
      %3795 = vmatprep.subr.bf16.mxu0 0
      %3796 = vmatpush2.bf16.msra.mxu0 0
      %3797 = vmatprep.subr.bf16.mxu0 0
      %3798 = vmatpush2.bf16.msra.mxu0 0
      %3799 = vmatprep.subr.bf16.mxu0 0
      %3800 = vmatpush2.bf16.msra.mxu0 0
      %3801 = vmatprep.subr.bf16.mxu0 0
      %3802 = vmatpush2.bf16.msra.mxu0 0
      %3803 = vmatprep.subr.bf16.mxu0 0
      %3804 = vmatpush2.bf16.msra.mxu0 0
      %3805 = vmatprep.subr.bf16.mxu0 0
      %3806 = vmatpush2.bf16.msra.mxu0 0
      %3807 = vmatprep.mubr.bf16.mxu0 0
      %3808 = vmatmul.mubr.bf16.gmra.mxu0 %v3683
      %v3809 = vpop.f32.mrf.mxu0
      %v3810 = vadd.f32 0.0, %v3809
      %v3811 = vpop.f32.mrf.mxu0
      %v3812 = vpop.f32.mrf.mxu0
      %v3813 = vadd.f32 0.0, %v3812
      %v3814 = vpop.f32.mrf.mxu0
      %3815 = vmatprep.mubr.bf16.mxu0 0
      %3816 = vmatmul.mubr.bf16.gmra.mxu0 %v3684
      %v3817 = vpop.f32.mrf.mxu0
      %v3818 = vadd.f32 0.0, %v3817
      %v3819 = vpop.f32.mrf.mxu0
      %v3820 = vpop.f32.mrf.mxu0
      %v3821 = vadd.f32 0.0, %v3820
      %v3822 = vpop.f32.mrf.mxu0
      %3823 = vmatprep.mubr.bf16.mxu0 0
      %3824 = vmatmul.mubr.bf16.gmra.mxu0 %v3685
      %v3825 = vpop.f32.mrf.mxu0
      %v3826 = vadd.f32 0.0, %v3825
      %v3827 = vpop.f32.mrf.mxu0
      %v3828 = vpop.f32.mrf.mxu0
      %v3829 = vadd.f32 0.0, %v3828
      %v3830 = vpop.f32.mrf.mxu0
      %3831 = vmatprep.mubr.bf16.mxu0 0
      %3832 = vmatmul.mubr.bf16.gmra.mxu0 %v3686
      %v3833 = vpop.f32.mrf.mxu0
      %v3834 = vadd.f32 0.0, %v3833
      %v3835 = vpop.f32.mrf.mxu0
      %v3836 = vpop.f32.mrf.mxu0
      %v3837 = vadd.f32 0.0, %v3836
      %v3838 = vpop.f32.mrf.mxu0
      %3839 = vmatprep.mubr.bf16.mxu0 0
      %3840 = vmatmul.mubr.bf16.gmra.mxu0 %v3687
      %v3841 = vpop.f32.mrf.mxu0
      %v3842 = vadd.f32 0.0, %v3841
      %v3843 = vpop.f32.mrf.mxu0
      %v3844 = vpop.f32.mrf.mxu0
      %v3845 = vadd.f32 0.0, %v3844
      %v3846 = vpop.f32.mrf.mxu0
      %3847 = vmatprep.mubr.bf16.mxu0 0
      %3848 = vmatmul.mubr.bf16.gmra.mxu0 %v3688
      %v3849 = vpop.f32.mrf.mxu0
      %v3850 = vadd.f32 0.0, %v3849
      %v3851 = vpop.f32.mrf.mxu0
      %v3852 = vpop.f32.mrf.mxu0
      %v3853 = vadd.f32 0.0, %v3852
      %v3854 = vpop.f32.mrf.mxu0
      %3855 = vmatprep.mubr.bf16.mxu0 0
      %3856 = vmatmul.mubr.bf16.gmra.mxu0 %v3689
      %v3857 = vpop.f32.mrf.mxu0
      %v3858 = vadd.f32 0.0, %v3857
      %v3859 = vpop.f32.mrf.mxu0
      %v3860 = vpop.f32.mrf.mxu0
      %v3861 = vadd.f32 0.0, %v3860
      %v3862 = vpop.f32.mrf.mxu0
      %3863 = vmatprep.mubr.bf16.mxu0 0
      %3864 = vmatmul.mubr.bf16.gmra.mxu0 %v3690
      %v3865 = vpop.f32.mrf.mxu0
      %v3866 = vadd.f32 0.0, %v3865
      %v3867 = vpop.f32.mrf.mxu0
      %v3868 = vpop.f32.mrf.mxu0
      %v3869 = vadd.f32 0.0, %v3868
      %v3870 = vpop.f32.mrf.mxu0
      %3871 = vmatprep.mubr.bf16.mxu0 0
      %3872 = vmatmul.mubr.bf16.gmra.mxu0 %v3691
      %v3873 = vpop.f32.mrf.mxu0
      %v3874 = vadd.f32 0.0, %v3873
      %v3875 = vpop.f32.mrf.mxu0
      %v3876 = vpop.f32.mrf.mxu0
      %v3877 = vadd.f32 0.0, %v3876
      %v3878 = vpop.f32.mrf.mxu0
      %3879 = vmatprep.mubr.bf16.mxu0 0
      %3880 = vmatmul.mubr.bf16.gmra.mxu0 %v3692
      %v3881 = vpop.f32.mrf.mxu0
      %v3882 = vadd.f32 0.0, %v3881
      %v3883 = vpop.f32.mrf.mxu0
      %v3884 = vpop.f32.mrf.mxu0
      %v3885 = vadd.f32 0.0, %v3884
      %v3886 = vpop.f32.mrf.mxu0
      %3887 = vmatprep.mubr.bf16.mxu0 0
      %3888 = vmatmul.mubr.bf16.gmra.mxu0 %v3693
      %v3889 = vpop.f32.mrf.mxu0
      %v3890 = vadd.f32 0.0, %v3889
      %v3891 = vpop.f32.mrf.mxu0
      %v3892 = vpop.f32.mrf.mxu0
      %v3893 = vadd.f32 0.0, %v3892
      %v3894 = vpop.f32.mrf.mxu0
      %3895 = vmatprep.mubr.bf16.mxu0 0
      %3896 = vmatmul.mubr.bf16.gmra.mxu0 %v3694
      %v3897 = vpop.f32.mrf.mxu0
      %v3898 = vadd.f32 0.0, %v3897
      %v3899 = vpop.f32.mrf.mxu0
      %v3900 = vpop.f32.mrf.mxu0
      %v3901 = vadd.f32 0.0, %v3900
      %v3902 = vpop.f32.mrf.mxu0
      %3903 = vmatprep.mubr.bf16.mxu0 0
      %3904 = vmatmul.mubr.bf16.gmra.mxu0 %v3695
      %v3905 = vpop.f32.mrf.mxu0
      %v3906 = vadd.f32 0.0, %v3905
      %v3907 = vpop.f32.mrf.mxu0
      %v3908 = vpop.f32.mrf.mxu0
      %v3909 = vadd.f32 0.0, %v3908
      %v3910 = vpop.f32.mrf.mxu0
      %3911 = vmatprep.mubr.bf16.mxu0 0
      %3912 = vmatmul.mubr.bf16.gmra.mxu0 %v3696
      %v3913 = vpop.f32.mrf.mxu0
      %v3914 = vadd.f32 0.0, %v3913
      %v3915 = vpop.f32.mrf.mxu0
      %v3916 = vpop.f32.mrf.mxu0
      %v3917 = vadd.f32 0.0, %v3916
      %v3918 = vpop.f32.mrf.mxu0
      %3919 = vmatprep.mubr.bf16.mxu0 0
      %3920 = vmatmul.mubr.bf16.gmra.mxu0 %v3697
      %v3921 = vpop.f32.mrf.mxu0
      %v3922 = vadd.f32 0.0, %v3921
      %v3923 = vpop.f32.mrf.mxu0
      %v3924 = vpop.f32.mrf.mxu0
      %v3925 = vadd.f32 0.0, %v3924
      %v3926 = vpop.f32.mrf.mxu0
      %3927 = vmatprep.mubr.bf16.mxu0 0
      %3928 = vmatmul.mubr.bf16.gmra.mxu0 %v3698
      %v3929 = vpop.f32.mrf.mxu0
      %v3930 = vadd.f32 0.0, %v3929
      %v3931 = vpop.f32.mrf.mxu0
      %v3932 = vpop.f32.mrf.mxu0
      %v3933 = vadd.f32 0.0, %v3932
      %v3934 = vpop.f32.mrf.mxu0
      %3935 = vmatprep.mubr.bf16.mxu0 0
      %3936 = vmatmul.mubr.bf16.gmra.mxu0 %v3699
      %v3937 = vpop.f32.mrf.mxu0
      %v3938 = vadd.f32 0.0, %v3937
      %v3939 = vpop.f32.mrf.mxu0
      %v3940 = vpop.f32.mrf.mxu0
      %v3941 = vadd.f32 0.0, %v3940
      %v3942 = vpop.f32.mrf.mxu0
      %3943 = vmatprep.mubr.bf16.mxu0 0
      %3944 = vmatmul.mubr.bf16.gmra.mxu0 %v3700
      %v3945 = vpop.f32.mrf.mxu0
      %v3946 = vadd.f32 0.0, %v3945
      %v3947 = vpop.f32.mrf.mxu0
      %v3948 = vpop.f32.mrf.mxu0
      %v3949 = vadd.f32 0.0, %v3948
      %v3950 = vpop.f32.mrf.mxu0
      %3951 = vmatprep.mubr.bf16.mxu0 0
      %3952 = vmatmul.mubr.bf16.gmra.mxu0 %v3701
      %v3953 = vpop.f32.mrf.mxu0
      %v3954 = vadd.f32 0.0, %v3953
      %v3955 = vpop.f32.mrf.mxu0
      %v3956 = vpop.f32.mrf.mxu0
      %v3957 = vadd.f32 0.0, %v3956
      %v3958 = vpop.f32.mrf.mxu0
      %3959 = vmatprep.mubr.bf16.mxu0 0
      %3960 = vmatmul.mubr.bf16.gmra.mxu0 %v3702
      %v3961 = vpop.f32.mrf.mxu0
      %v3962 = vadd.f32 0.0, %v3961
      %v3963 = vpop.f32.mrf.mxu0
      %v3964 = vpop.f32.mrf.mxu0
      %v3965 = vadd.f32 0.0, %v3964
      %v3966 = vpop.f32.mrf.mxu0
      %3967 = vmatprep.mubr.bf16.mxu0 0
      %3968 = vmatmul.mubr.bf16.gmra.mxu0 %v3703
      %v3969 = vpop.f32.mrf.mxu0
      %v3970 = vadd.f32 0.0, %v3969
      %v3971 = vpop.f32.mrf.mxu0
      %v3972 = vpop.f32.mrf.mxu0
      %v3973 = vadd.f32 0.0, %v3972
      %v3974 = vpop.f32.mrf.mxu0
      %3975 = vmatprep.mubr.bf16.mxu0 0
      %3976 = vmatmul.mubr.bf16.gmra.mxu0 %v3704
      %v3977 = vpop.f32.mrf.mxu0
      %v3978 = vadd.f32 0.0, %v3977
      %v3979 = vpop.f32.mrf.mxu0
      %v3980 = vpop.f32.mrf.mxu0
      %v3981 = vadd.f32 0.0, %v3980
      %v3982 = vpop.f32.mrf.mxu0
      %3983 = vmatprep.mubr.bf16.mxu0 0
      %3984 = vmatmul.mubr.bf16.gmra.mxu0 %v3705
      %v3985 = vpop.f32.mrf.mxu0
      %v3986 = vadd.f32 0.0, %v3985
      %v3987 = vpop.f32.mrf.mxu0
      %v3988 = vpop.f32.mrf.mxu0
      %v3989 = vadd.f32 0.0, %v3988
      %v3990 = vpop.f32.mrf.mxu0
      %3991 = vmatprep.mubr.bf16.mxu0 0
      %3992 = vmatmul.mubr.bf16.gmra.mxu0 %v3706
      %v3993 = vpop.f32.mrf.mxu0
      %v3994 = vadd.f32 0.0, %v3993
      %v3995 = vpop.f32.mrf.mxu0
      %v3996 = vpop.f32.mrf.mxu0
      %v3997 = vadd.f32 0.0, %v3996
      %v3998 = vpop.f32.mrf.mxu0
      %3999 = vmatprep.mubr.bf16.mxu0 0
      %4000 = vmatmul.mubr.bf16.gmra.mxu0 %v3707
      %v4001 = vpop.f32.mrf.mxu0
      %v4002 = vadd.f32 0.0, %v4001
      %v4003 = vpop.f32.mrf.mxu0
      %v4004 = vpop.f32.mrf.mxu0
      %v4005 = vadd.f32 0.0, %v4004
      %v4006 = vpop.f32.mrf.mxu0
      %4007 = vmatprep.mubr.bf16.mxu0 0
      %4008 = vmatmul.mubr.bf16.gmra.mxu0 %v3708
      %v4009 = vpop.f32.mrf.mxu0
      %v4010 = vadd.f32 0.0, %v4009
      %v4011 = vpop.f32.mrf.mxu0
      %v4012 = vpop.f32.mrf.mxu0
      %v4013 = vadd.f32 0.0, %v4012
      %v4014 = vpop.f32.mrf.mxu0
      %4015 = vmatprep.mubr.bf16.mxu0 0
      %4016 = vmatmul.mubr.bf16.gmra.mxu0 %v3709
      %v4017 = vpop.f32.mrf.mxu0
      %v4018 = vadd.f32 0.0, %v4017
      %v4019 = vpop.f32.mrf.mxu0
      %v4020 = vpop.f32.mrf.mxu0
      %v4021 = vadd.f32 0.0, %v4020
      %v4022 = vpop.f32.mrf.mxu0
      %4023 = vdwg.mxu0
      %v4024 = vadd.f32 %v3575, %v3810
      %v4025 = vadd.f32 %v3576, %v3813
      %v4026 = vadd.f32 %v3577, %v3818
      %v4027 = vadd.f32 %v3578, %v3821
      %v4028 = vadd.f32 %v3579, %v3826
      %v4029 = vadd.f32 %v3580, %v3829
      %v4030 = vadd.f32 %v3581, %v3834
      %v4031 = vadd.f32 %v3582, %v3837
      %v4032 = vadd.f32 %v3583, %v3842
      %v4033 = vadd.f32 %v3584, %v3845
      %v4034 = vadd.f32 %v3585, %v3850
      %v4035 = vadd.f32 %v3586, %v3853
      %v4036 = vadd.f32 %v3587, %v3858
      %v4037 = vadd.f32 %v3588, %v3861
      %v4038 = vadd.f32 %v3589, %v3866
      %v4039 = vadd.f32 %v3590, %v3869
      %v4040 = vadd.f32 %v3591, %v3874
      %v4041 = vadd.f32 %v3592, %v3877
      %v4042 = vadd.f32 %v3593, %v3882
      %v4043 = vadd.f32 %v3594, %v3885
      %v4044 = vadd.f32 %v3595, %v3890
      %v4045 = vadd.f32 %v3596, %v3893
      %v4046 = vadd.f32 %v3597, %v3898
      %v4047 = vadd.f32 %v3598, %v3901
      %v4048 = vadd.f32 %v3599, %v3906
      %v4049 = vadd.f32 %v3600, %v3909
      %v4050 = vadd.f32 %v3601, %v3914
      %v4051 = vadd.f32 %v3602, %v3917
      %v4052 = vadd.f32 %v3603, %v3922
      %v4053 = vadd.f32 %v3604, %v3925
      %v4054 = vadd.f32 %v3605, %v3930
      %v4055 = vadd.f32 %v3606, %v3933
      %v4056 = vadd.f32 %v3607, %v3938
      %v4057 = vadd.f32 %v3608, %v3941
      %v4058 = vadd.f32 %v3609, %v3946
      %v4059 = vadd.f32 %v3610, %v3949
      %v4060 = vadd.f32 %v3611, %v3954
      %v4061 = vadd.f32 %v3612, %v3957
      %v4062 = vadd.f32 %v3613, %v3962
      %v4063 = vadd.f32 %v3614, %v3965
      %v4064 = vadd.f32 %v3615, %v3970
      %v4065 = vadd.f32 %v3616, %v3973
      %v4066 = vadd.f32 %v3617, %v3978
      %v4067 = vadd.f32 %v3618, %v3981
      %v4068 = vadd.f32 %v3619, %v3986
      %v4069 = vadd.f32 %v3620, %v3989
      %v4070 = vadd.f32 %v3621, %v3994
      %v4071 = vadd.f32 %v3622, %v3997
      %v4072 = vadd.f32 %v3623, %v4002
      %v4073 = vadd.f32 %v3624, %v4005
      %v4074 = vadd.f32 %v3625, %v4010
      %v4075 = vadd.f32 %v3626, %v4013
      %v4076 = vadd.f32 %v3627, %v4018
      %v4077 = vadd.f32 %v3628, %v4021
      %v4078 = vld [vmem:[%s253 + $0x39] sm:$0xff]
      %v4079 = vld [vmem:[%s253 + $0x41] sm:$0xff]
      %v4080 = vld [vmem:[%s253 + $0x49] sm:$0xff]
      %v4081 = vld [vmem:[%s253 + $0x51] sm:$0xff]
      %v4082 = vld [vmem:[%s253 + $0x59] sm:$0xff]
      %v4083 = vld [vmem:[%s253 + $0x61] sm:$0xff]
      %v4084 = vld [vmem:[%s253 + $0x69] sm:$0xff]
      %v4085 = vld [vmem:[%s253 + $0x71] sm:$0xff]
      %v4086 = vld [vmem:[%s253 + $0x79] sm:$0xff]
      %v4087 = vld [vmem:[%s253 + $0x81] sm:$0xff]
      %v4088 = vld [vmem:[%s253 + $0x89] sm:$0xff]
      %v4089 = vld [vmem:[%s253 + $0x91] sm:$0xff]
      %v4090 = vld [vmem:[%s253 + $0x99] sm:$0xff]
      %v4091 = vld [vmem:[%s253 + $0xa1] sm:$0xff]
      %v4092 = vld [vmem:[%s253 + $0xa9] sm:$0xff]
      %v4093 = vld [vmem:[%s253 + $0xb1] sm:$0xff]
      %v4094 = vld [vmem:[%s253 + $0xb9] sm:$0xff]
      %v4095 = vld [vmem:[%s253 + $0xc1] sm:$0xff]
      %v4096 = vld [vmem:[%s253 + $0xc9] sm:$0xff]
      %v4097 = vld [vmem:[%s253 + $0xd1] sm:$0xff]
      %v4098 = vld [vmem:[%s253 + $0xd9] sm:$0xff]
      %v4099 = vld [vmem:[%s253 + $0xe1] sm:$0xff]
      %v4100 = vld [vmem:[%s253 + $0xe9] sm:$0xff]
      %v4101 = vld [vmem:[%s253 + $0xf1] sm:$0xff]
      %v4102 = vld [vmem:[%s253 + $0xf9] sm:$0xff]
      %v4103 = vld [vmem:[%s253 + $0x101] sm:$0xff]
      %v4104 = vld [vmem:[%s253 + $0x109] sm:$0xff]
      %v4105 = vld [vmem:[%s253 + $0x111] sm:$0xff]
      %v4106 = vld [vmem:[%s253 + $0x119] sm:$0xff]
      %v4107 = vld [vmem:[%s253 + $0x121] sm:$0xff]
      %v4108 = vld [vmem:[%s253 + $0x129] sm:$0xff]
      %v4109 = vld [vmem:[%s253 + $0x131] sm:$0xff]
      %v4110 = vld [vmem:[%s253 + $0x139] sm:$0xff]
      %v4111 = vld [vmem:[%s253 + $0x141] sm:$0xff]
      %v4112 = vld [vmem:[%s253 + $0x149] sm:$0xff]
      %v4113 = vld [vmem:[%s253 + $0x151] sm:$0xff]
      %v4114 = vld [vmem:[%s253 + $0x159] sm:$0xff]
      %v4115 = vld [vmem:[%s253 + $0x161] sm:$0xff]
      %v4116 = vld [vmem:[%s253 + $0x169] sm:$0xff]
      %v4117 = vld [vmem:[%s253 + $0x171] sm:$0xff]
      %v4118 = vld [vmem:[%s253 + $0x179] sm:$0xff]
      %v4119 = vld [vmem:[%s253 + $0x181] sm:$0xff]
      %v4120 = vld [vmem:[%s253 + $0x189] sm:$0xff]
      %v4121 = vld [vmem:[%s253 + $0x191] sm:$0xff]
      %v4122 = vld [vmem:[%s253 + $0x199] sm:$0xff]
      %v4123 = vld [vmem:[%s253 + $0x1a1] sm:$0xff]
      %v4124 = vld [vmem:[%s253 + $0x1a9] sm:$0xff]
      %v4125 = vld [vmem:[%s253 + $0x1b1] sm:$0xff]
      %v4126 = vld [vmem:[%s253 + $0x1b9] sm:$0xff]
      %v4127 = vld [vmem:[%s253 + $0x1c1] sm:$0xff]
      %v4128 = vld [vmem:[%s253 + $0x1c9] sm:$0xff]
      %v4129 = vld [vmem:[%s253 + $0x1d1] sm:$0xff]
      %v4130 = vld [vmem:[%s253 + $0x1d9] sm:$0xff]
      %v4131 = vld [vmem:[%s253 + $0x1e1] sm:$0xff]
      %v4132 = vpack.c.bf16 %v4079, %v4078
      %v4133 = vpack.c.bf16 %v4081, %v4080
      %v4134 = vpack.c.bf16 %v4083, %v4082
      %v4135 = vpack.c.bf16 %v4085, %v4084
      %v4136 = vpack.c.bf16 %v4087, %v4086
      %v4137 = vpack.c.bf16 %v4089, %v4088
      %v4138 = vpack.c.bf16 %v4091, %v4090
      %v4139 = vpack.c.bf16 %v4093, %v4092
      %v4140 = vpack.c.bf16 %v4095, %v4094
      %v4141 = vpack.c.bf16 %v4097, %v4096
      %v4142 = vpack.c.bf16 %v4099, %v4098
      %v4143 = vpack.c.bf16 %v4101, %v4100
      %v4144 = vpack.c.bf16 %v4103, %v4102
      %v4145 = vpack.c.bf16 %v4105, %v4104
      %v4146 = vpack.c.bf16 %v4107, %v4106
      %v4147 = vpack.c.bf16 %v4109, %v4108
      %v4148 = vpack.c.bf16 %v4111, %v4110
      %v4149 = vpack.c.bf16 %v4113, %v4112
      %v4150 = vpack.c.bf16 %v4115, %v4114
      %v4151 = vpack.c.bf16 %v4117, %v4116
      %v4152 = vpack.c.bf16 %v4119, %v4118
      %v4153 = vpack.c.bf16 %v4121, %v4120
      %v4154 = vpack.c.bf16 %v4123, %v4122
      %v4155 = vpack.c.bf16 %v4125, %v4124
      %v4156 = vpack.c.bf16 %v4127, %v4126
      %v4157 = vpack.c.bf16 %v4129, %v4128
      %v4158 = vpack.c.bf16 %v4131, %v4130
      %s4159 = scalar_lea.vmem %s1, 512
      %v4160 = vld [vmem:[%s4159] sm:$0xf]
      %v4161 = vld [vmem:[%s4159 + $0x4] sm:$0xf]
      %v4162 = vld [vmem:[%s4159 + $0x8] sm:$0xf]
      %v4163 = vld [vmem:[%s4159 + $0xc] sm:$0xf]
      %v4164 = vld [vmem:[%s4159 + $0x10] sm:$0xf]
      %v4165 = vld [vmem:[%s4159 + $0x14] sm:$0xf]
      %v4166 = vld [vmem:[%s4159 + $0x18] sm:$0xf]
      %v4167 = vld [vmem:[%s4159 + $0x1c] sm:$0xf]
      %v4168 = vld [vmem:[%s4159 + $0x20] sm:$0xf]
      %v4169 = vld [vmem:[%s4159 + $0x24] sm:$0xf]
      %v4170 = vld [vmem:[%s4159 + $0x28] sm:$0xf]
      %v4171 = vld [vmem:[%s4159 + $0x2c] sm:$0xf]
      %v4172 = vld [vmem:[%s4159 + $0x30] sm:$0xf]
      %v4173 = vld [vmem:[%s4159 + $0x34] sm:$0xf]
      %v4174 = vld [vmem:[%s4159 + $0x38] sm:$0xf]
      %v4175 = vld [vmem:[%s4159 + $0x3c] sm:$0xf]
      %v4192 = vunpack.c.l.b16 %v4160
      %v4193 = vunpack.c.l.b16 %v4161
      %v4194 = vunpack.c.l.b16 %v4162
      %v4195 = vunpack.c.l.b16 %v4163
      %v4196 = vunpack.c.l.b16 %v4164
      %v4197 = vunpack.c.l.b16 %v4165
      %v4198 = vunpack.c.l.b16 %v4166
      %v4199 = vunpack.c.l.b16 %v4167
      %v4200 = vunpack.c.l.b16 %v4168
      %v4201 = vunpack.c.l.b16 %v4169
      %v4202 = vunpack.c.l.b16 %v4170
      %v4203 = vunpack.c.l.b16 %v4171
      %v4204 = vunpack.c.l.b16 %v4172
      %v4205 = vunpack.c.l.b16 %v4173
      %v4206 = vunpack.c.l.b16 %v4174
      %v4207 = vunpack.c.l.b16 %v4175
      %v4208 = vpack.c.b16 %v4193, %v4192
      %v4209 = vpack.c.b16 %v4195, %v4194
      %v4210 = vpack.c.b16 %v4197, %v4196
      %v4211 = vpack.c.b16 %v4199, %v4198
      %v4212 = vpack.c.b16 %v4201, %v4200
      %v4213 = vpack.c.b16 %v4203, %v4202
      %v4214 = vpack.c.b16 %v4205, %v4204
      %v4215 = vpack.c.b16 %v4207, %v4206
      %4224 = vmatprep.subr.bf16.mxu0 0
      %4225 = vmatpush1.bf16.msra.mxu0 %v4215
      %4226 = vmatprep.subr.bf16.mxu0 0
      %4227 = vmatpush1.bf16.msra.mxu0 %v4214
      %4228 = vmatprep.subr.bf16.mxu0 0
      %4229 = vmatpush1.bf16.msra.mxu0 %v4213
      %4230 = vmatprep.subr.bf16.mxu0 0
      %4231 = vmatpush1.bf16.msra.mxu0 %v4212
      %4232 = vmatprep.subr.bf16.mxu0 0
      %4233 = vmatpush1.bf16.msra.mxu0 %v4211
      %4234 = vmatprep.subr.bf16.mxu0 0
      %4235 = vmatpush1.bf16.msra.mxu0 %v4210
      %4236 = vmatprep.subr.bf16.mxu0 0
      %4237 = vmatpush1.bf16.msra.mxu0 %v4209
      %4238 = vmatprep.subr.bf16.mxu0 0
      %4239 = vmatpush1.bf16.msra.mxu0 %v4208
      %4240 = vmatprep.subr.bf16.mxu0 0
      %4241 = vmatpush2.bf16.msra.mxu0 0
      %4242 = vmatprep.subr.bf16.mxu0 0
      %4243 = vmatpush2.bf16.msra.mxu0 0
      %4244 = vmatprep.subr.bf16.mxu0 0
      %4245 = vmatpush2.bf16.msra.mxu0 0
      %4246 = vmatprep.subr.bf16.mxu0 0
      %4247 = vmatpush2.bf16.msra.mxu0 0
      %4248 = vmatprep.subr.bf16.mxu0 0
      %4249 = vmatpush2.bf16.msra.mxu0 0
      %4250 = vmatprep.subr.bf16.mxu0 0
      %4251 = vmatpush2.bf16.msra.mxu0 0
      %4252 = vmatprep.subr.bf16.mxu0 0
      %4253 = vmatpush2.bf16.msra.mxu0 0
      %4254 = vmatprep.subr.bf16.mxu0 0
      %4255 = vmatpush2.bf16.msra.mxu0 0
      %4256 = vmatprep.mubr.bf16.mxu0 0
      %4257 = vmatmul.mubr.bf16.gmra.mxu0 %v4132
      %v4258 = vpop.f32.mrf.mxu0
      %v4259 = vadd.f32 0.0, %v4258
      %v4260 = vpop.f32.mrf.mxu0
      %v4261 = vpop.f32.mrf.mxu0
      %v4262 = vadd.f32 0.0, %v4261
      %v4263 = vpop.f32.mrf.mxu0
      %4264 = vmatprep.mubr.bf16.mxu0 0
      %4265 = vmatmul.mubr.bf16.gmra.mxu0 %v4133
      %v4266 = vpop.f32.mrf.mxu0
      %v4267 = vadd.f32 0.0, %v4266
      %v4268 = vpop.f32.mrf.mxu0
      %v4269 = vpop.f32.mrf.mxu0
      %v4270 = vadd.f32 0.0, %v4269
      %v4271 = vpop.f32.mrf.mxu0
      %4272 = vmatprep.mubr.bf16.mxu0 0
      %4273 = vmatmul.mubr.bf16.gmra.mxu0 %v4134
      %v4274 = vpop.f32.mrf.mxu0
      %v4275 = vadd.f32 0.0, %v4274
      %v4276 = vpop.f32.mrf.mxu0
      %v4277 = vpop.f32.mrf.mxu0
      %v4278 = vadd.f32 0.0, %v4277
      %v4279 = vpop.f32.mrf.mxu0
      %4280 = vmatprep.mubr.bf16.mxu0 0
      %4281 = vmatmul.mubr.bf16.gmra.mxu0 %v4135
      %v4282 = vpop.f32.mrf.mxu0
      %v4283 = vadd.f32 0.0, %v4282
      %v4284 = vpop.f32.mrf.mxu0
      %v4285 = vpop.f32.mrf.mxu0
      %v4286 = vadd.f32 0.0, %v4285
      %v4287 = vpop.f32.mrf.mxu0
      %4288 = vmatprep.mubr.bf16.mxu0 0
      %4289 = vmatmul.mubr.bf16.gmra.mxu0 %v4136
      %v4290 = vpop.f32.mrf.mxu0
      %v4291 = vadd.f32 0.0, %v4290
      %v4292 = vpop.f32.mrf.mxu0
      %v4293 = vpop.f32.mrf.mxu0
      %v4294 = vadd.f32 0.0, %v4293
      %v4295 = vpop.f32.mrf.mxu0
      %4296 = vmatprep.mubr.bf16.mxu0 0
      %4297 = vmatmul.mubr.bf16.gmra.mxu0 %v4137
      %v4298 = vpop.f32.mrf.mxu0
      %v4299 = vadd.f32 0.0, %v4298
      %v4300 = vpop.f32.mrf.mxu0
      %v4301 = vpop.f32.mrf.mxu0
      %v4302 = vadd.f32 0.0, %v4301
      %v4303 = vpop.f32.mrf.mxu0
      %4304 = vmatprep.mubr.bf16.mxu0 0
      %4305 = vmatmul.mubr.bf16.gmra.mxu0 %v4138
      %v4306 = vpop.f32.mrf.mxu0
      %v4307 = vadd.f32 0.0, %v4306
      %v4308 = vpop.f32.mrf.mxu0
      %v4309 = vpop.f32.mrf.mxu0
      %v4310 = vadd.f32 0.0, %v4309
      %v4311 = vpop.f32.mrf.mxu0
      %4312 = vmatprep.mubr.bf16.mxu0 0
      %4313 = vmatmul.mubr.bf16.gmra.mxu0 %v4139
      %v4314 = vpop.f32.mrf.mxu0
      %v4315 = vadd.f32 0.0, %v4314
      %v4316 = vpop.f32.mrf.mxu0
      %v4317 = vpop.f32.mrf.mxu0
      %v4318 = vadd.f32 0.0, %v4317
      %v4319 = vpop.f32.mrf.mxu0
      %4320 = vmatprep.mubr.bf16.mxu0 0
      %4321 = vmatmul.mubr.bf16.gmra.mxu0 %v4140
      %v4322 = vpop.f32.mrf.mxu0
      %v4323 = vadd.f32 0.0, %v4322
      %v4324 = vpop.f32.mrf.mxu0
      %v4325 = vpop.f32.mrf.mxu0
      %v4326 = vadd.f32 0.0, %v4325
      %v4327 = vpop.f32.mrf.mxu0
      %4328 = vmatprep.mubr.bf16.mxu0 0
      %4329 = vmatmul.mubr.bf16.gmra.mxu0 %v4141
      %v4330 = vpop.f32.mrf.mxu0
      %v4331 = vadd.f32 0.0, %v4330
      %v4332 = vpop.f32.mrf.mxu0
      %v4333 = vpop.f32.mrf.mxu0
      %v4334 = vadd.f32 0.0, %v4333
      %v4335 = vpop.f32.mrf.mxu0
      %4336 = vmatprep.mubr.bf16.mxu0 0
      %4337 = vmatmul.mubr.bf16.gmra.mxu0 %v4142
      %v4338 = vpop.f32.mrf.mxu0
      %v4339 = vadd.f32 0.0, %v4338
      %v4340 = vpop.f32.mrf.mxu0
      %v4341 = vpop.f32.mrf.mxu0
      %v4342 = vadd.f32 0.0, %v4341
      %v4343 = vpop.f32.mrf.mxu0
      %4344 = vmatprep.mubr.bf16.mxu0 0
      %4345 = vmatmul.mubr.bf16.gmra.mxu0 %v4143
      %v4346 = vpop.f32.mrf.mxu0
      %v4347 = vadd.f32 0.0, %v4346
      %v4348 = vpop.f32.mrf.mxu0
      %v4349 = vpop.f32.mrf.mxu0
      %v4350 = vadd.f32 0.0, %v4349
      %v4351 = vpop.f32.mrf.mxu0
      %4352 = vmatprep.mubr.bf16.mxu0 0
      %4353 = vmatmul.mubr.bf16.gmra.mxu0 %v4144
      %v4354 = vpop.f32.mrf.mxu0
      %v4355 = vadd.f32 0.0, %v4354
      %v4356 = vpop.f32.mrf.mxu0
      %v4357 = vpop.f32.mrf.mxu0
      %v4358 = vadd.f32 0.0, %v4357
      %v4359 = vpop.f32.mrf.mxu0
      %4360 = vmatprep.mubr.bf16.mxu0 0
      %4361 = vmatmul.mubr.bf16.gmra.mxu0 %v4145
      %v4362 = vpop.f32.mrf.mxu0
      %v4363 = vadd.f32 0.0, %v4362
      %v4364 = vpop.f32.mrf.mxu0
      %v4365 = vpop.f32.mrf.mxu0
      %v4366 = vadd.f32 0.0, %v4365
      %v4367 = vpop.f32.mrf.mxu0
      %4368 = vmatprep.mubr.bf16.mxu0 0
      %4369 = vmatmul.mubr.bf16.gmra.mxu0 %v4146
      %v4370 = vpop.f32.mrf.mxu0
      %v4371 = vadd.f32 0.0, %v4370
      %v4372 = vpop.f32.mrf.mxu0
      %v4373 = vpop.f32.mrf.mxu0
      %v4374 = vadd.f32 0.0, %v4373
      %v4375 = vpop.f32.mrf.mxu0
      %4376 = vmatprep.mubr.bf16.mxu0 0
      %4377 = vmatmul.mubr.bf16.gmra.mxu0 %v4147
      %v4378 = vpop.f32.mrf.mxu0
      %v4379 = vadd.f32 0.0, %v4378
      %v4380 = vpop.f32.mrf.mxu0
      %v4381 = vpop.f32.mrf.mxu0
      %v4382 = vadd.f32 0.0, %v4381
      %v4383 = vpop.f32.mrf.mxu0
      %4384 = vmatprep.mubr.bf16.mxu0 0
      %4385 = vmatmul.mubr.bf16.gmra.mxu0 %v4148
      %v4386 = vpop.f32.mrf.mxu0
      %v4387 = vadd.f32 0.0, %v4386
      %v4388 = vpop.f32.mrf.mxu0
      %v4389 = vpop.f32.mrf.mxu0
      %v4390 = vadd.f32 0.0, %v4389
      %v4391 = vpop.f32.mrf.mxu0
      %4392 = vmatprep.mubr.bf16.mxu0 0
      %4393 = vmatmul.mubr.bf16.gmra.mxu0 %v4149
      %v4394 = vpop.f32.mrf.mxu0
      %v4395 = vadd.f32 0.0, %v4394
      %v4396 = vpop.f32.mrf.mxu0
      %v4397 = vpop.f32.mrf.mxu0
      %v4398 = vadd.f32 0.0, %v4397
      %v4399 = vpop.f32.mrf.mxu0
      %4400 = vmatprep.mubr.bf16.mxu0 0
      %4401 = vmatmul.mubr.bf16.gmra.mxu0 %v4150
      %v4402 = vpop.f32.mrf.mxu0
      %v4403 = vadd.f32 0.0, %v4402
      %v4404 = vpop.f32.mrf.mxu0
      %v4405 = vpop.f32.mrf.mxu0
      %v4406 = vadd.f32 0.0, %v4405
      %v4407 = vpop.f32.mrf.mxu0
      %4408 = vmatprep.mubr.bf16.mxu0 0
      %4409 = vmatmul.mubr.bf16.gmra.mxu0 %v4151
      %v4410 = vpop.f32.mrf.mxu0
      %v4411 = vadd.f32 0.0, %v4410
      %v4412 = vpop.f32.mrf.mxu0
      %v4413 = vpop.f32.mrf.mxu0
      %v4414 = vadd.f32 0.0, %v4413
      %v4415 = vpop.f32.mrf.mxu0
      %4416 = vmatprep.mubr.bf16.mxu0 0
      %4417 = vmatmul.mubr.bf16.gmra.mxu0 %v4152
      %v4418 = vpop.f32.mrf.mxu0
      %v4419 = vadd.f32 0.0, %v4418
      %v4420 = vpop.f32.mrf.mxu0
      %v4421 = vpop.f32.mrf.mxu0
      %v4422 = vadd.f32 0.0, %v4421
      %v4423 = vpop.f32.mrf.mxu0
      %4424 = vmatprep.mubr.bf16.mxu0 0
      %4425 = vmatmul.mubr.bf16.gmra.mxu0 %v4153
      %v4426 = vpop.f32.mrf.mxu0
      %v4427 = vadd.f32 0.0, %v4426
      %v4428 = vpop.f32.mrf.mxu0
      %v4429 = vpop.f32.mrf.mxu0
      %v4430 = vadd.f32 0.0, %v4429
      %v4431 = vpop.f32.mrf.mxu0
      %4432 = vmatprep.mubr.bf16.mxu0 0
      %4433 = vmatmul.mubr.bf16.gmra.mxu0 %v4154
      %v4434 = vpop.f32.mrf.mxu0
      %v4435 = vadd.f32 0.0, %v4434
      %v4436 = vpop.f32.mrf.mxu0
      %v4437 = vpop.f32.mrf.mxu0
      %v4438 = vadd.f32 0.0, %v4437
      %v4439 = vpop.f32.mrf.mxu0
      %4440 = vmatprep.mubr.bf16.mxu0 0
      %4441 = vmatmul.mubr.bf16.gmra.mxu0 %v4155
      %v4442 = vpop.f32.mrf.mxu0
      %v4443 = vadd.f32 0.0, %v4442
      %v4444 = vpop.f32.mrf.mxu0
      %v4445 = vpop.f32.mrf.mxu0
      %v4446 = vadd.f32 0.0, %v4445
      %v4447 = vpop.f32.mrf.mxu0
      %4448 = vmatprep.mubr.bf16.mxu0 0
      %4449 = vmatmul.mubr.bf16.gmra.mxu0 %v4156
      %v4450 = vpop.f32.mrf.mxu0
      %v4451 = vadd.f32 0.0, %v4450
      %v4452 = vpop.f32.mrf.mxu0
      %v4453 = vpop.f32.mrf.mxu0
      %v4454 = vadd.f32 0.0, %v4453
      %v4455 = vpop.f32.mrf.mxu0
      %4456 = vmatprep.mubr.bf16.mxu0 0
      %4457 = vmatmul.mubr.bf16.gmra.mxu0 %v4157
      %v4458 = vpop.f32.mrf.mxu0
      %v4459 = vadd.f32 0.0, %v4458
      %v4460 = vpop.f32.mrf.mxu0
      %v4461 = vpop.f32.mrf.mxu0
      %v4462 = vadd.f32 0.0, %v4461
      %v4463 = vpop.f32.mrf.mxu0
      %4464 = vmatprep.mubr.bf16.mxu0 0
      %4465 = vmatmul.mubr.bf16.gmra.mxu0 %v4158
      %v4466 = vpop.f32.mrf.mxu0
      %v4467 = vadd.f32 0.0, %v4466
      %v4468 = vpop.f32.mrf.mxu0
      %v4469 = vpop.f32.mrf.mxu0
      %v4470 = vadd.f32 0.0, %v4469
      %v4471 = vpop.f32.mrf.mxu0
      %4472 = vdwg.mxu0
      %v4473 = vadd.f32 %v4024, %v4259
      %v4474 = vadd.f32 %v4025, %v4262
      %v4475 = vadd.f32 %v4026, %v4267
      %v4476 = vadd.f32 %v4027, %v4270
      %v4477 = vadd.f32 %v4028, %v4275
      %v4478 = vadd.f32 %v4029, %v4278
      %v4479 = vadd.f32 %v4030, %v4283
      %v4480 = vadd.f32 %v4031, %v4286
      %v4481 = vadd.f32 %v4032, %v4291
      %v4482 = vadd.f32 %v4033, %v4294
      %v4483 = vadd.f32 %v4034, %v4299
      %v4484 = vadd.f32 %v4035, %v4302
      %v4485 = vadd.f32 %v4036, %v4307
      %v4486 = vadd.f32 %v4037, %v4310
      %v4487 = vadd.f32 %v4038, %v4315
      %v4488 = vadd.f32 %v4039, %v4318
      %v4489 = vadd.f32 %v4040, %v4323
      %v4490 = vadd.f32 %v4041, %v4326
      %v4491 = vadd.f32 %v4042, %v4331
      %v4492 = vadd.f32 %v4043, %v4334
      %v4493 = vadd.f32 %v4044, %v4339
      %v4494 = vadd.f32 %v4045, %v4342
      %v4495 = vadd.f32 %v4046, %v4347
      %v4496 = vadd.f32 %v4047, %v4350
      %v4497 = vadd.f32 %v4048, %v4355
      %v4498 = vadd.f32 %v4049, %v4358
      %v4499 = vadd.f32 %v4050, %v4363
      %v4500 = vadd.f32 %v4051, %v4366
      %v4501 = vadd.f32 %v4052, %v4371
      %v4502 = vadd.f32 %v4053, %v4374
      %v4503 = vadd.f32 %v4054, %v4379
      %v4504 = vadd.f32 %v4055, %v4382
      %v4505 = vadd.f32 %v4056, %v4387
      %v4506 = vadd.f32 %v4057, %v4390
      %v4507 = vadd.f32 %v4058, %v4395
      %v4508 = vadd.f32 %v4059, %v4398
      %v4509 = vadd.f32 %v4060, %v4403
      %v4510 = vadd.f32 %v4061, %v4406
      %v4511 = vadd.f32 %v4062, %v4411
      %v4512 = vadd.f32 %v4063, %v4414
      %v4513 = vadd.f32 %v4064, %v4419
      %v4514 = vadd.f32 %v4065, %v4422
      %v4515 = vadd.f32 %v4066, %v4427
      %v4516 = vadd.f32 %v4067, %v4430
      %v4517 = vadd.f32 %v4068, %v4435
      %v4518 = vadd.f32 %v4069, %v4438
      %v4519 = vadd.f32 %v4070, %v4443
      %v4520 = vadd.f32 %v4071, %v4446
      %v4521 = vadd.f32 %v4072, %v4451
      %v4522 = vadd.f32 %v4073, %v4454
      %v4523 = vadd.f32 %v4074, %v4459
      %v4524 = vadd.f32 %v4075, %v4462
      %v4525 = vadd.f32 %v4076, %v4467
      %v4526 = vadd.f32 %v4077, %v4470
      %v4527 = vsel %vm541, %v4473, 0.0
      %v4528 = vsel %vm542, %v4474, 0.0
      %v4529 = vsel %vm543, %v4475, 0.0
      %v4530 = vsel %vm544, %v4476, 0.0
      %v4531 = vsel %vm545, %v4477, 0.0
      %v4532 = vsel %vm546, %v4478, 0.0
      %v4533 = vsel %vm547, %v4479, 0.0
      %v4534 = vsel %vm548, %v4480, 0.0
      %v4535 = vsel %vm549, %v4481, 0.0
      %v4536 = vsel %vm550, %v4482, 0.0
      %v4537 = vsel %vm551, %v4483, 0.0
      %v4538 = vsel %vm552, %v4484, 0.0
      %v4539 = vsel %vm553, %v4485, 0.0
      %v4540 = vsel %vm554, %v4486, 0.0
      %v4541 = vsel %vm555, %v4487, 0.0
      %v4542 = vsel %vm556, %v4488, 0.0
      %v4543 = vsel %vm557, %v4489, 0.0
      %v4544 = vsel %vm558, %v4490, 0.0
      %v4545 = vsel %vm559, %v4491, 0.0
      %v4546 = vsel %vm560, %v4492, 0.0
      %v4547 = vsel %vm561, %v4493, 0.0
      %v4548 = vsel %vm562, %v4494, 0.0
      %v4549 = vsel %vm563, %v4495, 0.0
      %v4550 = vsel %vm564, %v4496, 0.0
      %v4551 = vsel %vm565, %v4497, 0.0
      %v4552 = vsel %vm566, %v4498, 0.0
      %v4553 = vsel %vm567, %v4499, 0.0
      %v4554 = vsel %vm568, %v4500, 0.0
      %v4555 = vsel %vm569, %v4501, 0.0
      %v4556 = vsel %vm570, %v4502, 0.0
      %v4557 = vsel %vm571, %v4503, 0.0
      %v4558 = vsel %vm572, %v4504, 0.0
      %v4559 = vsel %vm573, %v4505, 0.0
      %v4560 = vsel %vm574, %v4506, 0.0
      %v4561 = vsel %vm575, %v4507, 0.0
      %v4562 = vsel %vm576, %v4508, 0.0
      %v4563 = vsel %vm577, %v4509, 0.0
      %v4564 = vsel %vm578, %v4510, 0.0
      %v4565 = vsel %vm579, %v4511, 0.0
      %v4566 = vsel %vm580, %v4512, 0.0
      %v4567 = vsel %vm581, %v4513, 0.0
      %v4568 = vsel %vm582, %v4514, 0.0
      %v4569 = vsel %vm583, %v4515, 0.0
      %v4570 = vsel %vm584, %v4516, 0.0
      %v4571 = vsel %vm585, %v4517, 0.0
      %v4572 = vsel %vm586, %v4518, 0.0
      %v4573 = vsel %vm587, %v4519, 0.0
      %v4574 = vsel %vm588, %v4520, 0.0
      %v4575 = vsel %vm589, %v4521, 0.0
      %v4576 = vsel %vm590, %v4522, 0.0
      %v4577 = vsel %vm591, %v4523, 0.0
      %v4578 = vsel %vm592, %v4524, 0.0
      %v4579 = vsel %vm593, %v4525, 0.0
      %v4580 = vsel %vm594, %v4526, 0.0
      %v4581 = vadd.f32 %v4527, %v4528
      %v4582 = vadd.f32 %v4581, %v4529
      %v4583 = vadd.f32 %v4582, %v4530
      %v4584 = vadd.f32 %v4583, %v4531
      %v4585 = vadd.f32 %v4584, %v4532
      %v4586 = vadd.f32 %v4585, %v4533
      %v4587 = vadd.f32 %v4586, %v4534
      %v4588 = vadd.f32 %v4587, %v4535
      %v4589 = vadd.f32 %v4588, %v4536
      %v4590 = vadd.f32 %v4589, %v4537
      %v4591 = vadd.f32 %v4590, %v4538
      %v4592 = vadd.f32 %v4591, %v4539
      %v4593 = vadd.f32 %v4592, %v4540
      %v4594 = vadd.f32 %v4593, %v4541
      %v4595 = vadd.f32 %v4594, %v4542
      %v4596 = vadd.f32 %v4595, %v4543
      %v4597 = vadd.f32 %v4596, %v4544
      %v4598 = vadd.f32 %v4597, %v4545
      %v4599 = vadd.f32 %v4598, %v4546
      %v4600 = vadd.f32 %v4599, %v4547
      %v4601 = vadd.f32 %v4600, %v4548
      %v4602 = vadd.f32 %v4601, %v4549
      %v4603 = vadd.f32 %v4602, %v4550
      %v4604 = vadd.f32 %v4603, %v4551
      %v4605 = vadd.f32 %v4604, %v4552
      %v4606 = vadd.f32 %v4605, %v4553
      %v4607 = vadd.f32 %v4606, %v4554
      %v4608 = vadd.f32 %v4607, %v4555
      %v4609 = vadd.f32 %v4608, %v4556
      %v4610 = vadd.f32 %v4609, %v4557
      %v4611 = vadd.f32 %v4610, %v4558
      %v4612 = vadd.f32 %v4611, %v4559
      %v4613 = vadd.f32 %v4612, %v4560
      %v4614 = vadd.f32 %v4613, %v4561
      %v4615 = vadd.f32 %v4614, %v4562
      %v4616 = vadd.f32 %v4615, %v4563
      %v4617 = vadd.f32 %v4616, %v4564
      %v4618 = vadd.f32 %v4617, %v4565
      %v4619 = vadd.f32 %v4618, %v4566
      %v4620 = vadd.f32 %v4619, %v4567
      %v4621 = vadd.f32 %v4620, %v4568
      %v4622 = vadd.f32 %v4621, %v4569
      %v4623 = vadd.f32 %v4622, %v4570
      %v4624 = vadd.f32 %v4623, %v4571
      %v4625 = vadd.f32 %v4624, %v4572
      %v4626 = vadd.f32 %v4625, %v4573
      %v4627 = vadd.f32 %v4626, %v4574
      %v4628 = vadd.f32 %v4627, %v4575
      %v4629 = vadd.f32 %v4628, %v4576
      %v4630 = vadd.f32 %v4629, %v4577
      %v4631 = vadd.f32 %v4630, %v4578
      %v4632 = vadd.f32 %v4631, %v4579
      %v4633 = vadd.f32 %v4632, %v4580
      %v4634 = vrot.slane %v4633, 4
      %v4635 = vadd.f32 %v4633, %v4634
      %v4636 = vrot.slane %v4635, 2
      %v4637 = vadd.f32 %v4635, %v4636
      %v4638 = vrot.slane %v4637, 1
      %v4639 = vadd.f32 %v4637, %v4638
      %4640 = vst [vmem:[%s262] sm:$0x1] %v4639
      %v4641 = vmul.f32 %v4527, %v4527
      %v4642 = vmul.f32 %v4528, %v4528
      %v4643 = vmul.f32 %v4529, %v4529
      %v4644 = vmul.f32 %v4530, %v4530
      %v4645 = vmul.f32 %v4531, %v4531
      %v4646 = vmul.f32 %v4532, %v4532
      %v4647 = vmul.f32 %v4533, %v4533
      %v4648 = vmul.f32 %v4534, %v4534
      %v4649 = vmul.f32 %v4535, %v4535
      %v4650 = vmul.f32 %v4536, %v4536
      %v4651 = vmul.f32 %v4537, %v4537
      %v4652 = vmul.f32 %v4538, %v4538
      %v4653 = vmul.f32 %v4539, %v4539
      %v4654 = vmul.f32 %v4540, %v4540
      %v4655 = vmul.f32 %v4541, %v4541
      %v4656 = vmul.f32 %v4542, %v4542
      %v4657 = vmul.f32 %v4543, %v4543
      %v4658 = vmul.f32 %v4544, %v4544
      %v4659 = vmul.f32 %v4545, %v4545
      %v4660 = vmul.f32 %v4546, %v4546
      %v4661 = vmul.f32 %v4547, %v4547
      %v4662 = vmul.f32 %v4548, %v4548
      %v4663 = vmul.f32 %v4549, %v4549
      %v4664 = vmul.f32 %v4550, %v4550
      %v4665 = vmul.f32 %v4551, %v4551
      %v4666 = vmul.f32 %v4552, %v4552
      %v4667 = vmul.f32 %v4553, %v4553
      %v4668 = vmul.f32 %v4554, %v4554
      %v4669 = vmul.f32 %v4555, %v4555
      %v4670 = vmul.f32 %v4556, %v4556
      %v4671 = vmul.f32 %v4557, %v4557
      %v4672 = vmul.f32 %v4558, %v4558
      %v4673 = vmul.f32 %v4559, %v4559
      %v4674 = vmul.f32 %v4560, %v4560
      %v4675 = vmul.f32 %v4561, %v4561
      %v4676 = vmul.f32 %v4562, %v4562
      %v4677 = vmul.f32 %v4563, %v4563
      %v4678 = vmul.f32 %v4564, %v4564
      %v4679 = vmul.f32 %v4565, %v4565
      %v4680 = vmul.f32 %v4566, %v4566
      %v4681 = vmul.f32 %v4567, %v4567
      %v4682 = vmul.f32 %v4568, %v4568
      %v4683 = vmul.f32 %v4569, %v4569
      %v4684 = vmul.f32 %v4570, %v4570
      %v4685 = vmul.f32 %v4571, %v4571
      %v4686 = vmul.f32 %v4572, %v4572
      %v4687 = vmul.f32 %v4573, %v4573
      %v4688 = vmul.f32 %v4574, %v4574
      %v4689 = vmul.f32 %v4575, %v4575
      %v4690 = vmul.f32 %v4576, %v4576
      %v4691 = vmul.f32 %v4577, %v4577
      %v4692 = vmul.f32 %v4578, %v4578
      %v4693 = vmul.f32 %v4579, %v4579
      %v4694 = vmul.f32 %v4580, %v4580
      %v4695 = vadd.f32 %v4641, %v4642
      %v4696 = vadd.f32 %v4695, %v4643
      %v4697 = vadd.f32 %v4696, %v4644
      %v4698 = vadd.f32 %v4697, %v4645
      %v4699 = vadd.f32 %v4698, %v4646
      %v4700 = vadd.f32 %v4699, %v4647
      %v4701 = vadd.f32 %v4700, %v4648
      %v4702 = vadd.f32 %v4701, %v4649
      %v4703 = vadd.f32 %v4702, %v4650
      %v4704 = vadd.f32 %v4703, %v4651
      %v4705 = vadd.f32 %v4704, %v4652
      %v4706 = vadd.f32 %v4705, %v4653
      %v4707 = vadd.f32 %v4706, %v4654
      %v4708 = vadd.f32 %v4707, %v4655
      %v4709 = vadd.f32 %v4708, %v4656
      %v4710 = vadd.f32 %v4709, %v4657
      %v4711 = vadd.f32 %v4710, %v4658
      %v4712 = vadd.f32 %v4711, %v4659
      %v4713 = vadd.f32 %v4712, %v4660
      %v4714 = vadd.f32 %v4713, %v4661
      %v4715 = vadd.f32 %v4714, %v4662
      %v4716 = vadd.f32 %v4715, %v4663
      %v4717 = vadd.f32 %v4716, %v4664
      %v4718 = vadd.f32 %v4717, %v4665
      %v4719 = vadd.f32 %v4718, %v4666
      %v4720 = vadd.f32 %v4719, %v4667
      %v4721 = vadd.f32 %v4720, %v4668
      %v4722 = vadd.f32 %v4721, %v4669
      %v4723 = vadd.f32 %v4722, %v4670
      %v4724 = vadd.f32 %v4723, %v4671
      %v4725 = vadd.f32 %v4724, %v4672
      %v4726 = vadd.f32 %v4725, %v4673
      %v4727 = vadd.f32 %v4726, %v4674
      %v4728 = vadd.f32 %v4727, %v4675
      %v4729 = vadd.f32 %v4728, %v4676
      %v4730 = vadd.f32 %v4729, %v4677
      %v4731 = vadd.f32 %v4730, %v4678
      %v4732 = vadd.f32 %v4731, %v4679
      %v4733 = vadd.f32 %v4732, %v4680
      %v4734 = vadd.f32 %v4733, %v4681
      %v4735 = vadd.f32 %v4734, %v4682
      %v4736 = vadd.f32 %v4735, %v4683
      %v4737 = vadd.f32 %v4736, %v4684
      %v4738 = vadd.f32 %v4737, %v4685
      %v4739 = vadd.f32 %v4738, %v4686
      %v4740 = vadd.f32 %v4739, %v4687
      %v4741 = vadd.f32 %v4740, %v4688
      %v4742 = vadd.f32 %v4741, %v4689
      %v4743 = vadd.f32 %v4742, %v4690
      %v4744 = vadd.f32 %v4743, %v4691
      %v4745 = vadd.f32 %v4744, %v4692
      %v4746 = vadd.f32 %v4745, %v4693
      %v4747 = vadd.f32 %v4746, %v4694
      %v4748 = vrot.slane %v4747, 4
      %v4749 = vadd.f32 %v4747, %v4748
      %v4750 = vrot.slane %v4749, 2
      %v4751 = vadd.f32 %v4749, %v4750
      %v4752 = vrot.slane %v4751, 1
      %v4753 = vadd.f32 %v4751, %v4752
      %4754 = vst [vmem:[%s262 + $0x1] sm:$0x1] %v4753
      %4755 = vst [vmem:[%s258] sm:$0xff] 0.0
      %4756 = vst [vmem:[%s258 + $0x8] sm:$0xff] 0.0
      %4757 = vst [vmem:[%s258 + $0x10] sm:$0xff] 0.0
      %4758 = vst [vmem:[%s258 + $0x18] sm:$0xff] 0.0
      %4759 = vst [vmem:[%s258 + $0x1d0] sm:$0xff] 0.0
      %4760 = vst [vmem:[%s258 + $0x1d8] sm:$0xff] 0.0
      %4761 = vst [vmem:[%s258 + $0x1e0] sm:$0xff] 0.0
      %4762 = vst [vmem:[%s258 + $0x1e8] sm:$0xff] 0.0
      %4763 = vst [vmem:[%s258 + $0x20] sm:$0xff] %v4473
      %4764 = vst [vmem:[%s258 + $0x28] sm:$0xff] %v4474
      %4765 = vst [vmem:[%s258 + $0x30] sm:$0xff] %v4475
      %4766 = vst [vmem:[%s258 + $0x38] sm:$0xff] %v4476
      %4767 = vst [vmem:[%s258 + $0x40] sm:$0xff] %v4477
      %4768 = vst [vmem:[%s258 + $0x48] sm:$0xff] %v4478
      %4769 = vst [vmem:[%s258 + $0x50] sm:$0xff] %v4479
      %4770 = vst [vmem:[%s258 + $0x58] sm:$0xff] %v4480
      %4771 = vst [vmem:[%s258 + $0x60] sm:$0xff] %v4481
      %4772 = vst [vmem:[%s258 + $0x68] sm:$0xff] %v4482
      %4773 = vst [vmem:[%s258 + $0x70] sm:$0xff] %v4483
      %4774 = vst [vmem:[%s258 + $0x78] sm:$0xff] %v4484
      %4775 = vst [vmem:[%s258 + $0x80] sm:$0xff] %v4485
      %4776 = vst [vmem:[%s258 + $0x88] sm:$0xff] %v4486
      %4777 = vst [vmem:[%s258 + $0x90] sm:$0xff] %v4487
      %4778 = vst [vmem:[%s258 + $0x98] sm:$0xff] %v4488
      %4779 = vst [vmem:[%s258 + $0xa0] sm:$0xff] %v4489
      %4780 = vst [vmem:[%s258 + $0xa8] sm:$0xff] %v4490
      %4781 = vst [vmem:[%s258 + $0xb0] sm:$0xff] %v4491
      %4782 = vst [vmem:[%s258 + $0xb8] sm:$0xff] %v4492
      %4783 = vst [vmem:[%s258 + $0xc0] sm:$0xff] %v4493
      %4784 = vst [vmem:[%s258 + $0xc8] sm:$0xff] %v4494
      %4785 = vst [vmem:[%s258 + $0xd0] sm:$0xff] %v4495
      %4786 = vst [vmem:[%s258 + $0xd8] sm:$0xff] %v4496
      %4787 = vst [vmem:[%s258 + $0xe0] sm:$0xff] %v4497
      %4788 = vst [vmem:[%s258 + $0xe8] sm:$0xff] %v4498
      %4789 = vst [vmem:[%s258 + $0xf0] sm:$0xff] %v4499
      %4790 = vst [vmem:[%s258 + $0xf8] sm:$0xff] %v4500
      %4791 = vst [vmem:[%s258 + $0x100] sm:$0xff] %v4501
      %4792 = vst [vmem:[%s258 + $0x108] sm:$0xff] %v4502
      %4793 = vst [vmem:[%s258 + $0x110] sm:$0xff] %v4503
      %4794 = vst [vmem:[%s258 + $0x118] sm:$0xff] %v4504
      %4795 = vst [vmem:[%s258 + $0x120] sm:$0xff] %v4505
      %4796 = vst [vmem:[%s258 + $0x128] sm:$0xff] %v4506
      %4797 = vst [vmem:[%s258 + $0x130] sm:$0xff] %v4507
      %4798 = vst [vmem:[%s258 + $0x138] sm:$0xff] %v4508
      %4799 = vst [vmem:[%s258 + $0x140] sm:$0xff] %v4509
      %4800 = vst [vmem:[%s258 + $0x148] sm:$0xff] %v4510
      %4801 = vst [vmem:[%s258 + $0x150] sm:$0xff] %v4511
      %4802 = vst [vmem:[%s258 + $0x158] sm:$0xff] %v4512
      %4803 = vst [vmem:[%s258 + $0x160] sm:$0xff] %v4513
      %4804 = vst [vmem:[%s258 + $0x168] sm:$0xff] %v4514
      %4805 = vst [vmem:[%s258 + $0x170] sm:$0xff] %v4515
      %4806 = vst [vmem:[%s258 + $0x178] sm:$0xff] %v4516
      %4807 = vst [vmem:[%s258 + $0x180] sm:$0xff] %v4517
      %4808 = vst [vmem:[%s258 + $0x188] sm:$0xff] %v4518
      %4809 = vst [vmem:[%s258 + $0x190] sm:$0xff] %v4519
      %4810 = vst [vmem:[%s258 + $0x198] sm:$0xff] %v4520
      %4811 = vst [vmem:[%s258 + $0x1a0] sm:$0xff] %v4521
      %4812 = vst [vmem:[%s258 + $0x1a8] sm:$0xff] %v4522
      %4813 = vst [vmem:[%s258 + $0x1b0] sm:$0xff] %v4523
      %4814 = vst [vmem:[%s258 + $0x1b8] sm:$0xff] %v4524
      %4815 = vst [vmem:[%s258 + $0x1c0] sm:$0xff] %v4525
      %4816 = vst [vmem:[%s258 + $0x1c8] sm:$0xff] %v4526
      %p4817 = scmp.lt.s32.totalorder %s18, 1
      %s4818 = scalar_select %p4817, %s18, 1
      %s4819 = smul.addr %s4818, 62
      %s4820 = smul.addr %s4819, 8
      %s4821 = scalar_lea.vmem %s5, %s4820
      %p4822 = scmp.lt.s32.totalorder %s18, 1
      %s4823 = scalar_select %p4822, %s18, 1
      %s4824 = smul.addr %s4823, 2
      %s4825 = scalar_lea.vmem %s6, %s4824
      // Predicated region
      $region41: #{residual_block.3} parent=39 // pred_check
        %p4826 = pneg %p146
      $region42: #{residual_block.3} parent=39 // pred_check_branch
        %4828 = sbr.rel (%p4826) target = $region44
      $region43: #{residual_block.3} parent=39 // pred_region
        _
      $region44: #{residual_block.3} parent=39 // pred_fallthru
        _
      // Predicated region
      $region45: #{residual_block.3} parent=39 // pred_check
        %p4829 = pneg %p172
      $region46: #{residual_block.3} parent=39 // pred_check_branch
        %4831 = sbr.rel (%p4829) target = $region48
      $region47: #{residual_block.3} parent=39 // pred_region
        _
      $region48: #{residual_block.3} parent=39 // pred_fallthru
        _
    $region40: #{residual_block.3} parent=5 // pred_fallthru
      _
    %p4832 = scmp.le.s32.totalorder 2, %s13
    // Predicated region
    $region49: #{residual_block.3} parent=5 // pred_check
      %p4833 = pneg %p4832
    $region50: #{residual_block.3} parent=5 // pred_check_branch
      %4835 = sbr.rel (%p4833) target = $region52
    $region51: #{residual_block.3} parent=5 // pred_region
      %s4836 = ssub.s32 %s13, 2
      // Predicated region
      $region53: #{residual_block.3} parent=51 // pred_check
        %p4837 = pneg %p152
      $region54: #{residual_block.3} parent=51 // pred_check_branch
        %4839 = sbr.rel (%p4837) target = $region56
      $region55: #{residual_block.3} parent=51 // pred_region
        %p4840 = scmp.lt.s32.totalorder %s19, 1
        %s4841 = scalar_select %p4840, %s19, 1
        %s4842 = smul.addr %s4841, 62
        %s4843 = smul.addr %s4842, 8
        %s4844 = scalar_lea.vmem %s5, %s4843
      $region56: #{residual_block.3} parent=51 // pred_fallthru
        _
      // Predicated region
      $region57: #{residual_block.3} parent=51 // pred_check
        %p4845 = pneg %p178
      $region58: #{residual_block.3} parent=51 // pred_check_branch
        %4847 = sbr.rel (%p4845) target = $region60
      $region59: #{residual_block.3} parent=51 // pred_region
        %p4848 = scmp.lt.s32.totalorder %s19, 1
        %s4849 = scalar_select %p4848, %s19, 1
        %s4850 = smul.addr %s4849, 2
        %s4851 = scalar_lea.vmem %s6, %s4850
      $region60: #{residual_block.3} parent=51 // pred_fallthru
        _
    $region52: #{residual_block.3} parent=5 // pred_fallthru
      _
  $region6: #{residual_block.3} parent=0 // loop_footer
    %s17 = sadd.s32 1, %s13
  $region7: #{residual_block.3} parent=0 // loop_footer_branch
    %12 = sbr.rel target = $region3
  $region8: #{residual_block.3} parent=0 // loop_exit
    _

</llo_original>
